<compile_context>
chip_gen: v7x
topology: tpu7x:2x2x1
jax: 0.10.0
libtpu: 0.0.40
codegen_flags: <defaults>
</compile_context>

<pallas_src>
import math
from functools import partial

import jax
import jax.numpy as jnp
from jax.experimental import pallas as pl
from jax.experimental.pallas import tpu as pltpu

BN_EPS = 1e-5
_TS_TARGET = 512      # spatial (lane) tile; multiple of 128
_SUBLANE = 16         # bf16 sublane granule (channel padding)


def _round_up(v, m):
    return ((v + m - 1) // m) * m


def _pick_spatial_tile(sp):
    """Largest power-of-two tile <= _TS_TARGET that still yields >=2 grid steps
    (v7x dual TensorCore), floored at 128 lanes."""
    ts = _TS_TARGET
    while ts > 128 and sp <= ts:
        ts //= 2
    return ts


# ----------------------------------------------------------------------------
# Pallas kernel: one spatial stripe of  (fused im2col) conv + BN bias + ReLU
# ----------------------------------------------------------------------------
def _conv_bn_relu_kernel(a_ref, w_ref, b_ref, o_ref, *, tap_starts):
    # a_ref: (Cin_p, width) bf16 haloed activation stripe (spatial on lanes)
    # w_ref: (taps, Cout_p, Cin_p) bf16, BN scale pre-folded
    # b_ref: (Cout_p, 1) f32 folded BN bias
    # o_ref: (Cout_p, TS) bf16
    cout_p, ts = o_ref.shape
    acc = jnp.zeros((cout_p, ts), jnp.float32)
    for t, s in enumerate(tap_starts):          # static unroll over the 9 taps
        acc = acc + jnp.dot(w_ref[t], a_ref[:, s:s + ts],
                            preferred_element_type=jnp.float32)
    y = acc + b_ref[...]                        # f32 epilogue (v5e-safe)
    o_ref[...] = jnp.maximum(y, 0.0).astype(o_ref.dtype)


# ----------------------------------------------------------------------------
# Fused conv + folded-BN + ReLU wrapper (channel-major activations)
# ----------------------------------------------------------------------------
def conv2d_bn_relu(x, w, scale, bias, dilation):
    """'same' 3x3 (dilated) conv + folded eval-BatchNorm + ReLU.

    x: (Cin, N, H, W) float (channel-major); w: (3,3,Cin,Cout) f32;
    scale/bias: (Cout,) f32.  Returns (Cout, N, H, W) bf16.
    """
    Cin, N, H, W = x.shape
    kh, kw, _, Cout = w.shape
    d = dilation
    p = d * (kh // 2)
    Hp, Wp = H + 2 * p, W + 2 * p
    Sp = N * Hp * Wp                                # flattened padded spatial

    Cin_p = _round_up(Cin, _SUBLANE)
    Cout_p = _round_up(Cout, _SUBLANE)

    TS = _pick_spatial_tile(Sp)
    Sp_out = _round_up(Sp, TS)
    n_tiles = Sp_out // TS
    halo = d * ((kh // 2) * Wp + (kw // 2))         # max |tap shift| in flat cols
    G = _round_up(max(halo, 1), 64)                 # lane-aligned halo guard
    width = TS + 2 * G                              # stripe width (mult of 128)

    # Channel-major, spatially zero-padded, flattened, guarded activation (bf16)
    a = jnp.pad(x.astype(jnp.bfloat16),
                ((0, Cin_p - Cin), (0, 0), (p, p), (p, p)))
    a = a.reshape(Cin_p, Sp)
    a = jnp.pad(a, ((0, 0), (G, G + Sp_out - Sp)))          # (Cin_p, Sp_out+2G)

    # Lightly-overlapping haloed stripes: stripe t covers flat columns
    # [t*TS - G, t*TS + TS + G) of the padded activation.
    stripes = jnp.stack([a[:, t * TS: t * TS + width] for t in range(n_tiles)],
                        axis=0)                              # (n_tiles, Cin_p, width)

    # BN scale folded into the weights (f32) -> (taps, Cout_p, Cin_p) bf16
    wf = w.astype(jnp.float32) * scale.astype(jnp.float32).reshape(1, 1, 1, Cout)
    wt = jnp.transpose(wf, (0, 1, 3, 2)).reshape(kh * kw, Cout, Cin)
    wt = jnp.pad(wt, ((0, 0), (0, Cout_p - Cout), (0, Cin_p - Cin)))
    wt = wt.astype(jnp.bfloat16)

    b2 = jnp.pad(bias.astype(jnp.float32), (0, Cout_p - Cout)).reshape(Cout_p, 1)

    # Tap (ky,kx) reads local stripe columns [G + shift, G + shift + TS).
    tap_starts = tuple(G + d * ((ky - kh // 2) * Wp + (kx - kw // 2))
                       for ky in range(kh) for kx in range(kw))

    out = pl.pallas_call(
        partial(_conv_bn_relu_kernel, tap_starts=tap_starts),
        out_shape=jax.ShapeDtypeStruct((Cout_p, Sp_out), jnp.bfloat16),
        grid=(n_tiles,),
        in_specs=[
            pl.BlockSpec((None, Cin_p, width), lambda i: (i, 0, 0)),   # stripes
            pl.BlockSpec((kh * kw, Cout_p, Cin_p), lambda i: (0, 0, 0)),  # weights
            pl.BlockSpec((Cout_p, 1), lambda i: (0, 0)),               # bias
        ],
        out_specs=pl.BlockSpec((Cout_p, TS), lambda i: (0, i)),
        compiler_params=pltpu.CompilerParams(
            dimension_semantics=("parallel",)),
    )(stripes, wt, b2)

    # Drop channel padding, the spatial tail tile and the conv halo.
    out = out[:Cout, :Sp].reshape(Cout, N, Hp, Wp)
    return out[:, :, p:p + H, p:p + W]


# ----------------------------------------------------------------------------
# Cheap glue ops (plain JAX), channel-major (C, N, H, W) layout
# ----------------------------------------------------------------------------
def maxpool2x2_ceil(x):
    """nn.MaxPool2d(2, stride=2, ceil_mode=True)."""
    C, N, H, W = x.shape
    Ho, Wo = -(-H // 2), -(-W // 2)
    ph, pw = Ho * 2 - H, Wo * 2 - W
    neg = jnp.array(-jnp.inf, x.dtype)
    xp = jnp.pad(x, ((0, 0), (0, 0), (0, ph), (0, pw)), constant_values=neg)
    return jax.lax.reduce_window(xp, neg, jax.lax.max,
                                 (1, 1, 2, 2), (1, 1, 2, 2), "VALID")


def upsample_like(src, tar):
    """F.upsample(src, size=tar.shape[2:], mode='bilinear')."""
    C, N = src.shape[:2]
    return jax.image.resize(src, (C, N, tar.shape[2], tar.shape[3]),
                            method="bilinear")


# ----------------------------------------------------------------------------
# Parameters (deterministic, synthetic) and eval-mode BN folding
# ----------------------------------------------------------------------------
class ParamGen:
    def __init__(self, seed=0):
        self.key = jax.random.PRNGKey(seed)

    def next(self):
        self.key, k = jax.random.split(self.key)
        return k

    def normal(self, shape, scale=1.0):
        return scale * jax.random.normal(self.next(), shape, jnp.float32)

    def uniform(self, shape):
        return jax.random.uniform(self.next(), shape, jnp.float32)


def init_convbn(pg, in_ch, out_ch, k=3):
    fan_in = in_ch * k * k
    return dict(
        w=pg.normal((k, k, in_ch, out_ch), 1.0 / math.sqrt(fan_in)),
        b=pg.normal((out_ch,), 0.01),
        gamma=1.0 + 0.1 * pg.normal((out_ch,)),
        beta=0.1 * pg.normal((out_ch,)),
        mean=0.01 * pg.normal((out_ch,)),
        var=1.0 + 0.1 * pg.uniform((out_ch,)),
    )


def _fold_bn(p):
    """Eval-mode BatchNorm2d folded into per-channel (scale, bias)."""
    inv = p["gamma"] * jax.lax.rsqrt(p["var"] + BN_EPS)
    return inv, p["beta"] + (p["b"] - p["mean"]) * inv


# ----------------------------------------------------------------------------
# RSU4
# ----------------------------------------------------------------------------
def init_rsu4(pg, in_ch=3, mid_ch=12, out_ch=3):
    return dict(
        rebnconvin=init_convbn(pg, in_ch, out_ch),
        rebnconv1=init_convbn(pg, out_ch, mid_ch),
        rebnconv2=init_convbn(pg, mid_ch, mid_ch),
        rebnconv3=init_convbn(pg, mid_ch, mid_ch),
        rebnconv4=init_convbn(pg, mid_ch, mid_ch),
        rebnconv3d=init_convbn(pg, mid_ch * 2, mid_ch),
        rebnconv2d=init_convbn(pg, mid_ch * 2, mid_ch),
        rebnconv1d=init_convbn(pg, mid_ch * 2, out_ch),
    )


def rsu4_forward(params, x, conv_fn):
    """x: (Cin, N, H, W) channel-major; conv_fn(x, w, scale, bias, dirate)."""
    def rebnconv(name, t, dirate):
        p = params[name]
        scale, bias = _fold_bn(p)
        return conv_fn(t, p["w"], scale, bias, dirate)

    hxin = rebnconv("rebnconvin", x, 1)
    hx1 = rebnconv("rebnconv1", hxin, 1)
    hx = maxpool2x2_ceil(hx1)
    hx2 = rebnconv("rebnconv2", hx, 1)
    hx = maxpool2x2_ceil(hx2)
    hx3 = rebnconv("rebnconv3", hx, 1)
    hx4 = rebnconv("rebnconv4", hx3, 2)
    hx3d = rebnconv("rebnconv3d", jnp.concatenate([hx4, hx3], axis=0), 1)
    hx3dup = upsample_like(hx3d, hx2)
    hx2d = rebnconv("rebnconv2d", jnp.concatenate([hx3dup, hx2], axis=0), 1)
    hx2dup = upsample_like(hx2d, hx1)
    hx1d = rebnconv("rebnconv1d", jnp.concatenate([hx2dup, hx1], axis=0), 1)
    return hx1d.astype(jnp.float32) + hxin.astype(jnp.float32)


def _conv_ref(x, w, scale, bias, dirate):
    """Pure-JAX f32 reference conv (used only for the correctness check)."""
    pad = dirate * (w.shape[0] // 2)
    xn = jnp.transpose(x, (1, 2, 3, 0)).astype(jnp.float32)      # (N,H,W,C)
    y = jax.lax.conv_general_dilated(
        xn, w.astype(jnp.float32), window_strides=(1, 1),
        padding=[(pad, pad), (pad, pad)], rhs_dilation=(dirate, dirate),
        dimension_numbers=("NHWC", "HWIO", "NHWC"))
    y = y * scale.reshape(1, 1, 1, -1) + bias.reshape(1, 1, 1, -1)
    y = jnp.maximum(y, 0.0)
    return jnp.transpose(y, (3, 0, 1, 2))                        # (C,N,H,W)


def rsu4_apply_nchw(params, x_nchw):
    x = jnp.transpose(x_nchw, (1, 0, 2, 3))       # NCHW -> channel-major CNHW
    y = rsu4_forward(params, x, conv2d_bn_relu)
    return jnp.transpose(y, (1, 0, 2, 3))         # CNHW -> NCHW


def rsu4_apply_nchw_ref(params, x_nchw):
    x = jnp.transpose(x_nchw, (1, 0, 2, 3))
    y = rsu4_forward(params, x, _conv_ref)
    return jnp.transpose(y, (1, 0, 2, 3))


# ----------------------------------------------------------------------------
if __name__ == "__main__":
    key = jax.random.PRNGKey(0)
    x = jax.random.normal(key, (2, 3, 32, 32), jnp.float32)      # NCHW input

    pg = ParamGen(seed=0)
    params = init_rsu4(pg, in_ch=3, mid_ch=12, out_ch=3)

    fwd = jax.jit(rsu4_apply_nchw)
    out = jax.block_until_ready(fwd(params, x))

    assert out.shape == (2, 3, 32, 32), out.shape
    assert bool(jnp.all(jnp.isfinite(out)))

    # Loose cross-check against a pure-JAX f32 reference (the Pallas path runs
    # the MXU in bf16 with bf16 activations, so allow a small relative error).
    ref = jax.block_until_ready(jax.jit(rsu4_apply_nchw_ref)(params, x))
    rel = float(jnp.linalg.norm((out - ref).ravel()) /
                (jnp.linalg.norm(ref.ravel()) + 1e-8))
    assert rel < 0.1, f"relative L2 error too large: {rel}"

    print("KERNEL_OK")
</pallas_src>

<mosaic_0001>
module attributes {stable_mosaic.version = 11 : i64} {
  func.func @_conv_bn_relu_kernel(%arg0: i32, %arg1: memref<1x16x640xbf16, #tpu.memory_space<vmem>>, %arg2: memref<9x16x16xbf16, #tpu.memory_space<vmem>>, %arg3: memref<16x1xf32, #tpu.memory_space<vmem>>, %arg4: memref<16x512xbf16, #tpu.memory_space<vmem>>) attributes {dimension_semantics = [#tpu.dimension_semantics<parallel>], iteration_bounds = array<i64: 5>, scalar_prefetch = 0 : i64, scratch_operands = 0 : i64, tpu.core_type = #tpu.core_type<tc>, window_params = [{transform_indices = @transform_0, window_bounds = array<i64: 1, 16, 640>}, {pipeline_mode = #tpu.pipeline_mode<synchronous>, transform_indices = @transform_1, window_bounds = array<i64: 9, 16, 16>}, {pipeline_mode = #tpu.pipeline_mode<synchronous>, transform_indices = @transform_2, window_bounds = array<i64: 16, 1>}, {transform_indices = @transform_3, window_bounds = array<i64: 16, 512>}]} {
    %cst = arith.constant 0.000000e+00 : f32
    %0 = vector.broadcast %cst : f32 to vector<16x512xf32>
    %c0 = arith.constant 0 : index
    %c0_0 = arith.constant 0 : index
    %c0_1 = arith.constant 0 : index
    %1 = vector.load %arg2[%c0, %c0_0, %c0_1] : memref<9x16x16xbf16, #tpu.memory_space<vmem>>, vector<1x16x16xbf16>
    %2 = vector.shape_cast %1 : vector<1x16x16xbf16> to vector<16x16xbf16>
    %c0_2 = arith.constant 0 : index
    %c0_3 = arith.constant 0 : index
    %c29 = arith.constant 29 : index
    %3 = vector.load %arg1[%c0_2, %c0_3, %c29] : memref<1x16x640xbf16, #tpu.memory_space<vmem>>, vector<1x16x512xbf16>
    %4 = vector.shape_cast %3 : vector<1x16x512xbf16> to vector<16x512xbf16>
    %cst_4 = arith.constant dense<0.000000e+00> : vector<16x512xf32>
    %5 = tpu.matmul %2, %4, %cst_4 {dimension_numbers = #tpu.dot_dimension_numbers<[1], [0], [0], [1], [0, 0, 1, 1], [], []>} : vector<16x16xbf16>, vector<16x512xbf16>, vector<16x512xf32> -> vector<16x512xf32>
    %6 = arith.addf %0, %5 : vector<16x512xf32>
    %c1 = arith.constant 1 : index
    %c0_5 = arith.constant 0 : index
    %c0_6 = arith.constant 0 : index
    %7 = vector.load %arg2[%c1, %c0_5, %c0_6] : memref<9x16x16xbf16, #tpu.memory_space<vmem>>, vector<1x16x16xbf16>
    %8 = vector.shape_cast %7 : vector<1x16x16xbf16> to vector<16x16xbf16>
    %c0_7 = arith.constant 0 : index
    %c0_8 = arith.constant 0 : index
    %c30 = arith.constant 30 : index
    %9 = vector.load %arg1[%c0_7, %c0_8, %c30] : memref<1x16x640xbf16, #tpu.memory_space<vmem>>, vector<1x16x512xbf16>
    %10 = vector.shape_cast %9 : vector<1x16x512xbf16> to vector<16x512xbf16>
    %cst_9 = arith.constant dense<0.000000e+00> : vector<16x512xf32>
    %11 = tpu.matmul %8, %10, %cst_9 {dimension_numbers = #tpu.dot_dimension_numbers<[1], [0], [0], [1], [0, 0, 1, 1], [], []>} : vector<16x16xbf16>, vector<16x512xbf16>, vector<16x512xf32> -> vector<16x512xf32>
    %12 = arith.addf %6, %11 : vector<16x512xf32>
    %c2 = arith.constant 2 : index
    %c0_10 = arith.constant 0 : index
    %c0_11 = arith.constant 0 : index
    %13 = vector.load %arg2[%c2, %c0_10, %c0_11] : memref<9x16x16xbf16, #tpu.memory_space<vmem>>, vector<1x16x16xbf16>
    %14 = vector.shape_cast %13 : vector<1x16x16xbf16> to vector<16x16xbf16>
    %c0_12 = arith.constant 0 : index
    %c0_13 = arith.constant 0 : index
    %c31 = arith.constant 31 : index
    %15 = vector.load %arg1[%c0_12, %c0_13, %c31] : memref<1x16x640xbf16, #tpu.memory_space<vmem>>, vector<1x16x512xbf16>
    %16 = vector.shape_cast %15 : vector<1x16x512xbf16> to vector<16x512xbf16>
    %cst_14 = arith.constant dense<0.000000e+00> : vector<16x512xf32>
    %17 = tpu.matmul %14, %16, %cst_14 {dimension_numbers = #tpu.dot_dimension_numbers<[1], [0], [0], [1], [0, 0, 1, 1], [], []>} : vector<16x16xbf16>, vector<16x512xbf16>, vector<16x512xf32> -> vector<16x512xf32>
    %18 = arith.addf %12, %17 : vector<16x512xf32>
    %c3 = arith.constant 3 : index
    %c0_15 = arith.constant 0 : index
    %c0_16 = arith.constant 0 : index
    %19 = vector.load %arg2[%c3, %c0_15, %c0_16] : memref<9x16x16xbf16, #tpu.memory_space<vmem>>, vector<1x16x16xbf16>
    %20 = vector.shape_cast %19 : vector<1x16x16xbf16> to vector<16x16xbf16>
    %c0_17 = arith.constant 0 : index
    %c0_18 = arith.constant 0 : index
    %c63 = arith.constant 63 : index
    %21 = vector.load %arg1[%c0_17, %c0_18, %c63] : memref<1x16x640xbf16, #tpu.memory_space<vmem>>, vector<1x16x512xbf16>
    %22 = vector.shape_cast %21 : vector<1x16x512xbf16> to vector<16x512xbf16>
    %cst_19 = arith.constant dense<0.000000e+00> : vector<16x512xf32>
    %23 = tpu.matmul %20, %22, %cst_19 {dimension_numbers = #tpu.dot_dimension_numbers<[1], [0], [0], [1], [0, 0, 1, 1], [], []>} : vector<16x16xbf16>, vector<16x512xbf16>, vector<16x512xf32> -> vector<16x512xf32>
    %24 = arith.addf %18, %23 : vector<16x512xf32>
    %c4 = arith.constant 4 : index
    %c0_20 = arith.constant 0 : index
    %c0_21 = arith.constant 0 : index
    %25 = vector.load %arg2[%c4, %c0_20, %c0_21] : memref<9x16x16xbf16, #tpu.memory_space<vmem>>, vector<1x16x16xbf16>
    %26 = vector.shape_cast %25 : vector<1x16x16xbf16> to vector<16x16xbf16>
    %c0_22 = arith.constant 0 : index
    %c0_23 = arith.constant 0 : index
    %c64 = arith.constant 64 : index
    %27 = vector.load %arg1[%c0_22, %c0_23, %c64] : memref<1x16x640xbf16, #tpu.memory_space<vmem>>, vector<1x16x512xbf16>
    %28 = vector.shape_cast %27 : vector<1x16x512xbf16> to vector<16x512xbf16>
    %cst_24 = arith.constant dense<0.000000e+00> : vector<16x512xf32>
    %29 = tpu.matmul %26, %28, %cst_24 {dimension_numbers = #tpu.dot_dimension_numbers<[1], [0], [0], [1], [0, 0, 1, 1], [], []>} : vector<16x16xbf16>, vector<16x512xbf16>, vector<16x512xf32> -> vector<16x512xf32>
    %30 = arith.addf %24, %29 : vector<16x512xf32>
    %c5 = arith.constant 5 : index
    %c0_25 = arith.constant 0 : index
    %c0_26 = arith.constant 0 : index
    %31 = vector.load %arg2[%c5, %c0_25, %c0_26] : memref<9x16x16xbf16, #tpu.memory_space<vmem>>, vector<1x16x16xbf16>
    %32 = vector.shape_cast %31 : vector<1x16x16xbf16> to vector<16x16xbf16>
    %c0_27 = arith.constant 0 : index
    %c0_28 = arith.constant 0 : index
    %c65 = arith.constant 65 : index
    %33 = vector.load %arg1[%c0_27, %c0_28, %c65] : memref<1x16x640xbf16, #tpu.memory_space<vmem>>, vector<1x16x512xbf16>
    %34 = vector.shape_cast %33 : vector<1x16x512xbf16> to vector<16x512xbf16>
    %cst_29 = arith.constant dense<0.000000e+00> : vector<16x512xf32>
    %35 = tpu.matmul %32, %34, %cst_29 {dimension_numbers = #tpu.dot_dimension_numbers<[1], [0], [0], [1], [0, 0, 1, 1], [], []>} : vector<16x16xbf16>, vector<16x512xbf16>, vector<16x512xf32> -> vector<16x512xf32>
    %36 = arith.addf %30, %35 : vector<16x512xf32>
    %c6 = arith.constant 6 : index
    %c0_30 = arith.constant 0 : index
    %c0_31 = arith.constant 0 : index
    %37 = vector.load %arg2[%c6, %c0_30, %c0_31] : memref<9x16x16xbf16, #tpu.memory_space<vmem>>, vector<1x16x16xbf16>
    %38 = vector.shape_cast %37 : vector<1x16x16xbf16> to vector<16x16xbf16>
    %c0_32 = arith.constant 0 : index
    %c0_33 = arith.constant 0 : index
    %c97 = arith.constant 97 : index
    %39 = vector.load %arg1[%c0_32, %c0_33, %c97] : memref<1x16x640xbf16, #tpu.memory_space<vmem>>, vector<1x16x512xbf16>
    %40 = vector.shape_cast %39 : vector<1x16x512xbf16> to vector<16x512xbf16>
    %cst_34 = arith.constant dense<0.000000e+00> : vector<16x512xf32>
    %41 = tpu.matmul %38, %40, %cst_34 {dimension_numbers = #tpu.dot_dimension_numbers<[1], [0], [0], [1], [0, 0, 1, 1], [], []>} : vector<16x16xbf16>, vector<16x512xbf16>, vector<16x512xf32> -> vector<16x512xf32>
    %42 = arith.addf %36, %41 : vector<16x512xf32>
    %c7 = arith.constant 7 : index
    %c0_35 = arith.constant 0 : index
    %c0_36 = arith.constant 0 : index
    %43 = vector.load %arg2[%c7, %c0_35, %c0_36] : memref<9x16x16xbf16, #tpu.memory_space<vmem>>, vector<1x16x16xbf16>
    %44 = vector.shape_cast %43 : vector<1x16x16xbf16> to vector<16x16xbf16>
    %c0_37 = arith.constant 0 : index
    %c0_38 = arith.constant 0 : index
    %c98 = arith.constant 98 : index
    %45 = vector.load %arg1[%c0_37, %c0_38, %c98] : memref<1x16x640xbf16, #tpu.memory_space<vmem>>, vector<1x16x512xbf16>
    %46 = vector.shape_cast %45 : vector<1x16x512xbf16> to vector<16x512xbf16>
    %cst_39 = arith.constant dense<0.000000e+00> : vector<16x512xf32>
    %47 = tpu.matmul %44, %46, %cst_39 {dimension_numbers = #tpu.dot_dimension_numbers<[1], [0], [0], [1], [0, 0, 1, 1], [], []>} : vector<16x16xbf16>, vector<16x512xbf16>, vector<16x512xf32> -> vector<16x512xf32>
    %48 = arith.addf %42, %47 : vector<16x512xf32>
    %c8 = arith.constant 8 : index
    %c0_40 = arith.constant 0 : index
    %c0_41 = arith.constant 0 : index
    %49 = vector.load %arg2[%c8, %c0_40, %c0_41] : memref<9x16x16xbf16, #tpu.memory_space<vmem>>, vector<1x16x16xbf16>
    %50 = vector.shape_cast %49 : vector<1x16x16xbf16> to vector<16x16xbf16>
    %c0_42 = arith.constant 0 : index
    %c0_43 = arith.constant 0 : index
    %c99 = arith.constant 99 : index
    %51 = vector.load %arg1[%c0_42, %c0_43, %c99] : memref<1x16x640xbf16, #tpu.memory_space<vmem>>, vector<1x16x512xbf16>
    %52 = vector.shape_cast %51 : vector<1x16x512xbf16> to vector<16x512xbf16>
    %cst_44 = arith.constant dense<0.000000e+00> : vector<16x512xf32>
    %53 = tpu.matmul %50, %52, %cst_44 {dimension_numbers = #tpu.dot_dimension_numbers<[1], [0], [0], [1], [0, 0, 1, 1], [], []>} : vector<16x16xbf16>, vector<16x512xbf16>, vector<16x512xf32> -> vector<16x512xf32>
    %54 = arith.addf %48, %53 : vector<16x512xf32>
    %c0_45 = arith.constant 0 : index
    %c0_46 = arith.constant 0 : index
    %55 = vector.load %arg3[%c0_45, %c0_46] : memref<16x1xf32, #tpu.memory_space<vmem>>, vector<16x1xf32>
    %56 = vector.broadcast %55 : vector<16x1xf32> to vector<16x512xf32>
    %57 = arith.addf %54, %56 : vector<16x512xf32>
    %cst_47 = arith.constant 0.000000e+00 : f32
    %58 = vector.broadcast %cst_47 : f32 to vector<16x512xf32>
    %59 = arith.maximumf %57, %58 : vector<16x512xf32>
    %60 = arith.truncf %59 : vector<16x512xf32> to vector<16x512xbf16>
    %c0_48 = arith.constant 0 : index
    %c0_49 = arith.constant 0 : index
    %61 = vector.load %arg4[%c0_48, %c0_49] : memref<16x512xbf16, #tpu.memory_space<vmem>>, vector<16x512xbf16>
    tpu.vector_store %arg4[%c0_48, %c0_49], %60 {strides = array<i32>} : memref<16x512xbf16, #tpu.memory_space<vmem>>, vector<16x512xbf16>,
    return
  }
  func.func @transform_0(%arg0: i32) -> (i32, i32, i32) {
    %c0_i32 = arith.constant 0 : i32
    %c0_i32_0 = arith.constant 0 : i32
    %c0_i32_1 = arith.constant 0 : i32
    return %arg0, %c0_i32, %c0_i32_0 : i32, i32, i32
  }
  func.func @transform_1(%arg0: i32) -> (i32, i32, i32) {
    %c0_i32 = arith.constant 0 : i32
    %c0_i32_0 = arith.constant 0 : i32
    %c0_i32_1 = arith.constant 0 : i32
    %c0_i32_2 = arith.constant 0 : i32
    return %c0_i32, %c0_i32_0, %c0_i32_1 : i32, i32, i32
  }
  func.func @transform_2(%arg0: i32) -> (i32, i32) {
    %c0_i32 = arith.constant 0 : i32
    %c0_i32_0 = arith.constant 0 : i32
    %c0_i32_1 = arith.constant 0 : i32
    return %c0_i32, %c0_i32_0 : i32, i32
  }
  func.func @transform_3(%arg0: i32) -> (i32, i32) {
    %c0_i32 = arith.constant 0 : i32
    %c0_i32_0 = arith.constant 0 : i32
    return %c0_i32, %arg0 : i32, i32
  }
}

module attributes {stable_mosaic.version = 11 : i64} {
  func.func @_conv_bn_relu_kernel(%arg0: i32, %arg1: memref<1x16x640xbf16, #tpu.memory_space<vmem>>, %arg2: memref<9x16x16xbf16, #tpu.memory_space<vmem>>, %arg3: memref<16x1xf32, #tpu.memory_space<vmem>>, %arg4: memref<16x512xbf16, #tpu.memory_space<vmem>>) attributes {dimension_semantics = [#tpu.dimension_semantics<parallel>], iteration_bounds = array<i64: 2>, scalar_prefetch = 0 : i64, scratch_operands = 0 : i64, tpu.core_type = #tpu.core_type<tc>, window_params = [{transform_indices = @transform_0, window_bounds = array<i64: 1, 16, 640>}, {pipeline_mode = #tpu.pipeline_mode<synchronous>, transform_indices = @transform_1, window_bounds = array<i64: 9, 16, 16>}, {pipeline_mode = #tpu.pipeline_mode<synchronous>, transform_indices = @transform_2, window_bounds = array<i64: 16, 1>}, {transform_indices = @transform_3, window_bounds = array<i64: 16, 512>}]} {
    %cst = arith.constant 0.000000e+00 : f32
    %0 = vector.broadcast %cst : f32 to vector<16x512xf32>
    %c0 = arith.constant 0 : index
    %c0_0 = arith.constant 0 : index
    %c0_1 = arith.constant 0 : index
    %1 = vector.load %arg2[%c0, %c0_0, %c0_1] : memref<9x16x16xbf16, #tpu.memory_space<vmem>>, vector<1x16x16xbf16>
    %2 = vector.shape_cast %1 : vector<1x16x16xbf16> to vector<16x16xbf16>
    %c0_2 = arith.constant 0 : index
    %c0_3 = arith.constant 0 : index
    %c45 = arith.constant 45 : index
    %3 = vector.load %arg1[%c0_2, %c0_3, %c45] : memref<1x16x640xbf16, #tpu.memory_space<vmem>>, vector<1x16x512xbf16>
    %4 = vector.shape_cast %3 : vector<1x16x512xbf16> to vector<16x512xbf16>
    %cst_4 = arith.constant dense<0.000000e+00> : vector<16x512xf32>
    %5 = tpu.matmul %2, %4, %cst_4 {dimension_numbers = #tpu.dot_dimension_numbers<[1], [0], [0], [1], [0, 0, 1, 1], [], []>} : vector<16x16xbf16>, vector<16x512xbf16>, vector<16x512xf32> -> vector<16x512xf32>
    %6 = arith.addf %0, %5 : vector<16x512xf32>
    %c1 = arith.constant 1 : index
    %c0_5 = arith.constant 0 : index
    %c0_6 = arith.constant 0 : index
    %7 = vector.load %arg2[%c1, %c0_5, %c0_6] : memref<9x16x16xbf16, #tpu.memory_space<vmem>>, vector<1x16x16xbf16>
    %8 = vector.shape_cast %7 : vector<1x16x16xbf16> to vector<16x16xbf16>
    %c0_7 = arith.constant 0 : index
    %c0_8 = arith.constant 0 : index
    %c46 = arith.constant 46 : index
    %9 = vector.load %arg1[%c0_7, %c0_8, %c46] : memref<1x16x640xbf16, #tpu.memory_space<vmem>>, vector<1x16x512xbf16>
    %10 = vector.shape_cast %9 : vector<1x16x512xbf16> to vector<16x512xbf16>
    %cst_9 = arith.constant dense<0.000000e+00> : vector<16x512xf32>
    %11 = tpu.matmul %8, %10, %cst_9 {dimension_numbers = #tpu.dot_dimension_numbers<[1], [0], [0], [1], [0, 0, 1, 1], [], []>} : vector<16x16xbf16>, vector<16x512xbf16>, vector<16x512xf32> -> vector<16x512xf32>
    %12 = arith.addf %6, %11 : vector<16x512xf32>
    %c2 = arith.constant 2 : index
    %c0_10 = arith.constant 0 : index
    %c0_11 = arith.constant 0 : index
    %13 = vector.load %arg2[%c2, %c0_10, %c0_11] : memref<9x16x16xbf16, #tpu.memory_space<vmem>>, vector<1x16x16xbf16>
    %14 = vector.shape_cast %13 : vector<1x16x16xbf16> to vector<16x16xbf16>
    %c0_12 = arith.constant 0 : index
    %c0_13 = arith.constant 0 : index
    %c47 = arith.constant 47 : index
    %15 = vector.load %arg1[%c0_12, %c0_13, %c47] : memref<1x16x640xbf16, #tpu.memory_space<vmem>>, vector<1x16x512xbf16>
    %16 = vector.shape_cast %15 : vector<1x16x512xbf16> to vector<16x512xbf16>
    %cst_14 = arith.constant dense<0.000000e+00> : vector<16x512xf32>
    %17 = tpu.matmul %14, %16, %cst_14 {dimension_numbers = #tpu.dot_dimension_numbers<[1], [0], [0], [1], [0, 0, 1, 1], [], []>} : vector<16x16xbf16>, vector<16x512xbf16>, vector<16x512xf32> -> vector<16x512xf32>
    %18 = arith.addf %12, %17 : vector<16x512xf32>
    %c3 = arith.constant 3 : index
    %c0_15 = arith.constant 0 : index
    %c0_16 = arith.constant 0 : index
    %19 = vector.load %arg2[%c3, %c0_15, %c0_16] : memref<9x16x16xbf16, #tpu.memory_space<vmem>>, vector<1x16x16xbf16>
    %20 = vector.shape_cast %19 : vector<1x16x16xbf16> to vector<16x16xbf16>
    %c0_17 = arith.constant 0 : index
    %c0_18 = arith.constant 0 : index
    %c63 = arith.constant 63 : index
    %21 = vector.load %arg1[%c0_17, %c0_18, %c63] : memref<1x16x640xbf16, #tpu.memory_space<vmem>>, vector<1x16x512xbf16>
    %22 = vector.shape_cast %21 : vector<1x16x512xbf16> to vector<16x512xbf16>
    %cst_19 = arith.constant dense<0.000000e+00> : vector<16x512xf32>
    %23 = tpu.matmul %20, %22, %cst_19 {dimension_numbers = #tpu.dot_dimension_numbers<[1], [0], [0], [1], [0, 0, 1, 1], [], []>} : vector<16x16xbf16>, vector<16x512xbf16>, vector<16x512xf32> -> vector<16x512xf32>
    %24 = arith.addf %18, %23 : vector<16x512xf32>
    %c4 = arith.constant 4 : index
    %c0_20 = arith.constant 0 : index
    %c0_21 = arith.constant 0 : index
    %25 = vector.load %arg2[%c4, %c0_20, %c0_21] : memref<9x16x16xbf16, #tpu.memory_space<vmem>>, vector<1x16x16xbf16>
    %26 = vector.shape_cast %25 : vector<1x16x16xbf16> to vector<16x16xbf16>
    %c0_22 = arith.constant 0 : index
    %c0_23 = arith.constant 0 : index
    %c64 = arith.constant 64 : index
    %27 = vector.load %arg1[%c0_22, %c0_23, %c64] : memref<1x16x640xbf16, #tpu.memory_space<vmem>>, vector<1x16x512xbf16>
    %28 = vector.shape_cast %27 : vector<1x16x512xbf16> to vector<16x512xbf16>
    %cst_24 = arith.constant dense<0.000000e+00> : vector<16x512xf32>
    %29 = tpu.matmul %26, %28, %cst_24 {dimension_numbers = #tpu.dot_dimension_numbers<[1], [0], [0], [1], [0, 0, 1, 1], [], []>} : vector<16x16xbf16>, vector<16x512xbf16>, vector<16x512xf32> -> vector<16x512xf32>
    %30 = arith.addf %24, %29 : vector<16x512xf32>
    %c5 = arith.constant 5 : index
    %c0_25 = arith.constant 0 : index
    %c0_26 = arith.constant 0 : index
    %31 = vector.load %arg2[%c5, %c0_25, %c0_26] : memref<9x16x16xbf16, #tpu.memory_space<vmem>>, vector<1x16x16xbf16>
    %32 = vector.shape_cast %31 : vector<1x16x16xbf16> to vector<16x16xbf16>
    %c0_27 = arith.constant 0 : index
    %c0_28 = arith.constant 0 : index
    %c65 = arith.constant 65 : index
    %33 = vector.load %arg1[%c0_27, %c0_28, %c65] : memref<1x16x640xbf16, #tpu.memory_space<vmem>>, vector<1x16x512xbf16>
    %34 = vector.shape_cast %33 : vector<1x16x512xbf16> to vector<16x512xbf16>
    %cst_29 = arith.constant dense<0.000000e+00> : vector<16x512xf32>
    %35 = tpu.matmul %32, %34, %cst_29 {dimension_numbers = #tpu.dot_dimension_numbers<[1], [0], [0], [1], [0, 0, 1, 1], [], []>} : vector<16x16xbf16>, vector<16x512xbf16>, vector<16x512xf32> -> vector<16x512xf32>
    %36 = arith.addf %30, %35 : vector<16x512xf32>
    %c6 = arith.constant 6 : index
    %c0_30 = arith.constant 0 : index
    %c0_31 = arith.constant 0 : index
    %37 = vector.load %arg2[%c6, %c0_30, %c0_31] : memref<9x16x16xbf16, #tpu.memory_space<vmem>>, vector<1x16x16xbf16>
    %38 = vector.shape_cast %37 : vector<1x16x16xbf16> to vector<16x16xbf16>
    %c0_32 = arith.constant 0 : index
    %c0_33 = arith.constant 0 : index
    %c81 = arith.constant 81 : index
    %39 = vector.load %arg1[%c0_32, %c0_33, %c81] : memref<1x16x640xbf16, #tpu.memory_space<vmem>>, vector<1x16x512xbf16>
    %40 = vector.shape_cast %39 : vector<1x16x512xbf16> to vector<16x512xbf16>
    %cst_34 = arith.constant dense<0.000000e+00> : vector<16x512xf32>
    %41 = tpu.matmul %38, %40, %cst_34 {dimension_numbers = #tpu.dot_dimension_numbers<[1], [0], [0], [1], [0, 0, 1, 1], [], []>} : vector<16x16xbf16>, vector<16x512xbf16>, vector<16x512xf32> -> vector<16x512xf32>
    %42 = arith.addf %36, %41 : vector<16x512xf32>
    %c7 = arith.constant 7 : index
    %c0_35 = arith.constant 0 : index
    %c0_36 = arith.constant 0 : index
    %43 = vector.load %arg2[%c7, %c0_35, %c0_36] : memref<9x16x16xbf16, #tpu.memory_space<vmem>>, vector<1x16x16xbf16>
    %44 = vector.shape_cast %43 : vector<1x16x16xbf16> to vector<16x16xbf16>
    %c0_37 = arith.constant 0 : index
    %c0_38 = arith.constant 0 : index
    %c82 = arith.constant 82 : index
    %45 = vector.load %arg1[%c0_37, %c0_38, %c82] : memref<1x16x640xbf16, #tpu.memory_space<vmem>>, vector<1x16x512xbf16>
    %46 = vector.shape_cast %45 : vector<1x16x512xbf16> to vector<16x512xbf16>
    %cst_39 = arith.constant dense<0.000000e+00> : vector<16x512xf32>
    %47 = tpu.matmul %44, %46, %cst_39 {dimension_numbers = #tpu.dot_dimension_numbers<[1], [0], [0], [1], [0, 0, 1, 1], [], []>} : vector<16x16xbf16>, vector<16x512xbf16>, vector<16x512xf32> -> vector<16x512xf32>
    %48 = arith.addf %42, %47 : vector<16x512xf32>
    %c8 = arith.constant 8 : index
    %c0_40 = arith.constant 0 : index
    %c0_41 = arith.constant 0 : index
    %49 = vector.load %arg2[%c8, %c0_40, %c0_41] : memref<9x16x16xbf16, #tpu.memory_space<vmem>>, vector<1x16x16xbf16>
    %50 = vector.shape_cast %49 : vector<1x16x16xbf16> to vector<16x16xbf16>
    %c0_42 = arith.constant 0 : index
    %c0_43 = arith.constant 0 : index
    %c83 = arith.constant 83 : index
    %51 = vector.load %arg1[%c0_42, %c0_43, %c83] : memref<1x16x640xbf16, #tpu.memory_space<vmem>>, vector<1x16x512xbf16>
    %52 = vector.shape_cast %51 : vector<1x16x512xbf16> to vector<16x512xbf16>
    %cst_44 = arith.constant dense<0.000000e+00> : vector<16x512xf32>
    %53 = tpu.matmul %50, %52, %cst_44 {dimension_numbers = #tpu.dot_dimension_numbers<[1], [0], [0], [1], [0, 0, 1, 1], [], []>} : vector<16x16xbf16>, vector<16x512xbf16>, vector<16x512xf32> -> vector<16x512xf32>
    %54 = arith.addf %48, %53 : vector<16x512xf32>
    %c0_45 = arith.constant 0 : index
    %c0_46 = arith.constant 0 : index
    %55 = vector.load %arg3[%c0_45, %c0_46] : memref<16x1xf32, #tpu.memory_space<vmem>>, vector<16x1xf32>
    %56 = vector.broadcast %55 : vector<16x1xf32> to vector<16x512xf32>
    %57 = arith.addf %54, %56 : vector<16x512xf32>
    %cst_47 = arith.constant 0.000000e+00 : f32
    %58 = vector.broadcast %cst_47 : f32 to vector<16x512xf32>
    %59 = arith.maximumf %57, %58 : vector<16x512xf32>
    %60 = arith.truncf %59 : vector<16x512xf32> to vector<16x512xbf16>
    %c0_48 = arith.constant 0 : index
    %c0_49 = arith.constant 0 : index
    %61 = vector.load %arg4[%c0_48, %c0_49] : memref<16x512xbf16, #tpu.memory_space<vmem>>, vector<16x512xbf16>
    tpu.vector_store %arg4[%c0_48, %c0_49], %60 {strides = array<i32>} : memref<16x512xbf16, #tpu.memory_space<vmem>>, vector<16x512xbf16>,
    return
  }
  func.func @transform_0(%arg0: i32) -> (i32, i32, i32) {
    %c0_i32 = arith.constant 0 : i32
    %c0_i32_0 = arith.constant 0 : i32
    %c0_i32_1 = arith.constant 0 : i32
    return %arg0, %c0_i32, %c0_i32_0 : i32, i32, i32
  }
  func.func @transform_1(%arg0: i32) -> (i32, i32, i32) {
    %c0_i32 = arith.constant 0 : i32
    %c0_i32_0 = arith.constant 0 : i32
    %c0_i32_1 = arith.constant 0 : i32
    %c0_i32_2 = arith.constant 0 : i32
    return %c0_i32, %c0_i32_0, %c0_i32_1 : i32, i32, i32
  }
  func.func @transform_2(%arg0: i32) -> (i32, i32) {
    %c0_i32 = arith.constant 0 : i32
    %c0_i32_0 = arith.constant 0 : i32
    %c0_i32_1 = arith.constant 0 : i32
    return %c0_i32, %c0_i32_0 : i32, i32
  }
  func.func @transform_3(%arg0: i32) -> (i32, i32) {
    %c0_i32 = arith.constant 0 : i32
    %c0_i32_0 = arith.constant 0 : i32
    return %c0_i32, %arg0 : i32, i32
  }
}

module attributes {stable_mosaic.version = 11 : i64} {
  func.func @_conv_bn_relu_kernel(%arg0: i32, %arg1: memref<1x16x384xbf16, #tpu.memory_space<vmem>>, %arg2: memref<9x16x16xbf16, #tpu.memory_space<vmem>>, %arg3: memref<16x1xf32, #tpu.memory_space<vmem>>, %arg4: memref<16x256xbf16, #tpu.memory_space<vmem>>) attributes {dimension_semantics = [#tpu.dimension_semantics<parallel>], iteration_bounds = array<i64: 2>, scalar_prefetch = 0 : i64, scratch_operands = 0 : i64, tpu.core_type = #tpu.core_type<tc>, window_params = [{transform_indices = @transform_0, window_bounds = array<i64: 1, 16, 384>}, {pipeline_mode = #tpu.pipeline_mode<synchronous>, transform_indices = @transform_1, window_bounds = array<i64: 9, 16, 16>}, {pipeline_mode = #tpu.pipeline_mode<synchronous>, transform_indices = @transform_2, window_bounds = array<i64: 16, 1>}, {transform_indices = @transform_3, window_bounds = array<i64: 16, 256>}]} {
    %cst = arith.constant 0.000000e+00 : f32
    %0 = vector.broadcast %cst : f32 to vector<16x256xf32>
    %c0 = arith.constant 0 : index
    %c0_0 = arith.constant 0 : index
    %c0_1 = arith.constant 0 : index
    %1 = vector.load %arg2[%c0, %c0_0, %c0_1] : memref<9x16x16xbf16, #tpu.memory_space<vmem>>, vector<1x16x16xbf16>
    %2 = vector.shape_cast %1 : vector<1x16x16xbf16> to vector<16x16xbf16>
    %c0_2 = arith.constant 0 : index
    %c0_3 = arith.constant 0 : index
    %c38 = arith.constant 38 : index
    %3 = vector.load %arg1[%c0_2, %c0_3, %c38] : memref<1x16x384xbf16, #tpu.memory_space<vmem>>, vector<1x16x256xbf16>
    %4 = vector.shape_cast %3 : vector<1x16x256xbf16> to vector<16x256xbf16>
    %cst_4 = arith.constant dense<0.000000e+00> : vector<16x256xf32>
    %5 = tpu.matmul %2, %4, %cst_4 {dimension_numbers = #tpu.dot_dimension_numbers<[1], [0], [0], [1], [0, 0, 1, 1], [], []>} : vector<16x16xbf16>, vector<16x256xbf16>, vector<16x256xf32> -> vector<16x256xf32>
    %6 = arith.addf %0, %5 : vector<16x256xf32>
    %c1 = arith.constant 1 : index
    %c0_5 = arith.constant 0 : index
    %c0_6 = arith.constant 0 : index
    %7 = vector.load %arg2[%c1, %c0_5, %c0_6] : memref<9x16x16xbf16, #tpu.memory_space<vmem>>, vector<1x16x16xbf16>
    %8 = vector.shape_cast %7 : vector<1x16x16xbf16> to vector<16x16xbf16>
    %c0_7 = arith.constant 0 : index
    %c0_8 = arith.constant 0 : index
    %c40 = arith.constant 40 : index
    %9 = vector.load %arg1[%c0_7, %c0_8, %c40] : memref<1x16x384xbf16, #tpu.memory_space<vmem>>, vector<1x16x256xbf16>
    %10 = vector.shape_cast %9 : vector<1x16x256xbf16> to vector<16x256xbf16>
    %cst_9 = arith.constant dense<0.000000e+00> : vector<16x256xf32>
    %11 = tpu.matmul %8, %10, %cst_9 {dimension_numbers = #tpu.dot_dimension_numbers<[1], [0], [0], [1], [0, 0, 1, 1], [], []>} : vector<16x16xbf16>, vector<16x256xbf16>, vector<16x256xf32> -> vector<16x256xf32>
    %12 = arith.addf %6, %11 : vector<16x256xf32>
    %c2 = arith.constant 2 : index
    %c0_10 = arith.constant 0 : index
    %c0_11 = arith.constant 0 : index
    %13 = vector.load %arg2[%c2, %c0_10, %c0_11] : memref<9x16x16xbf16, #tpu.memory_space<vmem>>, vector<1x16x16xbf16>
    %14 = vector.shape_cast %13 : vector<1x16x16xbf16> to vector<16x16xbf16>
    %c0_12 = arith.constant 0 : index
    %c0_13 = arith.constant 0 : index
    %c42 = arith.constant 42 : index
    %15 = vector.load %arg1[%c0_12, %c0_13, %c42] : memref<1x16x384xbf16, #tpu.memory_space<vmem>>, vector<1x16x256xbf16>
    %16 = vector.shape_cast %15 : vector<1x16x256xbf16> to vector<16x256xbf16>
    %cst_14 = arith.constant dense<0.000000e+00> : vector<16x256xf32>
    %17 = tpu.matmul %14, %16, %cst_14 {dimension_numbers = #tpu.dot_dimension_numbers<[1], [0], [0], [1], [0, 0, 1, 1], [], []>} : vector<16x16xbf16>, vector<16x256xbf16>, vector<16x256xf32> -> vector<16x256xf32>
    %18 = arith.addf %12, %17 : vector<16x256xf32>
    %c3 = arith.constant 3 : index
    %c0_15 = arith.constant 0 : index
    %c0_16 = arith.constant 0 : index
    %19 = vector.load %arg2[%c3, %c0_15, %c0_16] : memref<9x16x16xbf16, #tpu.memory_space<vmem>>, vector<1x16x16xbf16>
    %20 = vector.shape_cast %19 : vector<1x16x16xbf16> to vector<16x16xbf16>
    %c0_17 = arith.constant 0 : index
    %c0_18 = arith.constant 0 : index
    %c62 = arith.constant 62 : index
    %21 = vector.load %arg1[%c0_17, %c0_18, %c62] : memref<1x16x384xbf16, #tpu.memory_space<vmem>>, vector<1x16x256xbf16>
    %22 = vector.shape_cast %21 : vector<1x16x256xbf16> to vector<16x256xbf16>
    %cst_19 = arith.constant dense<0.000000e+00> : vector<16x256xf32>
    %23 = tpu.matmul %20, %22, %cst_19 {dimension_numbers = #tpu.dot_dimension_numbers<[1], [0], [0], [1], [0, 0, 1, 1], [], []>} : vector<16x16xbf16>, vector<16x256xbf16>, vector<16x256xf32> -> vector<16x256xf32>
    %24 = arith.addf %18, %23 : vector<16x256xf32>
    %c4 = arith.constant 4 : index
    %c0_20 = arith.constant 0 : index
    %c0_21 = arith.constant 0 : index
    %25 = vector.load %arg2[%c4, %c0_20, %c0_21] : memref<9x16x16xbf16, #tpu.memory_space<vmem>>, vector<1x16x16xbf16>
    %26 = vector.shape_cast %25 : vector<1x16x16xbf16> to vector<16x16xbf16>
    %c0_22 = arith.constant 0 : index
    %c0_23 = arith.constant 0 : index
    %c64 = arith.constant 64 : index
    %27 = vector.load %arg1[%c0_22, %c0_23, %c64] : memref<1x16x384xbf16, #tpu.memory_space<vmem>>, vector<1x16x256xbf16>
    %28 = vector.shape_cast %27 : vector<1x16x256xbf16> to vector<16x256xbf16>
    %cst_24 = arith.constant dense<0.000000e+00> : vector<16x256xf32>
    %29 = tpu.matmul %26, %28, %cst_24 {dimension_numbers = #tpu.dot_dimension_numbers<[1], [0], [0], [1], [0, 0, 1, 1], [], []>} : vector<16x16xbf16>, vector<16x256xbf16>, vector<16x256xf32> -> vector<16x256xf32>
    %30 = arith.addf %24, %29 : vector<16x256xf32>
    %c5 = arith.constant 5 : index
    %c0_25 = arith.constant 0 : index
    %c0_26 = arith.constant 0 : index
    %31 = vector.load %arg2[%c5, %c0_25, %c0_26] : memref<9x16x16xbf16, #tpu.memory_space<vmem>>, vector<1x16x16xbf16>
    %32 = vector.shape_cast %31 : vector<1x16x16xbf16> to vector<16x16xbf16>
    %c0_27 = arith.constant 0 : index
    %c0_28 = arith.constant 0 : index
    %c66 = arith.constant 66 : index
    %33 = vector.load %arg1[%c0_27, %c0_28, %c66] : memref<1x16x384xbf16, #tpu.memory_space<vmem>>, vector<1x16x256xbf16>
    %34 = vector.shape_cast %33 : vector<1x16x256xbf16> to vector<16x256xbf16>
    %cst_29 = arith.constant dense<0.000000e+00> : vector<16x256xf32>
    %35 = tpu.matmul %32, %34, %cst_29 {dimension_numbers = #tpu.dot_dimension_numbers<[1], [0], [0], [1], [0, 0, 1, 1], [], []>} : vector<16x16xbf16>, vector<16x256xbf16>, vector<16x256xf32> -> vector<16x256xf32>
    %36 = arith.addf %30, %35 : vector<16x256xf32>
    %c6 = arith.constant 6 : index
    %c0_30 = arith.constant 0 : index
    %c0_31 = arith.constant 0 : index
    %37 = vector.load %arg2[%c6, %c0_30, %c0_31] : memref<9x16x16xbf16, #tpu.memory_space<vmem>>, vector<1x16x16xbf16>
    %38 = vector.shape_cast %37 : vector<1x16x16xbf16> to vector<16x16xbf16>
    %c0_32 = arith.constant 0 : index
    %c0_33 = arith.constant 0 : index
    %c86 = arith.constant 86 : index
    %39 = vector.load %arg1[%c0_32, %c0_33, %c86] : memref<1x16x384xbf16, #tpu.memory_space<vmem>>, vector<1x16x256xbf16>
    %40 = vector.shape_cast %39 : vector<1x16x256xbf16> to vector<16x256xbf16>
    %cst_34 = arith.constant dense<0.000000e+00> : vector<16x256xf32>
    %41 = tpu.matmul %38, %40, %cst_34 {dimension_numbers = #tpu.dot_dimension_numbers<[1], [0], [0], [1], [0, 0, 1, 1], [], []>} : vector<16x16xbf16>, vector<16x256xbf16>, vector<16x256xf32> -> vector<16x256xf32>
    %42 = arith.addf %36, %41 : vector<16x256xf32>
    %c7 = arith.constant 7 : index
    %c0_35 = arith.constant 0 : index
    %c0_36 = arith.constant 0 : index
    %43 = vector.load %arg2[%c7, %c0_35, %c0_36] : memref<9x16x16xbf16, #tpu.memory_space<vmem>>, vector<1x16x16xbf16>
    %44 = vector.shape_cast %43 : vector<1x16x16xbf16> to vector<16x16xbf16>
    %c0_37 = arith.constant 0 : index
    %c0_38 = arith.constant 0 : index
    %c88 = arith.constant 88 : index
    %45 = vector.load %arg1[%c0_37, %c0_38, %c88] : memref<1x16x384xbf16, #tpu.memory_space<vmem>>, vector<1x16x256xbf16>
    %46 = vector.shape_cast %45 : vector<1x16x256xbf16> to vector<16x256xbf16>
    %cst_39 = arith.constant dense<0.000000e+00> : vector<16x256xf32>
    %47 = tpu.matmul %44, %46, %cst_39 {dimension_numbers = #tpu.dot_dimension_numbers<[1], [0], [0], [1], [0, 0, 1, 1], [], []>} : vector<16x16xbf16>, vector<16x256xbf16>, vector<16x256xf32> -> vector<16x256xf32>
    %48 = arith.addf %42, %47 : vector<16x256xf32>
    %c8 = arith.constant 8 : index
    %c0_40 = arith.constant 0 : index
    %c0_41 = arith.constant 0 : index
    %49 = vector.load %arg2[%c8, %c0_40, %c0_41] : memref<9x16x16xbf16, #tpu.memory_space<vmem>>, vector<1x16x16xbf16>
    %50 = vector.shape_cast %49 : vector<1x16x16xbf16> to vector<16x16xbf16>
    %c0_42 = arith.constant 0 : index
    %c0_43 = arith.constant 0 : index
    %c90 = arith.constant 90 : index
    %51 = vector.load %arg1[%c0_42, %c0_43, %c90] : memref<1x16x384xbf16, #tpu.memory_space<vmem>>, vector<1x16x256xbf16>
    %52 = vector.shape_cast %51 : vector<1x16x256xbf16> to vector<16x256xbf16>
    %cst_44 = arith.constant dense<0.000000e+00> : vector<16x256xf32>
    %53 = tpu.matmul %50, %52, %cst_44 {dimension_numbers = #tpu.dot_dimension_numbers<[1], [0], [0], [1], [0, 0, 1, 1], [], []>} : vector<16x16xbf16>, vector<16x256xbf16>, vector<16x256xf32> -> vector<16x256xf32>
    %54 = arith.addf %48, %53 : vector<16x256xf32>
    %c0_45 = arith.constant 0 : index
    %c0_46 = arith.constant 0 : index
    %55 = vector.load %arg3[%c0_45, %c0_46] : memref<16x1xf32, #tpu.memory_space<vmem>>, vector<16x1xf32>
    %56 = vector.broadcast %55 : vector<16x1xf32> to vector<16x256xf32>
    %57 = arith.addf %54, %56 : vector<16x256xf32>
    %cst_47 = arith.constant 0.000000e+00 : f32
    %58 = vector.broadcast %cst_47 : f32 to vector<16x256xf32>
    %59 = arith.maximumf %57, %58 : vector<16x256xf32>
    %60 = arith.truncf %59 : vector<16x256xf32> to vector<16x256xbf16>
    %c0_48 = arith.constant 0 : index
    %c0_49 = arith.constant 0 : index
    %61 = vector.load %arg4[%c0_48, %c0_49] : memref<16x256xbf16, #tpu.memory_space<vmem>>, vector<16x256xbf16>
    tpu.vector_store %arg4[%c0_48, %c0_49], %60 {strides = array<i32>} : memref<16x256xbf16, #tpu.memory_space<vmem>>, vector<16x256xbf16>,
    return
  }
  func.func @transform_0(%arg0: i32) -> (i32, i32, i32) {
    %c0_i32 = arith.constant 0 : i32
    %c0_i32_0 = arith.constant 0 : i32
    %c0_i32_1 = arith.constant 0 : i32
    return %arg0, %c0_i32, %c0_i32_0 : i32, i32, i32
  }
  func.func @transform_1(%arg0: i32) -> (i32, i32, i32) {
    %c0_i32 = arith.constant 0 : i32
    %c0_i32_0 = arith.constant 0 : i32
    %c0_i32_1 = arith.constant 0 : i32
    %c0_i32_2 = arith.constant 0 : i32
    return %c0_i32, %c0_i32_0, %c0_i32_1 : i32, i32, i32
  }
  func.func @transform_2(%arg0: i32) -> (i32, i32) {
    %c0_i32 = arith.constant 0 : i32
    %c0_i32_0 = arith.constant 0 : i32
    %c0_i32_1 = arith.constant 0 : i32
    return %c0_i32, %c0_i32_0 : i32, i32
  }
  func.func @transform_3(%arg0: i32) -> (i32, i32) {
    %c0_i32 = arith.constant 0 : i32
    %c0_i32_0 = arith.constant 0 : i32
    return %c0_i32, %arg0 : i32, i32
  }
}

module attributes {stable_mosaic.version = 11 : i64} {
  func.func @_conv_bn_relu_kernel(%arg0: i32, %arg1: memref<1x16x256xbf16, #tpu.memory_space<vmem>>, %arg2: memref<9x16x16xbf16, #tpu.memory_space<vmem>>, %arg3: memref<16x1xf32, #tpu.memory_space<vmem>>, %arg4: memref<16x128xbf16, #tpu.memory_space<vmem>>) attributes {dimension_semantics = [#tpu.dimension_semantics<parallel>], iteration_bounds = array<i64: 2>, scalar_prefetch = 0 : i64, scratch_operands = 0 : i64, tpu.core_type = #tpu.core_type<tc>, window_params = [{transform_indices = @transform_0, window_bounds = array<i64: 1, 16, 256>}, {pipeline_mode = #tpu.pipeline_mode<synchronous>, transform_indices = @transform_1, window_bounds = array<i64: 9, 16, 16>}, {pipeline_mode = #tpu.pipeline_mode<synchronous>, transform_indices = @transform_2, window_bounds = array<i64: 16, 1>}, {transform_indices = @transform_3, window_bounds = array<i64: 16, 128>}]} {
    %cst = arith.constant 0.000000e+00 : f32
    %0 = vector.broadcast %cst : f32 to vector<16x128xf32>
    %c0 = arith.constant 0 : index
    %c0_0 = arith.constant 0 : index
    %c0_1 = arith.constant 0 : index
    %1 = vector.load %arg2[%c0, %c0_0, %c0_1] : memref<9x16x16xbf16, #tpu.memory_space<vmem>>, vector<1x16x16xbf16>
    %2 = vector.shape_cast %1 : vector<1x16x16xbf16> to vector<16x16xbf16>
    %c0_2 = arith.constant 0 : index
    %c0_3 = arith.constant 0 : index
    %c53 = arith.constant 53 : index
    %3 = vector.load %arg1[%c0_2, %c0_3, %c53] : memref<1x16x256xbf16, #tpu.memory_space<vmem>>, vector<1x16x128xbf16>
    %4 = vector.shape_cast %3 : vector<1x16x128xbf16> to vector<16x128xbf16>
    %cst_4 = arith.constant dense<0.000000e+00> : vector<16x128xf32>
    %5 = tpu.matmul %2, %4, %cst_4 {dimension_numbers = #tpu.dot_dimension_numbers<[1], [0], [0], [1], [0, 0, 1, 1], [], []>} : vector<16x16xbf16>, vector<16x128xbf16>, vector<16x128xf32> -> vector<16x128xf32>
    %6 = arith.addf %0, %5 : vector<16x128xf32>
    %c1 = arith.constant 1 : index
    %c0_5 = arith.constant 0 : index
    %c0_6 = arith.constant 0 : index
    %7 = vector.load %arg2[%c1, %c0_5, %c0_6] : memref<9x16x16xbf16, #tpu.memory_space<vmem>>, vector<1x16x16xbf16>
    %8 = vector.shape_cast %7 : vector<1x16x16xbf16> to vector<16x16xbf16>
    %c0_7 = arith.constant 0 : index
    %c0_8 = arith.constant 0 : index
    %c54 = arith.constant 54 : index
    %9 = vector.load %arg1[%c0_7, %c0_8, %c54] : memref<1x16x256xbf16, #tpu.memory_space<vmem>>, vector<1x16x128xbf16>
    %10 = vector.shape_cast %9 : vector<1x16x128xbf16> to vector<16x128xbf16>
    %cst_9 = arith.constant dense<0.000000e+00> : vector<16x128xf32>
    %11 = tpu.matmul %8, %10, %cst_9 {dimension_numbers = #tpu.dot_dimension_numbers<[1], [0], [0], [1], [0, 0, 1, 1], [], []>} : vector<16x16xbf16>, vector<16x128xbf16>, vector<16x128xf32> -> vector<16x128xf32>
    %12 = arith.addf %6, %11 : vector<16x128xf32>
    %c2 = arith.constant 2 : index
    %c0_10 = arith.constant 0 : index
    %c0_11 = arith.constant 0 : index
    %13 = vector.load %arg2[%c2, %c0_10, %c0_11] : memref<9x16x16xbf16, #tpu.memory_space<vmem>>, vector<1x16x16xbf16>
    %14 = vector.shape_cast %13 : vector<1x16x16xbf16> to vector<16x16xbf16>
    %c0_12 = arith.constant 0 : index
    %c0_13 = arith.constant 0 : index
    %c55 = arith.constant 55 : index
    %15 = vector.load %arg1[%c0_12, %c0_13, %c55] : memref<1x16x256xbf16, #tpu.memory_space<vmem>>, vector<1x16x128xbf16>
    %16 = vector.shape_cast %15 : vector<1x16x128xbf16> to vector<16x128xbf16>
    %cst_14 = arith.constant dense<0.000000e+00> : vector<16x128xf32>
    %17 = tpu.matmul %14, %16, %cst_14 {dimension_numbers = #tpu.dot_dimension_numbers<[1], [0], [0], [1], [0, 0, 1, 1], [], []>} : vector<16x16xbf16>, vector<16x128xbf16>, vector<16x128xf32> -> vector<16x128xf32>
    %18 = arith.addf %12, %17 : vector<16x128xf32>
    %c3 = arith.constant 3 : index
    %c0_15 = arith.constant 0 : index
    %c0_16 = arith.constant 0 : index
    %19 = vector.load %arg2[%c3, %c0_15, %c0_16] : memref<9x16x16xbf16, #tpu.memory_space<vmem>>, vector<1x16x16xbf16>
    %20 = vector.shape_cast %19 : vector<1x16x16xbf16> to vector<16x16xbf16>
    %c0_17 = arith.constant 0 : index
    %c0_18 = arith.constant 0 : index
    %c63 = arith.constant 63 : index
    %21 = vector.load %arg1[%c0_17, %c0_18, %c63] : memref<1x16x256xbf16, #tpu.memory_space<vmem>>, vector<1x16x128xbf16>
    %22 = vector.shape_cast %21 : vector<1x16x128xbf16> to vector<16x128xbf16>
    %cst_19 = arith.constant dense<0.000000e+00> : vector<16x128xf32>
    %23 = tpu.matmul %20, %22, %cst_19 {dimension_numbers = #tpu.dot_dimension_numbers<[1], [0], [0], [1], [0, 0, 1, 1], [], []>} : vector<16x16xbf16>, vector<16x128xbf16>, vector<16x128xf32> -> vector<16x128xf32>
    %24 = arith.addf %18, %23 : vector<16x128xf32>
    %c4 = arith.constant 4 : index
    %c0_20 = arith.constant 0 : index
    %c0_21 = arith.constant 0 : index
    %25 = vector.load %arg2[%c4, %c0_20, %c0_21] : memref<9x16x16xbf16, #tpu.memory_space<vmem>>, vector<1x16x16xbf16>
    %26 = vector.shape_cast %25 : vector<1x16x16xbf16> to vector<16x16xbf16>
    %c0_22 = arith.constant 0 : index
    %c0_23 = arith.constant 0 : index
    %c64 = arith.constant 64 : index
    %27 = vector.load %arg1[%c0_22, %c0_23, %c64] : memref<1x16x256xbf16, #tpu.memory_space<vmem>>, vector<1x16x128xbf16>
    %28 = vector.shape_cast %27 : vector<1x16x128xbf16> to vector<16x128xbf16>
    %cst_24 = arith.constant dense<0.000000e+00> : vector<16x128xf32>
    %29 = tpu.matmul %26, %28, %cst_24 {dimension_numbers = #tpu.dot_dimension_numbers<[1], [0], [0], [1], [0, 0, 1, 1], [], []>} : vector<16x16xbf16>, vector<16x128xbf16>, vector<16x128xf32> -> vector<16x128xf32>
    %30 = arith.addf %24, %29 : vector<16x128xf32>
    %c5 = arith.constant 5 : index
    %c0_25 = arith.constant 0 : index
    %c0_26 = arith.constant 0 : index
    %31 = vector.load %arg2[%c5, %c0_25, %c0_26] : memref<9x16x16xbf16, #tpu.memory_space<vmem>>, vector<1x16x16xbf16>
    %32 = vector.shape_cast %31 : vector<1x16x16xbf16> to vector<16x16xbf16>
    %c0_27 = arith.constant 0 : index
    %c0_28 = arith.constant 0 : index
    %c65 = arith.constant 65 : index
    %33 = vector.load %arg1[%c0_27, %c0_28, %c65] : memref<1x16x256xbf16, #tpu.memory_space<vmem>>, vector<1x16x128xbf16>
    %34 = vector.shape_cast %33 : vector<1x16x128xbf16> to vector<16x128xbf16>
    %cst_29 = arith.constant dense<0.000000e+00> : vector<16x128xf32>
    %35 = tpu.matmul %32, %34, %cst_29 {dimension_numbers = #tpu.dot_dimension_numbers<[1], [0], [0], [1], [0, 0, 1, 1], [], []>} : vector<16x16xbf16>, vector<16x128xbf16>, vector<16x128xf32> -> vector<16x128xf32>
    %36 = arith.addf %30, %35 : vector<16x128xf32>
    %c6 = arith.constant 6 : index
    %c0_30 = arith.constant 0 : index
    %c0_31 = arith.constant 0 : index
    %37 = vector.load %arg2[%c6, %c0_30, %c0_31] : memref<9x16x16xbf16, #tpu.memory_space<vmem>>, vector<1x16x16xbf16>
    %38 = vector.shape_cast %37 : vector<1x16x16xbf16> to vector<16x16xbf16>
    %c0_32 = arith.constant 0 : index
    %c0_33 = arith.constant 0 : index
    %c73 = arith.constant 73 : index
    %39 = vector.load %arg1[%c0_32, %c0_33, %c73] : memref<1x16x256xbf16, #tpu.memory_space<vmem>>, vector<1x16x128xbf16>
    %40 = vector.shape_cast %39 : vector<1x16x128xbf16> to vector<16x128xbf16>
    %cst_34 = arith.constant dense<0.000000e+00> : vector<16x128xf32>
    %41 = tpu.matmul %38, %40, %cst_34 {dimension_numbers = #tpu.dot_dimension_numbers<[1], [0], [0], [1], [0, 0, 1, 1], [], []>} : vector<16x16xbf16>, vector<16x128xbf16>, vector<16x128xf32> -> vector<16x128xf32>
    %42 = arith.addf %36, %41 : vector<16x128xf32>
    %c7 = arith.constant 7 : index
    %c0_35 = arith.constant 0 : index
    %c0_36 = arith.constant 0 : index
    %43 = vector.load %arg2[%c7, %c0_35, %c0_36] : memref<9x16x16xbf16, #tpu.memory_space<vmem>>, vector<1x16x16xbf16>
    %44 = vector.shape_cast %43 : vector<1x16x16xbf16> to vector<16x16xbf16>
    %c0_37 = arith.constant 0 : index
    %c0_38 = arith.constant 0 : index
    %c74 = arith.constant 74 : index
    %45 = vector.load %arg1[%c0_37, %c0_38, %c74] : memref<1x16x256xbf16, #tpu.memory_space<vmem>>, vector<1x16x128xbf16>
    %46 = vector.shape_cast %45 : vector<1x16x128xbf16> to vector<16x128xbf16>
    %cst_39 = arith.constant dense<0.000000e+00> : vector<16x128xf32>
    %47 = tpu.matmul %44, %46, %cst_39 {dimension_numbers = #tpu.dot_dimension_numbers<[1], [0], [0], [1], [0, 0, 1, 1], [], []>} : vector<16x16xbf16>, vector<16x128xbf16>, vector<16x128xf32> -> vector<16x128xf32>
    %48 = arith.addf %42, %47 : vector<16x128xf32>
    %c8 = arith.constant 8 : index
    %c0_40 = arith.constant 0 : index
    %c0_41 = arith.constant 0 : index
    %49 = vector.load %arg2[%c8, %c0_40, %c0_41] : memref<9x16x16xbf16, #tpu.memory_space<vmem>>, vector<1x16x16xbf16>
    %50 = vector.shape_cast %49 : vector<1x16x16xbf16> to vector<16x16xbf16>
    %c0_42 = arith.constant 0 : index
    %c0_43 = arith.constant 0 : index
    %c75 = arith.constant 75 : index
    %51 = vector.load %arg1[%c0_42, %c0_43, %c75] : memref<1x16x256xbf16, #tpu.memory_space<vmem>>, vector<1x16x128xbf16>
    %52 = vector.shape_cast %51 : vector<1x16x128xbf16> to vector<16x128xbf16>
    %cst_44 = arith.constant dense<0.000000e+00> : vector<16x128xf32>
    %53 = tpu.matmul %50, %52, %cst_44 {dimension_numbers = #tpu.dot_dimension_numbers<[1], [0], [0], [1], [0, 0, 1, 1], [], []>} : vector<16x16xbf16>, vector<16x128xbf16>, vector<16x128xf32> -> vector<16x128xf32>
    %54 = arith.addf %48, %53 : vector<16x128xf32>
    %c0_45 = arith.constant 0 : index
    %c0_46 = arith.constant 0 : index
    %55 = vector.load %arg3[%c0_45, %c0_46] : memref<16x1xf32, #tpu.memory_space<vmem>>, vector<16x1xf32>
    %56 = vector.broadcast %55 : vector<16x1xf32> to vector<16x128xf32>
    %57 = arith.addf %54, %56 : vector<16x128xf32>
    %cst_47 = arith.constant 0.000000e+00 : f32
    %58 = vector.broadcast %cst_47 : f32 to vector<16x128xf32>
    %59 = arith.maximumf %57, %58 : vector<16x128xf32>
    %60 = arith.truncf %59 : vector<16x128xf32> to vector<16x128xbf16>
    %c0_48 = arith.constant 0 : index
    %c0_49 = arith.constant 0 : index
    %61 = vector.load %arg4[%c0_48, %c0_49] : memref<16x128xbf16, #tpu.memory_space<vmem>>, vector<16x128xbf16>
    tpu.vector_store %arg4[%c0_48, %c0_49], %60 {strides = array<i32>} : memref<16x128xbf16, #tpu.memory_space<vmem>>, vector<16x128xbf16>,
    return
  }
  func.func @transform_0(%arg0: i32) -> (i32, i32, i32) {
    %c0_i32 = arith.constant 0 : i32
    %c0_i32_0 = arith.constant 0 : i32
    %c0_i32_1 = arith.constant 0 : i32
    return %arg0, %c0_i32, %c0_i32_0 : i32, i32, i32
  }
  func.func @transform_1(%arg0: i32) -> (i32, i32, i32) {
    %c0_i32 = arith.constant 0 : i32
    %c0_i32_0 = arith.constant 0 : i32
    %c0_i32_1 = arith.constant 0 : i32
    %c0_i32_2 = arith.constant 0 : i32
    return %c0_i32, %c0_i32_0, %c0_i32_1 : i32, i32, i32
  }
  func.func @transform_2(%arg0: i32) -> (i32, i32) {
    %c0_i32 = arith.constant 0 : i32
    %c0_i32_0 = arith.constant 0 : i32
    %c0_i32_1 = arith.constant 0 : i32
    return %c0_i32, %c0_i32_0 : i32, i32
  }
  func.func @transform_3(%arg0: i32) -> (i32, i32) {
    %c0_i32 = arith.constant 0 : i32
    %c0_i32_0 = arith.constant 0 : i32
    return %c0_i32, %arg0 : i32, i32
  }
}

module attributes {stable_mosaic.version = 11 : i64} {
  func.func @_conv_bn_relu_kernel(%arg0: i32, %arg1: memref<1x32x256xbf16, #tpu.memory_space<vmem>>, %arg2: memref<9x16x32xbf16, #tpu.memory_space<vmem>>, %arg3: memref<16x1xf32, #tpu.memory_space<vmem>>, %arg4: memref<16x128xbf16, #tpu.memory_space<vmem>>) attributes {dimension_semantics = [#tpu.dimension_semantics<parallel>], iteration_bounds = array<i64: 2>, scalar_prefetch = 0 : i64, scratch_operands = 0 : i64, tpu.core_type = #tpu.core_type<tc>, window_params = [{transform_indices = @transform_0, window_bounds = array<i64: 1, 32, 256>}, {pipeline_mode = #tpu.pipeline_mode<synchronous>, transform_indices = @transform_1, window_bounds = array<i64: 9, 16, 32>}, {pipeline_mode = #tpu.pipeline_mode<synchronous>, transform_indices = @transform_2, window_bounds = array<i64: 16, 1>}, {transform_indices = @transform_3, window_bounds = array<i64: 16, 128>}]} {
    %cst = arith.constant 0.000000e+00 : f32
    %0 = vector.broadcast %cst : f32 to vector<16x128xf32>
    %c0 = arith.constant 0 : index
    %c0_0 = arith.constant 0 : index
    %c0_1 = arith.constant 0 : index
    %1 = vector.load %arg2[%c0, %c0_0, %c0_1] : memref<9x16x32xbf16, #tpu.memory_space<vmem>>, vector<1x16x32xbf16>
    %2 = vector.shape_cast %1 : vector<1x16x32xbf16> to vector<16x32xbf16>
    %c0_2 = arith.constant 0 : index
    %c0_3 = arith.constant 0 : index
    %c53 = arith.constant 53 : index
    %3 = vector.load %arg1[%c0_2, %c0_3, %c53] : memref<1x32x256xbf16, #tpu.memory_space<vmem>>, vector<1x32x128xbf16>
    %4 = vector.shape_cast %3 : vector<1x32x128xbf16> to vector<32x128xbf16>
    %cst_4 = arith.constant dense<0.000000e+00> : vector<16x128xf32>
    %5 = tpu.matmul %2, %4, %cst_4 {dimension_numbers = #tpu.dot_dimension_numbers<[1], [0], [0], [1], [0, 0, 1, 1], [], []>} : vector<16x32xbf16>, vector<32x128xbf16>, vector<16x128xf32> -> vector<16x128xf32>
    %6 = arith.addf %0, %5 : vector<16x128xf32>
    %c1 = arith.constant 1 : index
    %c0_5 = arith.constant 0 : index
    %c0_6 = arith.constant 0 : index
    %7 = vector.load %arg2[%c1, %c0_5, %c0_6] : memref<9x16x32xbf16, #tpu.memory_space<vmem>>, vector<1x16x32xbf16>
    %8 = vector.shape_cast %7 : vector<1x16x32xbf16> to vector<16x32xbf16>
    %c0_7 = arith.constant 0 : index
    %c0_8 = arith.constant 0 : index
    %c54 = arith.constant 54 : index
    %9 = vector.load %arg1[%c0_7, %c0_8, %c54] : memref<1x32x256xbf16, #tpu.memory_space<vmem>>, vector<1x32x128xbf16>
    %10 = vector.shape_cast %9 : vector<1x32x128xbf16> to vector<32x128xbf16>
    %cst_9 = arith.constant dense<0.000000e+00> : vector<16x128xf32>
    %11 = tpu.matmul %8, %10, %cst_9 {dimension_numbers = #tpu.dot_dimension_numbers<[1], [0], [0], [1], [0, 0, 1, 1], [], []>} : vector<16x32xbf16>, vector<32x128xbf16>, vector<16x128xf32> -> vector<16x128xf32>
    %12 = arith.addf %6, %11 : vector<16x128xf32>
    %c2 = arith.constant 2 : index
    %c0_10 = arith.constant 0 : index
    %c0_11 = arith.constant 0 : index
    %13 = vector.load %arg2[%c2, %c0_10, %c0_11] : memref<9x16x32xbf16, #tpu.memory_space<vmem>>, vector<1x16x32xbf16>
    %14 = vector.shape_cast %13 : vector<1x16x32xbf16> to vector<16x32xbf16>
    %c0_12 = arith.constant 0 : index
    %c0_13 = arith.constant 0 : index
    %c55 = arith.constant 55 : index
    %15 = vector.load %arg1[%c0_12, %c0_13, %c55] : memref<1x32x256xbf16, #tpu.memory_space<vmem>>, vector<1x32x128xbf16>
    %16 = vector.shape_cast %15 : vector<1x32x128xbf16> to vector<32x128xbf16>
    %cst_14 = arith.constant dense<0.000000e+00> : vector<16x128xf32>
    %17 = tpu.matmul %14, %16, %cst_14 {dimension_numbers = #tpu.dot_dimension_numbers<[1], [0], [0], [1], [0, 0, 1, 1], [], []>} : vector<16x32xbf16>, vector<32x128xbf16>, vector<16x128xf32> -> vector<16x128xf32>
    %18 = arith.addf %12, %17 : vector<16x128xf32>
    %c3 = arith.constant 3 : index
    %c0_15 = arith.constant 0 : index
    %c0_16 = arith.constant 0 : index
    %19 = vector.load %arg2[%c3, %c0_15, %c0_16] : memref<9x16x32xbf16, #tpu.memory_space<vmem>>, vector<1x16x32xbf16>
    %20 = vector.shape_cast %19 : vector<1x16x32xbf16> to vector<16x32xbf16>
    %c0_17 = arith.constant 0 : index
    %c0_18 = arith.constant 0 : index
    %c63 = arith.constant 63 : index
    %21 = vector.load %arg1[%c0_17, %c0_18, %c63] : memref<1x32x256xbf16, #tpu.memory_space<vmem>>, vector<1x32x128xbf16>
    %22 = vector.shape_cast %21 : vector<1x32x128xbf16> to vector<32x128xbf16>
    %cst_19 = arith.constant dense<0.000000e+00> : vector<16x128xf32>
    %23 = tpu.matmul %20, %22, %cst_19 {dimension_numbers = #tpu.dot_dimension_numbers<[1], [0], [0], [1], [0, 0, 1, 1], [], []>} : vector<16x32xbf16>, vector<32x128xbf16>, vector<16x128xf32> -> vector<16x128xf32>
    %24 = arith.addf %18, %23 : vector<16x128xf32>
    %c4 = arith.constant 4 : index
    %c0_20 = arith.constant 0 : index
    %c0_21 = arith.constant 0 : index
    %25 = vector.load %arg2[%c4, %c0_20, %c0_21] : memref<9x16x32xbf16, #tpu.memory_space<vmem>>, vector<1x16x32xbf16>
    %26 = vector.shape_cast %25 : vector<1x16x32xbf16> to vector<16x32xbf16>
    %c0_22 = arith.constant 0 : index
    %c0_23 = arith.constant 0 : index
    %c64 = arith.constant 64 : index
    %27 = vector.load %arg1[%c0_22, %c0_23, %c64] : memref<1x32x256xbf16, #tpu.memory_space<vmem>>, vector<1x32x128xbf16>
    %28 = vector.shape_cast %27 : vector<1x32x128xbf16> to vector<32x128xbf16>
    %cst_24 = arith.constant dense<0.000000e+00> : vector<16x128xf32>
    %29 = tpu.matmul %26, %28, %cst_24 {dimension_numbers = #tpu.dot_dimension_numbers<[1], [0], [0], [1], [0, 0, 1, 1], [], []>} : vector<16x32xbf16>, vector<32x128xbf16>, vector<16x128xf32> -> vector<16x128xf32>
    %30 = arith.addf %24, %29 : vector<16x128xf32>
    %c5 = arith.constant 5 : index
    %c0_25 = arith.constant 0 : index
    %c0_26 = arith.constant 0 : index
    %31 = vector.load %arg2[%c5, %c0_25, %c0_26] : memref<9x16x32xbf16, #tpu.memory_space<vmem>>, vector<1x16x32xbf16>
    %32 = vector.shape_cast %31 : vector<1x16x32xbf16> to vector<16x32xbf16>
    %c0_27 = arith.constant 0 : index
    %c0_28 = arith.constant 0 : index
    %c65 = arith.constant 65 : index
    %33 = vector.load %arg1[%c0_27, %c0_28, %c65] : memref<1x32x256xbf16, #tpu.memory_space<vmem>>, vector<1x32x128xbf16>
    %34 = vector.shape_cast %33 : vector<1x32x128xbf16> to vector<32x128xbf16>
    %cst_29 = arith.constant dense<0.000000e+00> : vector<16x128xf32>
    %35 = tpu.matmul %32, %34, %cst_29 {dimension_numbers = #tpu.dot_dimension_numbers<[1], [0], [0], [1], [0, 0, 1, 1], [], []>} : vector<16x32xbf16>, vector<32x128xbf16>, vector<16x128xf32> -> vector<16x128xf32>
    %36 = arith.addf %30, %35 : vector<16x128xf32>
    %c6 = arith.constant 6 : index
    %c0_30 = arith.constant 0 : index
    %c0_31 = arith.constant 0 : index
    %37 = vector.load %arg2[%c6, %c0_30, %c0_31] : memref<9x16x32xbf16, #tpu.memory_space<vmem>>, vector<1x16x32xbf16>
    %38 = vector.shape_cast %37 : vector<1x16x32xbf16> to vector<16x32xbf16>
    %c0_32 = arith.constant 0 : index
    %c0_33 = arith.constant 0 : index
    %c73 = arith.constant 73 : index
    %39 = vector.load %arg1[%c0_32, %c0_33, %c73] : memref<1x32x256xbf16, #tpu.memory_space<vmem>>, vector<1x32x128xbf16>
    %40 = vector.shape_cast %39 : vector<1x32x128xbf16> to vector<32x128xbf16>
    %cst_34 = arith.constant dense<0.000000e+00> : vector<16x128xf32>
    %41 = tpu.matmul %38, %40, %cst_34 {dimension_numbers = #tpu.dot_dimension_numbers<[1], [0], [0], [1], [0, 0, 1, 1], [], []>} : vector<16x32xbf16>, vector<32x128xbf16>, vector<16x128xf32> -> vector<16x128xf32>
    %42 = arith.addf %36, %41 : vector<16x128xf32>
    %c7 = arith.constant 7 : index
    %c0_35 = arith.constant 0 : index
    %c0_36 = arith.constant 0 : index
    %43 = vector.load %arg2[%c7, %c0_35, %c0_36] : memref<9x16x32xbf16, #tpu.memory_space<vmem>>, vector<1x16x32xbf16>
    %44 = vector.shape_cast %43 : vector<1x16x32xbf16> to vector<16x32xbf16>
    %c0_37 = arith.constant 0 : index
    %c0_38 = arith.constant 0 : index
    %c74 = arith.constant 74 : index
    %45 = vector.load %arg1[%c0_37, %c0_38, %c74] : memref<1x32x256xbf16, #tpu.memory_space<vmem>>, vector<1x32x128xbf16>
    %46 = vector.shape_cast %45 : vector<1x32x128xbf16> to vector<32x128xbf16>
    %cst_39 = arith.constant dense<0.000000e+00> : vector<16x128xf32>
    %47 = tpu.matmul %44, %46, %cst_39 {dimension_numbers = #tpu.dot_dimension_numbers<[1], [0], [0], [1], [0, 0, 1, 1], [], []>} : vector<16x32xbf16>, vector<32x128xbf16>, vector<16x128xf32> -> vector<16x128xf32>
    %48 = arith.addf %42, %47 : vector<16x128xf32>
    %c8 = arith.constant 8 : index
    %c0_40 = arith.constant 0 : index
    %c0_41 = arith.constant 0 : index
    %49 = vector.load %arg2[%c8, %c0_40, %c0_41] : memref<9x16x32xbf16, #tpu.memory_space<vmem>>, vector<1x16x32xbf16>
    %50 = vector.shape_cast %49 : vector<1x16x32xbf16> to vector<16x32xbf16>
    %c0_42 = arith.constant 0 : index
    %c0_43 = arith.constant 0 : index
    %c75 = arith.constant 75 : index
    %51 = vector.load %arg1[%c0_42, %c0_43, %c75] : memref<1x32x256xbf16, #tpu.memory_space<vmem>>, vector<1x32x128xbf16>
    %52 = vector.shape_cast %51 : vector<1x32x128xbf16> to vector<32x128xbf16>
    %cst_44 = arith.constant dense<0.000000e+00> : vector<16x128xf32>
    %53 = tpu.matmul %50, %52, %cst_44 {dimension_numbers = #tpu.dot_dimension_numbers<[1], [0], [0], [1], [0, 0, 1, 1], [], []>} : vector<16x32xbf16>, vector<32x128xbf16>, vector<16x128xf32> -> vector<16x128xf32>
    %54 = arith.addf %48, %53 : vector<16x128xf32>
    %c0_45 = arith.constant 0 : index
    %c0_46 = arith.constant 0 : index
    %55 = vector.load %arg3[%c0_45, %c0_46] : memref<16x1xf32, #tpu.memory_space<vmem>>, vector<16x1xf32>
    %56 = vector.broadcast %55 : vector<16x1xf32> to vector<16x128xf32>
    %57 = arith.addf %54, %56 : vector<16x128xf32>
    %cst_47 = arith.constant 0.000000e+00 : f32
    %58 = vector.broadcast %cst_47 : f32 to vector<16x128xf32>
    %59 = arith.maximumf %57, %58 : vector<16x128xf32>
    %60 = arith.truncf %59 : vector<16x128xf32> to vector<16x128xbf16>
    %c0_48 = arith.constant 0 : index
    %c0_49 = arith.constant 0 : index
    %61 = vector.load %arg4[%c0_48, %c0_49] : memref<16x128xbf16, #tpu.memory_space<vmem>>, vector<16x128xbf16>
    tpu.vector_store %arg4[%c0_48, %c0_49], %60 {strides = array<i32>} : memref<16x128xbf16, #tpu.memory_space<vmem>>, vector<16x128xbf16>,
    return
  }
  func.func @transform_0(%arg0: i32) -> (i32, i32, i32) {
    %c0_i32 = arith.constant 0 : i32
    %c0_i32_0 = arith.constant 0 : i32
    %c0_i32_1 = arith.constant 0 : i32
    return %arg0, %c0_i32, %c0_i32_0 : i32, i32, i32
  }
  func.func @transform_1(%arg0: i32) -> (i32, i32, i32) {
    %c0_i32 = arith.constant 0 : i32
    %c0_i32_0 = arith.constant 0 : i32
    %c0_i32_1 = arith.constant 0 : i32
    %c0_i32_2 = arith.constant 0 : i32
    return %c0_i32, %c0_i32_0, %c0_i32_1 : i32, i32, i32
  }
  func.func @transform_2(%arg0: i32) -> (i32, i32) {
    %c0_i32 = arith.constant 0 : i32
    %c0_i32_0 = arith.constant 0 : i32
    %c0_i32_1 = arith.constant 0 : i32
    return %c0_i32, %c0_i32_0 : i32, i32
  }
  func.func @transform_3(%arg0: i32) -> (i32, i32) {
    %c0_i32 = arith.constant 0 : i32
    %c0_i32_0 = arith.constant 0 : i32
    return %c0_i32, %arg0 : i32, i32
  }
}

module attributes {stable_mosaic.version = 11 : i64} {
  func.func @_conv_bn_relu_kernel(%arg0: i32, %arg1: memref<1x32x640xbf16, #tpu.memory_space<vmem>>, %arg2: memref<9x16x32xbf16, #tpu.memory_space<vmem>>, %arg3: memref<16x1xf32, #tpu.memory_space<vmem>>, %arg4: memref<16x512xbf16, #tpu.memory_space<vmem>>) attributes {dimension_semantics = [#tpu.dimension_semantics<parallel>], iteration_bounds = array<i64: 2>, scalar_prefetch = 0 : i64, scratch_operands = 0 : i64, tpu.core_type = #tpu.core_type<tc>, window_params = [{transform_indices = @transform_0, window_bounds = array<i64: 1, 32, 640>}, {pipeline_mode = #tpu.pipeline_mode<synchronous>, transform_indices = @transform_1, window_bounds = array<i64: 9, 16, 32>}, {pipeline_mode = #tpu.pipeline_mode<synchronous>, transform_indices = @transform_2, window_bounds = array<i64: 16, 1>}, {transform_indices = @transform_3, window_bounds = array<i64: 16, 512>}]} {
    %cst = arith.constant 0.000000e+00 : f32
    %0 = vector.broadcast %cst : f32 to vector<16x512xf32>
    %c0 = arith.constant 0 : index
    %c0_0 = arith.constant 0 : index
    %c0_1 = arith.constant 0 : index
    %1 = vector.load %arg2[%c0, %c0_0, %c0_1] : memref<9x16x32xbf16, #tpu.memory_space<vmem>>, vector<1x16x32xbf16>
    %2 = vector.shape_cast %1 : vector<1x16x32xbf16> to vector<16x32xbf16>
    %c0_2 = arith.constant 0 : index
    %c0_3 = arith.constant 0 : index
    %c45 = arith.constant 45 : index
    %3 = vector.load %arg1[%c0_2, %c0_3, %c45] : memref<1x32x640xbf16, #tpu.memory_space<vmem>>, vector<1x32x512xbf16>
    %4 = vector.shape_cast %3 : vector<1x32x512xbf16> to vector<32x512xbf16>
    %cst_4 = arith.constant dense<0.000000e+00> : vector<16x512xf32>
    %5 = tpu.matmul %2, %4, %cst_4 {dimension_numbers = #tpu.dot_dimension_numbers<[1], [0], [0], [1], [0, 0, 1, 1], [], []>} : vector<16x32xbf16>, vector<32x512xbf16>, vector<16x512xf32> -> vector<16x512xf32>
    %6 = arith.addf %0, %5 : vector<16x512xf32>
    %c1 = arith.constant 1 : index
    %c0_5 = arith.constant 0 : index
    %c0_6 = arith.constant 0 : index
    %7 = vector.load %arg2[%c1, %c0_5, %c0_6] : memref<9x16x32xbf16, #tpu.memory_space<vmem>>, vector<1x16x32xbf16>
    %8 = vector.shape_cast %7 : vector<1x16x32xbf16> to vector<16x32xbf16>
    %c0_7 = arith.constant 0 : index
    %c0_8 = arith.constant 0 : index
    %c46 = arith.constant 46 : index
    %9 = vector.load %arg1[%c0_7, %c0_8, %c46] : memref<1x32x640xbf16, #tpu.memory_space<vmem>>, vector<1x32x512xbf16>
    %10 = vector.shape_cast %9 : vector<1x32x512xbf16> to vector<32x512xbf16>
    %cst_9 = arith.constant dense<0.000000e+00> : vector<16x512xf32>
    %11 = tpu.matmul %8, %10, %cst_9 {dimension_numbers = #tpu.dot_dimension_numbers<[1], [0], [0], [1], [0, 0, 1, 1], [], []>} : vector<16x32xbf16>, vector<32x512xbf16>, vector<16x512xf32> -> vector<16x512xf32>
    %12 = arith.addf %6, %11 : vector<16x512xf32>
    %c2 = arith.constant 2 : index
    %c0_10 = arith.constant 0 : index
    %c0_11 = arith.constant 0 : index
    %13 = vector.load %arg2[%c2, %c0_10, %c0_11] : memref<9x16x32xbf16, #tpu.memory_space<vmem>>, vector<1x16x32xbf16>
    %14 = vector.shape_cast %13 : vector<1x16x32xbf16> to vector<16x32xbf16>
    %c0_12 = arith.constant 0 : index
    %c0_13 = arith.constant 0 : index
    %c47 = arith.constant 47 : index
    %15 = vector.load %arg1[%c0_12, %c0_13, %c47] : memref<1x32x640xbf16, #tpu.memory_space<vmem>>, vector<1x32x512xbf16>
    %16 = vector.shape_cast %15 : vector<1x32x512xbf16> to vector<32x512xbf16>
    %cst_14 = arith.constant dense<0.000000e+00> : vector<16x512xf32>
    %17 = tpu.matmul %14, %16, %cst_14 {dimension_numbers = #tpu.dot_dimension_numbers<[1], [0], [0], [1], [0, 0, 1, 1], [], []>} : vector<16x32xbf16>, vector<32x512xbf16>, vector<16x512xf32> -> vector<16x512xf32>
    %18 = arith.addf %12, %17 : vector<16x512xf32>
    %c3 = arith.constant 3 : index
    %c0_15 = arith.constant 0 : index
    %c0_16 = arith.constant 0 : index
    %19 = vector.load %arg2[%c3, %c0_15, %c0_16] : memref<9x16x32xbf16, #tpu.memory_space<vmem>>, vector<1x16x32xbf16>
    %20 = vector.shape_cast %19 : vector<1x16x32xbf16> to vector<16x32xbf16>
    %c0_17 = arith.constant 0 : index
    %c0_18 = arith.constant 0 : index
    %c63 = arith.constant 63 : index
    %21 = vector.load %arg1[%c0_17, %c0_18, %c63] : memref<1x32x640xbf16, #tpu.memory_space<vmem>>, vector<1x32x512xbf16>
    %22 = vector.shape_cast %21 : vector<1x32x512xbf16> to vector<32x512xbf16>
    %cst_19 = arith.constant dense<0.000000e+00> : vector<16x512xf32>
    %23 = tpu.matmul %20, %22, %cst_19 {dimension_numbers = #tpu.dot_dimension_numbers<[1], [0], [0], [1], [0, 0, 1, 1], [], []>} : vector<16x32xbf16>, vector<32x512xbf16>, vector<16x512xf32> -> vector<16x512xf32>
    %24 = arith.addf %18, %23 : vector<16x512xf32>
    %c4 = arith.constant 4 : index
    %c0_20 = arith.constant 0 : index
    %c0_21 = arith.constant 0 : index
    %25 = vector.load %arg2[%c4, %c0_20, %c0_21] : memref<9x16x32xbf16, #tpu.memory_space<vmem>>, vector<1x16x32xbf16>
    %26 = vector.shape_cast %25 : vector<1x16x32xbf16> to vector<16x32xbf16>
    %c0_22 = arith.constant 0 : index
    %c0_23 = arith.constant 0 : index
    %c64 = arith.constant 64 : index
    %27 = vector.load %arg1[%c0_22, %c0_23, %c64] : memref<1x32x640xbf16, #tpu.memory_space<vmem>>, vector<1x32x512xbf16>
    %28 = vector.shape_cast %27 : vector<1x32x512xbf16> to vector<32x512xbf16>
    %cst_24 = arith.constant dense<0.000000e+00> : vector<16x512xf32>
    %29 = tpu.matmul %26, %28, %cst_24 {dimension_numbers = #tpu.dot_dimension_numbers<[1], [0], [0], [1], [0, 0, 1, 1], [], []>} : vector<16x32xbf16>, vector<32x512xbf16>, vector<16x512xf32> -> vector<16x512xf32>
    %30 = arith.addf %24, %29 : vector<16x512xf32>
    %c5 = arith.constant 5 : index
    %c0_25 = arith.constant 0 : index
    %c0_26 = arith.constant 0 : index
    %31 = vector.load %arg2[%c5, %c0_25, %c0_26] : memref<9x16x32xbf16, #tpu.memory_space<vmem>>, vector<1x16x32xbf16>
    %32 = vector.shape_cast %31 : vector<1x16x32xbf16> to vector<16x32xbf16>
    %c0_27 = arith.constant 0 : index
    %c0_28 = arith.constant 0 : index
    %c65 = arith.constant 65 : index
    %33 = vector.load %arg1[%c0_27, %c0_28, %c65] : memref<1x32x640xbf16, #tpu.memory_space<vmem>>, vector<1x32x512xbf16>
    %34 = vector.shape_cast %33 : vector<1x32x512xbf16> to vector<32x512xbf16>
    %cst_29 = arith.constant dense<0.000000e+00> : vector<16x512xf32>
    %35 = tpu.matmul %32, %34, %cst_29 {dimension_numbers = #tpu.dot_dimension_numbers<[1], [0], [0], [1], [0, 0, 1, 1], [], []>} : vector<16x32xbf16>, vector<32x512xbf16>, vector<16x512xf32> -> vector<16x512xf32>
    %36 = arith.addf %30, %35 : vector<16x512xf32>
    %c6 = arith.constant 6 : index
    %c0_30 = arith.constant 0 : index
    %c0_31 = arith.constant 0 : index
    %37 = vector.load %arg2[%c6, %c0_30, %c0_31] : memref<9x16x32xbf16, #tpu.memory_space<vmem>>, vector<1x16x32xbf16>
    %38 = vector.shape_cast %37 : vector<1x16x32xbf16> to vector<16x32xbf16>
    %c0_32 = arith.constant 0 : index
    %c0_33 = arith.constant 0 : index
    %c81 = arith.constant 81 : index
    %39 = vector.load %arg1[%c0_32, %c0_33, %c81] : memref<1x32x640xbf16, #tpu.memory_space<vmem>>, vector<1x32x512xbf16>
    %40 = vector.shape_cast %39 : vector<1x32x512xbf16> to vector<32x512xbf16>
    %cst_34 = arith.constant dense<0.000000e+00> : vector<16x512xf32>
    %41 = tpu.matmul %38, %40, %cst_34 {dimension_numbers = #tpu.dot_dimension_numbers<[1], [0], [0], [1], [0, 0, 1, 1], [], []>} : vector<16x32xbf16>, vector<32x512xbf16>, vector<16x512xf32> -> vector<16x512xf32>
    %42 = arith.addf %36, %41 : vector<16x512xf32>
    %c7 = arith.constant 7 : index
    %c0_35 = arith.constant 0 : index
    %c0_36 = arith.constant 0 : index
    %43 = vector.load %arg2[%c7, %c0_35, %c0_36] : memref<9x16x32xbf16, #tpu.memory_space<vmem>>, vector<1x16x32xbf16>
    %44 = vector.shape_cast %43 : vector<1x16x32xbf16> to vector<16x32xbf16>
    %c0_37 = arith.constant 0 : index
    %c0_38 = arith.constant 0 : index
    %c82 = arith.constant 82 : index
    %45 = vector.load %arg1[%c0_37, %c0_38, %c82] : memref<1x32x640xbf16, #tpu.memory_space<vmem>>, vector<1x32x512xbf16>
    %46 = vector.shape_cast %45 : vector<1x32x512xbf16> to vector<32x512xbf16>
    %cst_39 = arith.constant dense<0.000000e+00> : vector<16x512xf32>
    %47 = tpu.matmul %44, %46, %cst_39 {dimension_numbers = #tpu.dot_dimension_numbers<[1], [0], [0], [1], [0, 0, 1, 1], [], []>} : vector<16x32xbf16>, vector<32x512xbf16>, vector<16x512xf32> -> vector<16x512xf32>
    %48 = arith.addf %42, %47 : vector<16x512xf32>
    %c8 = arith.constant 8 : index
    %c0_40 = arith.constant 0 : index
    %c0_41 = arith.constant 0 : index
    %49 = vector.load %arg2[%c8, %c0_40, %c0_41] : memref<9x16x32xbf16, #tpu.memory_space<vmem>>, vector<1x16x32xbf16>
    %50 = vector.shape_cast %49 : vector<1x16x32xbf16> to vector<16x32xbf16>
    %c0_42 = arith.constant 0 : index
    %c0_43 = arith.constant 0 : index
    %c83 = arith.constant 83 : index
    %51 = vector.load %arg1[%c0_42, %c0_43, %c83] : memref<1x32x640xbf16, #tpu.memory_space<vmem>>, vector<1x32x512xbf16>
    %52 = vector.shape_cast %51 : vector<1x32x512xbf16> to vector<32x512xbf16>
    %cst_44 = arith.constant dense<0.000000e+00> : vector<16x512xf32>
    %53 = tpu.matmul %50, %52, %cst_44 {dimension_numbers = #tpu.dot_dimension_numbers<[1], [0], [0], [1], [0, 0, 1, 1], [], []>} : vector<16x32xbf16>, vector<32x512xbf16>, vector<16x512xf32> -> vector<16x512xf32>
    %54 = arith.addf %48, %53 : vector<16x512xf32>
    %c0_45 = arith.constant 0 : index
    %c0_46 = arith.constant 0 : index
    %55 = vector.load %arg3[%c0_45, %c0_46] : memref<16x1xf32, #tpu.memory_space<vmem>>, vector<16x1xf32>
    %56 = vector.broadcast %55 : vector<16x1xf32> to vector<16x512xf32>
    %57 = arith.addf %54, %56 : vector<16x512xf32>
    %cst_47 = arith.constant 0.000000e+00 : f32
    %58 = vector.broadcast %cst_47 : f32 to vector<16x512xf32>
    %59 = arith.maximumf %57, %58 : vector<16x512xf32>
    %60 = arith.truncf %59 : vector<16x512xf32> to vector<16x512xbf16>
    %c0_48 = arith.constant 0 : index
    %c0_49 = arith.constant 0 : index
    %61 = vector.load %arg4[%c0_48, %c0_49] : memref<16x512xbf16, #tpu.memory_space<vmem>>, vector<16x512xbf16>
    tpu.vector_store %arg4[%c0_48, %c0_49], %60 {strides = array<i32>} : memref<16x512xbf16, #tpu.memory_space<vmem>>, vector<16x512xbf16>,
    return
  }
  func.func @transform_0(%arg0: i32) -> (i32, i32, i32) {
    %c0_i32 = arith.constant 0 : i32
    %c0_i32_0 = arith.constant 0 : i32
    %c0_i32_1 = arith.constant 0 : i32
    return %arg0, %c0_i32, %c0_i32_0 : i32, i32, i32
  }
  func.func @transform_1(%arg0: i32) -> (i32, i32, i32) {
    %c0_i32 = arith.constant 0 : i32
    %c0_i32_0 = arith.constant 0 : i32
    %c0_i32_1 = arith.constant 0 : i32
    %c0_i32_2 = arith.constant 0 : i32
    return %c0_i32, %c0_i32_0, %c0_i32_1 : i32, i32, i32
  }
  func.func @transform_2(%arg0: i32) -> (i32, i32) {
    %c0_i32 = arith.constant 0 : i32
    %c0_i32_0 = arith.constant 0 : i32
    %c0_i32_1 = arith.constant 0 : i32
    return %c0_i32, %c0_i32_0 : i32, i32
  }
  func.func @transform_3(%arg0: i32) -> (i32, i32) {
    %c0_i32 = arith.constant 0 : i32
    %c0_i32_0 = arith.constant 0 : i32
    return %c0_i32, %arg0 : i32, i32
  }
}

module attributes {stable_mosaic.version = 11 : i64} {
  func.func @_conv_bn_relu_kernel(%arg0: i32, %arg1: memref<1x32x640xbf16, #tpu.memory_space<vmem>>, %arg2: memref<9x16x32xbf16, #tpu.memory_space<vmem>>, %arg3: memref<16x1xf32, #tpu.memory_space<vmem>>, %arg4: memref<16x512xbf16, #tpu.memory_space<vmem>>) attributes {dimension_semantics = [#tpu.dimension_semantics<parallel>], iteration_bounds = array<i64: 5>, scalar_prefetch = 0 : i64, scratch_operands = 0 : i64, tpu.core_type = #tpu.core_type<tc>, window_params = [{transform_indices = @transform_0, window_bounds = array<i64: 1, 32, 640>}, {pipeline_mode = #tpu.pipeline_mode<synchronous>, transform_indices = @transform_1, window_bounds = array<i64: 9, 16, 32>}, {pipeline_mode = #tpu.pipeline_mode<synchronous>, transform_indices = @transform_2, window_bounds = array<i64: 16, 1>}, {transform_indices = @transform_3, window_bounds = array<i64: 16, 512>}]} {
    %cst = arith.constant 0.000000e+00 : f32
    %0 = vector.broadcast %cst : f32 to vector<16x512xf32>
    %c0 = arith.constant 0 : index
    %c0_0 = arith.constant 0 : index
    %c0_1 = arith.constant 0 : index
    %1 = vector.load %arg2[%c0, %c0_0, %c0_1] : memref<9x16x32xbf16, #tpu.memory_space<vmem>>, vector<1x16x32xbf16>
    %2 = vector.shape_cast %1 : vector<1x16x32xbf16> to vector<16x32xbf16>
    %c0_2 = arith.constant 0 : index
    %c0_3 = arith.constant 0 : index
    %c29 = arith.constant 29 : index
    %3 = vector.load %arg1[%c0_2, %c0_3, %c29] : memref<1x32x640xbf16, #tpu.memory_space<vmem>>, vector<1x32x512xbf16>
    %4 = vector.shape_cast %3 : vector<1x32x512xbf16> to vector<32x512xbf16>
    %cst_4 = arith.constant dense<0.000000e+00> : vector<16x512xf32>
    %5 = tpu.matmul %2, %4, %cst_4 {dimension_numbers = #tpu.dot_dimension_numbers<[1], [0], [0], [1], [0, 0, 1, 1], [], []>} : vector<16x32xbf16>, vector<32x512xbf16>, vector<16x512xf32> -> vector<16x512xf32>
    %6 = arith.addf %0, %5 : vector<16x512xf32>
    %c1 = arith.constant 1 : index
    %c0_5 = arith.constant 0 : index
    %c0_6 = arith.constant 0 : index
    %7 = vector.load %arg2[%c1, %c0_5, %c0_6] : memref<9x16x32xbf16, #tpu.memory_space<vmem>>, vector<1x16x32xbf16>
    %8 = vector.shape_cast %7 : vector<1x16x32xbf16> to vector<16x32xbf16>
    %c0_7 = arith.constant 0 : index
    %c0_8 = arith.constant 0 : index
    %c30 = arith.constant 30 : index
    %9 = vector.load %arg1[%c0_7, %c0_8, %c30] : memref<1x32x640xbf16, #tpu.memory_space<vmem>>, vector<1x32x512xbf16>
    %10 = vector.shape_cast %9 : vector<1x32x512xbf16> to vector<32x512xbf16>
    %cst_9 = arith.constant dense<0.000000e+00> : vector<16x512xf32>
    %11 = tpu.matmul %8, %10, %cst_9 {dimension_numbers = #tpu.dot_dimension_numbers<[1], [0], [0], [1], [0, 0, 1, 1], [], []>} : vector<16x32xbf16>, vector<32x512xbf16>, vector<16x512xf32> -> vector<16x512xf32>
    %12 = arith.addf %6, %11 : vector<16x512xf32>
    %c2 = arith.constant 2 : index
    %c0_10 = arith.constant 0 : index
    %c0_11 = arith.constant 0 : index
    %13 = vector.load %arg2[%c2, %c0_10, %c0_11] : memref<9x16x32xbf16, #tpu.memory_space<vmem>>, vector<1x16x32xbf16>
    %14 = vector.shape_cast %13 : vector<1x16x32xbf16> to vector<16x32xbf16>
    %c0_12 = arith.constant 0 : index
    %c0_13 = arith.constant 0 : index
    %c31 = arith.constant 31 : index
    %15 = vector.load %arg1[%c0_12, %c0_13, %c31] : memref<1x32x640xbf16, #tpu.memory_space<vmem>>, vector<1x32x512xbf16>
    %16 = vector.shape_cast %15 : vector<1x32x512xbf16> to vector<32x512xbf16>
    %cst_14 = arith.constant dense<0.000000e+00> : vector<16x512xf32>
    %17 = tpu.matmul %14, %16, %cst_14 {dimension_numbers = #tpu.dot_dimension_numbers<[1], [0], [0], [1], [0, 0, 1, 1], [], []>} : vector<16x32xbf16>, vector<32x512xbf16>, vector<16x512xf32> -> vector<16x512xf32>
    %18 = arith.addf %12, %17 : vector<16x512xf32>
    %c3 = arith.constant 3 : index
    %c0_15 = arith.constant 0 : index
    %c0_16 = arith.constant 0 : index
    %19 = vector.load %arg2[%c3, %c0_15, %c0_16] : memref<9x16x32xbf16, #tpu.memory_space<vmem>>, vector<1x16x32xbf16>
    %20 = vector.shape_cast %19 : vector<1x16x32xbf16> to vector<16x32xbf16>
    %c0_17 = arith.constant 0 : index
    %c0_18 = arith.constant 0 : index
    %c63 = arith.constant 63 : index
    %21 = vector.load %arg1[%c0_17, %c0_18, %c63] : memref<1x32x640xbf16, #tpu.memory_space<vmem>>, vector<1x32x512xbf16>
    %22 = vector.shape_cast %21 : vector<1x32x512xbf16> to vector<32x512xbf16>
    %cst_19 = arith.constant dense<0.000000e+00> : vector<16x512xf32>
    %23 = tpu.matmul %20, %22, %cst_19 {dimension_numbers = #tpu.dot_dimension_numbers<[1], [0], [0], [1], [0, 0, 1, 1], [], []>} : vector<16x32xbf16>, vector<32x512xbf16>, vector<16x512xf32> -> vector<16x512xf32>
    %24 = arith.addf %18, %23 : vector<16x512xf32>
    %c4 = arith.constant 4 : index
    %c0_20 = arith.constant 0 : index
    %c0_21 = arith.constant 0 : index
    %25 = vector.load %arg2[%c4, %c0_20, %c0_21] : memref<9x16x32xbf16, #tpu.memory_space<vmem>>, vector<1x16x32xbf16>
    %26 = vector.shape_cast %25 : vector<1x16x32xbf16> to vector<16x32xbf16>
    %c0_22 = arith.constant 0 : index
    %c0_23 = arith.constant 0 : index
    %c64 = arith.constant 64 : index
    %27 = vector.load %arg1[%c0_22, %c0_23, %c64] : memref<1x32x640xbf16, #tpu.memory_space<vmem>>, vector<1x32x512xbf16>
    %28 = vector.shape_cast %27 : vector<1x32x512xbf16> to vector<32x512xbf16>
    %cst_24 = arith.constant dense<0.000000e+00> : vector<16x512xf32>
    %29 = tpu.matmul %26, %28, %cst_24 {dimension_numbers = #tpu.dot_dimension_numbers<[1], [0], [0], [1], [0, 0, 1, 1], [], []>} : vector<16x32xbf16>, vector<32x512xbf16>, vector<16x512xf32> -> vector<16x512xf32>
    %30 = arith.addf %24, %29 : vector<16x512xf32>
    %c5 = arith.constant 5 : index
    %c0_25 = arith.constant 0 : index
    %c0_26 = arith.constant 0 : index
    %31 = vector.load %arg2[%c5, %c0_25, %c0_26] : memref<9x16x32xbf16, #tpu.memory_space<vmem>>, vector<1x16x32xbf16>
    %32 = vector.shape_cast %31 : vector<1x16x32xbf16> to vector<16x32xbf16>
    %c0_27 = arith.constant 0 : index
    %c0_28 = arith.constant 0 : index
    %c65 = arith.constant 65 : index
    %33 = vector.load %arg1[%c0_27, %c0_28, %c65] : memref<1x32x640xbf16, #tpu.memory_space<vmem>>, vector<1x32x512xbf16>
    %34 = vector.shape_cast %33 : vector<1x32x512xbf16> to vector<32x512xbf16>
    %cst_29 = arith.constant dense<0.000000e+00> : vector<16x512xf32>
    %35 = tpu.matmul %32, %34, %cst_29 {dimension_numbers = #tpu.dot_dimension_numbers<[1], [0], [0], [1], [0, 0, 1, 1], [], []>} : vector<16x32xbf16>, vector<32x512xbf16>, vector<16x512xf32> -> vector<16x512xf32>
    %36 = arith.addf %30, %35 : vector<16x512xf32>
    %c6 = arith.constant 6 : index
    %c0_30 = arith.constant 0 : index
    %c0_31 = arith.constant 0 : index
    %37 = vector.load %arg2[%c6, %c0_30, %c0_31] : memref<9x16x32xbf16, #tpu.memory_space<vmem>>, vector<1x16x32xbf16>
    %38 = vector.shape_cast %37 : vector<1x16x32xbf16> to vector<16x32xbf16>
    %c0_32 = arith.constant 0 : index
    %c0_33 = arith.constant 0 : index
    %c97 = arith.constant 97 : index
    %39 = vector.load %arg1[%c0_32, %c0_33, %c97] : memref<1x32x640xbf16, #tpu.memory_space<vmem>>, vector<1x32x512xbf16>
    %40 = vector.shape_cast %39 : vector<1x32x512xbf16> to vector<32x512xbf16>
    %cst_34 = arith.constant dense<0.000000e+00> : vector<16x512xf32>
    %41 = tpu.matmul %38, %40, %cst_34 {dimension_numbers = #tpu.dot_dimension_numbers<[1], [0], [0], [1], [0, 0, 1, 1], [], []>} : vector<16x32xbf16>, vector<32x512xbf16>, vector<16x512xf32> -> vector<16x512xf32>
    %42 = arith.addf %36, %41 : vector<16x512xf32>
    %c7 = arith.constant 7 : index
    %c0_35 = arith.constant 0 : index
    %c0_36 = arith.constant 0 : index
    %43 = vector.load %arg2[%c7, %c0_35, %c0_36] : memref<9x16x32xbf16, #tpu.memory_space<vmem>>, vector<1x16x32xbf16>
    %44 = vector.shape_cast %43 : vector<1x16x32xbf16> to vector<16x32xbf16>
    %c0_37 = arith.constant 0 : index
    %c0_38 = arith.constant 0 : index
    %c98 = arith.constant 98 : index
    %45 = vector.load %arg1[%c0_37, %c0_38, %c98] : memref<1x32x640xbf16, #tpu.memory_space<vmem>>, vector<1x32x512xbf16>
    %46 = vector.shape_cast %45 : vector<1x32x512xbf16> to vector<32x512xbf16>
    %cst_39 = arith.constant dense<0.000000e+00> : vector<16x512xf32>
    %47 = tpu.matmul %44, %46, %cst_39 {dimension_numbers = #tpu.dot_dimension_numbers<[1], [0], [0], [1], [0, 0, 1, 1], [], []>} : vector<16x32xbf16>, vector<32x512xbf16>, vector<16x512xf32> -> vector<16x512xf32>
    %48 = arith.addf %42, %47 : vector<16x512xf32>
    %c8 = arith.constant 8 : index
    %c0_40 = arith.constant 0 : index
    %c0_41 = arith.constant 0 : index
    %49 = vector.load %arg2[%c8, %c0_40, %c0_41] : memref<9x16x32xbf16, #tpu.memory_space<vmem>>, vector<1x16x32xbf16>
    %50 = vector.shape_cast %49 : vector<1x16x32xbf16> to vector<16x32xbf16>
    %c0_42 = arith.constant 0 : index
    %c0_43 = arith.constant 0 : index
    %c99 = arith.constant 99 : index
    %51 = vector.load %arg1[%c0_42, %c0_43, %c99] : memref<1x32x640xbf16, #tpu.memory_space<vmem>>, vector<1x32x512xbf16>
    %52 = vector.shape_cast %51 : vector<1x32x512xbf16> to vector<32x512xbf16>
    %cst_44 = arith.constant dense<0.000000e+00> : vector<16x512xf32>
    %53 = tpu.matmul %50, %52, %cst_44 {dimension_numbers = #tpu.dot_dimension_numbers<[1], [0], [0], [1], [0, 0, 1, 1], [], []>} : vector<16x32xbf16>, vector<32x512xbf16>, vector<16x512xf32> -> vector<16x512xf32>
    %54 = arith.addf %48, %53 : vector<16x512xf32>
    %c0_45 = arith.constant 0 : index
    %c0_46 = arith.constant 0 : index
    %55 = vector.load %arg3[%c0_45, %c0_46] : memref<16x1xf32, #tpu.memory_space<vmem>>, vector<16x1xf32>
    %56 = vector.broadcast %55 : vector<16x1xf32> to vector<16x512xf32>
    %57 = arith.addf %54, %56 : vector<16x512xf32>
    %cst_47 = arith.constant 0.000000e+00 : f32
    %58 = vector.broadcast %cst_47 : f32 to vector<16x512xf32>
    %59 = arith.maximumf %57, %58 : vector<16x512xf32>
    %60 = arith.truncf %59 : vector<16x512xf32> to vector<16x512xbf16>
    %c0_48 = arith.constant 0 : index
    %c0_49 = arith.constant 0 : index
    %61 = vector.load %arg4[%c0_48, %c0_49] : memref<16x512xbf16, #tpu.memory_space<vmem>>, vector<16x512xbf16>
    tpu.vector_store %arg4[%c0_48, %c0_49], %60 {strides = array<i32>} : memref<16x512xbf16, #tpu.memory_space<vmem>>, vector<16x512xbf16>,
    return
  }
  func.func @transform_0(%arg0: i32) -> (i32, i32, i32) {
    %c0_i32 = arith.constant 0 : i32
    %c0_i32_0 = arith.constant 0 : i32
    %c0_i32_1 = arith.constant 0 : i32
    return %arg0, %c0_i32, %c0_i32_0 : i32, i32, i32
  }
  func.func @transform_1(%arg0: i32) -> (i32, i32, i32) {
    %c0_i32 = arith.constant 0 : i32
    %c0_i32_0 = arith.constant 0 : i32
    %c0_i32_1 = arith.constant 0 : i32
    %c0_i32_2 = arith.constant 0 : i32
    return %c0_i32, %c0_i32_0, %c0_i32_1 : i32, i32, i32
  }
  func.func @transform_2(%arg0: i32) -> (i32, i32) {
    %c0_i32 = arith.constant 0 : i32
    %c0_i32_0 = arith.constant 0 : i32
    %c0_i32_1 = arith.constant 0 : i32
    return %c0_i32, %c0_i32_0 : i32, i32
  }
  func.func @transform_3(%arg0: i32) -> (i32, i32) {
    %c0_i32 = arith.constant 0 : i32
    %c0_i32_0 = arith.constant 0 : i32
    return %c0_i32, %arg0 : i32, i32
  }
}

</mosaic_0001>

<llo_original>
// kernel: rsu4_apply_nchw.8
$region0: #{rsu4_apply_nchw.8}
  #allocation0 [shape = 'u32[]', space=smem, size = 0x4, offset = 0x4, fixed_abs, tag = 'smem constant byte address 0x4 - core index']
  #allocation1 [shape = 'u32[144,128]{1,0:T(1,128)}', space=vmem, size = 0x12000, scoped, tag = 'internal scratch']
  %s0 = inlined_call_operand.vmem [shape: bf16[5,16,640], index: 0, kind: input, shape index: {}]
  %s1 = inlined_call_operand.vmem [shape: bf16[9,16,16], index: 1, kind: input, shape index: {}]
  %s2 = inlined_call_operand.vmem [shape: f32[16,1], index: 2, kind: input, shape index: {}]
  %s3 = inlined_call_operand.vmem [shape: bf16[16,2560], index: 3, kind: output, shape index: {}]
  %s4 = sld [smem:[#allocation0]]
  $region64: #{rsu4_apply_nchw.8} parent=0
    _
  %s6 = ssub.s32 1, %s4
  %s7 = scalar_select 0, %s6, %s4
  $region1: #{rsu4_apply_nchw.8} parent=0
    #allocation2 [shape = 'u8[32768]{0}', space=vmem, size = 0x8000, scoped, tag = 'output window, operand 0']
    loop: start=0, step=1, limit=7
    $region2: #{rsu4_apply_nchw.8} parent=1 // loop_pre_header
      _
    $region3: #{rsu4_apply_nchw.8} parent=1 // loop_header
      %s9 = sphi 0, %s13
      %p10 = scmp.ge.s32.totalorder %s9, 7
      %s19 = sphi 0, %s21
      %s22 = sphi 0, %s19
      %s23 = sphi 0, %s22
      %s39 = sphi 0, %s23
      %s43 = sphi 0, %s43
      %s45 = sphi 0, %s43
      %s46 = sphi 0, %s45
      %s60 = sphi 0, %s46
      %s64 = sphi 0, %s64
      %s66 = sphi 0, %s64
      %s67 = sphi 0, %s66
      %s81 = sphi 0, %s67
      %s87 = sphi 0, %s89
      %s90 = sphi 0, %s87
      %s91 = sphi 0, %s90
      %s107 = sphi 0, %s91
    $region4: #{rsu4_apply_nchw.8} parent=1 // loop_header_branch
      %12 = sbr.rel (%p10) target = $region8
    $region5: #{rsu4_apply_nchw.8} parent=1 // loop_body
      %s14 = ssub.s32 %s9, 1
      %s15 = ssub.s32 %s9, 2
      %s16 = sadd.s32 %s9, 1
      %s17 = ssub.s32 %s9, %s16
      %p18 = scmp.eq.s32.totalorder %s17, 0
      %s20 = sadd.s32 %s19, 1
      %s21 = scalar_select %p18, %s19, %s20
      %p24 = pneg %p18
      %p25 = scmp.eq.s32.totalorder %s9, 4
      %p26 = por %p24, %p25
      %p27 = scmp.ne.s32.totalorder %s19, %s22
      %p28 = scmp.eq.s32.totalorder %s9, 0
      %p29 = por %p27, %p28
      %p30 = scmp.ne.s32.totalorder %s19, %s22
      %p31 = scmp.eq.s32.totalorder %s14, 4
      %p32 = por %p30, %p31
      %p33 = scmp.ne.s32.totalorder %s22, %s23
      %p34 = scmp.eq.s32.totalorder %s14, 0
      %p35 = por %p33, %p34
      %p36 = scmp.ne.s32.totalorder %s22, %s23
      %p37 = scmp.eq.s32.totalorder %s15, 4
      %p38 = por %p36, %p37
      %p40 = scmp.ne.s32.totalorder %s23, %s39
      %p41 = scmp.eq.s32.totalorder %s15, 0
      %p42 = por %p40, %p41
      %s44 = sadd.s32 %s43, 1
      %p47 = scmp.eq.s32.totalorder %s9, 4
      %p48 = scmp.ne.s32.totalorder %s43, %s45
      %p49 = scmp.eq.s32.totalorder %s9, 0
      %p50 = por %p48, %p49
      %p51 = scmp.ne.s32.totalorder %s43, %s45
      %p52 = scmp.eq.s32.totalorder %s14, 4
      %p53 = por %p51, %p52
      %p54 = scmp.ne.s32.totalorder %s45, %s46
      %p55 = scmp.eq.s32.totalorder %s14, 0
      %p56 = por %p54, %p55
      %p57 = scmp.ne.s32.totalorder %s45, %s46
      %p58 = scmp.eq.s32.totalorder %s15, 4
      %p59 = por %p57, %p58
      %p61 = scmp.ne.s32.totalorder %s46, %s60
      %p62 = scmp.eq.s32.totalorder %s15, 0
      %p63 = por %p61, %p62
      %s65 = sadd.s32 %s64, 1
      %p68 = scmp.eq.s32.totalorder %s9, 4
      %p69 = scmp.ne.s32.totalorder %s64, %s66
      %p70 = scmp.eq.s32.totalorder %s9, 0
      %p71 = por %p69, %p70
      %p72 = scmp.ne.s32.totalorder %s64, %s66
      %p73 = scmp.eq.s32.totalorder %s14, 4
      %p74 = por %p72, %p73
      %p75 = scmp.ne.s32.totalorder %s66, %s67
      %p76 = scmp.eq.s32.totalorder %s14, 0
      %p77 = por %p75, %p76
      %p78 = scmp.ne.s32.totalorder %s66, %s67
      %p79 = scmp.eq.s32.totalorder %s15, 4
      %p80 = por %p78, %p79
      %p82 = scmp.ne.s32.totalorder %s67, %s81
      %p83 = scmp.eq.s32.totalorder %s15, 0
      %p84 = por %p82, %p83
      %s85 = ssub.s32 %s9, %s16
      %p86 = scmp.eq.s32.totalorder %s85, 0
      %s88 = sadd.s32 %s87, 1
      %s89 = scalar_select %p86, %s87, %s88
      %p92 = pneg %p86
      %p93 = scmp.eq.s32.totalorder %s9, 4
      %p94 = por %p92, %p93
      %p95 = scmp.ne.s32.totalorder %s87, %s90
      %p96 = scmp.eq.s32.totalorder %s9, 0
      %p97 = por %p95, %p96
      %p98 = scmp.ne.s32.totalorder %s87, %s90
      %p99 = scmp.eq.s32.totalorder %s14, 4
      %p100 = por %p98, %p99
      %p101 = scmp.ne.s32.totalorder %s90, %s91
      %p102 = scmp.eq.s32.totalorder %s14, 0
      %p103 = por %p101, %p102
      %p104 = scmp.ne.s32.totalorder %s90, %s91
      %p105 = scmp.eq.s32.totalorder %s15, 4
      %p106 = por %p104, %p105
      %p108 = scmp.ne.s32.totalorder %s91, %s107
      %p109 = scmp.eq.s32.totalorder %s15, 0
      %p110 = por %p108, %p109
      %p111 = scmp.le.s32.totalorder 1, %s9
      %p112 = scmp.lt.s32.totalorder %s9, 6
      %p113 = pnand %p111, %p112
      %p114 = pneg %p113
      // Predicated region
      $region9: #{rsu4_apply_nchw.8} parent=5 // pred_check
        _
      $region10: #{rsu4_apply_nchw.8} parent=5 // pred_check_branch
        %116 = sbr.rel (%p113) target = $region12
      $region11: #{rsu4_apply_nchw.8} parent=5 // pred_region
        %s117 = ssub.s32 %s9, 1
        // Predicated region
        $region13: #{rsu4_apply_nchw.8} parent=11 // pred_check
          %p118 = pneg %p56
        $region14: #{rsu4_apply_nchw.8} parent=11 // pred_check_branch
          %120 = sbr.rel (%p118) target = $region16
        $region15: #{rsu4_apply_nchw.8} parent=11 // pred_region
          _
        $region16: #{rsu4_apply_nchw.8} parent=11 // pred_fallthru
          _
        // Predicated region
        $region17: #{rsu4_apply_nchw.8} parent=11 // pred_check
          %p121 = pneg %p77
        $region18: #{rsu4_apply_nchw.8} parent=11 // pred_check_branch
          %123 = sbr.rel (%p121) target = $region20
        $region19: #{rsu4_apply_nchw.8} parent=11 // pred_region
          _
        $region20: #{rsu4_apply_nchw.8} parent=11 // pred_fallthru
          _
      $region12: #{rsu4_apply_nchw.8} parent=5 // pred_fallthru
        _
      %p124 = scmp.lt.s32.totalorder %s9, 5
      // Predicated region
      $region21: #{rsu4_apply_nchw.8} parent=5 // pred_check
        %p125 = pneg %p124
      $region22: #{rsu4_apply_nchw.8} parent=5 // pred_check_branch
        %127 = sbr.rel (%p125) target = $region24
      $region23: #{rsu4_apply_nchw.8} parent=5 // pred_region
        // Predicated region
        $region25: #{rsu4_apply_nchw.8} parent=23 // pred_check
          %p128 = pneg %p29
        $region26: #{rsu4_apply_nchw.8} parent=23 // pred_check_branch
          %130 = sbr.rel (%p128) target = $region28
        $region27: #{rsu4_apply_nchw.8} parent=23 // pred_region
          %p131 = scmp.lt.s32.totalorder %s9, 4
          %s132 = scalar_select %p131, %s9, 4
          %s133 = smul.addr %s132, 10
          %s134 = smul.addr %s133, 4
          %s135 = scalar_lea.vmem %s0, %s134
        $region28: #{rsu4_apply_nchw.8} parent=23 // pred_fallthru
          _
      $region24: #{rsu4_apply_nchw.8} parent=5 // pred_fallthru
        _
      %p136 = scmp.le.s32.totalorder 1, %s9
      %p137 = scmp.lt.s32.totalorder %s9, 6
      %p138 = pnand %p136, %p137
      %p139 = pneg %p138
      // Predicated region
      $region29: #{rsu4_apply_nchw.8} parent=5 // pred_check
        _
      $region30: #{rsu4_apply_nchw.8} parent=5 // pred_check_branch
        %141 = sbr.rel (%p138) target = $region32
      $region31: #{rsu4_apply_nchw.8} parent=5 // pred_region
        %s142 = ssub.s32 %s9, 1
        %p143 = scmp.lt.s32.totalorder %s14, 4
        %s144 = scalar_select %p143, %s14, 4
        %s145 = smul.addr %s144, 10
        %s146 = smul.addr %s145, 4
        %s147 = scalar_lea.vmem %s0, %s146
        %p148 = pneg %p35
        %p149 = pneg %p32
        %p150 = pneg %p56
        %p151 = pneg %p53
        %p152 = pneg %p77
        %p153 = pneg %p74
        %p154 = pneg %p103
        %p155 = pneg %p100
        %s156 = sand.u32 %s90, 1
        %s157 = sand.u32 %s90, 1
        %s158 = smul.addr %s157, 32
        %s159 = scalar_lea.vmem [#allocation2], %s158
        %p160 = scmp.lt.s32.totalorder %s14, 4
        %s161 = scalar_select %p160, %s14, 4
        %s162 = smul.addr %s161, 10
        %s163 = smul.addr %s162, 4
        %s164 = scalar_lea.vmem %s0, %s163
        %s165 = smul.u32 4, %s14
        %v167 = vld [vmem:[%s1] sm:$0xf]
        %v168 = vld [vmem:[%s1 + $0x4] sm:$0xf]
        %v169 = vld [vmem:[%s164] sm:$0xff]
        %v170 = vld [vmem:[%s164 + $0x8] sm:$0xff]
        %v171 = vld [vmem:[%s164 + $0x10] sm:$0xf]
        %v172 = vld [vmem:[%s164 + $0x14] sm:$0xff]
        %v173 = vld [vmem:[%s164 + $0x1c] sm:$0xff]
        %v174 = vld [vmem:[%s164 + $0x24] sm:$0xf]
        %s175 = scalar_lea.vmem %s1, 8
        %v176 = vld [vmem:[%s175] sm:$0xf]
        %v177 = vld [vmem:[%s175 + $0x4] sm:$0xf]
        %v180 = vunpack.c.l.b16 %v176
        %v181 = vunpack.c.l.b16 %v177
        %v182 = vpack.c.b16 %v181, %v180
        %v189 = vunpack.c.l.b16 %v169
        %v190 = vunpack.c.h.b16 %v169
        %v191 = vunpack.c.l.b16 %v170
        %v192 = vunpack.c.h.b16 %v170
        %v193 = vunpack.c.l.b16 %v171
        %v194 = vunpack.c.l.b16 %v172
        %v195 = vunpack.c.h.b16 %v172
        %v196 = vunpack.c.l.b16 %v173
        %v197 = vunpack.c.h.b16 %v173
        %v198 = vunpack.c.l.b16 %v174
        %v199 = vpack.c.b16 %v194, %v189
        %v200 = vpack.c.b16 %v195, %v190
        %v201 = vpack.c.b16 %v196, %v191
        %v202 = vpack.c.b16 %v197, %v192
        %v203 = vpack.c.b16 %v198, %v193
        %204 = vrot.lane.b32.xlu0 %v199, 98
        %v205 = vpop.permute.xlu0 %204
        %206 = vrot.lane.b32.xlu0 %v200, 98
        %v207 = vpop.permute.xlu0 %206
        %208 = vrot.lane.b32.xlu0 %v201, 98
        %v209 = vpop.permute.xlu0 %208
        %210 = vrot.lane.b32.xlu0 %v202, 98
        %v211 = vpop.permute.xlu0 %210
        %212 = vrot.lane.b32.xlu0 %v203, 98
        %v213 = vpop.permute.xlu0 %212
        %vm214 = vcmask 801792
        %v215 = vsel %vm214, %v205, %v207
        %v216 = vsel %vm214, %v207, %v209
        %v217 = vsel %vm214, %v209, %v211
        %v218 = vsel %vm214, %v211, %v213
        %vm223 = vcmask 130048
        %v225 = vsel %vm223, %v182, 0
        %227 = vmatprep.subr.bf16.mxu0 %v216
        %228 = vmatpush1.bf16.msra.mxu0 %v215
        %229 = vmatprep.subr.bf16.mxu0 0
        %230 = vmatpush1.bf16.msra.mxu0 0
        %231 = vmatprep.subr.bf16.mxu0 0
        %232 = vmatpush1.bf16.msra.mxu0 0
        %233 = vmatprep.subr.bf16.mxu0 0
        %234 = vmatpush1.bf16.msra.mxu0 0
        %235 = vmatprep.subr.bf16.mxu0 0
        %236 = vmatpush1.bf16.msra.mxu0 0
        %237 = vmatprep.subr.bf16.mxu0 0
        %238 = vmatpush1.bf16.msra.mxu0 0
        %239 = vmatprep.subr.bf16.mxu0 0
        %240 = vmatpush1.bf16.msra.mxu0 0
        %241 = vmatprep.subr.bf16.mxu0 0
        %242 = vmatpush1.bf16.msra.mxu0 0
        %243 = vmatprep.subr.bf16.mxu0 0
        %244 = vmatpush1.bf16.msra.mxu0 0
        %245 = vmatprep.subr.bf16.mxu0 0
        %246 = vmatpush1.bf16.msra.mxu0 0
        %247 = vmatprep.subr.bf16.mxu0 0
        %248 = vmatpush1.bf16.msra.mxu0 0
        %249 = vmatprep.subr.bf16.mxu0 0
        %250 = vmatpush1.bf16.msra.mxu0 0
        %251 = vmatprep.subr.bf16.mxu0 0
        %252 = vmatpush1.bf16.msra.mxu0 0
        %253 = vmatprep.subr.bf16.mxu0 0
        %254 = vmatpush1.bf16.msra.mxu0 0
        %255 = vmatprep.subr.bf16.mxu0 0
        %256 = vmatpush1.bf16.msra.mxu0 0
        %257 = vmatprep.subr.bf16.mxu0 0
        %258 = vmatpush1.bf16.msra.mxu0 0
        %259 = vmatprep.mubr.bf16.mxu0 0
        %260 = vmatmul.mubr.bf16.gmra.mrb[0].mxu0 %v225
        %v261 = vpop.f32.mrb[0].mxu0
        %v262 = vadd.f32 0.0, %v261
        %v263 = vpop.f32.mrb[0].mxu0
        %v264 = vadd.f32 0.0, %v263
        %v265 = vpop.f32.mrb[0].mxu0
        %v266 = vadd.f32 0.0, %v265
        %v267 = vpop.f32.mrb[0].mxu0
        %v268 = vadd.f32 0.0, %v267
        %269 = vdwg.mxu0
        %270 = vmatprep.subr.bf16.mxu0 %v218
        %271 = vmatpush1.bf16.msra.mxu0 %v217
        %272 = vmatprep.subr.bf16.mxu0 0
        %273 = vmatpush1.bf16.msra.mxu0 0
        %274 = vmatprep.subr.bf16.mxu0 0
        %275 = vmatpush1.bf16.msra.mxu0 0
        %276 = vmatprep.subr.bf16.mxu0 0
        %277 = vmatpush1.bf16.msra.mxu0 0
        %278 = vmatprep.subr.bf16.mxu0 0
        %279 = vmatpush1.bf16.msra.mxu0 0
        %280 = vmatprep.subr.bf16.mxu0 0
        %281 = vmatpush1.bf16.msra.mxu0 0
        %282 = vmatprep.subr.bf16.mxu0 0
        %283 = vmatpush1.bf16.msra.mxu0 0
        %284 = vmatprep.subr.bf16.mxu0 0
        %285 = vmatpush1.bf16.msra.mxu0 0
        %286 = vmatprep.subr.bf16.mxu0 0
        %287 = vmatpush1.bf16.msra.mxu0 0
        %288 = vmatprep.subr.bf16.mxu0 0
        %289 = vmatpush1.bf16.msra.mxu0 0
        %290 = vmatprep.subr.bf16.mxu0 0
        %291 = vmatpush1.bf16.msra.mxu0 0
        %292 = vmatprep.subr.bf16.mxu0 0
        %293 = vmatpush1.bf16.msra.mxu0 0
        %294 = vmatprep.subr.bf16.mxu0 0
        %295 = vmatpush1.bf16.msra.mxu0 0
        %296 = vmatprep.subr.bf16.mxu0 0
        %297 = vmatpush1.bf16.msra.mxu0 0
        %298 = vmatprep.subr.bf16.mxu0 0
        %299 = vmatpush1.bf16.msra.mxu0 0
        %300 = vmatprep.subr.bf16.mxu0 0
        %301 = vmatpush1.bf16.msra.mxu0 0
        %302 = vmatprep.mubr.bf16.mxu0 0
        %303 = vmatmul.mubr.bf16.gmra.mrb[0].mxu0 %v225
        %v304 = vpop.f32.mrb[0].mxu0
        %v305 = vadd.f32 0.0, %v304
        %v306 = vpop.f32.mrb[0].mxu0
        %v307 = vadd.f32 0.0, %v306
        %v308 = vpop.f32.mrb[0].mxu0
        %v309 = vadd.f32 0.0, %v308
        %v310 = vpop.f32.mrb[0].mxu0
        %v311 = vadd.f32 0.0, %v310
        %312 = vdwg.mxu0
        %v315 = vunpack.c.l.b16 %v167
        %v316 = vunpack.c.l.b16 %v168
        %v317 = vpack.c.b16 %v316, %v315
        %318 = vrot.lane.b32.xlu0 %v199, 99
        %v319 = vpop.permute.xlu0 %318
        %320 = vrot.lane.b32.xlu0 %v200, 99
        %v321 = vpop.permute.xlu0 %320
        %322 = vrot.lane.b32.xlu0 %v201, 99
        %v323 = vpop.permute.xlu0 %322
        %324 = vrot.lane.b32.xlu0 %v202, 99
        %v325 = vpop.permute.xlu0 %324
        %326 = vrot.lane.b32.xlu0 %v203, 99
        %v327 = vpop.permute.xlu0 %326
        %vm328 = vcmask 809984
        %v329 = vsel %vm328, %v319, %v321
        %v330 = vsel %vm328, %v321, %v323
        %v331 = vsel %vm328, %v323, %v325
        %v332 = vsel %vm328, %v325, %v327
        %v338 = vsel %vm223, %v317, 0
        %340 = vmatprep.subr.bf16.mxu0 %v330
        %341 = vmatpush1.bf16.msra.mxu0 %v329
        %342 = vmatprep.subr.bf16.mxu0 0
        %343 = vmatpush1.bf16.msra.mxu0 0
        %344 = vmatprep.subr.bf16.mxu0 0
        %345 = vmatpush1.bf16.msra.mxu0 0
        %346 = vmatprep.subr.bf16.mxu0 0
        %347 = vmatpush1.bf16.msra.mxu0 0
        %348 = vmatprep.subr.bf16.mxu0 0
        %349 = vmatpush1.bf16.msra.mxu0 0
        %350 = vmatprep.subr.bf16.mxu0 0
        %351 = vmatpush1.bf16.msra.mxu0 0
        %352 = vmatprep.subr.bf16.mxu0 0
        %353 = vmatpush1.bf16.msra.mxu0 0
        %354 = vmatprep.subr.bf16.mxu0 0
        %355 = vmatpush1.bf16.msra.mxu0 0
        %356 = vmatprep.subr.bf16.mxu0 0
        %357 = vmatpush1.bf16.msra.mxu0 0
        %358 = vmatprep.subr.bf16.mxu0 0
        %359 = vmatpush1.bf16.msra.mxu0 0
        %360 = vmatprep.subr.bf16.mxu0 0
        %361 = vmatpush1.bf16.msra.mxu0 0
        %362 = vmatprep.subr.bf16.mxu0 0
        %363 = vmatpush1.bf16.msra.mxu0 0
        %364 = vmatprep.subr.bf16.mxu0 0
        %365 = vmatpush1.bf16.msra.mxu0 0
        %366 = vmatprep.subr.bf16.mxu0 0
        %367 = vmatpush1.bf16.msra.mxu0 0
        %368 = vmatprep.subr.bf16.mxu0 0
        %369 = vmatpush1.bf16.msra.mxu0 0
        %370 = vmatprep.subr.bf16.mxu0 0
        %371 = vmatpush1.bf16.msra.mxu0 0
        %372 = vmatprep.mubr.bf16.mxu0 0
        %373 = vmatmul.mubr.bf16.gmra.mrb[0].mxu0 %v338
        %v374 = vpop.f32.mrb[0].mxu0
        %v375 = vadd.f32 %v262, %v374
        %v376 = vpop.f32.mrb[0].mxu0
        %v377 = vadd.f32 %v264, %v376
        %v378 = vpop.f32.mrb[0].mxu0
        %v379 = vadd.f32 %v266, %v378
        %v380 = vpop.f32.mrb[0].mxu0
        %v381 = vadd.f32 %v268, %v380
        %382 = vdwg.mxu0
        %383 = vmatprep.subr.bf16.mxu0 %v332
        %384 = vmatpush1.bf16.msra.mxu0 %v331
        %385 = vmatprep.subr.bf16.mxu0 0
        %386 = vmatpush1.bf16.msra.mxu0 0
        %387 = vmatprep.subr.bf16.mxu0 0
        %388 = vmatpush1.bf16.msra.mxu0 0
        %389 = vmatprep.subr.bf16.mxu0 0
        %390 = vmatpush1.bf16.msra.mxu0 0
        %391 = vmatprep.subr.bf16.mxu0 0
        %392 = vmatpush1.bf16.msra.mxu0 0
        %393 = vmatprep.subr.bf16.mxu0 0
        %394 = vmatpush1.bf16.msra.mxu0 0
        %395 = vmatprep.subr.bf16.mxu0 0
        %396 = vmatpush1.bf16.msra.mxu0 0
        %397 = vmatprep.subr.bf16.mxu0 0
        %398 = vmatpush1.bf16.msra.mxu0 0
        %399 = vmatprep.subr.bf16.mxu0 0
        %400 = vmatpush1.bf16.msra.mxu0 0
        %401 = vmatprep.subr.bf16.mxu0 0
        %402 = vmatpush1.bf16.msra.mxu0 0
        %403 = vmatprep.subr.bf16.mxu0 0
        %404 = vmatpush1.bf16.msra.mxu0 0
        %405 = vmatprep.subr.bf16.mxu0 0
        %406 = vmatpush1.bf16.msra.mxu0 0
        %407 = vmatprep.subr.bf16.mxu0 0
        %408 = vmatpush1.bf16.msra.mxu0 0
        %409 = vmatprep.subr.bf16.mxu0 0
        %410 = vmatpush1.bf16.msra.mxu0 0
        %411 = vmatprep.subr.bf16.mxu0 0
        %412 = vmatpush1.bf16.msra.mxu0 0
        %413 = vmatprep.subr.bf16.mxu0 0
        %414 = vmatpush1.bf16.msra.mxu0 0
        %415 = vmatprep.mubr.bf16.mxu0 0
        %416 = vmatmul.mubr.bf16.gmra.mrb[0].mxu0 %v338
        %v417 = vpop.f32.mrb[0].mxu0
        %v418 = vadd.f32 %v305, %v417
        %v419 = vpop.f32.mrb[0].mxu0
        %v420 = vadd.f32 %v307, %v419
        %v421 = vpop.f32.mrb[0].mxu0
        %v422 = vadd.f32 %v309, %v421
        %v423 = vpop.f32.mrb[0].mxu0
        %v424 = vadd.f32 %v311, %v423
        %425 = vdwg.mxu0
        %s426 = scalar_lea.vmem %s1, 16
        %v427 = vld [vmem:[%s426] sm:$0xf]
        %v428 = vld [vmem:[%s426 + $0x4] sm:$0xf]
        %v431 = vunpack.c.l.b16 %v427
        %v432 = vunpack.c.l.b16 %v428
        %v433 = vpack.c.b16 %v432, %v431
        %434 = vrot.lane.b32.xlu0 %v199, 97
        %v435 = vpop.permute.xlu0 %434
        %436 = vrot.lane.b32.xlu0 %v200, 97
        %v437 = vpop.permute.xlu0 %436
        %438 = vrot.lane.b32.xlu0 %v201, 97
        %v439 = vpop.permute.xlu0 %438
        %440 = vrot.lane.b32.xlu0 %v202, 97
        %v441 = vpop.permute.xlu0 %440
        %442 = vrot.lane.b32.xlu0 %v203, 97
        %v443 = vpop.permute.xlu0 %442
        %vm444 = vcmask 793600
        %v445 = vsel %vm444, %v435, %v437
        %v446 = vsel %vm444, %v437, %v439
        %v447 = vsel %vm444, %v439, %v441
        %v448 = vsel %vm444, %v441, %v443
        %v454 = vsel %vm223, %v433, 0
        %456 = vmatprep.subr.bf16.mxu0 %v446
        %457 = vmatpush1.bf16.msra.mxu0 %v445
        %458 = vmatprep.subr.bf16.mxu0 0
        %459 = vmatpush1.bf16.msra.mxu0 0
        %460 = vmatprep.subr.bf16.mxu0 0
        %461 = vmatpush1.bf16.msra.mxu0 0
        %462 = vmatprep.subr.bf16.mxu0 0
        %463 = vmatpush1.bf16.msra.mxu0 0
        %464 = vmatprep.subr.bf16.mxu0 0
        %465 = vmatpush1.bf16.msra.mxu0 0
        %466 = vmatprep.subr.bf16.mxu0 0
        %467 = vmatpush1.bf16.msra.mxu0 0
        %468 = vmatprep.subr.bf16.mxu0 0
        %469 = vmatpush1.bf16.msra.mxu0 0
        %470 = vmatprep.subr.bf16.mxu0 0
        %471 = vmatpush1.bf16.msra.mxu0 0
        %472 = vmatprep.subr.bf16.mxu0 0
        %473 = vmatpush1.bf16.msra.mxu0 0
        %474 = vmatprep.subr.bf16.mxu0 0
        %475 = vmatpush1.bf16.msra.mxu0 0
        %476 = vmatprep.subr.bf16.mxu0 0
        %477 = vmatpush1.bf16.msra.mxu0 0
        %478 = vmatprep.subr.bf16.mxu0 0
        %479 = vmatpush1.bf16.msra.mxu0 0
        %480 = vmatprep.subr.bf16.mxu0 0
        %481 = vmatpush1.bf16.msra.mxu0 0
        %482 = vmatprep.subr.bf16.mxu0 0
        %483 = vmatpush1.bf16.msra.mxu0 0
        %484 = vmatprep.subr.bf16.mxu0 0
        %485 = vmatpush1.bf16.msra.mxu0 0
        %486 = vmatprep.subr.bf16.mxu0 0
        %487 = vmatpush1.bf16.msra.mxu0 0
        %488 = vmatprep.mubr.bf16.mxu0 0
        %489 = vmatmul.mubr.bf16.gmra.mrb[0].mxu0 %v454
        %v490 = vpop.f32.mrb[0].mxu0
        %v491 = vadd.f32 0.0, %v490
        %v492 = vpop.f32.mrb[0].mxu0
        %v493 = vadd.f32 0.0, %v492
        %v494 = vpop.f32.mrb[0].mxu0
        %v495 = vadd.f32 0.0, %v494
        %v496 = vpop.f32.mrb[0].mxu0
        %v497 = vadd.f32 0.0, %v496
        %498 = vdwg.mxu0
        %499 = vmatprep.subr.bf16.mxu0 %v448
        %500 = vmatpush1.bf16.msra.mxu0 %v447
        %501 = vmatprep.subr.bf16.mxu0 0
        %502 = vmatpush1.bf16.msra.mxu0 0
        %503 = vmatprep.subr.bf16.mxu0 0
        %504 = vmatpush1.bf16.msra.mxu0 0
        %505 = vmatprep.subr.bf16.mxu0 0
        %506 = vmatpush1.bf16.msra.mxu0 0
        %507 = vmatprep.subr.bf16.mxu0 0
        %508 = vmatpush1.bf16.msra.mxu0 0
        %509 = vmatprep.subr.bf16.mxu0 0
        %510 = vmatpush1.bf16.msra.mxu0 0
        %511 = vmatprep.subr.bf16.mxu0 0
        %512 = vmatpush1.bf16.msra.mxu0 0
        %513 = vmatprep.subr.bf16.mxu0 0
        %514 = vmatpush1.bf16.msra.mxu0 0
        %515 = vmatprep.subr.bf16.mxu0 0
        %516 = vmatpush1.bf16.msra.mxu0 0
        %517 = vmatprep.subr.bf16.mxu0 0
        %518 = vmatpush1.bf16.msra.mxu0 0
        %519 = vmatprep.subr.bf16.mxu0 0
        %520 = vmatpush1.bf16.msra.mxu0 0
        %521 = vmatprep.subr.bf16.mxu0 0
        %522 = vmatpush1.bf16.msra.mxu0 0
        %523 = vmatprep.subr.bf16.mxu0 0
        %524 = vmatpush1.bf16.msra.mxu0 0
        %525 = vmatprep.subr.bf16.mxu0 0
        %526 = vmatpush1.bf16.msra.mxu0 0
        %527 = vmatprep.subr.bf16.mxu0 0
        %528 = vmatpush1.bf16.msra.mxu0 0
        %529 = vmatprep.subr.bf16.mxu0 0
        %530 = vmatpush1.bf16.msra.mxu0 0
        %531 = vmatprep.mubr.bf16.mxu0 0
        %532 = vmatmul.mubr.bf16.gmra.mrb[0].mxu0 %v454
        %v533 = vpop.f32.mrb[0].mxu0
        %v534 = vadd.f32 0.0, %v533
        %v535 = vpop.f32.mrb[0].mxu0
        %v536 = vadd.f32 0.0, %v535
        %v537 = vpop.f32.mrb[0].mxu0
        %v538 = vadd.f32 0.0, %v537
        %v539 = vpop.f32.mrb[0].mxu0
        %v540 = vadd.f32 0.0, %v539
        %541 = vdwg.mxu0
        %v542 = vadd.f32 %v375, %v491
        %v543 = vadd.f32 %v377, %v493
        %v544 = vadd.f32 %v418, %v534
        %v545 = vadd.f32 %v420, %v536
        %v546 = vadd.f32 %v379, %v495
        %v547 = vadd.f32 %v381, %v497
        %v548 = vadd.f32 %v422, %v538
        %v549 = vadd.f32 %v424, %v540
        %s550 = scalar_lea.vmem %s1, 24
        %v551 = vld [vmem:[%s550] sm:$0xf]
        %v552 = vld [vmem:[%s550 + $0x4] sm:$0xf]
        %v555 = vunpack.c.l.b16 %v551
        %v556 = vunpack.c.l.b16 %v552
        %v557 = vpack.c.b16 %v556, %v555
        %558 = vrot.lane.b32.xlu0 %v199, 65
        %v559 = vpop.permute.xlu0 %558
        %560 = vrot.lane.b32.xlu0 %v200, 65
        %v561 = vpop.permute.xlu0 %560
        %562 = vrot.lane.b32.xlu0 %v201, 65
        %v563 = vpop.permute.xlu0 %562
        %564 = vrot.lane.b32.xlu0 %v202, 65
        %v565 = vpop.permute.xlu0 %564
        %566 = vrot.lane.b32.xlu0 %v203, 65
        %v567 = vpop.permute.xlu0 %566
        %vm568 = vcmask 531456
        %v569 = vsel %vm568, %v559, %v561
        %v570 = vsel %vm568, %v561, %v563
        %v571 = vsel %vm568, %v563, %v565
        %v572 = vsel %vm568, %v565, %v567
        %v578 = vsel %vm223, %v557, 0
        %580 = vmatprep.subr.bf16.mxu0 %v570
        %581 = vmatpush1.bf16.msra.mxu0 %v569
        %582 = vmatprep.subr.bf16.mxu0 0
        %583 = vmatpush1.bf16.msra.mxu0 0
        %584 = vmatprep.subr.bf16.mxu0 0
        %585 = vmatpush1.bf16.msra.mxu0 0
        %586 = vmatprep.subr.bf16.mxu0 0
        %587 = vmatpush1.bf16.msra.mxu0 0
        %588 = vmatprep.subr.bf16.mxu0 0
        %589 = vmatpush1.bf16.msra.mxu0 0
        %590 = vmatprep.subr.bf16.mxu0 0
        %591 = vmatpush1.bf16.msra.mxu0 0
        %592 = vmatprep.subr.bf16.mxu0 0
        %593 = vmatpush1.bf16.msra.mxu0 0
        %594 = vmatprep.subr.bf16.mxu0 0
        %595 = vmatpush1.bf16.msra.mxu0 0
        %596 = vmatprep.subr.bf16.mxu0 0
        %597 = vmatpush1.bf16.msra.mxu0 0
        %598 = vmatprep.subr.bf16.mxu0 0
        %599 = vmatpush1.bf16.msra.mxu0 0
        %600 = vmatprep.subr.bf16.mxu0 0
        %601 = vmatpush1.bf16.msra.mxu0 0
        %602 = vmatprep.subr.bf16.mxu0 0
        %603 = vmatpush1.bf16.msra.mxu0 0
        %604 = vmatprep.subr.bf16.mxu0 0
        %605 = vmatpush1.bf16.msra.mxu0 0
        %606 = vmatprep.subr.bf16.mxu0 0
        %607 = vmatpush1.bf16.msra.mxu0 0
        %608 = vmatprep.subr.bf16.mxu0 0
        %609 = vmatpush1.bf16.msra.mxu0 0
        %610 = vmatprep.subr.bf16.mxu0 0
        %611 = vmatpush1.bf16.msra.mxu0 0
        %612 = vmatprep.mubr.bf16.mxu0 0
        %613 = vmatmul.mubr.bf16.gmra.mrb[0].mxu0 %v578
        %v614 = vpop.f32.mrb[0].mxu0
        %v615 = vadd.f32 0.0, %v614
        %v616 = vpop.f32.mrb[0].mxu0
        %v617 = vadd.f32 0.0, %v616
        %v618 = vpop.f32.mrb[0].mxu0
        %v619 = vadd.f32 0.0, %v618
        %v620 = vpop.f32.mrb[0].mxu0
        %v621 = vadd.f32 0.0, %v620
        %622 = vdwg.mxu0
        %623 = vmatprep.subr.bf16.mxu0 %v572
        %624 = vmatpush1.bf16.msra.mxu0 %v571
        %625 = vmatprep.subr.bf16.mxu0 0
        %626 = vmatpush1.bf16.msra.mxu0 0
        %627 = vmatprep.subr.bf16.mxu0 0
        %628 = vmatpush1.bf16.msra.mxu0 0
        %629 = vmatprep.subr.bf16.mxu0 0
        %630 = vmatpush1.bf16.msra.mxu0 0
        %631 = vmatprep.subr.bf16.mxu0 0
        %632 = vmatpush1.bf16.msra.mxu0 0
        %633 = vmatprep.subr.bf16.mxu0 0
        %634 = vmatpush1.bf16.msra.mxu0 0
        %635 = vmatprep.subr.bf16.mxu0 0
        %636 = vmatpush1.bf16.msra.mxu0 0
        %637 = vmatprep.subr.bf16.mxu0 0
        %638 = vmatpush1.bf16.msra.mxu0 0
        %639 = vmatprep.subr.bf16.mxu0 0
        %640 = vmatpush1.bf16.msra.mxu0 0
        %641 = vmatprep.subr.bf16.mxu0 0
        %642 = vmatpush1.bf16.msra.mxu0 0
        %643 = vmatprep.subr.bf16.mxu0 0
        %644 = vmatpush1.bf16.msra.mxu0 0
        %645 = vmatprep.subr.bf16.mxu0 0
        %646 = vmatpush1.bf16.msra.mxu0 0
        %647 = vmatprep.subr.bf16.mxu0 0
        %648 = vmatpush1.bf16.msra.mxu0 0
        %649 = vmatprep.subr.bf16.mxu0 0
        %650 = vmatpush1.bf16.msra.mxu0 0
        %651 = vmatprep.subr.bf16.mxu0 0
        %652 = vmatpush1.bf16.msra.mxu0 0
        %653 = vmatprep.subr.bf16.mxu0 0
        %654 = vmatpush1.bf16.msra.mxu0 0
        %655 = vmatprep.mubr.bf16.mxu0 0
        %656 = vmatmul.mubr.bf16.gmra.mrb[0].mxu0 %v578
        %v657 = vpop.f32.mrb[0].mxu0
        %v658 = vadd.f32 0.0, %v657
        %v659 = vpop.f32.mrb[0].mxu0
        %v660 = vadd.f32 0.0, %v659
        %v661 = vpop.f32.mrb[0].mxu0
        %v662 = vadd.f32 0.0, %v661
        %v663 = vpop.f32.mrb[0].mxu0
        %v664 = vadd.f32 0.0, %v663
        %665 = vdwg.mxu0
        %v666 = vadd.f32 %v542, %v615
        %v667 = vadd.f32 %v543, %v617
        %v668 = vadd.f32 %v544, %v658
        %v669 = vadd.f32 %v545, %v660
        %v670 = vadd.f32 %v546, %v619
        %v671 = vadd.f32 %v547, %v621
        %v672 = vadd.f32 %v548, %v662
        %v673 = vadd.f32 %v549, %v664
        %s674 = scalar_lea.vmem %s1, 32
        %v675 = vld [vmem:[%s674] sm:$0xf]
        %v676 = vld [vmem:[%s674 + $0x4] sm:$0xf]
        %v679 = vunpack.c.l.b16 %v675
        %v680 = vunpack.c.l.b16 %v676
        %v681 = vpack.c.b16 %v680, %v679
        %682 = vrot.lane.b32.xlu0 %v199, 64
        %v683 = vpop.permute.xlu0 %682
        %684 = vrot.lane.b32.xlu0 %v200, 64
        %v685 = vpop.permute.xlu0 %684
        %686 = vrot.lane.b32.xlu0 %v201, 64
        %v687 = vpop.permute.xlu0 %686
        %688 = vrot.lane.b32.xlu0 %v202, 64
        %v689 = vpop.permute.xlu0 %688
        %690 = vrot.lane.b32.xlu0 %v203, 64
        %v691 = vpop.permute.xlu0 %690
        %vm692 = vcmask 523264
        %v693 = vsel %vm692, %v683, %v685
        %v694 = vsel %vm692, %v685, %v687
        %v695 = vsel %vm692, %v687, %v689
        %v696 = vsel %vm692, %v689, %v691
        %v702 = vsel %vm223, %v681, 0
        %704 = vmatprep.subr.bf16.mxu0 %v694
        %705 = vmatpush1.bf16.msra.mxu0 %v693
        %706 = vmatprep.subr.bf16.mxu0 0
        %707 = vmatpush1.bf16.msra.mxu0 0
        %708 = vmatprep.subr.bf16.mxu0 0
        %709 = vmatpush1.bf16.msra.mxu0 0
        %710 = vmatprep.subr.bf16.mxu0 0
        %711 = vmatpush1.bf16.msra.mxu0 0
        %712 = vmatprep.subr.bf16.mxu0 0
        %713 = vmatpush1.bf16.msra.mxu0 0
        %714 = vmatprep.subr.bf16.mxu0 0
        %715 = vmatpush1.bf16.msra.mxu0 0
        %716 = vmatprep.subr.bf16.mxu0 0
        %717 = vmatpush1.bf16.msra.mxu0 0
        %718 = vmatprep.subr.bf16.mxu0 0
        %719 = vmatpush1.bf16.msra.mxu0 0
        %720 = vmatprep.subr.bf16.mxu0 0
        %721 = vmatpush1.bf16.msra.mxu0 0
        %722 = vmatprep.subr.bf16.mxu0 0
        %723 = vmatpush1.bf16.msra.mxu0 0
        %724 = vmatprep.subr.bf16.mxu0 0
        %725 = vmatpush1.bf16.msra.mxu0 0
        %726 = vmatprep.subr.bf16.mxu0 0
        %727 = vmatpush1.bf16.msra.mxu0 0
        %728 = vmatprep.subr.bf16.mxu0 0
        %729 = vmatpush1.bf16.msra.mxu0 0
        %730 = vmatprep.subr.bf16.mxu0 0
        %731 = vmatpush1.bf16.msra.mxu0 0
        %732 = vmatprep.subr.bf16.mxu0 0
        %733 = vmatpush1.bf16.msra.mxu0 0
        %734 = vmatprep.subr.bf16.mxu0 0
        %735 = vmatpush1.bf16.msra.mxu0 0
        %736 = vmatprep.mubr.bf16.mxu0 0
        %737 = vmatmul.mubr.bf16.gmra.mrb[0].mxu0 %v702
        %v738 = vpop.f32.mrb[0].mxu0
        %v739 = vadd.f32 0.0, %v738
        %v740 = vpop.f32.mrb[0].mxu0
        %v741 = vadd.f32 0.0, %v740
        %v742 = vpop.f32.mrb[0].mxu0
        %v743 = vadd.f32 0.0, %v742
        %v744 = vpop.f32.mrb[0].mxu0
        %v745 = vadd.f32 0.0, %v744
        %746 = vdwg.mxu0
        %747 = vmatprep.subr.bf16.mxu0 %v696
        %748 = vmatpush1.bf16.msra.mxu0 %v695
        %749 = vmatprep.subr.bf16.mxu0 0
        %750 = vmatpush1.bf16.msra.mxu0 0
        %751 = vmatprep.subr.bf16.mxu0 0
        %752 = vmatpush1.bf16.msra.mxu0 0
        %753 = vmatprep.subr.bf16.mxu0 0
        %754 = vmatpush1.bf16.msra.mxu0 0
        %755 = vmatprep.subr.bf16.mxu0 0
        %756 = vmatpush1.bf16.msra.mxu0 0
        %757 = vmatprep.subr.bf16.mxu0 0
        %758 = vmatpush1.bf16.msra.mxu0 0
        %759 = vmatprep.subr.bf16.mxu0 0
        %760 = vmatpush1.bf16.msra.mxu0 0
        %761 = vmatprep.subr.bf16.mxu0 0
        %762 = vmatpush1.bf16.msra.mxu0 0
        %763 = vmatprep.subr.bf16.mxu0 0
        %764 = vmatpush1.bf16.msra.mxu0 0
        %765 = vmatprep.subr.bf16.mxu0 0
        %766 = vmatpush1.bf16.msra.mxu0 0
        %767 = vmatprep.subr.bf16.mxu0 0
        %768 = vmatpush1.bf16.msra.mxu0 0
        %769 = vmatprep.subr.bf16.mxu0 0
        %770 = vmatpush1.bf16.msra.mxu0 0
        %771 = vmatprep.subr.bf16.mxu0 0
        %772 = vmatpush1.bf16.msra.mxu0 0
        %773 = vmatprep.subr.bf16.mxu0 0
        %774 = vmatpush1.bf16.msra.mxu0 0
        %775 = vmatprep.subr.bf16.mxu0 0
        %776 = vmatpush1.bf16.msra.mxu0 0
        %777 = vmatprep.subr.bf16.mxu0 0
        %778 = vmatpush1.bf16.msra.mxu0 0
        %779 = vmatprep.mubr.bf16.mxu0 0
        %780 = vmatmul.mubr.bf16.gmra.mrb[0].mxu0 %v702
        %v781 = vpop.f32.mrb[0].mxu0
        %v782 = vadd.f32 0.0, %v781
        %v783 = vpop.f32.mrb[0].mxu0
        %v784 = vadd.f32 0.0, %v783
        %v785 = vpop.f32.mrb[0].mxu0
        %v786 = vadd.f32 0.0, %v785
        %v787 = vpop.f32.mrb[0].mxu0
        %v788 = vadd.f32 0.0, %v787
        %789 = vdwg.mxu0
        %v790 = vadd.f32 %v666, %v739
        %v791 = vadd.f32 %v667, %v741
        %v792 = vadd.f32 %v668, %v782
        %v793 = vadd.f32 %v669, %v784
        %v794 = vadd.f32 %v670, %v743
        %v795 = vadd.f32 %v671, %v745
        %v796 = vadd.f32 %v672, %v786
        %v797 = vadd.f32 %v673, %v788
        %s798 = scalar_lea.vmem %s1, 40
        %v799 = vld [vmem:[%s798] sm:$0xf]
        %v800 = vld [vmem:[%s798 + $0x4] sm:$0xf]
        %v803 = vunpack.c.l.b16 %v799
        %v804 = vunpack.c.l.b16 %v800
        %v805 = vpack.c.b16 %v804, %v803
        %806 = vrot.lane.b32.xlu0 %v199, 63
        %v807 = vpop.permute.xlu0 %806
        %808 = vrot.lane.b32.xlu0 %v200, 63
        %v809 = vpop.permute.xlu0 %808
        %810 = vrot.lane.b32.xlu0 %v201, 63
        %v811 = vpop.permute.xlu0 %810
        %812 = vrot.lane.b32.xlu0 %v202, 63
        %v813 = vpop.permute.xlu0 %812
        %814 = vrot.lane.b32.xlu0 %v203, 63
        %v815 = vpop.permute.xlu0 %814
        %vm816 = vcmask 515072
        %v817 = vsel %vm816, %v807, %v809
        %v818 = vsel %vm816, %v809, %v811
        %v819 = vsel %vm816, %v811, %v813
        %v820 = vsel %vm816, %v813, %v815
        %v826 = vsel %vm223, %v805, 0
        %828 = vmatprep.subr.bf16.mxu0 %v818
        %829 = vmatpush1.bf16.msra.mxu0 %v817
        %830 = vmatprep.subr.bf16.mxu0 0
        %831 = vmatpush1.bf16.msra.mxu0 0
        %832 = vmatprep.subr.bf16.mxu0 0
        %833 = vmatpush1.bf16.msra.mxu0 0
        %834 = vmatprep.subr.bf16.mxu0 0
        %835 = vmatpush1.bf16.msra.mxu0 0
        %836 = vmatprep.subr.bf16.mxu0 0
        %837 = vmatpush1.bf16.msra.mxu0 0
        %838 = vmatprep.subr.bf16.mxu0 0
        %839 = vmatpush1.bf16.msra.mxu0 0
        %840 = vmatprep.subr.bf16.mxu0 0
        %841 = vmatpush1.bf16.msra.mxu0 0
        %842 = vmatprep.subr.bf16.mxu0 0
        %843 = vmatpush1.bf16.msra.mxu0 0
        %844 = vmatprep.subr.bf16.mxu0 0
        %845 = vmatpush1.bf16.msra.mxu0 0
        %846 = vmatprep.subr.bf16.mxu0 0
        %847 = vmatpush1.bf16.msra.mxu0 0
        %848 = vmatprep.subr.bf16.mxu0 0
        %849 = vmatpush1.bf16.msra.mxu0 0
        %850 = vmatprep.subr.bf16.mxu0 0
        %851 = vmatpush1.bf16.msra.mxu0 0
        %852 = vmatprep.subr.bf16.mxu0 0
        %853 = vmatpush1.bf16.msra.mxu0 0
        %854 = vmatprep.subr.bf16.mxu0 0
        %855 = vmatpush1.bf16.msra.mxu0 0
        %856 = vmatprep.subr.bf16.mxu0 0
        %857 = vmatpush1.bf16.msra.mxu0 0
        %858 = vmatprep.subr.bf16.mxu0 0
        %859 = vmatpush1.bf16.msra.mxu0 0
        %860 = vmatprep.mubr.bf16.mxu0 0
        %861 = vmatmul.mubr.bf16.gmra.mrb[0].mxu0 %v826
        %v862 = vpop.f32.mrb[0].mxu0
        %v863 = vadd.f32 0.0, %v862
        %v864 = vpop.f32.mrb[0].mxu0
        %v865 = vadd.f32 0.0, %v864
        %v866 = vpop.f32.mrb[0].mxu0
        %v867 = vadd.f32 0.0, %v866
        %v868 = vpop.f32.mrb[0].mxu0
        %v869 = vadd.f32 0.0, %v868
        %870 = vdwg.mxu0
        %871 = vmatprep.subr.bf16.mxu0 %v820
        %872 = vmatpush1.bf16.msra.mxu0 %v819
        %873 = vmatprep.subr.bf16.mxu0 0
        %874 = vmatpush1.bf16.msra.mxu0 0
        %875 = vmatprep.subr.bf16.mxu0 0
        %876 = vmatpush1.bf16.msra.mxu0 0
        %877 = vmatprep.subr.bf16.mxu0 0
        %878 = vmatpush1.bf16.msra.mxu0 0
        %879 = vmatprep.subr.bf16.mxu0 0
        %880 = vmatpush1.bf16.msra.mxu0 0
        %881 = vmatprep.subr.bf16.mxu0 0
        %882 = vmatpush1.bf16.msra.mxu0 0
        %883 = vmatprep.subr.bf16.mxu0 0
        %884 = vmatpush1.bf16.msra.mxu0 0
        %885 = vmatprep.subr.bf16.mxu0 0
        %886 = vmatpush1.bf16.msra.mxu0 0
        %887 = vmatprep.subr.bf16.mxu0 0
        %888 = vmatpush1.bf16.msra.mxu0 0
        %889 = vmatprep.subr.bf16.mxu0 0
        %890 = vmatpush1.bf16.msra.mxu0 0
        %891 = vmatprep.subr.bf16.mxu0 0
        %892 = vmatpush1.bf16.msra.mxu0 0
        %893 = vmatprep.subr.bf16.mxu0 0
        %894 = vmatpush1.bf16.msra.mxu0 0
        %895 = vmatprep.subr.bf16.mxu0 0
        %896 = vmatpush1.bf16.msra.mxu0 0
        %897 = vmatprep.subr.bf16.mxu0 0
        %898 = vmatpush1.bf16.msra.mxu0 0
        %899 = vmatprep.subr.bf16.mxu0 0
        %900 = vmatpush1.bf16.msra.mxu0 0
        %901 = vmatprep.subr.bf16.mxu0 0
        %902 = vmatpush1.bf16.msra.mxu0 0
        %903 = vmatprep.mubr.bf16.mxu0 0
        %904 = vmatmul.mubr.bf16.gmra.mrb[0].mxu0 %v826
        %v905 = vpop.f32.mrb[0].mxu0
        %v906 = vadd.f32 0.0, %v905
        %v907 = vpop.f32.mrb[0].mxu0
        %v908 = vadd.f32 0.0, %v907
        %v909 = vpop.f32.mrb[0].mxu0
        %v910 = vadd.f32 0.0, %v909
        %v911 = vpop.f32.mrb[0].mxu0
        %v912 = vadd.f32 0.0, %v911
        %913 = vdwg.mxu0
        %v914 = vadd.f32 %v790, %v863
        %v915 = vadd.f32 %v791, %v865
        %v916 = vadd.f32 %v792, %v906
        %v917 = vadd.f32 %v793, %v908
        %v918 = vadd.f32 %v794, %v867
        %v919 = vadd.f32 %v795, %v869
        %v920 = vadd.f32 %v796, %v910
        %v921 = vadd.f32 %v797, %v912
        %s922 = scalar_lea.vmem %s1, 48
        %v923 = vld [vmem:[%s922] sm:$0xf]
        %v924 = vld [vmem:[%s922 + $0x4] sm:$0xf]
        %v927 = vunpack.c.l.b16 %v923
        %v928 = vunpack.c.l.b16 %v924
        %v929 = vpack.c.b16 %v928, %v927
        %930 = vrot.lane.b32.xlu0 %v199, 31
        %v931 = vpop.permute.xlu0 %930
        %932 = vrot.lane.b32.xlu0 %v200, 31
        %v933 = vpop.permute.xlu0 %932
        %934 = vrot.lane.b32.xlu0 %v201, 31
        %v935 = vpop.permute.xlu0 %934
        %936 = vrot.lane.b32.xlu0 %v202, 31
        %v937 = vpop.permute.xlu0 %936
        %938 = vrot.lane.b32.xlu0 %v203, 31
        %v939 = vpop.permute.xlu0 %938
        %vm940 = vcmask 252928
        %v941 = vsel %vm940, %v931, %v933
        %v942 = vsel %vm940, %v933, %v935
        %v943 = vsel %vm940, %v935, %v937
        %v944 = vsel %vm940, %v937, %v939
        %v950 = vsel %vm223, %v929, 0
        %952 = vmatprep.subr.bf16.mxu0 %v942
        %953 = vmatpush1.bf16.msra.mxu0 %v941
        %954 = vmatprep.subr.bf16.mxu0 0
        %955 = vmatpush1.bf16.msra.mxu0 0
        %956 = vmatprep.subr.bf16.mxu0 0
        %957 = vmatpush1.bf16.msra.mxu0 0
        %958 = vmatprep.subr.bf16.mxu0 0
        %959 = vmatpush1.bf16.msra.mxu0 0
        %960 = vmatprep.subr.bf16.mxu0 0
        %961 = vmatpush1.bf16.msra.mxu0 0
        %962 = vmatprep.subr.bf16.mxu0 0
        %963 = vmatpush1.bf16.msra.mxu0 0
        %964 = vmatprep.subr.bf16.mxu0 0
        %965 = vmatpush1.bf16.msra.mxu0 0
        %966 = vmatprep.subr.bf16.mxu0 0
        %967 = vmatpush1.bf16.msra.mxu0 0
        %968 = vmatprep.subr.bf16.mxu0 0
        %969 = vmatpush1.bf16.msra.mxu0 0
        %970 = vmatprep.subr.bf16.mxu0 0
        %971 = vmatpush1.bf16.msra.mxu0 0
        %972 = vmatprep.subr.bf16.mxu0 0
        %973 = vmatpush1.bf16.msra.mxu0 0
        %974 = vmatprep.subr.bf16.mxu0 0
        %975 = vmatpush1.bf16.msra.mxu0 0
        %976 = vmatprep.subr.bf16.mxu0 0
        %977 = vmatpush1.bf16.msra.mxu0 0
        %978 = vmatprep.subr.bf16.mxu0 0
        %979 = vmatpush1.bf16.msra.mxu0 0
        %980 = vmatprep.subr.bf16.mxu0 0
        %981 = vmatpush1.bf16.msra.mxu0 0
        %982 = vmatprep.subr.bf16.mxu0 0
        %983 = vmatpush1.bf16.msra.mxu0 0
        %984 = vmatprep.mubr.bf16.mxu0 0
        %985 = vmatmul.mubr.bf16.gmra.mrb[0].mxu0 %v950
        %v986 = vpop.f32.mrb[0].mxu0
        %v987 = vadd.f32 0.0, %v986
        %v988 = vpop.f32.mrb[0].mxu0
        %v989 = vadd.f32 0.0, %v988
        %v990 = vpop.f32.mrb[0].mxu0
        %v991 = vadd.f32 0.0, %v990
        %v992 = vpop.f32.mrb[0].mxu0
        %v993 = vadd.f32 0.0, %v992
        %994 = vdwg.mxu0
        %995 = vmatprep.subr.bf16.mxu0 %v944
        %996 = vmatpush1.bf16.msra.mxu0 %v943
        %997 = vmatprep.subr.bf16.mxu0 0
        %998 = vmatpush1.bf16.msra.mxu0 0
        %999 = vmatprep.subr.bf16.mxu0 0
        %1000 = vmatpush1.bf16.msra.mxu0 0
        %1001 = vmatprep.subr.bf16.mxu0 0
        %1002 = vmatpush1.bf16.msra.mxu0 0
        %1003 = vmatprep.subr.bf16.mxu0 0
        %1004 = vmatpush1.bf16.msra.mxu0 0
        %1005 = vmatprep.subr.bf16.mxu0 0
        %1006 = vmatpush1.bf16.msra.mxu0 0
        %1007 = vmatprep.subr.bf16.mxu0 0
        %1008 = vmatpush1.bf16.msra.mxu0 0
        %1009 = vmatprep.subr.bf16.mxu0 0
        %1010 = vmatpush1.bf16.msra.mxu0 0
        %1011 = vmatprep.subr.bf16.mxu0 0
        %1012 = vmatpush1.bf16.msra.mxu0 0
        %1013 = vmatprep.subr.bf16.mxu0 0
        %1014 = vmatpush1.bf16.msra.mxu0 0
        %1015 = vmatprep.subr.bf16.mxu0 0
        %1016 = vmatpush1.bf16.msra.mxu0 0
        %1017 = vmatprep.subr.bf16.mxu0 0
        %1018 = vmatpush1.bf16.msra.mxu0 0
        %1019 = vmatprep.subr.bf16.mxu0 0
        %1020 = vmatpush1.bf16.msra.mxu0 0
        %1021 = vmatprep.subr.bf16.mxu0 0
        %1022 = vmatpush1.bf16.msra.mxu0 0
        %1023 = vmatprep.subr.bf16.mxu0 0
        %1024 = vmatpush1.bf16.msra.mxu0 0
        %1025 = vmatprep.subr.bf16.mxu0 0
        %1026 = vmatpush1.bf16.msra.mxu0 0
        %1027 = vmatprep.mubr.bf16.mxu0 0
        %1028 = vmatmul.mubr.bf16.gmra.mrb[0].mxu0 %v950
        %v1029 = vpop.f32.mrb[0].mxu0
        %v1030 = vadd.f32 0.0, %v1029
        %v1031 = vpop.f32.mrb[0].mxu0
        %v1032 = vadd.f32 0.0, %v1031
        %v1033 = vpop.f32.mrb[0].mxu0
        %v1034 = vadd.f32 0.0, %v1033
        %v1035 = vpop.f32.mrb[0].mxu0
        %v1036 = vadd.f32 0.0, %v1035
        %1037 = vdwg.mxu0
        %v1038 = vadd.f32 %v914, %v987
        %v1039 = vadd.f32 %v915, %v989
        %v1040 = vadd.f32 %v916, %v1030
        %v1041 = vadd.f32 %v917, %v1032
        %v1042 = vadd.f32 %v918, %v991
        %v1043 = vadd.f32 %v919, %v993
        %v1044 = vadd.f32 %v920, %v1034
        %v1045 = vadd.f32 %v921, %v1036
        %s1046 = scalar_lea.vmem %s1, 56
        %v1047 = vld [vmem:[%s1046] sm:$0xf]
        %v1048 = vld [vmem:[%s1046 + $0x4] sm:$0xf]
        %v1051 = vunpack.c.l.b16 %v1047
        %v1052 = vunpack.c.l.b16 %v1048
        %v1053 = vpack.c.b16 %v1052, %v1051
        %1054 = vrot.lane.b32.xlu0 %v199, 30
        %v1055 = vpop.permute.xlu0 %1054
        %1056 = vrot.lane.b32.xlu0 %v200, 30
        %v1057 = vpop.permute.xlu0 %1056
        %1058 = vrot.lane.b32.xlu0 %v201, 30
        %v1059 = vpop.permute.xlu0 %1058
        %1060 = vrot.lane.b32.xlu0 %v202, 30
        %v1061 = vpop.permute.xlu0 %1060
        %1062 = vrot.lane.b32.xlu0 %v203, 30
        %v1063 = vpop.permute.xlu0 %1062
        %vm1064 = vcmask 244736
        %v1065 = vsel %vm1064, %v1055, %v1057
        %v1066 = vsel %vm1064, %v1057, %v1059
        %v1067 = vsel %vm1064, %v1059, %v1061
        %v1068 = vsel %vm1064, %v1061, %v1063
        %v1074 = vsel %vm223, %v1053, 0
        %1076 = vmatprep.subr.bf16.mxu0 %v1066
        %1077 = vmatpush1.bf16.msra.mxu0 %v1065
        %1078 = vmatprep.subr.bf16.mxu0 0
        %1079 = vmatpush1.bf16.msra.mxu0 0
        %1080 = vmatprep.subr.bf16.mxu0 0
        %1081 = vmatpush1.bf16.msra.mxu0 0
        %1082 = vmatprep.subr.bf16.mxu0 0
        %1083 = vmatpush1.bf16.msra.mxu0 0
        %1084 = vmatprep.subr.bf16.mxu0 0
        %1085 = vmatpush1.bf16.msra.mxu0 0
        %1086 = vmatprep.subr.bf16.mxu0 0
        %1087 = vmatpush1.bf16.msra.mxu0 0
        %1088 = vmatprep.subr.bf16.mxu0 0
        %1089 = vmatpush1.bf16.msra.mxu0 0
        %1090 = vmatprep.subr.bf16.mxu0 0
        %1091 = vmatpush1.bf16.msra.mxu0 0
        %1092 = vmatprep.subr.bf16.mxu0 0
        %1093 = vmatpush1.bf16.msra.mxu0 0
        %1094 = vmatprep.subr.bf16.mxu0 0
        %1095 = vmatpush1.bf16.msra.mxu0 0
        %1096 = vmatprep.subr.bf16.mxu0 0
        %1097 = vmatpush1.bf16.msra.mxu0 0
        %1098 = vmatprep.subr.bf16.mxu0 0
        %1099 = vmatpush1.bf16.msra.mxu0 0
        %1100 = vmatprep.subr.bf16.mxu0 0
        %1101 = vmatpush1.bf16.msra.mxu0 0
        %1102 = vmatprep.subr.bf16.mxu0 0
        %1103 = vmatpush1.bf16.msra.mxu0 0
        %1104 = vmatprep.subr.bf16.mxu0 0
        %1105 = vmatpush1.bf16.msra.mxu0 0
        %1106 = vmatprep.subr.bf16.mxu0 0
        %1107 = vmatpush1.bf16.msra.mxu0 0
        %1108 = vmatprep.mubr.bf16.mxu0 0
        %1109 = vmatmul.mubr.bf16.gmra.mrb[0].mxu0 %v1074
        %v1110 = vpop.f32.mrb[0].mxu0
        %v1111 = vadd.f32 0.0, %v1110
        %v1112 = vpop.f32.mrb[0].mxu0
        %v1113 = vadd.f32 0.0, %v1112
        %v1114 = vpop.f32.mrb[0].mxu0
        %v1115 = vadd.f32 0.0, %v1114
        %v1116 = vpop.f32.mrb[0].mxu0
        %v1117 = vadd.f32 0.0, %v1116
        %1118 = vdwg.mxu0
        %1119 = vmatprep.subr.bf16.mxu0 %v1068
        %1120 = vmatpush1.bf16.msra.mxu0 %v1067
        %1121 = vmatprep.subr.bf16.mxu0 0
        %1122 = vmatpush1.bf16.msra.mxu0 0
        %1123 = vmatprep.subr.bf16.mxu0 0
        %1124 = vmatpush1.bf16.msra.mxu0 0
        %1125 = vmatprep.subr.bf16.mxu0 0
        %1126 = vmatpush1.bf16.msra.mxu0 0
        %1127 = vmatprep.subr.bf16.mxu0 0
        %1128 = vmatpush1.bf16.msra.mxu0 0
        %1129 = vmatprep.subr.bf16.mxu0 0
        %1130 = vmatpush1.bf16.msra.mxu0 0
        %1131 = vmatprep.subr.bf16.mxu0 0
        %1132 = vmatpush1.bf16.msra.mxu0 0
        %1133 = vmatprep.subr.bf16.mxu0 0
        %1134 = vmatpush1.bf16.msra.mxu0 0
        %1135 = vmatprep.subr.bf16.mxu0 0
        %1136 = vmatpush1.bf16.msra.mxu0 0
        %1137 = vmatprep.subr.bf16.mxu0 0
        %1138 = vmatpush1.bf16.msra.mxu0 0
        %1139 = vmatprep.subr.bf16.mxu0 0
        %1140 = vmatpush1.bf16.msra.mxu0 0
        %1141 = vmatprep.subr.bf16.mxu0 0
        %1142 = vmatpush1.bf16.msra.mxu0 0
        %1143 = vmatprep.subr.bf16.mxu0 0
        %1144 = vmatpush1.bf16.msra.mxu0 0
        %1145 = vmatprep.subr.bf16.mxu0 0
        %1146 = vmatpush1.bf16.msra.mxu0 0
        %1147 = vmatprep.subr.bf16.mxu0 0
        %1148 = vmatpush1.bf16.msra.mxu0 0
        %1149 = vmatprep.subr.bf16.mxu0 0
        %1150 = vmatpush1.bf16.msra.mxu0 0
        %1151 = vmatprep.mubr.bf16.mxu0 0
        %1152 = vmatmul.mubr.bf16.gmra.mrb[0].mxu0 %v1074
        %v1153 = vpop.f32.mrb[0].mxu0
        %v1154 = vadd.f32 0.0, %v1153
        %v1155 = vpop.f32.mrb[0].mxu0
        %v1156 = vadd.f32 0.0, %v1155
        %v1157 = vpop.f32.mrb[0].mxu0
        %v1158 = vadd.f32 0.0, %v1157
        %v1159 = vpop.f32.mrb[0].mxu0
        %v1160 = vadd.f32 0.0, %v1159
        %1161 = vdwg.mxu0
        %v1162 = vadd.f32 %v1038, %v1111
        %v1163 = vadd.f32 %v1039, %v1113
        %v1164 = vadd.f32 %v1040, %v1154
        %v1165 = vadd.f32 %v1041, %v1156
        %v1166 = vadd.f32 %v1042, %v1115
        %v1167 = vadd.f32 %v1043, %v1117
        %v1168 = vadd.f32 %v1044, %v1158
        %v1169 = vadd.f32 %v1045, %v1160
        %s1170 = scalar_lea.vmem %s1, 64
        %v1171 = vld [vmem:[%s1170] sm:$0xf]
        %v1172 = vld [vmem:[%s1170 + $0x4] sm:$0xf]
        %v1175 = vunpack.c.l.b16 %v1171
        %v1176 = vunpack.c.l.b16 %v1172
        %v1177 = vpack.c.b16 %v1176, %v1175
        %1178 = vrot.lane.b32.xlu0 %v199, 29
        %v1179 = vpop.permute.xlu0 %1178
        %1180 = vrot.lane.b32.xlu0 %v200, 29
        %v1181 = vpop.permute.xlu0 %1180
        %1182 = vrot.lane.b32.xlu0 %v201, 29
        %v1183 = vpop.permute.xlu0 %1182
        %1184 = vrot.lane.b32.xlu0 %v202, 29
        %v1185 = vpop.permute.xlu0 %1184
        %1186 = vrot.lane.b32.xlu0 %v203, 29
        %v1187 = vpop.permute.xlu0 %1186
        %vm1188 = vcmask 236544
        %v1189 = vsel %vm1188, %v1179, %v1181
        %v1190 = vsel %vm1188, %v1181, %v1183
        %v1191 = vsel %vm1188, %v1183, %v1185
        %v1192 = vsel %vm1188, %v1185, %v1187
        %v1198 = vsel %vm223, %v1177, 0
        %1200 = vmatprep.subr.bf16.mxu0 %v1190
        %1201 = vmatpush1.bf16.msra.mxu0 %v1189
        %1202 = vmatprep.subr.bf16.mxu0 0
        %1203 = vmatpush1.bf16.msra.mxu0 0
        %1204 = vmatprep.subr.bf16.mxu0 0
        %1205 = vmatpush1.bf16.msra.mxu0 0
        %1206 = vmatprep.subr.bf16.mxu0 0
        %1207 = vmatpush1.bf16.msra.mxu0 0
        %1208 = vmatprep.subr.bf16.mxu0 0
        %1209 = vmatpush1.bf16.msra.mxu0 0
        %1210 = vmatprep.subr.bf16.mxu0 0
        %1211 = vmatpush1.bf16.msra.mxu0 0
        %1212 = vmatprep.subr.bf16.mxu0 0
        %1213 = vmatpush1.bf16.msra.mxu0 0
        %1214 = vmatprep.subr.bf16.mxu0 0
        %1215 = vmatpush1.bf16.msra.mxu0 0
        %1216 = vmatprep.subr.bf16.mxu0 0
        %1217 = vmatpush1.bf16.msra.mxu0 0
        %1218 = vmatprep.subr.bf16.mxu0 0
        %1219 = vmatpush1.bf16.msra.mxu0 0
        %1220 = vmatprep.subr.bf16.mxu0 0
        %1221 = vmatpush1.bf16.msra.mxu0 0
        %1222 = vmatprep.subr.bf16.mxu0 0
        %1223 = vmatpush1.bf16.msra.mxu0 0
        %1224 = vmatprep.subr.bf16.mxu0 0
        %1225 = vmatpush1.bf16.msra.mxu0 0
        %1226 = vmatprep.subr.bf16.mxu0 0
        %1227 = vmatpush1.bf16.msra.mxu0 0
        %1228 = vmatprep.subr.bf16.mxu0 0
        %1229 = vmatpush1.bf16.msra.mxu0 0
        %1230 = vmatprep.subr.bf16.mxu0 0
        %1231 = vmatpush1.bf16.msra.mxu0 0
        %1232 = vmatprep.mubr.bf16.mxu0 0
        %1233 = vmatmul.mubr.bf16.gmra.mrb[0].mxu0 %v1198
        %v1234 = vpop.f32.mrb[0].mxu0
        %v1235 = vadd.f32 0.0, %v1234
        %v1236 = vpop.f32.mrb[0].mxu0
        %v1237 = vadd.f32 0.0, %v1236
        %v1238 = vpop.f32.mrb[0].mxu0
        %v1239 = vadd.f32 0.0, %v1238
        %v1240 = vpop.f32.mrb[0].mxu0
        %v1241 = vadd.f32 0.0, %v1240
        %1242 = vdwg.mxu0
        %1243 = vmatprep.subr.bf16.mxu0 %v1192
        %1244 = vmatpush1.bf16.msra.mxu0 %v1191
        %1245 = vmatprep.subr.bf16.mxu0 0
        %1246 = vmatpush1.bf16.msra.mxu0 0
        %1247 = vmatprep.subr.bf16.mxu0 0
        %1248 = vmatpush1.bf16.msra.mxu0 0
        %1249 = vmatprep.subr.bf16.mxu0 0
        %1250 = vmatpush1.bf16.msra.mxu0 0
        %1251 = vmatprep.subr.bf16.mxu0 0
        %1252 = vmatpush1.bf16.msra.mxu0 0
        %1253 = vmatprep.subr.bf16.mxu0 0
        %1254 = vmatpush1.bf16.msra.mxu0 0
        %1255 = vmatprep.subr.bf16.mxu0 0
        %1256 = vmatpush1.bf16.msra.mxu0 0
        %1257 = vmatprep.subr.bf16.mxu0 0
        %1258 = vmatpush1.bf16.msra.mxu0 0
        %1259 = vmatprep.subr.bf16.mxu0 0
        %1260 = vmatpush1.bf16.msra.mxu0 0
        %1261 = vmatprep.subr.bf16.mxu0 0
        %1262 = vmatpush1.bf16.msra.mxu0 0
        %1263 = vmatprep.subr.bf16.mxu0 0
        %1264 = vmatpush1.bf16.msra.mxu0 0
        %1265 = vmatprep.subr.bf16.mxu0 0
        %1266 = vmatpush1.bf16.msra.mxu0 0
        %1267 = vmatprep.subr.bf16.mxu0 0
        %1268 = vmatpush1.bf16.msra.mxu0 0
        %1269 = vmatprep.subr.bf16.mxu0 0
        %1270 = vmatpush1.bf16.msra.mxu0 0
        %1271 = vmatprep.subr.bf16.mxu0 0
        %1272 = vmatpush1.bf16.msra.mxu0 0
        %1273 = vmatprep.subr.bf16.mxu0 0
        %1274 = vmatpush1.bf16.msra.mxu0 0
        %1275 = vmatprep.mubr.bf16.mxu0 0
        %1276 = vmatmul.mubr.bf16.gmra.mrb[0].mxu0 %v1198
        %v1277 = vpop.f32.mrb[0].mxu0
        %v1278 = vadd.f32 0.0, %v1277
        %v1279 = vpop.f32.mrb[0].mxu0
        %v1280 = vadd.f32 0.0, %v1279
        %v1281 = vpop.f32.mrb[0].mxu0
        %v1282 = vadd.f32 0.0, %v1281
        %v1283 = vpop.f32.mrb[0].mxu0
        %v1284 = vadd.f32 0.0, %v1283
        %1285 = vdwg.mxu0
        %v1286 = vadd.f32 %v1162, %v1235
        %v1287 = vadd.f32 %v1163, %v1237
        %v1288 = vadd.f32 %v1164, %v1278
        %v1289 = vadd.f32 %v1165, %v1280
        %v1290 = vadd.f32 %v1166, %v1239
        %v1291 = vadd.f32 %v1167, %v1241
        %v1292 = vadd.f32 %v1168, %v1282
        %v1293 = vadd.f32 %v1169, %v1284
        %v1294 = vld [vmem:[%s2] sm:$0xff]
        %v1295 = vld [vmem:[%s2 + $0x8] sm:$0xff]
        %1297 = vset.pattern.permute.xlu0 0
        %1298 = vperm.xlu0 %1297, %v1294
        %v1299 = vpop.permute.xlu0 %1298
        %1302 = vset.pattern.permute.xlu0 0
        %1303 = vperm.xlu0 %1302, %v1295
        %v1304 = vpop.permute.xlu0 %1303
        %v1306 = vadd.f32 %v1286, %v1299
        %v1307 = vadd.f32 %v1287, %v1299
        %v1308 = vadd.f32 %v1288, %v1299
        %v1309 = vadd.f32 %v1289, %v1299
        %v1310 = vadd.f32 %v1290, %v1304
        %v1311 = vadd.f32 %v1291, %v1304
        %v1312 = vadd.f32 %v1292, %v1304
        %v1313 = vadd.f32 %v1293, %v1304
        %v1314 = vmax.f32 %v1306, 0.0
        %v1315 = vmax.f32 %v1307, 0.0
        %v1316 = vmax.f32 %v1308, 0.0
        %v1317 = vmax.f32 %v1309, 0.0
        %v1318 = vmax.f32 %v1310, 0.0
        %v1319 = vmax.f32 %v1311, 0.0
        %v1320 = vmax.f32 %v1312, 0.0
        %v1321 = vmax.f32 %v1313, 0.0
        %v1322 = vpack.c.bf16 %v1318, %v1314
        %v1323 = vpack.c.bf16 %v1319, %v1315
        %v1324 = vpack.c.bf16 %v1320, %v1316
        %v1325 = vpack.c.bf16 %v1321, %v1317
        %v1330 = vunpack.c.l.b16 %v1322
        %v1331 = vunpack.c.l.b16 %v1323
        %v1332 = vunpack.c.l.b16 %v1324
        %v1333 = vunpack.c.l.b16 %v1325
        %v1334 = vunpack.c.h.b16 %v1322
        %v1335 = vunpack.c.h.b16 %v1323
        %v1336 = vunpack.c.h.b16 %v1324
        %v1337 = vunpack.c.h.b16 %v1325
        %v1338 = vpack.c.b16 %v1331, %v1330
        %v1339 = vpack.c.b16 %v1333, %v1332
        %v1340 = vpack.c.b16 %v1335, %v1334
        %v1341 = vpack.c.b16 %v1337, %v1336
        %1346 = vst [vmem:[%s159] sm:$0xff] %v1338
        %1347 = vst [vmem:[%s159 + $0x8] sm:$0xff] %v1339
        %1348 = vst [vmem:[%s159 + $0x10] sm:$0xff] %v1340
        %1349 = vst [vmem:[%s159 + $0x18] sm:$0xff] %v1341
        %s1350 = sand.u32 %s90, 1
        %s1351 = sand.u32 %s90, 1
        %s1352 = smul.addr %s1351, 32
        %s1353 = scalar_lea.vmem [#allocation2], %s1352
        // Predicated region
        $region33: #{rsu4_apply_nchw.8} parent=31 // pred_check
          %p1354 = pneg %p100
        $region34: #{rsu4_apply_nchw.8} parent=31 // pred_check_branch
          %1356 = sbr.rel (%p1354) target = $region36
        $region35: #{rsu4_apply_nchw.8} parent=31 // pred_region
          %s1357 = smul.u32 4, %s14
          %s1358 = smul.addr %s1357, 4
          %s1359 = scalar_lea.vmem %s3, %s1358
          // Predicated region
          $region37: #{rsu4_apply_nchw.8} parent=35 // pred_check
            _
          $region38: #{rsu4_apply_nchw.8} parent=35 // pred_check_branch
            %1361 = sbr.rel (0) target = $region40
          $region39: #{rsu4_apply_nchw.8} parent=35 // pred_region
            // Predicated region
            $region41: #{rsu4_apply_nchw.8} parent=39 // pred_check
              _
            $region42: #{rsu4_apply_nchw.8} parent=39 // pred_check_branch
              %1363 = sbr.rel (0) target = $region44
            $region43: #{rsu4_apply_nchw.8} parent=39 // pred_region
              loop: start=0, step=1, limit=1
              $region45: #{rsu4_apply_nchw.8} parent=43 // loop_pre_header
                _
              $region46: #{rsu4_apply_nchw.8} parent=43 // loop_header
                %s1365 = sphi 0, %s1369
                %p1366 = scmp.ge.s32.totalorder %s1365, 1
                %s1370 = sphi %s1353, %s1353
                %s1371 = sphi %s1359, %s1359
              $region47: #{rsu4_apply_nchw.8} parent=43 // loop_header_branch
                %1368 = sbr.rel (%p1366) target = $region51
              $region48: #{rsu4_apply_nchw.8} parent=43 // loop_body
                %v1372 = vld [vmem:[%s1370] sm:$0xff]
                %1373 = vst [vmem:[%s1371] sm:$0xff] %v1372
                %v1374 = vld [vmem:[%s1370 + $0x8] sm:$0xff]
                %1375 = vst [vmem:[%s1371 + $0x8] sm:$0xff] %v1374
                %v1376 = vld [vmem:[%s1370 + $0x10] sm:$0xff]
                %1377 = vst [vmem:[%s1371 + $0x50] sm:$0xff] %v1376
                %v1378 = vld [vmem:[%s1370 + $0x18] sm:$0xff]
                %1379 = vst [vmem:[%s1371 + $0x58] sm:$0xff] %v1378
              $region49: #{rsu4_apply_nchw.8} parent=43 // loop_footer
                %s1369 = sadd.s32 1, %s1365
              $region50: #{rsu4_apply_nchw.8} parent=43 // loop_footer_branch
                %1364 = sbr.rel target = $region46
              $region51: #{rsu4_apply_nchw.8} parent=43 // loop_exit
                _
            $region44: #{rsu4_apply_nchw.8} parent=39 // pred_fallthru
              _
            // Predicated region
            $region52: #{rsu4_apply_nchw.8} parent=39 // pred_check
              _
            $region53: #{rsu4_apply_nchw.8} parent=39 // pred_check_branch
              %1381 = sbr.rel target = $region55
            $region54: #{rsu4_apply_nchw.8} parent=39 // pred_region
              _
            $region55: #{rsu4_apply_nchw.8} parent=39 // pred_fallthru
              _
          $region40: #{rsu4_apply_nchw.8} parent=35 // pred_fallthru
            _
          %1382 = vnop
        $region36: #{rsu4_apply_nchw.8} parent=31 // pred_fallthru
          _
      $region32: #{rsu4_apply_nchw.8} parent=5 // pred_fallthru
        _
      %p1383 = scmp.le.s32.totalorder 2, %s9
      // Predicated region
      $region56: #{rsu4_apply_nchw.8} parent=5 // pred_check
        %p1384 = pneg %p1383
      $region57: #{rsu4_apply_nchw.8} parent=5 // pred_check_branch
        %1386 = sbr.rel (%p1384) target = $region59
      $region58: #{rsu4_apply_nchw.8} parent=5 // pred_region
        %s1387 = ssub.s32 %s9, 2
        // Predicated region
        $region60: #{rsu4_apply_nchw.8} parent=58 // pred_check
          %p1388 = pneg %p106
        $region61: #{rsu4_apply_nchw.8} parent=58 // pred_check_branch
          %1390 = sbr.rel (%p1388) target = $region63
        $region62: #{rsu4_apply_nchw.8} parent=58 // pred_region
          %s1391 = sand.u32 %s91, 1
          %s1392 = sand.u32 %s91, 1
          %s1393 = smul.addr %s1392, 32
          %s1394 = scalar_lea.vmem [#allocation2], %s1393
        $region63: #{rsu4_apply_nchw.8} parent=58 // pred_fallthru
          _
      $region59: #{rsu4_apply_nchw.8} parent=5 // pred_fallthru
        _
    $region6: #{rsu4_apply_nchw.8} parent=1 // loop_footer
      %s13 = sadd.s32 1, %s9
    $region7: #{rsu4_apply_nchw.8} parent=1 // loop_footer_branch
      %8 = sbr.rel target = $region3
    $region8: #{rsu4_apply_nchw.8} parent=1 // loop_exit
      _

// kernel: rsu4_apply_nchw.10
$region0: #{rsu4_apply_nchw.10}
  #allocation0 [shape = 'u32[]', space=smem, size = 0x4, offset = 0x4, fixed_abs, tag = 'smem constant byte address 0x4 - core index']
  #allocation1 [shape = 'u32[144,128]{1,0:T(1,128)}', space=vmem, size = 0x12000, scoped, tag = 'internal scratch']
  %s0 = inlined_call_operand.vmem [shape: bf16[2,16,640], index: 0, kind: input, shape index: {}]
  %s1 = inlined_call_operand.vmem [shape: bf16[9,16,16], index: 1, kind: input, shape index: {}]
  %s2 = inlined_call_operand.vmem [shape: f32[16,1], index: 2, kind: input, shape index: {}]
  %s3 = inlined_call_operand.vmem [shape: bf16[16,1024], index: 3, kind: output, shape index: {}]
  %s4 = sld [smem:[#allocation0]]
  $region64: #{rsu4_apply_nchw.10} parent=0
    _
  %s6 = ssub.s32 1, %s4
  %s7 = scalar_select 0, %s6, %s4
  $region1: #{rsu4_apply_nchw.10} parent=0
    #allocation2 [shape = 'u8[32768]{0}', space=vmem, size = 0x8000, scoped, tag = 'output window, operand 0']
    loop: start=0, step=1, limit=4
    $region2: #{rsu4_apply_nchw.10} parent=1 // loop_pre_header
      _
    $region3: #{rsu4_apply_nchw.10} parent=1 // loop_header
      %s9 = sphi 0, %s13
      %p10 = scmp.ge.s32.totalorder %s9, 4
      %s19 = sphi 0, %s21
      %s22 = sphi 0, %s19
      %s23 = sphi 0, %s22
      %s39 = sphi 0, %s23
      %s43 = sphi 0, %s43
      %s45 = sphi 0, %s43
      %s46 = sphi 0, %s45
      %s60 = sphi 0, %s46
      %s64 = sphi 0, %s64
      %s66 = sphi 0, %s64
      %s67 = sphi 0, %s66
      %s81 = sphi 0, %s67
      %s87 = sphi 0, %s89
      %s90 = sphi 0, %s87
      %s91 = sphi 0, %s90
      %s107 = sphi 0, %s91
    $region4: #{rsu4_apply_nchw.10} parent=1 // loop_header_branch
      %12 = sbr.rel (%p10) target = $region8
    $region5: #{rsu4_apply_nchw.10} parent=1 // loop_body
      %s14 = ssub.s32 %s9, 1
      %s15 = ssub.s32 %s9, 2
      %s16 = sadd.s32 %s9, 1
      %s17 = ssub.s32 %s9, %s16
      %p18 = scmp.eq.s32.totalorder %s17, 0
      %s20 = sadd.s32 %s19, 1
      %s21 = scalar_select %p18, %s19, %s20
      %p24 = pneg %p18
      %p25 = scmp.eq.s32.totalorder %s9, 1
      %p26 = por %p24, %p25
      %p27 = scmp.ne.s32.totalorder %s19, %s22
      %p28 = scmp.eq.s32.totalorder %s9, 0
      %p29 = por %p27, %p28
      %p30 = scmp.ne.s32.totalorder %s19, %s22
      %p31 = scmp.eq.s32.totalorder %s14, 1
      %p32 = por %p30, %p31
      %p33 = scmp.ne.s32.totalorder %s22, %s23
      %p34 = scmp.eq.s32.totalorder %s14, 0
      %p35 = por %p33, %p34
      %p36 = scmp.ne.s32.totalorder %s22, %s23
      %p37 = scmp.eq.s32.totalorder %s15, 1
      %p38 = por %p36, %p37
      %p40 = scmp.ne.s32.totalorder %s23, %s39
      %p41 = scmp.eq.s32.totalorder %s15, 0
      %p42 = por %p40, %p41
      %s44 = sadd.s32 %s43, 1
      %p47 = scmp.eq.s32.totalorder %s9, 1
      %p48 = scmp.ne.s32.totalorder %s43, %s45
      %p49 = scmp.eq.s32.totalorder %s9, 0
      %p50 = por %p48, %p49
      %p51 = scmp.ne.s32.totalorder %s43, %s45
      %p52 = scmp.eq.s32.totalorder %s14, 1
      %p53 = por %p51, %p52
      %p54 = scmp.ne.s32.totalorder %s45, %s46
      %p55 = scmp.eq.s32.totalorder %s14, 0
      %p56 = por %p54, %p55
      %p57 = scmp.ne.s32.totalorder %s45, %s46
      %p58 = scmp.eq.s32.totalorder %s15, 1
      %p59 = por %p57, %p58
      %p61 = scmp.ne.s32.totalorder %s46, %s60
      %p62 = scmp.eq.s32.totalorder %s15, 0
      %p63 = por %p61, %p62
      %s65 = sadd.s32 %s64, 1
      %p68 = scmp.eq.s32.totalorder %s9, 1
      %p69 = scmp.ne.s32.totalorder %s64, %s66
      %p70 = scmp.eq.s32.totalorder %s9, 0
      %p71 = por %p69, %p70
      %p72 = scmp.ne.s32.totalorder %s64, %s66
      %p73 = scmp.eq.s32.totalorder %s14, 1
      %p74 = por %p72, %p73
      %p75 = scmp.ne.s32.totalorder %s66, %s67
      %p76 = scmp.eq.s32.totalorder %s14, 0
      %p77 = por %p75, %p76
      %p78 = scmp.ne.s32.totalorder %s66, %s67
      %p79 = scmp.eq.s32.totalorder %s15, 1
      %p80 = por %p78, %p79
      %p82 = scmp.ne.s32.totalorder %s67, %s81
      %p83 = scmp.eq.s32.totalorder %s15, 0
      %p84 = por %p82, %p83
      %s85 = ssub.s32 %s9, %s16
      %p86 = scmp.eq.s32.totalorder %s85, 0
      %s88 = sadd.s32 %s87, 1
      %s89 = scalar_select %p86, %s87, %s88
      %p92 = pneg %p86
      %p93 = scmp.eq.s32.totalorder %s9, 1
      %p94 = por %p92, %p93
      %p95 = scmp.ne.s32.totalorder %s87, %s90
      %p96 = scmp.eq.s32.totalorder %s9, 0
      %p97 = por %p95, %p96
      %p98 = scmp.ne.s32.totalorder %s87, %s90
      %p99 = scmp.eq.s32.totalorder %s14, 1
      %p100 = por %p98, %p99
      %p101 = scmp.ne.s32.totalorder %s90, %s91
      %p102 = scmp.eq.s32.totalorder %s14, 0
      %p103 = por %p101, %p102
      %p104 = scmp.ne.s32.totalorder %s90, %s91
      %p105 = scmp.eq.s32.totalorder %s15, 1
      %p106 = por %p104, %p105
      %p108 = scmp.ne.s32.totalorder %s91, %s107
      %p109 = scmp.eq.s32.totalorder %s15, 0
      %p110 = por %p108, %p109
      %p111 = scmp.le.s32.totalorder 1, %s9
      %p112 = scmp.lt.s32.totalorder %s9, 3
      %p113 = pnand %p111, %p112
      %p114 = pneg %p113
      // Predicated region
      $region9: #{rsu4_apply_nchw.10} parent=5 // pred_check
        _
      $region10: #{rsu4_apply_nchw.10} parent=5 // pred_check_branch
        %116 = sbr.rel (%p113) target = $region12
      $region11: #{rsu4_apply_nchw.10} parent=5 // pred_region
        %s117 = ssub.s32 %s9, 1
        // Predicated region
        $region13: #{rsu4_apply_nchw.10} parent=11 // pred_check
          %p118 = pneg %p56
        $region14: #{rsu4_apply_nchw.10} parent=11 // pred_check_branch
          %120 = sbr.rel (%p118) target = $region16
        $region15: #{rsu4_apply_nchw.10} parent=11 // pred_region
          _
        $region16: #{rsu4_apply_nchw.10} parent=11 // pred_fallthru
          _
        // Predicated region
        $region17: #{rsu4_apply_nchw.10} parent=11 // pred_check
          %p121 = pneg %p77
        $region18: #{rsu4_apply_nchw.10} parent=11 // pred_check_branch
          %123 = sbr.rel (%p121) target = $region20
        $region19: #{rsu4_apply_nchw.10} parent=11 // pred_region
          _
        $region20: #{rsu4_apply_nchw.10} parent=11 // pred_fallthru
          _
      $region12: #{rsu4_apply_nchw.10} parent=5 // pred_fallthru
        _
      %p124 = scmp.lt.s32.totalorder %s9, 2
      // Predicated region
      $region21: #{rsu4_apply_nchw.10} parent=5 // pred_check
        %p125 = pneg %p124
      $region22: #{rsu4_apply_nchw.10} parent=5 // pred_check_branch
        %127 = sbr.rel (%p125) target = $region24
      $region23: #{rsu4_apply_nchw.10} parent=5 // pred_region
        // Predicated region
        $region25: #{rsu4_apply_nchw.10} parent=23 // pred_check
          %p128 = pneg %p29
        $region26: #{rsu4_apply_nchw.10} parent=23 // pred_check_branch
          %130 = sbr.rel (%p128) target = $region28
        $region27: #{rsu4_apply_nchw.10} parent=23 // pred_region
          %p131 = scmp.lt.s32.totalorder %s9, 1
          %s132 = scalar_select %p131, %s9, 1
          %s133 = smul.addr %s132, 10
          %s134 = smul.addr %s133, 4
          %s135 = scalar_lea.vmem %s0, %s134
        $region28: #{rsu4_apply_nchw.10} parent=23 // pred_fallthru
          _
      $region24: #{rsu4_apply_nchw.10} parent=5 // pred_fallthru
        _
      %p136 = scmp.le.s32.totalorder 1, %s9
      %p137 = scmp.lt.s32.totalorder %s9, 3
      %p138 = pnand %p136, %p137
      %p139 = pneg %p138
      // Predicated region
      $region29: #{rsu4_apply_nchw.10} parent=5 // pred_check
        _
      $region30: #{rsu4_apply_nchw.10} parent=5 // pred_check_branch
        %141 = sbr.rel (%p138) target = $region32
      $region31: #{rsu4_apply_nchw.10} parent=5 // pred_region
        %s142 = ssub.s32 %s9, 1
        %p143 = scmp.lt.s32.totalorder %s14, 1
        %s144 = scalar_select %p143, %s14, 1
        %s145 = smul.addr %s144, 10
        %s146 = smul.addr %s145, 4
        %s147 = scalar_lea.vmem %s0, %s146
        %p148 = pneg %p35
        %p149 = pneg %p32
        %p150 = pneg %p56
        %p151 = pneg %p53
        %p152 = pneg %p77
        %p153 = pneg %p74
        %p154 = pneg %p103
        %p155 = pneg %p100
        %s156 = sand.u32 %s90, 1
        %s157 = sand.u32 %s90, 1
        %s158 = smul.addr %s157, 32
        %s159 = scalar_lea.vmem [#allocation2], %s158
        %p160 = scmp.lt.s32.totalorder %s14, 1
        %s161 = scalar_select %p160, %s14, 1
        %s162 = smul.addr %s161, 10
        %s163 = smul.addr %s162, 4
        %s164 = scalar_lea.vmem %s0, %s163
        %s165 = smul.u32 4, %s14
        %v167 = vld [vmem:[%s1] sm:$0xf]
        %v168 = vld [vmem:[%s1 + $0x4] sm:$0xf]
        %v169 = vld [vmem:[%s164] sm:$0xff]
        %v170 = vld [vmem:[%s164 + $0x8] sm:$0xff]
        %v171 = vld [vmem:[%s164 + $0x10] sm:$0xf]
        %v172 = vld [vmem:[%s164 + $0x14] sm:$0xff]
        %v173 = vld [vmem:[%s164 + $0x1c] sm:$0xff]
        %v174 = vld [vmem:[%s164 + $0x24] sm:$0xf]
        %s175 = scalar_lea.vmem %s1, 8
        %v176 = vld [vmem:[%s175] sm:$0xf]
        %v177 = vld [vmem:[%s175 + $0x4] sm:$0xf]
        %v180 = vunpack.c.l.b16 %v176
        %v181 = vunpack.c.l.b16 %v177
        %v182 = vpack.c.b16 %v181, %v180
        %v189 = vunpack.c.l.b16 %v169
        %v190 = vunpack.c.h.b16 %v169
        %v191 = vunpack.c.l.b16 %v170
        %v192 = vunpack.c.h.b16 %v170
        %v193 = vunpack.c.l.b16 %v171
        %v194 = vunpack.c.l.b16 %v172
        %v195 = vunpack.c.h.b16 %v172
        %v196 = vunpack.c.l.b16 %v173
        %v197 = vunpack.c.h.b16 %v173
        %v198 = vunpack.c.l.b16 %v174
        %v199 = vpack.c.b16 %v194, %v189
        %v200 = vpack.c.b16 %v195, %v190
        %v201 = vpack.c.b16 %v196, %v191
        %v202 = vpack.c.b16 %v197, %v192
        %v203 = vpack.c.b16 %v198, %v193
        %204 = vrot.lane.b32.xlu0 %v199, 82
        %v205 = vpop.permute.xlu0 %204
        %206 = vrot.lane.b32.xlu0 %v200, 82
        %v207 = vpop.permute.xlu0 %206
        %208 = vrot.lane.b32.xlu0 %v201, 82
        %v209 = vpop.permute.xlu0 %208
        %210 = vrot.lane.b32.xlu0 %v202, 82
        %v211 = vpop.permute.xlu0 %210
        %212 = vrot.lane.b32.xlu0 %v203, 82
        %v213 = vpop.permute.xlu0 %212
        %vm214 = vcmask 670720
        %v215 = vsel %vm214, %v205, %v207
        %v216 = vsel %vm214, %v207, %v209
        %v217 = vsel %vm214, %v209, %v211
        %v218 = vsel %vm214, %v211, %v213
        %vm223 = vcmask 130048
        %v225 = vsel %vm223, %v182, 0
        %227 = vmatprep.subr.bf16.mxu0 %v216
        %228 = vmatpush1.bf16.msra.mxu0 %v215
        %229 = vmatprep.subr.bf16.mxu0 0
        %230 = vmatpush1.bf16.msra.mxu0 0
        %231 = vmatprep.subr.bf16.mxu0 0
        %232 = vmatpush1.bf16.msra.mxu0 0
        %233 = vmatprep.subr.bf16.mxu0 0
        %234 = vmatpush1.bf16.msra.mxu0 0
        %235 = vmatprep.subr.bf16.mxu0 0
        %236 = vmatpush1.bf16.msra.mxu0 0
        %237 = vmatprep.subr.bf16.mxu0 0
        %238 = vmatpush1.bf16.msra.mxu0 0
        %239 = vmatprep.subr.bf16.mxu0 0
        %240 = vmatpush1.bf16.msra.mxu0 0
        %241 = vmatprep.subr.bf16.mxu0 0
        %242 = vmatpush1.bf16.msra.mxu0 0
        %243 = vmatprep.subr.bf16.mxu0 0
        %244 = vmatpush1.bf16.msra.mxu0 0
        %245 = vmatprep.subr.bf16.mxu0 0
        %246 = vmatpush1.bf16.msra.mxu0 0
        %247 = vmatprep.subr.bf16.mxu0 0
        %248 = vmatpush1.bf16.msra.mxu0 0
        %249 = vmatprep.subr.bf16.mxu0 0
        %250 = vmatpush1.bf16.msra.mxu0 0
        %251 = vmatprep.subr.bf16.mxu0 0
        %252 = vmatpush1.bf16.msra.mxu0 0
        %253 = vmatprep.subr.bf16.mxu0 0
        %254 = vmatpush1.bf16.msra.mxu0 0
        %255 = vmatprep.subr.bf16.mxu0 0
        %256 = vmatpush1.bf16.msra.mxu0 0
        %257 = vmatprep.subr.bf16.mxu0 0
        %258 = vmatpush1.bf16.msra.mxu0 0
        %259 = vmatprep.mubr.bf16.mxu0 0
        %260 = vmatmul.mubr.bf16.gmra.mrb[0].mxu0 %v225
        %v261 = vpop.f32.mrb[0].mxu0
        %v262 = vadd.f32 0.0, %v261
        %v263 = vpop.f32.mrb[0].mxu0
        %v264 = vadd.f32 0.0, %v263
        %v265 = vpop.f32.mrb[0].mxu0
        %v266 = vadd.f32 0.0, %v265
        %v267 = vpop.f32.mrb[0].mxu0
        %v268 = vadd.f32 0.0, %v267
        %269 = vdwg.mxu0
        %270 = vmatprep.subr.bf16.mxu0 %v218
        %271 = vmatpush1.bf16.msra.mxu0 %v217
        %272 = vmatprep.subr.bf16.mxu0 0
        %273 = vmatpush1.bf16.msra.mxu0 0
        %274 = vmatprep.subr.bf16.mxu0 0
        %275 = vmatpush1.bf16.msra.mxu0 0
        %276 = vmatprep.subr.bf16.mxu0 0
        %277 = vmatpush1.bf16.msra.mxu0 0
        %278 = vmatprep.subr.bf16.mxu0 0
        %279 = vmatpush1.bf16.msra.mxu0 0
        %280 = vmatprep.subr.bf16.mxu0 0
        %281 = vmatpush1.bf16.msra.mxu0 0
        %282 = vmatprep.subr.bf16.mxu0 0
        %283 = vmatpush1.bf16.msra.mxu0 0
        %284 = vmatprep.subr.bf16.mxu0 0
        %285 = vmatpush1.bf16.msra.mxu0 0
        %286 = vmatprep.subr.bf16.mxu0 0
        %287 = vmatpush1.bf16.msra.mxu0 0
        %288 = vmatprep.subr.bf16.mxu0 0
        %289 = vmatpush1.bf16.msra.mxu0 0
        %290 = vmatprep.subr.bf16.mxu0 0
        %291 = vmatpush1.bf16.msra.mxu0 0
        %292 = vmatprep.subr.bf16.mxu0 0
        %293 = vmatpush1.bf16.msra.mxu0 0
        %294 = vmatprep.subr.bf16.mxu0 0
        %295 = vmatpush1.bf16.msra.mxu0 0
        %296 = vmatprep.subr.bf16.mxu0 0
        %297 = vmatpush1.bf16.msra.mxu0 0
        %298 = vmatprep.subr.bf16.mxu0 0
        %299 = vmatpush1.bf16.msra.mxu0 0
        %300 = vmatprep.subr.bf16.mxu0 0
        %301 = vmatpush1.bf16.msra.mxu0 0
        %302 = vmatprep.mubr.bf16.mxu0 0
        %303 = vmatmul.mubr.bf16.gmra.mrb[0].mxu0 %v225
        %v304 = vpop.f32.mrb[0].mxu0
        %v305 = vadd.f32 0.0, %v304
        %v306 = vpop.f32.mrb[0].mxu0
        %v307 = vadd.f32 0.0, %v306
        %v308 = vpop.f32.mrb[0].mxu0
        %v309 = vadd.f32 0.0, %v308
        %v310 = vpop.f32.mrb[0].mxu0
        %v311 = vadd.f32 0.0, %v310
        %312 = vdwg.mxu0
        %v315 = vunpack.c.l.b16 %v167
        %v316 = vunpack.c.l.b16 %v168
        %v317 = vpack.c.b16 %v316, %v315
        %318 = vrot.lane.b32.xlu0 %v199, 83
        %v319 = vpop.permute.xlu0 %318
        %320 = vrot.lane.b32.xlu0 %v200, 83
        %v321 = vpop.permute.xlu0 %320
        %322 = vrot.lane.b32.xlu0 %v201, 83
        %v323 = vpop.permute.xlu0 %322
        %324 = vrot.lane.b32.xlu0 %v202, 83
        %v325 = vpop.permute.xlu0 %324
        %326 = vrot.lane.b32.xlu0 %v203, 83
        %v327 = vpop.permute.xlu0 %326
        %vm328 = vcmask 678912
        %v329 = vsel %vm328, %v319, %v321
        %v330 = vsel %vm328, %v321, %v323
        %v331 = vsel %vm328, %v323, %v325
        %v332 = vsel %vm328, %v325, %v327
        %v338 = vsel %vm223, %v317, 0
        %340 = vmatprep.subr.bf16.mxu0 %v330
        %341 = vmatpush1.bf16.msra.mxu0 %v329
        %342 = vmatprep.subr.bf16.mxu0 0
        %343 = vmatpush1.bf16.msra.mxu0 0
        %344 = vmatprep.subr.bf16.mxu0 0
        %345 = vmatpush1.bf16.msra.mxu0 0
        %346 = vmatprep.subr.bf16.mxu0 0
        %347 = vmatpush1.bf16.msra.mxu0 0
        %348 = vmatprep.subr.bf16.mxu0 0
        %349 = vmatpush1.bf16.msra.mxu0 0
        %350 = vmatprep.subr.bf16.mxu0 0
        %351 = vmatpush1.bf16.msra.mxu0 0
        %352 = vmatprep.subr.bf16.mxu0 0
        %353 = vmatpush1.bf16.msra.mxu0 0
        %354 = vmatprep.subr.bf16.mxu0 0
        %355 = vmatpush1.bf16.msra.mxu0 0
        %356 = vmatprep.subr.bf16.mxu0 0
        %357 = vmatpush1.bf16.msra.mxu0 0
        %358 = vmatprep.subr.bf16.mxu0 0
        %359 = vmatpush1.bf16.msra.mxu0 0
        %360 = vmatprep.subr.bf16.mxu0 0
        %361 = vmatpush1.bf16.msra.mxu0 0
        %362 = vmatprep.subr.bf16.mxu0 0
        %363 = vmatpush1.bf16.msra.mxu0 0
        %364 = vmatprep.subr.bf16.mxu0 0
        %365 = vmatpush1.bf16.msra.mxu0 0
        %366 = vmatprep.subr.bf16.mxu0 0
        %367 = vmatpush1.bf16.msra.mxu0 0
        %368 = vmatprep.subr.bf16.mxu0 0
        %369 = vmatpush1.bf16.msra.mxu0 0
        %370 = vmatprep.subr.bf16.mxu0 0
        %371 = vmatpush1.bf16.msra.mxu0 0
        %372 = vmatprep.mubr.bf16.mxu0 0
        %373 = vmatmul.mubr.bf16.gmra.mrb[0].mxu0 %v338
        %v374 = vpop.f32.mrb[0].mxu0
        %v375 = vadd.f32 %v262, %v374
        %v376 = vpop.f32.mrb[0].mxu0
        %v377 = vadd.f32 %v264, %v376
        %v378 = vpop.f32.mrb[0].mxu0
        %v379 = vadd.f32 %v266, %v378
        %v380 = vpop.f32.mrb[0].mxu0
        %v381 = vadd.f32 %v268, %v380
        %382 = vdwg.mxu0
        %383 = vmatprep.subr.bf16.mxu0 %v332
        %384 = vmatpush1.bf16.msra.mxu0 %v331
        %385 = vmatprep.subr.bf16.mxu0 0
        %386 = vmatpush1.bf16.msra.mxu0 0
        %387 = vmatprep.subr.bf16.mxu0 0
        %388 = vmatpush1.bf16.msra.mxu0 0
        %389 = vmatprep.subr.bf16.mxu0 0
        %390 = vmatpush1.bf16.msra.mxu0 0
        %391 = vmatprep.subr.bf16.mxu0 0
        %392 = vmatpush1.bf16.msra.mxu0 0
        %393 = vmatprep.subr.bf16.mxu0 0
        %394 = vmatpush1.bf16.msra.mxu0 0
        %395 = vmatprep.subr.bf16.mxu0 0
        %396 = vmatpush1.bf16.msra.mxu0 0
        %397 = vmatprep.subr.bf16.mxu0 0
        %398 = vmatpush1.bf16.msra.mxu0 0
        %399 = vmatprep.subr.bf16.mxu0 0
        %400 = vmatpush1.bf16.msra.mxu0 0
        %401 = vmatprep.subr.bf16.mxu0 0
        %402 = vmatpush1.bf16.msra.mxu0 0
        %403 = vmatprep.subr.bf16.mxu0 0
        %404 = vmatpush1.bf16.msra.mxu0 0
        %405 = vmatprep.subr.bf16.mxu0 0
        %406 = vmatpush1.bf16.msra.mxu0 0
        %407 = vmatprep.subr.bf16.mxu0 0
        %408 = vmatpush1.bf16.msra.mxu0 0
        %409 = vmatprep.subr.bf16.mxu0 0
        %410 = vmatpush1.bf16.msra.mxu0 0
        %411 = vmatprep.subr.bf16.mxu0 0
        %412 = vmatpush1.bf16.msra.mxu0 0
        %413 = vmatprep.subr.bf16.mxu0 0
        %414 = vmatpush1.bf16.msra.mxu0 0
        %415 = vmatprep.mubr.bf16.mxu0 0
        %416 = vmatmul.mubr.bf16.gmra.mrb[0].mxu0 %v338
        %v417 = vpop.f32.mrb[0].mxu0
        %v418 = vadd.f32 %v305, %v417
        %v419 = vpop.f32.mrb[0].mxu0
        %v420 = vadd.f32 %v307, %v419
        %v421 = vpop.f32.mrb[0].mxu0
        %v422 = vadd.f32 %v309, %v421
        %v423 = vpop.f32.mrb[0].mxu0
        %v424 = vadd.f32 %v311, %v423
        %425 = vdwg.mxu0
        %s426 = scalar_lea.vmem %s1, 16
        %v427 = vld [vmem:[%s426] sm:$0xf]
        %v428 = vld [vmem:[%s426 + $0x4] sm:$0xf]
        %v431 = vunpack.c.l.b16 %v427
        %v432 = vunpack.c.l.b16 %v428
        %v433 = vpack.c.b16 %v432, %v431
        %434 = vrot.lane.b32.xlu0 %v199, 81
        %v435 = vpop.permute.xlu0 %434
        %436 = vrot.lane.b32.xlu0 %v200, 81
        %v437 = vpop.permute.xlu0 %436
        %438 = vrot.lane.b32.xlu0 %v201, 81
        %v439 = vpop.permute.xlu0 %438
        %440 = vrot.lane.b32.xlu0 %v202, 81
        %v441 = vpop.permute.xlu0 %440
        %442 = vrot.lane.b32.xlu0 %v203, 81
        %v443 = vpop.permute.xlu0 %442
        %vm444 = vcmask 662528
        %v445 = vsel %vm444, %v435, %v437
        %v446 = vsel %vm444, %v437, %v439
        %v447 = vsel %vm444, %v439, %v441
        %v448 = vsel %vm444, %v441, %v443
        %v454 = vsel %vm223, %v433, 0
        %456 = vmatprep.subr.bf16.mxu0 %v446
        %457 = vmatpush1.bf16.msra.mxu0 %v445
        %458 = vmatprep.subr.bf16.mxu0 0
        %459 = vmatpush1.bf16.msra.mxu0 0
        %460 = vmatprep.subr.bf16.mxu0 0
        %461 = vmatpush1.bf16.msra.mxu0 0
        %462 = vmatprep.subr.bf16.mxu0 0
        %463 = vmatpush1.bf16.msra.mxu0 0
        %464 = vmatprep.subr.bf16.mxu0 0
        %465 = vmatpush1.bf16.msra.mxu0 0
        %466 = vmatprep.subr.bf16.mxu0 0
        %467 = vmatpush1.bf16.msra.mxu0 0
        %468 = vmatprep.subr.bf16.mxu0 0
        %469 = vmatpush1.bf16.msra.mxu0 0
        %470 = vmatprep.subr.bf16.mxu0 0
        %471 = vmatpush1.bf16.msra.mxu0 0
        %472 = vmatprep.subr.bf16.mxu0 0
        %473 = vmatpush1.bf16.msra.mxu0 0
        %474 = vmatprep.subr.bf16.mxu0 0
        %475 = vmatpush1.bf16.msra.mxu0 0
        %476 = vmatprep.subr.bf16.mxu0 0
        %477 = vmatpush1.bf16.msra.mxu0 0
        %478 = vmatprep.subr.bf16.mxu0 0
        %479 = vmatpush1.bf16.msra.mxu0 0
        %480 = vmatprep.subr.bf16.mxu0 0
        %481 = vmatpush1.bf16.msra.mxu0 0
        %482 = vmatprep.subr.bf16.mxu0 0
        %483 = vmatpush1.bf16.msra.mxu0 0
        %484 = vmatprep.subr.bf16.mxu0 0
        %485 = vmatpush1.bf16.msra.mxu0 0
        %486 = vmatprep.subr.bf16.mxu0 0
        %487 = vmatpush1.bf16.msra.mxu0 0
        %488 = vmatprep.mubr.bf16.mxu0 0
        %489 = vmatmul.mubr.bf16.gmra.mrb[0].mxu0 %v454
        %v490 = vpop.f32.mrb[0].mxu0
        %v491 = vadd.f32 0.0, %v490
        %v492 = vpop.f32.mrb[0].mxu0
        %v493 = vadd.f32 0.0, %v492
        %v494 = vpop.f32.mrb[0].mxu0
        %v495 = vadd.f32 0.0, %v494
        %v496 = vpop.f32.mrb[0].mxu0
        %v497 = vadd.f32 0.0, %v496
        %498 = vdwg.mxu0
        %499 = vmatprep.subr.bf16.mxu0 %v448
        %500 = vmatpush1.bf16.msra.mxu0 %v447
        %501 = vmatprep.subr.bf16.mxu0 0
        %502 = vmatpush1.bf16.msra.mxu0 0
        %503 = vmatprep.subr.bf16.mxu0 0
        %504 = vmatpush1.bf16.msra.mxu0 0
        %505 = vmatprep.subr.bf16.mxu0 0
        %506 = vmatpush1.bf16.msra.mxu0 0
        %507 = vmatprep.subr.bf16.mxu0 0
        %508 = vmatpush1.bf16.msra.mxu0 0
        %509 = vmatprep.subr.bf16.mxu0 0
        %510 = vmatpush1.bf16.msra.mxu0 0
        %511 = vmatprep.subr.bf16.mxu0 0
        %512 = vmatpush1.bf16.msra.mxu0 0
        %513 = vmatprep.subr.bf16.mxu0 0
        %514 = vmatpush1.bf16.msra.mxu0 0
        %515 = vmatprep.subr.bf16.mxu0 0
        %516 = vmatpush1.bf16.msra.mxu0 0
        %517 = vmatprep.subr.bf16.mxu0 0
        %518 = vmatpush1.bf16.msra.mxu0 0
        %519 = vmatprep.subr.bf16.mxu0 0
        %520 = vmatpush1.bf16.msra.mxu0 0
        %521 = vmatprep.subr.bf16.mxu0 0
        %522 = vmatpush1.bf16.msra.mxu0 0
        %523 = vmatprep.subr.bf16.mxu0 0
        %524 = vmatpush1.bf16.msra.mxu0 0
        %525 = vmatprep.subr.bf16.mxu0 0
        %526 = vmatpush1.bf16.msra.mxu0 0
        %527 = vmatprep.subr.bf16.mxu0 0
        %528 = vmatpush1.bf16.msra.mxu0 0
        %529 = vmatprep.subr.bf16.mxu0 0
        %530 = vmatpush1.bf16.msra.mxu0 0
        %531 = vmatprep.mubr.bf16.mxu0 0
        %532 = vmatmul.mubr.bf16.gmra.mrb[0].mxu0 %v454
        %v533 = vpop.f32.mrb[0].mxu0
        %v534 = vadd.f32 0.0, %v533
        %v535 = vpop.f32.mrb[0].mxu0
        %v536 = vadd.f32 0.0, %v535
        %v537 = vpop.f32.mrb[0].mxu0
        %v538 = vadd.f32 0.0, %v537
        %v539 = vpop.f32.mrb[0].mxu0
        %v540 = vadd.f32 0.0, %v539
        %541 = vdwg.mxu0
        %v542 = vadd.f32 %v375, %v491
        %v543 = vadd.f32 %v377, %v493
        %v544 = vadd.f32 %v418, %v534
        %v545 = vadd.f32 %v420, %v536
        %v546 = vadd.f32 %v379, %v495
        %v547 = vadd.f32 %v381, %v497
        %v548 = vadd.f32 %v422, %v538
        %v549 = vadd.f32 %v424, %v540
        %s550 = scalar_lea.vmem %s1, 24
        %v551 = vld [vmem:[%s550] sm:$0xf]
        %v552 = vld [vmem:[%s550 + $0x4] sm:$0xf]
        %v555 = vunpack.c.l.b16 %v551
        %v556 = vunpack.c.l.b16 %v552
        %v557 = vpack.c.b16 %v556, %v555
        %558 = vrot.lane.b32.xlu0 %v199, 65
        %v559 = vpop.permute.xlu0 %558
        %560 = vrot.lane.b32.xlu0 %v200, 65
        %v561 = vpop.permute.xlu0 %560
        %562 = vrot.lane.b32.xlu0 %v201, 65
        %v563 = vpop.permute.xlu0 %562
        %564 = vrot.lane.b32.xlu0 %v202, 65
        %v565 = vpop.permute.xlu0 %564
        %566 = vrot.lane.b32.xlu0 %v203, 65
        %v567 = vpop.permute.xlu0 %566
        %vm568 = vcmask 531456
        %v569 = vsel %vm568, %v559, %v561
        %v570 = vsel %vm568, %v561, %v563
        %v571 = vsel %vm568, %v563, %v565
        %v572 = vsel %vm568, %v565, %v567
        %v578 = vsel %vm223, %v557, 0
        %580 = vmatprep.subr.bf16.mxu0 %v570
        %581 = vmatpush1.bf16.msra.mxu0 %v569
        %582 = vmatprep.subr.bf16.mxu0 0
        %583 = vmatpush1.bf16.msra.mxu0 0
        %584 = vmatprep.subr.bf16.mxu0 0
        %585 = vmatpush1.bf16.msra.mxu0 0
        %586 = vmatprep.subr.bf16.mxu0 0
        %587 = vmatpush1.bf16.msra.mxu0 0
        %588 = vmatprep.subr.bf16.mxu0 0
        %589 = vmatpush1.bf16.msra.mxu0 0
        %590 = vmatprep.subr.bf16.mxu0 0
        %591 = vmatpush1.bf16.msra.mxu0 0
        %592 = vmatprep.subr.bf16.mxu0 0
        %593 = vmatpush1.bf16.msra.mxu0 0
        %594 = vmatprep.subr.bf16.mxu0 0
        %595 = vmatpush1.bf16.msra.mxu0 0
        %596 = vmatprep.subr.bf16.mxu0 0
        %597 = vmatpush1.bf16.msra.mxu0 0
        %598 = vmatprep.subr.bf16.mxu0 0
        %599 = vmatpush1.bf16.msra.mxu0 0
        %600 = vmatprep.subr.bf16.mxu0 0
        %601 = vmatpush1.bf16.msra.mxu0 0
        %602 = vmatprep.subr.bf16.mxu0 0
        %603 = vmatpush1.bf16.msra.mxu0 0
        %604 = vmatprep.subr.bf16.mxu0 0
        %605 = vmatpush1.bf16.msra.mxu0 0
        %606 = vmatprep.subr.bf16.mxu0 0
        %607 = vmatpush1.bf16.msra.mxu0 0
        %608 = vmatprep.subr.bf16.mxu0 0
        %609 = vmatpush1.bf16.msra.mxu0 0
        %610 = vmatprep.subr.bf16.mxu0 0
        %611 = vmatpush1.bf16.msra.mxu0 0
        %612 = vmatprep.mubr.bf16.mxu0 0
        %613 = vmatmul.mubr.bf16.gmra.mrb[0].mxu0 %v578
        %v614 = vpop.f32.mrb[0].mxu0
        %v615 = vadd.f32 0.0, %v614
        %v616 = vpop.f32.mrb[0].mxu0
        %v617 = vadd.f32 0.0, %v616
        %v618 = vpop.f32.mrb[0].mxu0
        %v619 = vadd.f32 0.0, %v618
        %v620 = vpop.f32.mrb[0].mxu0
        %v621 = vadd.f32 0.0, %v620
        %622 = vdwg.mxu0
        %623 = vmatprep.subr.bf16.mxu0 %v572
        %624 = vmatpush1.bf16.msra.mxu0 %v571
        %625 = vmatprep.subr.bf16.mxu0 0
        %626 = vmatpush1.bf16.msra.mxu0 0
        %627 = vmatprep.subr.bf16.mxu0 0
        %628 = vmatpush1.bf16.msra.mxu0 0
        %629 = vmatprep.subr.bf16.mxu0 0
        %630 = vmatpush1.bf16.msra.mxu0 0
        %631 = vmatprep.subr.bf16.mxu0 0
        %632 = vmatpush1.bf16.msra.mxu0 0
        %633 = vmatprep.subr.bf16.mxu0 0
        %634 = vmatpush1.bf16.msra.mxu0 0
        %635 = vmatprep.subr.bf16.mxu0 0
        %636 = vmatpush1.bf16.msra.mxu0 0
        %637 = vmatprep.subr.bf16.mxu0 0
        %638 = vmatpush1.bf16.msra.mxu0 0
        %639 = vmatprep.subr.bf16.mxu0 0
        %640 = vmatpush1.bf16.msra.mxu0 0
        %641 = vmatprep.subr.bf16.mxu0 0
        %642 = vmatpush1.bf16.msra.mxu0 0
        %643 = vmatprep.subr.bf16.mxu0 0
        %644 = vmatpush1.bf16.msra.mxu0 0
        %645 = vmatprep.subr.bf16.mxu0 0
        %646 = vmatpush1.bf16.msra.mxu0 0
        %647 = vmatprep.subr.bf16.mxu0 0
        %648 = vmatpush1.bf16.msra.mxu0 0
        %649 = vmatprep.subr.bf16.mxu0 0
        %650 = vmatpush1.bf16.msra.mxu0 0
        %651 = vmatprep.subr.bf16.mxu0 0
        %652 = vmatpush1.bf16.msra.mxu0 0
        %653 = vmatprep.subr.bf16.mxu0 0
        %654 = vmatpush1.bf16.msra.mxu0 0
        %655 = vmatprep.mubr.bf16.mxu0 0
        %656 = vmatmul.mubr.bf16.gmra.mrb[0].mxu0 %v578
        %v657 = vpop.f32.mrb[0].mxu0
        %v658 = vadd.f32 0.0, %v657
        %v659 = vpop.f32.mrb[0].mxu0
        %v660 = vadd.f32 0.0, %v659
        %v661 = vpop.f32.mrb[0].mxu0
        %v662 = vadd.f32 0.0, %v661
        %v663 = vpop.f32.mrb[0].mxu0
        %v664 = vadd.f32 0.0, %v663
        %665 = vdwg.mxu0
        %v666 = vadd.f32 %v542, %v615
        %v667 = vadd.f32 %v543, %v617
        %v668 = vadd.f32 %v544, %v658
        %v669 = vadd.f32 %v545, %v660
        %v670 = vadd.f32 %v546, %v619
        %v671 = vadd.f32 %v547, %v621
        %v672 = vadd.f32 %v548, %v662
        %v673 = vadd.f32 %v549, %v664
        %s674 = scalar_lea.vmem %s1, 32
        %v675 = vld [vmem:[%s674] sm:$0xf]
        %v676 = vld [vmem:[%s674 + $0x4] sm:$0xf]
        %v679 = vunpack.c.l.b16 %v675
        %v680 = vunpack.c.l.b16 %v676
        %v681 = vpack.c.b16 %v680, %v679
        %682 = vrot.lane.b32.xlu0 %v199, 64
        %v683 = vpop.permute.xlu0 %682
        %684 = vrot.lane.b32.xlu0 %v200, 64
        %v685 = vpop.permute.xlu0 %684
        %686 = vrot.lane.b32.xlu0 %v201, 64
        %v687 = vpop.permute.xlu0 %686
        %688 = vrot.lane.b32.xlu0 %v202, 64
        %v689 = vpop.permute.xlu0 %688
        %690 = vrot.lane.b32.xlu0 %v203, 64
        %v691 = vpop.permute.xlu0 %690
        %vm692 = vcmask 523264
        %v693 = vsel %vm692, %v683, %v685
        %v694 = vsel %vm692, %v685, %v687
        %v695 = vsel %vm692, %v687, %v689
        %v696 = vsel %vm692, %v689, %v691
        %v702 = vsel %vm223, %v681, 0
        %704 = vmatprep.subr.bf16.mxu0 %v694
        %705 = vmatpush1.bf16.msra.mxu0 %v693
        %706 = vmatprep.subr.bf16.mxu0 0
        %707 = vmatpush1.bf16.msra.mxu0 0
        %708 = vmatprep.subr.bf16.mxu0 0
        %709 = vmatpush1.bf16.msra.mxu0 0
        %710 = vmatprep.subr.bf16.mxu0 0
        %711 = vmatpush1.bf16.msra.mxu0 0
        %712 = vmatprep.subr.bf16.mxu0 0
        %713 = vmatpush1.bf16.msra.mxu0 0
        %714 = vmatprep.subr.bf16.mxu0 0
        %715 = vmatpush1.bf16.msra.mxu0 0
        %716 = vmatprep.subr.bf16.mxu0 0
        %717 = vmatpush1.bf16.msra.mxu0 0
        %718 = vmatprep.subr.bf16.mxu0 0
        %719 = vmatpush1.bf16.msra.mxu0 0
        %720 = vmatprep.subr.bf16.mxu0 0
        %721 = vmatpush1.bf16.msra.mxu0 0
        %722 = vmatprep.subr.bf16.mxu0 0
        %723 = vmatpush1.bf16.msra.mxu0 0
        %724 = vmatprep.subr.bf16.mxu0 0
        %725 = vmatpush1.bf16.msra.mxu0 0
        %726 = vmatprep.subr.bf16.mxu0 0
        %727 = vmatpush1.bf16.msra.mxu0 0
        %728 = vmatprep.subr.bf16.mxu0 0
        %729 = vmatpush1.bf16.msra.mxu0 0
        %730 = vmatprep.subr.bf16.mxu0 0
        %731 = vmatpush1.bf16.msra.mxu0 0
        %732 = vmatprep.subr.bf16.mxu0 0
        %733 = vmatpush1.bf16.msra.mxu0 0
        %734 = vmatprep.subr.bf16.mxu0 0
        %735 = vmatpush1.bf16.msra.mxu0 0
        %736 = vmatprep.mubr.bf16.mxu0 0
        %737 = vmatmul.mubr.bf16.gmra.mrb[0].mxu0 %v702
        %v738 = vpop.f32.mrb[0].mxu0
        %v739 = vadd.f32 0.0, %v738
        %v740 = vpop.f32.mrb[0].mxu0
        %v741 = vadd.f32 0.0, %v740
        %v742 = vpop.f32.mrb[0].mxu0
        %v743 = vadd.f32 0.0, %v742
        %v744 = vpop.f32.mrb[0].mxu0
        %v745 = vadd.f32 0.0, %v744
        %746 = vdwg.mxu0
        %747 = vmatprep.subr.bf16.mxu0 %v696
        %748 = vmatpush1.bf16.msra.mxu0 %v695
        %749 = vmatprep.subr.bf16.mxu0 0
        %750 = vmatpush1.bf16.msra.mxu0 0
        %751 = vmatprep.subr.bf16.mxu0 0
        %752 = vmatpush1.bf16.msra.mxu0 0
        %753 = vmatprep.subr.bf16.mxu0 0
        %754 = vmatpush1.bf16.msra.mxu0 0
        %755 = vmatprep.subr.bf16.mxu0 0
        %756 = vmatpush1.bf16.msra.mxu0 0
        %757 = vmatprep.subr.bf16.mxu0 0
        %758 = vmatpush1.bf16.msra.mxu0 0
        %759 = vmatprep.subr.bf16.mxu0 0
        %760 = vmatpush1.bf16.msra.mxu0 0
        %761 = vmatprep.subr.bf16.mxu0 0
        %762 = vmatpush1.bf16.msra.mxu0 0
        %763 = vmatprep.subr.bf16.mxu0 0
        %764 = vmatpush1.bf16.msra.mxu0 0
        %765 = vmatprep.subr.bf16.mxu0 0
        %766 = vmatpush1.bf16.msra.mxu0 0
        %767 = vmatprep.subr.bf16.mxu0 0
        %768 = vmatpush1.bf16.msra.mxu0 0
        %769 = vmatprep.subr.bf16.mxu0 0
        %770 = vmatpush1.bf16.msra.mxu0 0
        %771 = vmatprep.subr.bf16.mxu0 0
        %772 = vmatpush1.bf16.msra.mxu0 0
        %773 = vmatprep.subr.bf16.mxu0 0
        %774 = vmatpush1.bf16.msra.mxu0 0
        %775 = vmatprep.subr.bf16.mxu0 0
        %776 = vmatpush1.bf16.msra.mxu0 0
        %777 = vmatprep.subr.bf16.mxu0 0
        %778 = vmatpush1.bf16.msra.mxu0 0
        %779 = vmatprep.mubr.bf16.mxu0 0
        %780 = vmatmul.mubr.bf16.gmra.mrb[0].mxu0 %v702
        %v781 = vpop.f32.mrb[0].mxu0
        %v782 = vadd.f32 0.0, %v781
        %v783 = vpop.f32.mrb[0].mxu0
        %v784 = vadd.f32 0.0, %v783
        %v785 = vpop.f32.mrb[0].mxu0
        %v786 = vadd.f32 0.0, %v785
        %v787 = vpop.f32.mrb[0].mxu0
        %v788 = vadd.f32 0.0, %v787
        %789 = vdwg.mxu0
        %v790 = vadd.f32 %v666, %v739
        %v791 = vadd.f32 %v667, %v741
        %v792 = vadd.f32 %v668, %v782
        %v793 = vadd.f32 %v669, %v784
        %v794 = vadd.f32 %v670, %v743
        %v795 = vadd.f32 %v671, %v745
        %v796 = vadd.f32 %v672, %v786
        %v797 = vadd.f32 %v673, %v788
        %s798 = scalar_lea.vmem %s1, 40
        %v799 = vld [vmem:[%s798] sm:$0xf]
        %v800 = vld [vmem:[%s798 + $0x4] sm:$0xf]
        %v803 = vunpack.c.l.b16 %v799
        %v804 = vunpack.c.l.b16 %v800
        %v805 = vpack.c.b16 %v804, %v803
        %806 = vrot.lane.b32.xlu0 %v199, 63
        %v807 = vpop.permute.xlu0 %806
        %808 = vrot.lane.b32.xlu0 %v200, 63
        %v809 = vpop.permute.xlu0 %808
        %810 = vrot.lane.b32.xlu0 %v201, 63
        %v811 = vpop.permute.xlu0 %810
        %812 = vrot.lane.b32.xlu0 %v202, 63
        %v813 = vpop.permute.xlu0 %812
        %814 = vrot.lane.b32.xlu0 %v203, 63
        %v815 = vpop.permute.xlu0 %814
        %vm816 = vcmask 515072
        %v817 = vsel %vm816, %v807, %v809
        %v818 = vsel %vm816, %v809, %v811
        %v819 = vsel %vm816, %v811, %v813
        %v820 = vsel %vm816, %v813, %v815
        %v826 = vsel %vm223, %v805, 0
        %828 = vmatprep.subr.bf16.mxu0 %v818
        %829 = vmatpush1.bf16.msra.mxu0 %v817
        %830 = vmatprep.subr.bf16.mxu0 0
        %831 = vmatpush1.bf16.msra.mxu0 0
        %832 = vmatprep.subr.bf16.mxu0 0
        %833 = vmatpush1.bf16.msra.mxu0 0
        %834 = vmatprep.subr.bf16.mxu0 0
        %835 = vmatpush1.bf16.msra.mxu0 0
        %836 = vmatprep.subr.bf16.mxu0 0
        %837 = vmatpush1.bf16.msra.mxu0 0
        %838 = vmatprep.subr.bf16.mxu0 0
        %839 = vmatpush1.bf16.msra.mxu0 0
        %840 = vmatprep.subr.bf16.mxu0 0
        %841 = vmatpush1.bf16.msra.mxu0 0
        %842 = vmatprep.subr.bf16.mxu0 0
        %843 = vmatpush1.bf16.msra.mxu0 0
        %844 = vmatprep.subr.bf16.mxu0 0
        %845 = vmatpush1.bf16.msra.mxu0 0
        %846 = vmatprep.subr.bf16.mxu0 0
        %847 = vmatpush1.bf16.msra.mxu0 0
        %848 = vmatprep.subr.bf16.mxu0 0
        %849 = vmatpush1.bf16.msra.mxu0 0
        %850 = vmatprep.subr.bf16.mxu0 0
        %851 = vmatpush1.bf16.msra.mxu0 0
        %852 = vmatprep.subr.bf16.mxu0 0
        %853 = vmatpush1.bf16.msra.mxu0 0
        %854 = vmatprep.subr.bf16.mxu0 0
        %855 = vmatpush1.bf16.msra.mxu0 0
        %856 = vmatprep.subr.bf16.mxu0 0
        %857 = vmatpush1.bf16.msra.mxu0 0
        %858 = vmatprep.subr.bf16.mxu0 0
        %859 = vmatpush1.bf16.msra.mxu0 0
        %860 = vmatprep.mubr.bf16.mxu0 0
        %861 = vmatmul.mubr.bf16.gmra.mrb[0].mxu0 %v826
        %v862 = vpop.f32.mrb[0].mxu0
        %v863 = vadd.f32 0.0, %v862
        %v864 = vpop.f32.mrb[0].mxu0
        %v865 = vadd.f32 0.0, %v864
        %v866 = vpop.f32.mrb[0].mxu0
        %v867 = vadd.f32 0.0, %v866
        %v868 = vpop.f32.mrb[0].mxu0
        %v869 = vadd.f32 0.0, %v868
        %870 = vdwg.mxu0
        %871 = vmatprep.subr.bf16.mxu0 %v820
        %872 = vmatpush1.bf16.msra.mxu0 %v819
        %873 = vmatprep.subr.bf16.mxu0 0
        %874 = vmatpush1.bf16.msra.mxu0 0
        %875 = vmatprep.subr.bf16.mxu0 0
        %876 = vmatpush1.bf16.msra.mxu0 0
        %877 = vmatprep.subr.bf16.mxu0 0
        %878 = vmatpush1.bf16.msra.mxu0 0
        %879 = vmatprep.subr.bf16.mxu0 0
        %880 = vmatpush1.bf16.msra.mxu0 0
        %881 = vmatprep.subr.bf16.mxu0 0
        %882 = vmatpush1.bf16.msra.mxu0 0
        %883 = vmatprep.subr.bf16.mxu0 0
        %884 = vmatpush1.bf16.msra.mxu0 0
        %885 = vmatprep.subr.bf16.mxu0 0
        %886 = vmatpush1.bf16.msra.mxu0 0
        %887 = vmatprep.subr.bf16.mxu0 0
        %888 = vmatpush1.bf16.msra.mxu0 0
        %889 = vmatprep.subr.bf16.mxu0 0
        %890 = vmatpush1.bf16.msra.mxu0 0
        %891 = vmatprep.subr.bf16.mxu0 0
        %892 = vmatpush1.bf16.msra.mxu0 0
        %893 = vmatprep.subr.bf16.mxu0 0
        %894 = vmatpush1.bf16.msra.mxu0 0
        %895 = vmatprep.subr.bf16.mxu0 0
        %896 = vmatpush1.bf16.msra.mxu0 0
        %897 = vmatprep.subr.bf16.mxu0 0
        %898 = vmatpush1.bf16.msra.mxu0 0
        %899 = vmatprep.subr.bf16.mxu0 0
        %900 = vmatpush1.bf16.msra.mxu0 0
        %901 = vmatprep.subr.bf16.mxu0 0
        %902 = vmatpush1.bf16.msra.mxu0 0
        %903 = vmatprep.mubr.bf16.mxu0 0
        %904 = vmatmul.mubr.bf16.gmra.mrb[0].mxu0 %v826
        %v905 = vpop.f32.mrb[0].mxu0
        %v906 = vadd.f32 0.0, %v905
        %v907 = vpop.f32.mrb[0].mxu0
        %v908 = vadd.f32 0.0, %v907
        %v909 = vpop.f32.mrb[0].mxu0
        %v910 = vadd.f32 0.0, %v909
        %v911 = vpop.f32.mrb[0].mxu0
        %v912 = vadd.f32 0.0, %v911
        %913 = vdwg.mxu0
        %v914 = vadd.f32 %v790, %v863
        %v915 = vadd.f32 %v791, %v865
        %v916 = vadd.f32 %v792, %v906
        %v917 = vadd.f32 %v793, %v908
        %v918 = vadd.f32 %v794, %v867
        %v919 = vadd.f32 %v795, %v869
        %v920 = vadd.f32 %v796, %v910
        %v921 = vadd.f32 %v797, %v912
        %s922 = scalar_lea.vmem %s1, 48
        %v923 = vld [vmem:[%s922] sm:$0xf]
        %v924 = vld [vmem:[%s922 + $0x4] sm:$0xf]
        %v927 = vunpack.c.l.b16 %v923
        %v928 = vunpack.c.l.b16 %v924
        %v929 = vpack.c.b16 %v928, %v927
        %930 = vrot.lane.b32.xlu0 %v199, 47
        %v931 = vpop.permute.xlu0 %930
        %932 = vrot.lane.b32.xlu0 %v200, 47
        %v933 = vpop.permute.xlu0 %932
        %934 = vrot.lane.b32.xlu0 %v201, 47
        %v935 = vpop.permute.xlu0 %934
        %936 = vrot.lane.b32.xlu0 %v202, 47
        %v937 = vpop.permute.xlu0 %936
        %938 = vrot.lane.b32.xlu0 %v203, 47
        %v939 = vpop.permute.xlu0 %938
        %vm940 = vcmask 384000
        %v941 = vsel %vm940, %v931, %v933
        %v942 = vsel %vm940, %v933, %v935
        %v943 = vsel %vm940, %v935, %v937
        %v944 = vsel %vm940, %v937, %v939
        %v950 = vsel %vm223, %v929, 0
        %952 = vmatprep.subr.bf16.mxu0 %v942
        %953 = vmatpush1.bf16.msra.mxu0 %v941
        %954 = vmatprep.subr.bf16.mxu0 0
        %955 = vmatpush1.bf16.msra.mxu0 0
        %956 = vmatprep.subr.bf16.mxu0 0
        %957 = vmatpush1.bf16.msra.mxu0 0
        %958 = vmatprep.subr.bf16.mxu0 0
        %959 = vmatpush1.bf16.msra.mxu0 0
        %960 = vmatprep.subr.bf16.mxu0 0
        %961 = vmatpush1.bf16.msra.mxu0 0
        %962 = vmatprep.subr.bf16.mxu0 0
        %963 = vmatpush1.bf16.msra.mxu0 0
        %964 = vmatprep.subr.bf16.mxu0 0
        %965 = vmatpush1.bf16.msra.mxu0 0
        %966 = vmatprep.subr.bf16.mxu0 0
        %967 = vmatpush1.bf16.msra.mxu0 0
        %968 = vmatprep.subr.bf16.mxu0 0
        %969 = vmatpush1.bf16.msra.mxu0 0
        %970 = vmatprep.subr.bf16.mxu0 0
        %971 = vmatpush1.bf16.msra.mxu0 0
        %972 = vmatprep.subr.bf16.mxu0 0
        %973 = vmatpush1.bf16.msra.mxu0 0
        %974 = vmatprep.subr.bf16.mxu0 0
        %975 = vmatpush1.bf16.msra.mxu0 0
        %976 = vmatprep.subr.bf16.mxu0 0
        %977 = vmatpush1.bf16.msra.mxu0 0
        %978 = vmatprep.subr.bf16.mxu0 0
        %979 = vmatpush1.bf16.msra.mxu0 0
        %980 = vmatprep.subr.bf16.mxu0 0
        %981 = vmatpush1.bf16.msra.mxu0 0
        %982 = vmatprep.subr.bf16.mxu0 0
        %983 = vmatpush1.bf16.msra.mxu0 0
        %984 = vmatprep.mubr.bf16.mxu0 0
        %985 = vmatmul.mubr.bf16.gmra.mrb[0].mxu0 %v950
        %v986 = vpop.f32.mrb[0].mxu0
        %v987 = vadd.f32 0.0, %v986
        %v988 = vpop.f32.mrb[0].mxu0
        %v989 = vadd.f32 0.0, %v988
        %v990 = vpop.f32.mrb[0].mxu0
        %v991 = vadd.f32 0.0, %v990
        %v992 = vpop.f32.mrb[0].mxu0
        %v993 = vadd.f32 0.0, %v992
        %994 = vdwg.mxu0
        %995 = vmatprep.subr.bf16.mxu0 %v944
        %996 = vmatpush1.bf16.msra.mxu0 %v943
        %997 = vmatprep.subr.bf16.mxu0 0
        %998 = vmatpush1.bf16.msra.mxu0 0
        %999 = vmatprep.subr.bf16.mxu0 0
        %1000 = vmatpush1.bf16.msra.mxu0 0
        %1001 = vmatprep.subr.bf16.mxu0 0
        %1002 = vmatpush1.bf16.msra.mxu0 0
        %1003 = vmatprep.subr.bf16.mxu0 0
        %1004 = vmatpush1.bf16.msra.mxu0 0
        %1005 = vmatprep.subr.bf16.mxu0 0
        %1006 = vmatpush1.bf16.msra.mxu0 0
        %1007 = vmatprep.subr.bf16.mxu0 0
        %1008 = vmatpush1.bf16.msra.mxu0 0
        %1009 = vmatprep.subr.bf16.mxu0 0
        %1010 = vmatpush1.bf16.msra.mxu0 0
        %1011 = vmatprep.subr.bf16.mxu0 0
        %1012 = vmatpush1.bf16.msra.mxu0 0
        %1013 = vmatprep.subr.bf16.mxu0 0
        %1014 = vmatpush1.bf16.msra.mxu0 0
        %1015 = vmatprep.subr.bf16.mxu0 0
        %1016 = vmatpush1.bf16.msra.mxu0 0
        %1017 = vmatprep.subr.bf16.mxu0 0
        %1018 = vmatpush1.bf16.msra.mxu0 0
        %1019 = vmatprep.subr.bf16.mxu0 0
        %1020 = vmatpush1.bf16.msra.mxu0 0
        %1021 = vmatprep.subr.bf16.mxu0 0
        %1022 = vmatpush1.bf16.msra.mxu0 0
        %1023 = vmatprep.subr.bf16.mxu0 0
        %1024 = vmatpush1.bf16.msra.mxu0 0
        %1025 = vmatprep.subr.bf16.mxu0 0
        %1026 = vmatpush1.bf16.msra.mxu0 0
        %1027 = vmatprep.mubr.bf16.mxu0 0
        %1028 = vmatmul.mubr.bf16.gmra.mrb[0].mxu0 %v950
        %v1029 = vpop.f32.mrb[0].mxu0
        %v1030 = vadd.f32 0.0, %v1029
        %v1031 = vpop.f32.mrb[0].mxu0
        %v1032 = vadd.f32 0.0, %v1031
        %v1033 = vpop.f32.mrb[0].mxu0
        %v1034 = vadd.f32 0.0, %v1033
        %v1035 = vpop.f32.mrb[0].mxu0
        %v1036 = vadd.f32 0.0, %v1035
        %1037 = vdwg.mxu0
        %v1038 = vadd.f32 %v914, %v987
        %v1039 = vadd.f32 %v915, %v989
        %v1040 = vadd.f32 %v916, %v1030
        %v1041 = vadd.f32 %v917, %v1032
        %v1042 = vadd.f32 %v918, %v991
        %v1043 = vadd.f32 %v919, %v993
        %v1044 = vadd.f32 %v920, %v1034
        %v1045 = vadd.f32 %v921, %v1036
        %s1046 = scalar_lea.vmem %s1, 56
        %v1047 = vld [vmem:[%s1046] sm:$0xf]
        %v1048 = vld [vmem:[%s1046 + $0x4] sm:$0xf]
        %v1051 = vunpack.c.l.b16 %v1047
        %v1052 = vunpack.c.l.b16 %v1048
        %v1053 = vpack.c.b16 %v1052, %v1051
        %1054 = vrot.lane.b32.xlu0 %v199, 46
        %v1055 = vpop.permute.xlu0 %1054
        %1056 = vrot.lane.b32.xlu0 %v200, 46
        %v1057 = vpop.permute.xlu0 %1056
        %1058 = vrot.lane.b32.xlu0 %v201, 46
        %v1059 = vpop.permute.xlu0 %1058
        %1060 = vrot.lane.b32.xlu0 %v202, 46
        %v1061 = vpop.permute.xlu0 %1060
        %1062 = vrot.lane.b32.xlu0 %v203, 46
        %v1063 = vpop.permute.xlu0 %1062
        %vm1064 = vcmask 375808
        %v1065 = vsel %vm1064, %v1055, %v1057
        %v1066 = vsel %vm1064, %v1057, %v1059
        %v1067 = vsel %vm1064, %v1059, %v1061
        %v1068 = vsel %vm1064, %v1061, %v1063
        %v1074 = vsel %vm223, %v1053, 0
        %1076 = vmatprep.subr.bf16.mxu0 %v1066
        %1077 = vmatpush1.bf16.msra.mxu0 %v1065
        %1078 = vmatprep.subr.bf16.mxu0 0
        %1079 = vmatpush1.bf16.msra.mxu0 0
        %1080 = vmatprep.subr.bf16.mxu0 0
        %1081 = vmatpush1.bf16.msra.mxu0 0
        %1082 = vmatprep.subr.bf16.mxu0 0
        %1083 = vmatpush1.bf16.msra.mxu0 0
        %1084 = vmatprep.subr.bf16.mxu0 0
        %1085 = vmatpush1.bf16.msra.mxu0 0
        %1086 = vmatprep.subr.bf16.mxu0 0
        %1087 = vmatpush1.bf16.msra.mxu0 0
        %1088 = vmatprep.subr.bf16.mxu0 0
        %1089 = vmatpush1.bf16.msra.mxu0 0
        %1090 = vmatprep.subr.bf16.mxu0 0
        %1091 = vmatpush1.bf16.msra.mxu0 0
        %1092 = vmatprep.subr.bf16.mxu0 0
        %1093 = vmatpush1.bf16.msra.mxu0 0
        %1094 = vmatprep.subr.bf16.mxu0 0
        %1095 = vmatpush1.bf16.msra.mxu0 0
        %1096 = vmatprep.subr.bf16.mxu0 0
        %1097 = vmatpush1.bf16.msra.mxu0 0
        %1098 = vmatprep.subr.bf16.mxu0 0
        %1099 = vmatpush1.bf16.msra.mxu0 0
        %1100 = vmatprep.subr.bf16.mxu0 0
        %1101 = vmatpush1.bf16.msra.mxu0 0
        %1102 = vmatprep.subr.bf16.mxu0 0
        %1103 = vmatpush1.bf16.msra.mxu0 0
        %1104 = vmatprep.subr.bf16.mxu0 0
        %1105 = vmatpush1.bf16.msra.mxu0 0
        %1106 = vmatprep.subr.bf16.mxu0 0
        %1107 = vmatpush1.bf16.msra.mxu0 0
        %1108 = vmatprep.mubr.bf16.mxu0 0
        %1109 = vmatmul.mubr.bf16.gmra.mrb[0].mxu0 %v1074
        %v1110 = vpop.f32.mrb[0].mxu0
        %v1111 = vadd.f32 0.0, %v1110
        %v1112 = vpop.f32.mrb[0].mxu0
        %v1113 = vadd.f32 0.0, %v1112
        %v1114 = vpop.f32.mrb[0].mxu0
        %v1115 = vadd.f32 0.0, %v1114
        %v1116 = vpop.f32.mrb[0].mxu0
        %v1117 = vadd.f32 0.0, %v1116
        %1118 = vdwg.mxu0
        %1119 = vmatprep.subr.bf16.mxu0 %v1068
        %1120 = vmatpush1.bf16.msra.mxu0 %v1067
        %1121 = vmatprep.subr.bf16.mxu0 0
        %1122 = vmatpush1.bf16.msra.mxu0 0
        %1123 = vmatprep.subr.bf16.mxu0 0
        %1124 = vmatpush1.bf16.msra.mxu0 0
        %1125 = vmatprep.subr.bf16.mxu0 0
        %1126 = vmatpush1.bf16.msra.mxu0 0
        %1127 = vmatprep.subr.bf16.mxu0 0
        %1128 = vmatpush1.bf16.msra.mxu0 0
        %1129 = vmatprep.subr.bf16.mxu0 0
        %1130 = vmatpush1.bf16.msra.mxu0 0
        %1131 = vmatprep.subr.bf16.mxu0 0
        %1132 = vmatpush1.bf16.msra.mxu0 0
        %1133 = vmatprep.subr.bf16.mxu0 0
        %1134 = vmatpush1.bf16.msra.mxu0 0
        %1135 = vmatprep.subr.bf16.mxu0 0
        %1136 = vmatpush1.bf16.msra.mxu0 0
        %1137 = vmatprep.subr.bf16.mxu0 0
        %1138 = vmatpush1.bf16.msra.mxu0 0
        %1139 = vmatprep.subr.bf16.mxu0 0
        %1140 = vmatpush1.bf16.msra.mxu0 0
        %1141 = vmatprep.subr.bf16.mxu0 0
        %1142 = vmatpush1.bf16.msra.mxu0 0
        %1143 = vmatprep.subr.bf16.mxu0 0
        %1144 = vmatpush1.bf16.msra.mxu0 0
        %1145 = vmatprep.subr.bf16.mxu0 0
        %1146 = vmatpush1.bf16.msra.mxu0 0
        %1147 = vmatprep.subr.bf16.mxu0 0
        %1148 = vmatpush1.bf16.msra.mxu0 0
        %1149 = vmatprep.subr.bf16.mxu0 0
        %1150 = vmatpush1.bf16.msra.mxu0 0
        %1151 = vmatprep.mubr.bf16.mxu0 0
        %1152 = vmatmul.mubr.bf16.gmra.mrb[0].mxu0 %v1074
        %v1153 = vpop.f32.mrb[0].mxu0
        %v1154 = vadd.f32 0.0, %v1153
        %v1155 = vpop.f32.mrb[0].mxu0
        %v1156 = vadd.f32 0.0, %v1155
        %v1157 = vpop.f32.mrb[0].mxu0
        %v1158 = vadd.f32 0.0, %v1157
        %v1159 = vpop.f32.mrb[0].mxu0
        %v1160 = vadd.f32 0.0, %v1159
        %1161 = vdwg.mxu0
        %v1162 = vadd.f32 %v1038, %v1111
        %v1163 = vadd.f32 %v1039, %v1113
        %v1164 = vadd.f32 %v1040, %v1154
        %v1165 = vadd.f32 %v1041, %v1156
        %v1166 = vadd.f32 %v1042, %v1115
        %v1167 = vadd.f32 %v1043, %v1117
        %v1168 = vadd.f32 %v1044, %v1158
        %v1169 = vadd.f32 %v1045, %v1160
        %s1170 = scalar_lea.vmem %s1, 64
        %v1171 = vld [vmem:[%s1170] sm:$0xf]
        %v1172 = vld [vmem:[%s1170 + $0x4] sm:$0xf]
        %v1175 = vunpack.c.l.b16 %v1171
        %v1176 = vunpack.c.l.b16 %v1172
        %v1177 = vpack.c.b16 %v1176, %v1175
        %1178 = vrot.lane.b32.xlu0 %v199, 45
        %v1179 = vpop.permute.xlu0 %1178
        %1180 = vrot.lane.b32.xlu0 %v200, 45
        %v1181 = vpop.permute.xlu0 %1180
        %1182 = vrot.lane.b32.xlu0 %v201, 45
        %v1183 = vpop.permute.xlu0 %1182
        %1184 = vrot.lane.b32.xlu0 %v202, 45
        %v1185 = vpop.permute.xlu0 %1184
        %1186 = vrot.lane.b32.xlu0 %v203, 45
        %v1187 = vpop.permute.xlu0 %1186
        %vm1188 = vcmask 367616
        %v1189 = vsel %vm1188, %v1179, %v1181
        %v1190 = vsel %vm1188, %v1181, %v1183
        %v1191 = vsel %vm1188, %v1183, %v1185
        %v1192 = vsel %vm1188, %v1185, %v1187
        %v1198 = vsel %vm223, %v1177, 0
        %1200 = vmatprep.subr.bf16.mxu0 %v1190
        %1201 = vmatpush1.bf16.msra.mxu0 %v1189
        %1202 = vmatprep.subr.bf16.mxu0 0
        %1203 = vmatpush1.bf16.msra.mxu0 0
        %1204 = vmatprep.subr.bf16.mxu0 0
        %1205 = vmatpush1.bf16.msra.mxu0 0
        %1206 = vmatprep.subr.bf16.mxu0 0
        %1207 = vmatpush1.bf16.msra.mxu0 0
        %1208 = vmatprep.subr.bf16.mxu0 0
        %1209 = vmatpush1.bf16.msra.mxu0 0
        %1210 = vmatprep.subr.bf16.mxu0 0
        %1211 = vmatpush1.bf16.msra.mxu0 0
        %1212 = vmatprep.subr.bf16.mxu0 0
        %1213 = vmatpush1.bf16.msra.mxu0 0
        %1214 = vmatprep.subr.bf16.mxu0 0
        %1215 = vmatpush1.bf16.msra.mxu0 0
        %1216 = vmatprep.subr.bf16.mxu0 0
        %1217 = vmatpush1.bf16.msra.mxu0 0
        %1218 = vmatprep.subr.bf16.mxu0 0
        %1219 = vmatpush1.bf16.msra.mxu0 0
        %1220 = vmatprep.subr.bf16.mxu0 0
        %1221 = vmatpush1.bf16.msra.mxu0 0
        %1222 = vmatprep.subr.bf16.mxu0 0
        %1223 = vmatpush1.bf16.msra.mxu0 0
        %1224 = vmatprep.subr.bf16.mxu0 0
        %1225 = vmatpush1.bf16.msra.mxu0 0
        %1226 = vmatprep.subr.bf16.mxu0 0
        %1227 = vmatpush1.bf16.msra.mxu0 0
        %1228 = vmatprep.subr.bf16.mxu0 0
        %1229 = vmatpush1.bf16.msra.mxu0 0
        %1230 = vmatprep.subr.bf16.mxu0 0
        %1231 = vmatpush1.bf16.msra.mxu0 0
        %1232 = vmatprep.mubr.bf16.mxu0 0
        %1233 = vmatmul.mubr.bf16.gmra.mrb[0].mxu0 %v1198
        %v1234 = vpop.f32.mrb[0].mxu0
        %v1235 = vadd.f32 0.0, %v1234
        %v1236 = vpop.f32.mrb[0].mxu0
        %v1237 = vadd.f32 0.0, %v1236
        %v1238 = vpop.f32.mrb[0].mxu0
        %v1239 = vadd.f32 0.0, %v1238
        %v1240 = vpop.f32.mrb[0].mxu0
        %v1241 = vadd.f32 0.0, %v1240
        %1242 = vdwg.mxu0
        %1243 = vmatprep.subr.bf16.mxu0 %v1192
        %1244 = vmatpush1.bf16.msra.mxu0 %v1191
        %1245 = vmatprep.subr.bf16.mxu0 0
        %1246 = vmatpush1.bf16.msra.mxu0 0
        %1247 = vmatprep.subr.bf16.mxu0 0
        %1248 = vmatpush1.bf16.msra.mxu0 0
        %1249 = vmatprep.subr.bf16.mxu0 0
        %1250 = vmatpush1.bf16.msra.mxu0 0
        %1251 = vmatprep.subr.bf16.mxu0 0
        %1252 = vmatpush1.bf16.msra.mxu0 0
        %1253 = vmatprep.subr.bf16.mxu0 0
        %1254 = vmatpush1.bf16.msra.mxu0 0
        %1255 = vmatprep.subr.bf16.mxu0 0
        %1256 = vmatpush1.bf16.msra.mxu0 0
        %1257 = vmatprep.subr.bf16.mxu0 0
        %1258 = vmatpush1.bf16.msra.mxu0 0
        %1259 = vmatprep.subr.bf16.mxu0 0
        %1260 = vmatpush1.bf16.msra.mxu0 0
        %1261 = vmatprep.subr.bf16.mxu0 0
        %1262 = vmatpush1.bf16.msra.mxu0 0
        %1263 = vmatprep.subr.bf16.mxu0 0
        %1264 = vmatpush1.bf16.msra.mxu0 0
        %1265 = vmatprep.subr.bf16.mxu0 0
        %1266 = vmatpush1.bf16.msra.mxu0 0
        %1267 = vmatprep.subr.bf16.mxu0 0
        %1268 = vmatpush1.bf16.msra.mxu0 0
        %1269 = vmatprep.subr.bf16.mxu0 0
        %1270 = vmatpush1.bf16.msra.mxu0 0
        %1271 = vmatprep.subr.bf16.mxu0 0
        %1272 = vmatpush1.bf16.msra.mxu0 0
        %1273 = vmatprep.subr.bf16.mxu0 0
        %1274 = vmatpush1.bf16.msra.mxu0 0
        %1275 = vmatprep.mubr.bf16.mxu0 0
        %1276 = vmatmul.mubr.bf16.gmra.mrb[0].mxu0 %v1198
        %v1277 = vpop.f32.mrb[0].mxu0
        %v1278 = vadd.f32 0.0, %v1277
        %v1279 = vpop.f32.mrb[0].mxu0
        %v1280 = vadd.f32 0.0, %v1279
        %v1281 = vpop.f32.mrb[0].mxu0
        %v1282 = vadd.f32 0.0, %v1281
        %v1283 = vpop.f32.mrb[0].mxu0
        %v1284 = vadd.f32 0.0, %v1283
        %1285 = vdwg.mxu0
        %v1286 = vadd.f32 %v1162, %v1235
        %v1287 = vadd.f32 %v1163, %v1237
        %v1288 = vadd.f32 %v1164, %v1278
        %v1289 = vadd.f32 %v1165, %v1280
        %v1290 = vadd.f32 %v1166, %v1239
        %v1291 = vadd.f32 %v1167, %v1241
        %v1292 = vadd.f32 %v1168, %v1282
        %v1293 = vadd.f32 %v1169, %v1284
        %v1294 = vld [vmem:[%s2] sm:$0xff]
        %v1295 = vld [vmem:[%s2 + $0x8] sm:$0xff]
        %1297 = vset.pattern.permute.xlu0 0
        %1298 = vperm.xlu0 %1297, %v1294
        %v1299 = vpop.permute.xlu0 %1298
        %1302 = vset.pattern.permute.xlu0 0
        %1303 = vperm.xlu0 %1302, %v1295
        %v1304 = vpop.permute.xlu0 %1303
        %v1306 = vadd.f32 %v1286, %v1299
        %v1307 = vadd.f32 %v1287, %v1299
        %v1308 = vadd.f32 %v1288, %v1299
        %v1309 = vadd.f32 %v1289, %v1299
        %v1310 = vadd.f32 %v1290, %v1304
        %v1311 = vadd.f32 %v1291, %v1304
        %v1312 = vadd.f32 %v1292, %v1304
        %v1313 = vadd.f32 %v1293, %v1304
        %v1314 = vmax.f32 %v1306, 0.0
        %v1315 = vmax.f32 %v1307, 0.0
        %v1316 = vmax.f32 %v1308, 0.0
        %v1317 = vmax.f32 %v1309, 0.0
        %v1318 = vmax.f32 %v1310, 0.0
        %v1319 = vmax.f32 %v1311, 0.0
        %v1320 = vmax.f32 %v1312, 0.0
        %v1321 = vmax.f32 %v1313, 0.0
        %v1322 = vpack.c.bf16 %v1318, %v1314
        %v1323 = vpack.c.bf16 %v1319, %v1315
        %v1324 = vpack.c.bf16 %v1320, %v1316
        %v1325 = vpack.c.bf16 %v1321, %v1317
        %v1330 = vunpack.c.l.b16 %v1322
        %v1331 = vunpack.c.l.b16 %v1323
        %v1332 = vunpack.c.l.b16 %v1324
        %v1333 = vunpack.c.l.b16 %v1325
        %v1334 = vunpack.c.h.b16 %v1322
        %v1335 = vunpack.c.h.b16 %v1323
        %v1336 = vunpack.c.h.b16 %v1324
        %v1337 = vunpack.c.h.b16 %v1325
        %v1338 = vpack.c.b16 %v1331, %v1330
        %v1339 = vpack.c.b16 %v1333, %v1332
        %v1340 = vpack.c.b16 %v1335, %v1334
        %v1341 = vpack.c.b16 %v1337, %v1336
        %1346 = vst [vmem:[%s159] sm:$0xff] %v1338
        %1347 = vst [vmem:[%s159 + $0x8] sm:$0xff] %v1339
        %1348 = vst [vmem:[%s159 + $0x10] sm:$0xff] %v1340
        %1349 = vst [vmem:[%s159 + $0x18] sm:$0xff] %v1341
        %s1350 = sand.u32 %s90, 1
        %s1351 = sand.u32 %s90, 1
        %s1352 = smul.addr %s1351, 32
        %s1353 = scalar_lea.vmem [#allocation2], %s1352
        // Predicated region
        $region33: #{rsu4_apply_nchw.10} parent=31 // pred_check
          %p1354 = pneg %p100
        $region34: #{rsu4_apply_nchw.10} parent=31 // pred_check_branch
          %1356 = sbr.rel (%p1354) target = $region36
        $region35: #{rsu4_apply_nchw.10} parent=31 // pred_region
          %s1357 = smul.u32 4, %s14
          %s1358 = smul.addr %s1357, 4
          %s1359 = scalar_lea.vmem %s3, %s1358
          // Predicated region
          $region37: #{rsu4_apply_nchw.10} parent=35 // pred_check
            _
          $region38: #{rsu4_apply_nchw.10} parent=35 // pred_check_branch
            %1361 = sbr.rel (0) target = $region40
          $region39: #{rsu4_apply_nchw.10} parent=35 // pred_region
            // Predicated region
            $region41: #{rsu4_apply_nchw.10} parent=39 // pred_check
              _
            $region42: #{rsu4_apply_nchw.10} parent=39 // pred_check_branch
              %1363 = sbr.rel (0) target = $region44
            $region43: #{rsu4_apply_nchw.10} parent=39 // pred_region
              loop: start=0, step=1, limit=1
              $region45: #{rsu4_apply_nchw.10} parent=43 // loop_pre_header
                _
              $region46: #{rsu4_apply_nchw.10} parent=43 // loop_header
                %s1365 = sphi 0, %s1369
                %p1366 = scmp.ge.s32.totalorder %s1365, 1
                %s1370 = sphi %s1353, %s1353
                %s1371 = sphi %s1359, %s1359
              $region47: #{rsu4_apply_nchw.10} parent=43 // loop_header_branch
                %1368 = sbr.rel (%p1366) target = $region51
              $region48: #{rsu4_apply_nchw.10} parent=43 // loop_body
                %v1372 = vld [vmem:[%s1370] sm:$0xff]
                %1373 = vst [vmem:[%s1371] sm:$0xff] %v1372
                %v1374 = vld [vmem:[%s1370 + $0x8] sm:$0xff]
                %1375 = vst [vmem:[%s1371 + $0x8] sm:$0xff] %v1374
                %v1376 = vld [vmem:[%s1370 + $0x10] sm:$0xff]
                %1377 = vst [vmem:[%s1371 + $0x20] sm:$0xff] %v1376
                %v1378 = vld [vmem:[%s1370 + $0x18] sm:$0xff]
                %1379 = vst [vmem:[%s1371 + $0x28] sm:$0xff] %v1378
              $region49: #{rsu4_apply_nchw.10} parent=43 // loop_footer
                %s1369 = sadd.s32 1, %s1365
              $region50: #{rsu4_apply_nchw.10} parent=43 // loop_footer_branch
                %1364 = sbr.rel target = $region46
              $region51: #{rsu4_apply_nchw.10} parent=43 // loop_exit
                _
            $region44: #{rsu4_apply_nchw.10} parent=39 // pred_fallthru
              _
            // Predicated region
            $region52: #{rsu4_apply_nchw.10} parent=39 // pred_check
              _
            $region53: #{rsu4_apply_nchw.10} parent=39 // pred_check_branch
              %1381 = sbr.rel target = $region55
            $region54: #{rsu4_apply_nchw.10} parent=39 // pred_region
              _
            $region55: #{rsu4_apply_nchw.10} parent=39 // pred_fallthru
              _
          $region40: #{rsu4_apply_nchw.10} parent=35 // pred_fallthru
            _
          %1382 = vnop
        $region36: #{rsu4_apply_nchw.10} parent=31 // pred_fallthru
          _
      $region32: #{rsu4_apply_nchw.10} parent=5 // pred_fallthru
        _
      %p1383 = scmp.le.s32.totalorder 2, %s9
      // Predicated region
      $region56: #{rsu4_apply_nchw.10} parent=5 // pred_check
        %p1384 = pneg %p1383
      $region57: #{rsu4_apply_nchw.10} parent=5 // pred_check_branch
        %1386 = sbr.rel (%p1384) target = $region59
      $region58: #{rsu4_apply_nchw.10} parent=5 // pred_region
        %s1387 = ssub.s32 %s9, 2
        // Predicated region
        $region60: #{rsu4_apply_nchw.10} parent=58 // pred_check
          %p1388 = pneg %p106
        $region61: #{rsu4_apply_nchw.10} parent=58 // pred_check_branch
          %1390 = sbr.rel (%p1388) target = $region63
        $region62: #{rsu4_apply_nchw.10} parent=58 // pred_region
          %s1391 = sand.u32 %s91, 1
          %s1392 = sand.u32 %s91, 1
          %s1393 = smul.addr %s1392, 32
          %s1394 = scalar_lea.vmem [#allocation2], %s1393
        $region63: #{rsu4_apply_nchw.10} parent=58 // pred_fallthru
          _
      $region59: #{rsu4_apply_nchw.10} parent=5 // pred_fallthru
        _
    $region6: #{rsu4_apply_nchw.10} parent=1 // loop_footer
      %s13 = sadd.s32 1, %s9
    $region7: #{rsu4_apply_nchw.10} parent=1 // loop_footer_branch
      %8 = sbr.rel target = $region3
    $region8: #{rsu4_apply_nchw.10} parent=1 // loop_exit
      _

// kernel: rsu4_apply_nchw.12
$region0: #{rsu4_apply_nchw.12}
  #allocation0 [shape = 'u32[]', space=smem, size = 0x4, offset = 0x4, fixed_abs, tag = 'smem constant byte address 0x4 - core index']
  #allocation1 [shape = 'u32[144,128]{1,0:T(1,128)}', space=vmem, size = 0x12000, scoped, tag = 'internal scratch']
  %s0 = inlined_call_operand.vmem [shape: bf16[2,16,384], index: 0, kind: input, shape index: {}]
  %s1 = inlined_call_operand.vmem [shape: bf16[9,16,16], index: 1, kind: input, shape index: {}]
  %s2 = inlined_call_operand.vmem [shape: f32[16,1], index: 2, kind: input, shape index: {}]
  %s3 = inlined_call_operand.vmem [shape: bf16[16,512], index: 3, kind: output, shape index: {}]
  %s4 = sld [smem:[#allocation0]]
  $region79: #{rsu4_apply_nchw.12} parent=0
    _
  %s6 = ssub.s32 1, %s4
  %s7 = scalar_select 0, %s6, %s4
  $region1: #{rsu4_apply_nchw.12} parent=0
    #allocation2 [shape = 'u8[16384]{0}', space=vmem, size = 0x4000, scoped, tag = 'output window, operand 0']
    loop: start=0, step=1, limit=4
    $region2: #{rsu4_apply_nchw.12} parent=1 // loop_pre_header
      _
    $region3: #{rsu4_apply_nchw.12} parent=1 // loop_header
      %s9 = sphi 0, %s13
      %p10 = scmp.ge.s32.totalorder %s9, 4
      %s19 = sphi 0, %s21
      %s22 = sphi 0, %s19
      %s23 = sphi 0, %s22
      %s39 = sphi 0, %s23
      %s43 = sphi 0, %s43
      %s45 = sphi 0, %s43
      %s46 = sphi 0, %s45
      %s60 = sphi 0, %s46
      %s64 = sphi 0, %s64
      %s66 = sphi 0, %s64
      %s67 = sphi 0, %s66
      %s81 = sphi 0, %s67
      %s87 = sphi 0, %s89
      %s90 = sphi 0, %s87
      %s91 = sphi 0, %s90
      %s107 = sphi 0, %s91
    $region4: #{rsu4_apply_nchw.12} parent=1 // loop_header_branch
      %12 = sbr.rel (%p10) target = $region8
    $region5: #{rsu4_apply_nchw.12} parent=1 // loop_body
      %s14 = ssub.s32 %s9, 1
      %s15 = ssub.s32 %s9, 2
      %s16 = sadd.s32 %s9, 1
      %s17 = ssub.s32 %s9, %s16
      %p18 = scmp.eq.s32.totalorder %s17, 0
      %s20 = sadd.s32 %s19, 1
      %s21 = scalar_select %p18, %s19, %s20
      %p24 = pneg %p18
      %p25 = scmp.eq.s32.totalorder %s9, 1
      %p26 = por %p24, %p25
      %p27 = scmp.ne.s32.totalorder %s19, %s22
      %p28 = scmp.eq.s32.totalorder %s9, 0
      %p29 = por %p27, %p28
      %p30 = scmp.ne.s32.totalorder %s19, %s22
      %p31 = scmp.eq.s32.totalorder %s14, 1
      %p32 = por %p30, %p31
      %p33 = scmp.ne.s32.totalorder %s22, %s23
      %p34 = scmp.eq.s32.totalorder %s14, 0
      %p35 = por %p33, %p34
      %p36 = scmp.ne.s32.totalorder %s22, %s23
      %p37 = scmp.eq.s32.totalorder %s15, 1
      %p38 = por %p36, %p37
      %p40 = scmp.ne.s32.totalorder %s23, %s39
      %p41 = scmp.eq.s32.totalorder %s15, 0
      %p42 = por %p40, %p41
      %s44 = sadd.s32 %s43, 1
      %p47 = scmp.eq.s32.totalorder %s9, 1
      %p48 = scmp.ne.s32.totalorder %s43, %s45
      %p49 = scmp.eq.s32.totalorder %s9, 0
      %p50 = por %p48, %p49
      %p51 = scmp.ne.s32.totalorder %s43, %s45
      %p52 = scmp.eq.s32.totalorder %s14, 1
      %p53 = por %p51, %p52
      %p54 = scmp.ne.s32.totalorder %s45, %s46
      %p55 = scmp.eq.s32.totalorder %s14, 0
      %p56 = por %p54, %p55
      %p57 = scmp.ne.s32.totalorder %s45, %s46
      %p58 = scmp.eq.s32.totalorder %s15, 1
      %p59 = por %p57, %p58
      %p61 = scmp.ne.s32.totalorder %s46, %s60
      %p62 = scmp.eq.s32.totalorder %s15, 0
      %p63 = por %p61, %p62
      %s65 = sadd.s32 %s64, 1
      %p68 = scmp.eq.s32.totalorder %s9, 1
      %p69 = scmp.ne.s32.totalorder %s64, %s66
      %p70 = scmp.eq.s32.totalorder %s9, 0
      %p71 = por %p69, %p70
      %p72 = scmp.ne.s32.totalorder %s64, %s66
      %p73 = scmp.eq.s32.totalorder %s14, 1
      %p74 = por %p72, %p73
      %p75 = scmp.ne.s32.totalorder %s66, %s67
      %p76 = scmp.eq.s32.totalorder %s14, 0
      %p77 = por %p75, %p76
      %p78 = scmp.ne.s32.totalorder %s66, %s67
      %p79 = scmp.eq.s32.totalorder %s15, 1
      %p80 = por %p78, %p79
      %p82 = scmp.ne.s32.totalorder %s67, %s81
      %p83 = scmp.eq.s32.totalorder %s15, 0
      %p84 = por %p82, %p83
      %s85 = ssub.s32 %s9, %s16
      %p86 = scmp.eq.s32.totalorder %s85, 0
      %s88 = sadd.s32 %s87, 1
      %s89 = scalar_select %p86, %s87, %s88
      %p92 = pneg %p86
      %p93 = scmp.eq.s32.totalorder %s9, 1
      %p94 = por %p92, %p93
      %p95 = scmp.ne.s32.totalorder %s87, %s90
      %p96 = scmp.eq.s32.totalorder %s9, 0
      %p97 = por %p95, %p96
      %p98 = scmp.ne.s32.totalorder %s87, %s90
      %p99 = scmp.eq.s32.totalorder %s14, 1
      %p100 = por %p98, %p99
      %p101 = scmp.ne.s32.totalorder %s90, %s91
      %p102 = scmp.eq.s32.totalorder %s14, 0
      %p103 = por %p101, %p102
      %p104 = scmp.ne.s32.totalorder %s90, %s91
      %p105 = scmp.eq.s32.totalorder %s15, 1
      %p106 = por %p104, %p105
      %p108 = scmp.ne.s32.totalorder %s91, %s107
      %p109 = scmp.eq.s32.totalorder %s15, 0
      %p110 = por %p108, %p109
      %p111 = scmp.le.s32.totalorder 1, %s9
      %p112 = scmp.lt.s32.totalorder %s9, 3
      %p113 = pnand %p111, %p112
      %p114 = pneg %p113
      // Predicated region
      $region9: #{rsu4_apply_nchw.12} parent=5 // pred_check
        _
      $region10: #{rsu4_apply_nchw.12} parent=5 // pred_check_branch
        %116 = sbr.rel (%p113) target = $region12
      $region11: #{rsu4_apply_nchw.12} parent=5 // pred_region
        %s117 = ssub.s32 %s9, 1
        // Predicated region
        $region13: #{rsu4_apply_nchw.12} parent=11 // pred_check
          %p118 = pneg %p56
        $region14: #{rsu4_apply_nchw.12} parent=11 // pred_check_branch
          %120 = sbr.rel (%p118) target = $region16
        $region15: #{rsu4_apply_nchw.12} parent=11 // pred_region
          _
        $region16: #{rsu4_apply_nchw.12} parent=11 // pred_fallthru
          _
        // Predicated region
        $region17: #{rsu4_apply_nchw.12} parent=11 // pred_check
          %p121 = pneg %p77
        $region18: #{rsu4_apply_nchw.12} parent=11 // pred_check_branch
          %123 = sbr.rel (%p121) target = $region20
        $region19: #{rsu4_apply_nchw.12} parent=11 // pred_region
          _
        $region20: #{rsu4_apply_nchw.12} parent=11 // pred_fallthru
          _
      $region12: #{rsu4_apply_nchw.12} parent=5 // pred_fallthru
        _
      %p124 = scmp.lt.s32.totalorder %s9, 2
      // Predicated region
      $region21: #{rsu4_apply_nchw.12} parent=5 // pred_check
        %p125 = pneg %p124
      $region22: #{rsu4_apply_nchw.12} parent=5 // pred_check_branch
        %127 = sbr.rel (%p125) target = $region24
      $region23: #{rsu4_apply_nchw.12} parent=5 // pred_region
        // Predicated region
        $region25: #{rsu4_apply_nchw.12} parent=23 // pred_check
          %p128 = pneg %p29
        $region26: #{rsu4_apply_nchw.12} parent=23 // pred_check_branch
          %130 = sbr.rel (%p128) target = $region28
        $region27: #{rsu4_apply_nchw.12} parent=23 // pred_region
          %p131 = scmp.lt.s32.totalorder %s9, 1
          %s132 = scalar_select %p131, %s9, 1
          %s133 = smul.addr %s132, 6
          %s134 = smul.addr %s133, 4
          %s135 = scalar_lea.vmem %s0, %s134
        $region28: #{rsu4_apply_nchw.12} parent=23 // pred_fallthru
          _
      $region24: #{rsu4_apply_nchw.12} parent=5 // pred_fallthru
        _
      %p136 = scmp.le.s32.totalorder 1, %s9
      %p137 = scmp.lt.s32.totalorder %s9, 3
      %p138 = pnand %p136, %p137
      %p139 = pneg %p138
      // Predicated region
      $region29: #{rsu4_apply_nchw.12} parent=5 // pred_check
        _
      $region30: #{rsu4_apply_nchw.12} parent=5 // pred_check_branch
        %141 = sbr.rel (%p138) target = $region32
      $region31: #{rsu4_apply_nchw.12} parent=5 // pred_region
        %s142 = ssub.s32 %s9, 1
        %p143 = scmp.lt.s32.totalorder %s14, 1
        %s144 = scalar_select %p143, %s14, 1
        %s145 = smul.addr %s144, 6
        %s146 = smul.addr %s145, 4
        %s147 = scalar_lea.vmem %s0, %s146
        %p148 = pneg %p35
        %p149 = pneg %p32
        %p150 = pneg %p56
        %p151 = pneg %p53
        %p152 = pneg %p77
        %p153 = pneg %p74
        %p154 = pneg %p103
        %p155 = pneg %p100
        %s156 = sand.u32 %s90, 1
        %s157 = sand.u32 %s90, 1
        %s158 = smul.addr %s157, 16
        %s159 = scalar_lea.vmem [#allocation2], %s158
        %p160 = scmp.lt.s32.totalorder %s14, 1
        %s161 = scalar_select %p160, %s14, 1
        %s162 = smul.addr %s161, 6
        %s163 = smul.addr %s162, 4
        %s164 = scalar_lea.vmem %s0, %s163
        %s165 = smul.u32 2, %s14
        %v167 = vld [vmem:[%s1] sm:$0xf]
        %v168 = vld [vmem:[%s1 + $0x4] sm:$0xf]
        %v169 = vld [vmem:[%s164] sm:$0xff]
        %v170 = vld [vmem:[%s164 + $0x8] sm:$0xf]
        %v171 = vld [vmem:[%s164 + $0xc] sm:$0xff]
        %v172 = vld [vmem:[%s164 + $0x14] sm:$0xf]
        %s173 = scalar_lea.vmem %s1, 8
        %v174 = vld [vmem:[%s173] sm:$0xf]
        %v175 = vld [vmem:[%s173 + $0x4] sm:$0xf]
        %v178 = vunpack.c.l.b16 %v174
        %v179 = vunpack.c.l.b16 %v175
        %v180 = vpack.c.b16 %v179, %v178
        %v185 = vunpack.c.l.b16 %v169
        %v186 = vunpack.c.h.b16 %v169
        %v187 = vunpack.c.l.b16 %v170
        %v188 = vunpack.c.l.b16 %v171
        %v189 = vunpack.c.h.b16 %v171
        %v190 = vunpack.c.l.b16 %v172
        %v191 = vpack.c.b16 %v188, %v185
        %v192 = vpack.c.b16 %v189, %v186
        %v193 = vpack.c.b16 %v190, %v187
        %194 = vrot.lane.b32.xlu0 %v191, 88
        %v195 = vpop.permute.xlu0 %194
        %196 = vrot.lane.b32.xlu0 %v192, 88
        %v197 = vpop.permute.xlu0 %196
        %198 = vrot.lane.b32.xlu0 %v193, 88
        %v199 = vpop.permute.xlu0 %198
        %vm200 = vcmask 719872
        %v201 = vsel %vm200, %v195, %v197
        %v202 = vsel %vm200, %v197, %v199
        %vm205 = vcmask 130048
        %v207 = vsel %vm205, %v180, 0
        %209 = vmatprep.subr.bf16.mxu0 %v202
        %210 = vmatpush1.bf16.msra.mxu0 %v201
        %211 = vmatprep.subr.bf16.mxu0 0
        %212 = vmatpush1.bf16.msra.mxu0 0
        %213 = vmatprep.subr.bf16.mxu0 0
        %214 = vmatpush1.bf16.msra.mxu0 0
        %215 = vmatprep.subr.bf16.mxu0 0
        %216 = vmatpush1.bf16.msra.mxu0 0
        %217 = vmatprep.subr.bf16.mxu0 0
        %218 = vmatpush1.bf16.msra.mxu0 0
        %219 = vmatprep.subr.bf16.mxu0 0
        %220 = vmatpush1.bf16.msra.mxu0 0
        %221 = vmatprep.subr.bf16.mxu0 0
        %222 = vmatpush1.bf16.msra.mxu0 0
        %223 = vmatprep.subr.bf16.mxu0 0
        %224 = vmatpush1.bf16.msra.mxu0 0
        %225 = vmatprep.subr.bf16.mxu0 0
        %226 = vmatpush1.bf16.msra.mxu0 0
        %227 = vmatprep.subr.bf16.mxu0 0
        %228 = vmatpush1.bf16.msra.mxu0 0
        %229 = vmatprep.subr.bf16.mxu0 0
        %230 = vmatpush1.bf16.msra.mxu0 0
        %231 = vmatprep.subr.bf16.mxu0 0
        %232 = vmatpush1.bf16.msra.mxu0 0
        %233 = vmatprep.subr.bf16.mxu0 0
        %234 = vmatpush1.bf16.msra.mxu0 0
        %235 = vmatprep.subr.bf16.mxu0 0
        %236 = vmatpush1.bf16.msra.mxu0 0
        %237 = vmatprep.subr.bf16.mxu0 0
        %238 = vmatpush1.bf16.msra.mxu0 0
        %239 = vmatprep.subr.bf16.mxu0 0
        %240 = vmatpush1.bf16.msra.mxu0 0
        %241 = vmatprep.mubr.bf16.mxu0 0
        %242 = vmatmul.mubr.bf16.gmra.mrb[0].mxu0 %v207
        %v243 = vpop.f32.mrb[0].mxu0
        %v244 = vadd.f32 0.0, %v243
        %v245 = vpop.f32.mrb[0].mxu0
        %v246 = vadd.f32 0.0, %v245
        %v247 = vpop.f32.mrb[0].mxu0
        %v248 = vadd.f32 0.0, %v247
        %v249 = vpop.f32.mrb[0].mxu0
        %v250 = vadd.f32 0.0, %v249
        %251 = vdwg.mxu0
        %v254 = vunpack.c.l.b16 %v167
        %v255 = vunpack.c.l.b16 %v168
        %v256 = vpack.c.b16 %v255, %v254
        %257 = vrot.lane.b32.xlu0 %v191, 90
        %v258 = vpop.permute.xlu0 %257
        %259 = vrot.lane.b32.xlu0 %v192, 90
        %v260 = vpop.permute.xlu0 %259
        %261 = vrot.lane.b32.xlu0 %v193, 90
        %v262 = vpop.permute.xlu0 %261
        %vm263 = vcmask 736256
        %v264 = vsel %vm263, %v258, %v260
        %v265 = vsel %vm263, %v260, %v262
        %v269 = vsel %vm205, %v256, 0
        %271 = vmatprep.subr.bf16.mxu0 %v265
        %272 = vmatpush1.bf16.msra.mxu0 %v264
        %273 = vmatprep.subr.bf16.mxu0 0
        %274 = vmatpush1.bf16.msra.mxu0 0
        %275 = vmatprep.subr.bf16.mxu0 0
        %276 = vmatpush1.bf16.msra.mxu0 0
        %277 = vmatprep.subr.bf16.mxu0 0
        %278 = vmatpush1.bf16.msra.mxu0 0
        %279 = vmatprep.subr.bf16.mxu0 0
        %280 = vmatpush1.bf16.msra.mxu0 0
        %281 = vmatprep.subr.bf16.mxu0 0
        %282 = vmatpush1.bf16.msra.mxu0 0
        %283 = vmatprep.subr.bf16.mxu0 0
        %284 = vmatpush1.bf16.msra.mxu0 0
        %285 = vmatprep.subr.bf16.mxu0 0
        %286 = vmatpush1.bf16.msra.mxu0 0
        %287 = vmatprep.subr.bf16.mxu0 0
        %288 = vmatpush1.bf16.msra.mxu0 0
        %289 = vmatprep.subr.bf16.mxu0 0
        %290 = vmatpush1.bf16.msra.mxu0 0
        %291 = vmatprep.subr.bf16.mxu0 0
        %292 = vmatpush1.bf16.msra.mxu0 0
        %293 = vmatprep.subr.bf16.mxu0 0
        %294 = vmatpush1.bf16.msra.mxu0 0
        %295 = vmatprep.subr.bf16.mxu0 0
        %296 = vmatpush1.bf16.msra.mxu0 0
        %297 = vmatprep.subr.bf16.mxu0 0
        %298 = vmatpush1.bf16.msra.mxu0 0
        %299 = vmatprep.subr.bf16.mxu0 0
        %300 = vmatpush1.bf16.msra.mxu0 0
        %301 = vmatprep.subr.bf16.mxu0 0
        %302 = vmatpush1.bf16.msra.mxu0 0
        %303 = vmatprep.mubr.bf16.mxu0 0
        %304 = vmatmul.mubr.bf16.gmra.mrb[0].mxu0 %v269
        %v305 = vpop.f32.mrb[0].mxu0
        %v306 = vadd.f32 %v244, %v305
        %v307 = vpop.f32.mrb[0].mxu0
        %v308 = vadd.f32 %v246, %v307
        %v309 = vpop.f32.mrb[0].mxu0
        %v310 = vadd.f32 %v248, %v309
        %v311 = vpop.f32.mrb[0].mxu0
        %v312 = vadd.f32 %v250, %v311
        %313 = vdwg.mxu0
        %s314 = scalar_lea.vmem %s1, 16
        %v315 = vld [vmem:[%s314] sm:$0xf]
        %v316 = vld [vmem:[%s314 + $0x4] sm:$0xf]
        %v319 = vunpack.c.l.b16 %v315
        %v320 = vunpack.c.l.b16 %v316
        %v321 = vpack.c.b16 %v320, %v319
        %322 = vrot.lane.b32.xlu0 %v191, 86
        %v323 = vpop.permute.xlu0 %322
        %324 = vrot.lane.b32.xlu0 %v192, 86
        %v325 = vpop.permute.xlu0 %324
        %326 = vrot.lane.b32.xlu0 %v193, 86
        %v327 = vpop.permute.xlu0 %326
        %vm328 = vcmask 703488
        %v329 = vsel %vm328, %v323, %v325
        %v330 = vsel %vm328, %v325, %v327
        %v334 = vsel %vm205, %v321, 0
        %336 = vmatprep.subr.bf16.mxu0 %v330
        %337 = vmatpush1.bf16.msra.mxu0 %v329
        %338 = vmatprep.subr.bf16.mxu0 0
        %339 = vmatpush1.bf16.msra.mxu0 0
        %340 = vmatprep.subr.bf16.mxu0 0
        %341 = vmatpush1.bf16.msra.mxu0 0
        %342 = vmatprep.subr.bf16.mxu0 0
        %343 = vmatpush1.bf16.msra.mxu0 0
        %344 = vmatprep.subr.bf16.mxu0 0
        %345 = vmatpush1.bf16.msra.mxu0 0
        %346 = vmatprep.subr.bf16.mxu0 0
        %347 = vmatpush1.bf16.msra.mxu0 0
        %348 = vmatprep.subr.bf16.mxu0 0
        %349 = vmatpush1.bf16.msra.mxu0 0
        %350 = vmatprep.subr.bf16.mxu0 0
        %351 = vmatpush1.bf16.msra.mxu0 0
        %352 = vmatprep.subr.bf16.mxu0 0
        %353 = vmatpush1.bf16.msra.mxu0 0
        %354 = vmatprep.subr.bf16.mxu0 0
        %355 = vmatpush1.bf16.msra.mxu0 0
        %356 = vmatprep.subr.bf16.mxu0 0
        %357 = vmatpush1.bf16.msra.mxu0 0
        %358 = vmatprep.subr.bf16.mxu0 0
        %359 = vmatpush1.bf16.msra.mxu0 0
        %360 = vmatprep.subr.bf16.mxu0 0
        %361 = vmatpush1.bf16.msra.mxu0 0
        %362 = vmatprep.subr.bf16.mxu0 0
        %363 = vmatpush1.bf16.msra.mxu0 0
        %364 = vmatprep.subr.bf16.mxu0 0
        %365 = vmatpush1.bf16.msra.mxu0 0
        %366 = vmatprep.subr.bf16.mxu0 0
        %367 = vmatpush1.bf16.msra.mxu0 0
        %368 = vmatprep.mubr.bf16.mxu0 0
        %369 = vmatmul.mubr.bf16.gmra.mrb[0].mxu0 %v334
        %v370 = vpop.f32.mrb[0].mxu0
        %v371 = vadd.f32 0.0, %v370
        %v372 = vpop.f32.mrb[0].mxu0
        %v373 = vadd.f32 0.0, %v372
        %v374 = vpop.f32.mrb[0].mxu0
        %v375 = vadd.f32 0.0, %v374
        %v376 = vpop.f32.mrb[0].mxu0
        %v377 = vadd.f32 0.0, %v376
        %378 = vdwg.mxu0
        %v379 = vadd.f32 %v306, %v371
        %v380 = vadd.f32 %v308, %v373
        %v381 = vadd.f32 %v310, %v375
        %v382 = vadd.f32 %v312, %v377
        %s383 = scalar_lea.vmem %s1, 24
        %v384 = vld [vmem:[%s383] sm:$0xf]
        %v385 = vld [vmem:[%s383 + $0x4] sm:$0xf]
        %v388 = vunpack.c.l.b16 %v384
        %v389 = vunpack.c.l.b16 %v385
        %v390 = vpack.c.b16 %v389, %v388
        %391 = vrot.lane.b32.xlu0 %v191, 66
        %v392 = vpop.permute.xlu0 %391
        %393 = vrot.lane.b32.xlu0 %v192, 66
        %v394 = vpop.permute.xlu0 %393
        %395 = vrot.lane.b32.xlu0 %v193, 66
        %v396 = vpop.permute.xlu0 %395
        %vm397 = vcmask 539648
        %v398 = vsel %vm397, %v392, %v394
        %v399 = vsel %vm397, %v394, %v396
        %v403 = vsel %vm205, %v390, 0
        %405 = vmatprep.subr.bf16.mxu0 %v399
        %406 = vmatpush1.bf16.msra.mxu0 %v398
        %407 = vmatprep.subr.bf16.mxu0 0
        %408 = vmatpush1.bf16.msra.mxu0 0
        %409 = vmatprep.subr.bf16.mxu0 0
        %410 = vmatpush1.bf16.msra.mxu0 0
        %411 = vmatprep.subr.bf16.mxu0 0
        %412 = vmatpush1.bf16.msra.mxu0 0
        %413 = vmatprep.subr.bf16.mxu0 0
        %414 = vmatpush1.bf16.msra.mxu0 0
        %415 = vmatprep.subr.bf16.mxu0 0
        %416 = vmatpush1.bf16.msra.mxu0 0
        %417 = vmatprep.subr.bf16.mxu0 0
        %418 = vmatpush1.bf16.msra.mxu0 0
        %419 = vmatprep.subr.bf16.mxu0 0
        %420 = vmatpush1.bf16.msra.mxu0 0
        %421 = vmatprep.subr.bf16.mxu0 0
        %422 = vmatpush1.bf16.msra.mxu0 0
        %423 = vmatprep.subr.bf16.mxu0 0
        %424 = vmatpush1.bf16.msra.mxu0 0
        %425 = vmatprep.subr.bf16.mxu0 0
        %426 = vmatpush1.bf16.msra.mxu0 0
        %427 = vmatprep.subr.bf16.mxu0 0
        %428 = vmatpush1.bf16.msra.mxu0 0
        %429 = vmatprep.subr.bf16.mxu0 0
        %430 = vmatpush1.bf16.msra.mxu0 0
        %431 = vmatprep.subr.bf16.mxu0 0
        %432 = vmatpush1.bf16.msra.mxu0 0
        %433 = vmatprep.subr.bf16.mxu0 0
        %434 = vmatpush1.bf16.msra.mxu0 0
        %435 = vmatprep.subr.bf16.mxu0 0
        %436 = vmatpush1.bf16.msra.mxu0 0
        %437 = vmatprep.mubr.bf16.mxu0 0
        %438 = vmatmul.mubr.bf16.gmra.mrb[0].mxu0 %v403
        %v439 = vpop.f32.mrb[0].mxu0
        %v440 = vadd.f32 0.0, %v439
        %v441 = vpop.f32.mrb[0].mxu0
        %v442 = vadd.f32 0.0, %v441
        %v443 = vpop.f32.mrb[0].mxu0
        %v444 = vadd.f32 0.0, %v443
        %v445 = vpop.f32.mrb[0].mxu0
        %v446 = vadd.f32 0.0, %v445
        %447 = vdwg.mxu0
        %v448 = vadd.f32 %v379, %v440
        %v449 = vadd.f32 %v380, %v442
        %v450 = vadd.f32 %v381, %v444
        %v451 = vadd.f32 %v382, %v446
        %s452 = scalar_lea.vmem %s1, 32
        %v453 = vld [vmem:[%s452] sm:$0xf]
        %v454 = vld [vmem:[%s452 + $0x4] sm:$0xf]
        %v457 = vunpack.c.l.b16 %v453
        %v458 = vunpack.c.l.b16 %v454
        %v459 = vpack.c.b16 %v458, %v457
        %460 = vrot.lane.b32.xlu0 %v191, 64
        %v461 = vpop.permute.xlu0 %460
        %462 = vrot.lane.b32.xlu0 %v192, 64
        %v463 = vpop.permute.xlu0 %462
        %464 = vrot.lane.b32.xlu0 %v193, 64
        %v465 = vpop.permute.xlu0 %464
        %vm466 = vcmask 523264
        %v467 = vsel %vm466, %v461, %v463
        %v468 = vsel %vm466, %v463, %v465
        %v472 = vsel %vm205, %v459, 0
        %474 = vmatprep.subr.bf16.mxu0 %v468
        %475 = vmatpush1.bf16.msra.mxu0 %v467
        %476 = vmatprep.subr.bf16.mxu0 0
        %477 = vmatpush1.bf16.msra.mxu0 0
        %478 = vmatprep.subr.bf16.mxu0 0
        %479 = vmatpush1.bf16.msra.mxu0 0
        %480 = vmatprep.subr.bf16.mxu0 0
        %481 = vmatpush1.bf16.msra.mxu0 0
        %482 = vmatprep.subr.bf16.mxu0 0
        %483 = vmatpush1.bf16.msra.mxu0 0
        %484 = vmatprep.subr.bf16.mxu0 0
        %485 = vmatpush1.bf16.msra.mxu0 0
        %486 = vmatprep.subr.bf16.mxu0 0
        %487 = vmatpush1.bf16.msra.mxu0 0
        %488 = vmatprep.subr.bf16.mxu0 0
        %489 = vmatpush1.bf16.msra.mxu0 0
        %490 = vmatprep.subr.bf16.mxu0 0
        %491 = vmatpush1.bf16.msra.mxu0 0
        %492 = vmatprep.subr.bf16.mxu0 0
        %493 = vmatpush1.bf16.msra.mxu0 0
        %494 = vmatprep.subr.bf16.mxu0 0
        %495 = vmatpush1.bf16.msra.mxu0 0
        %496 = vmatprep.subr.bf16.mxu0 0
        %497 = vmatpush1.bf16.msra.mxu0 0
        %498 = vmatprep.subr.bf16.mxu0 0
        %499 = vmatpush1.bf16.msra.mxu0 0
        %500 = vmatprep.subr.bf16.mxu0 0
        %501 = vmatpush1.bf16.msra.mxu0 0
        %502 = vmatprep.subr.bf16.mxu0 0
        %503 = vmatpush1.bf16.msra.mxu0 0
        %504 = vmatprep.subr.bf16.mxu0 0
        %505 = vmatpush1.bf16.msra.mxu0 0
        %506 = vmatprep.mubr.bf16.mxu0 0
        %507 = vmatmul.mubr.bf16.gmra.mrb[0].mxu0 %v472
        %v508 = vpop.f32.mrb[0].mxu0
        %v509 = vadd.f32 0.0, %v508
        %v510 = vpop.f32.mrb[0].mxu0
        %v511 = vadd.f32 0.0, %v510
        %v512 = vpop.f32.mrb[0].mxu0
        %v513 = vadd.f32 0.0, %v512
        %v514 = vpop.f32.mrb[0].mxu0
        %v515 = vadd.f32 0.0, %v514
        %516 = vdwg.mxu0
        %v517 = vadd.f32 %v448, %v509
        %v518 = vadd.f32 %v449, %v511
        %v519 = vadd.f32 %v450, %v513
        %v520 = vadd.f32 %v451, %v515
        %s521 = scalar_lea.vmem %s1, 40
        %v522 = vld [vmem:[%s521] sm:$0xf]
        %v523 = vld [vmem:[%s521 + $0x4] sm:$0xf]
        %v526 = vunpack.c.l.b16 %v522
        %v527 = vunpack.c.l.b16 %v523
        %v528 = vpack.c.b16 %v527, %v526
        %529 = vrot.lane.b32.xlu0 %v191, 62
        %v530 = vpop.permute.xlu0 %529
        %531 = vrot.lane.b32.xlu0 %v192, 62
        %v532 = vpop.permute.xlu0 %531
        %533 = vrot.lane.b32.xlu0 %v193, 62
        %v534 = vpop.permute.xlu0 %533
        %vm535 = vcmask 506880
        %v536 = vsel %vm535, %v530, %v532
        %v537 = vsel %vm535, %v532, %v534
        %v541 = vsel %vm205, %v528, 0
        %543 = vmatprep.subr.bf16.mxu0 %v537
        %544 = vmatpush1.bf16.msra.mxu0 %v536
        %545 = vmatprep.subr.bf16.mxu0 0
        %546 = vmatpush1.bf16.msra.mxu0 0
        %547 = vmatprep.subr.bf16.mxu0 0
        %548 = vmatpush1.bf16.msra.mxu0 0
        %549 = vmatprep.subr.bf16.mxu0 0
        %550 = vmatpush1.bf16.msra.mxu0 0
        %551 = vmatprep.subr.bf16.mxu0 0
        %552 = vmatpush1.bf16.msra.mxu0 0
        %553 = vmatprep.subr.bf16.mxu0 0
        %554 = vmatpush1.bf16.msra.mxu0 0
        %555 = vmatprep.subr.bf16.mxu0 0
        %556 = vmatpush1.bf16.msra.mxu0 0
        %557 = vmatprep.subr.bf16.mxu0 0
        %558 = vmatpush1.bf16.msra.mxu0 0
        %559 = vmatprep.subr.bf16.mxu0 0
        %560 = vmatpush1.bf16.msra.mxu0 0
        %561 = vmatprep.subr.bf16.mxu0 0
        %562 = vmatpush1.bf16.msra.mxu0 0
        %563 = vmatprep.subr.bf16.mxu0 0
        %564 = vmatpush1.bf16.msra.mxu0 0
        %565 = vmatprep.subr.bf16.mxu0 0
        %566 = vmatpush1.bf16.msra.mxu0 0
        %567 = vmatprep.subr.bf16.mxu0 0
        %568 = vmatpush1.bf16.msra.mxu0 0
        %569 = vmatprep.subr.bf16.mxu0 0
        %570 = vmatpush1.bf16.msra.mxu0 0
        %571 = vmatprep.subr.bf16.mxu0 0
        %572 = vmatpush1.bf16.msra.mxu0 0
        %573 = vmatprep.subr.bf16.mxu0 0
        %574 = vmatpush1.bf16.msra.mxu0 0
        %575 = vmatprep.mubr.bf16.mxu0 0
        %576 = vmatmul.mubr.bf16.gmra.mrb[0].mxu0 %v541
        %v577 = vpop.f32.mrb[0].mxu0
        %v578 = vadd.f32 0.0, %v577
        %v579 = vpop.f32.mrb[0].mxu0
        %v580 = vadd.f32 0.0, %v579
        %v581 = vpop.f32.mrb[0].mxu0
        %v582 = vadd.f32 0.0, %v581
        %v583 = vpop.f32.mrb[0].mxu0
        %v584 = vadd.f32 0.0, %v583
        %585 = vdwg.mxu0
        %v586 = vadd.f32 %v517, %v578
        %v587 = vadd.f32 %v518, %v580
        %v588 = vadd.f32 %v519, %v582
        %v589 = vadd.f32 %v520, %v584
        %s590 = scalar_lea.vmem %s1, 48
        %v591 = vld [vmem:[%s590] sm:$0xf]
        %v592 = vld [vmem:[%s590 + $0x4] sm:$0xf]
        %v595 = vunpack.c.l.b16 %v591
        %v596 = vunpack.c.l.b16 %v592
        %v597 = vpack.c.b16 %v596, %v595
        %598 = vrot.lane.b32.xlu0 %v191, 42
        %v599 = vpop.permute.xlu0 %598
        %600 = vrot.lane.b32.xlu0 %v192, 42
        %v601 = vpop.permute.xlu0 %600
        %602 = vrot.lane.b32.xlu0 %v193, 42
        %v603 = vpop.permute.xlu0 %602
        %vm604 = vcmask 343040
        %v605 = vsel %vm604, %v599, %v601
        %v606 = vsel %vm604, %v601, %v603
        %v610 = vsel %vm205, %v597, 0
        %612 = vmatprep.subr.bf16.mxu0 %v606
        %613 = vmatpush1.bf16.msra.mxu0 %v605
        %614 = vmatprep.subr.bf16.mxu0 0
        %615 = vmatpush1.bf16.msra.mxu0 0
        %616 = vmatprep.subr.bf16.mxu0 0
        %617 = vmatpush1.bf16.msra.mxu0 0
        %618 = vmatprep.subr.bf16.mxu0 0
        %619 = vmatpush1.bf16.msra.mxu0 0
        %620 = vmatprep.subr.bf16.mxu0 0
        %621 = vmatpush1.bf16.msra.mxu0 0
        %622 = vmatprep.subr.bf16.mxu0 0
        %623 = vmatpush1.bf16.msra.mxu0 0
        %624 = vmatprep.subr.bf16.mxu0 0
        %625 = vmatpush1.bf16.msra.mxu0 0
        %626 = vmatprep.subr.bf16.mxu0 0
        %627 = vmatpush1.bf16.msra.mxu0 0
        %628 = vmatprep.subr.bf16.mxu0 0
        %629 = vmatpush1.bf16.msra.mxu0 0
        %630 = vmatprep.subr.bf16.mxu0 0
        %631 = vmatpush1.bf16.msra.mxu0 0
        %632 = vmatprep.subr.bf16.mxu0 0
        %633 = vmatpush1.bf16.msra.mxu0 0
        %634 = vmatprep.subr.bf16.mxu0 0
        %635 = vmatpush1.bf16.msra.mxu0 0
        %636 = vmatprep.subr.bf16.mxu0 0
        %637 = vmatpush1.bf16.msra.mxu0 0
        %638 = vmatprep.subr.bf16.mxu0 0
        %639 = vmatpush1.bf16.msra.mxu0 0
        %640 = vmatprep.subr.bf16.mxu0 0
        %641 = vmatpush1.bf16.msra.mxu0 0
        %642 = vmatprep.subr.bf16.mxu0 0
        %643 = vmatpush1.bf16.msra.mxu0 0
        %644 = vmatprep.mubr.bf16.mxu0 0
        %645 = vmatmul.mubr.bf16.gmra.mrb[0].mxu0 %v610
        %v646 = vpop.f32.mrb[0].mxu0
        %v647 = vadd.f32 0.0, %v646
        %v648 = vpop.f32.mrb[0].mxu0
        %v649 = vadd.f32 0.0, %v648
        %v650 = vpop.f32.mrb[0].mxu0
        %v651 = vadd.f32 0.0, %v650
        %v652 = vpop.f32.mrb[0].mxu0
        %v653 = vadd.f32 0.0, %v652
        %654 = vdwg.mxu0
        %v655 = vadd.f32 %v586, %v647
        %v656 = vadd.f32 %v587, %v649
        %v657 = vadd.f32 %v588, %v651
        %v658 = vadd.f32 %v589, %v653
        %s659 = scalar_lea.vmem %s1, 56
        %v660 = vld [vmem:[%s659] sm:$0xf]
        %v661 = vld [vmem:[%s659 + $0x4] sm:$0xf]
        %v664 = vunpack.c.l.b16 %v660
        %v665 = vunpack.c.l.b16 %v661
        %v666 = vpack.c.b16 %v665, %v664
        %667 = vrot.lane.b32.xlu0 %v191, 40
        %v668 = vpop.permute.xlu0 %667
        %669 = vrot.lane.b32.xlu0 %v192, 40
        %v670 = vpop.permute.xlu0 %669
        %671 = vrot.lane.b32.xlu0 %v193, 40
        %v672 = vpop.permute.xlu0 %671
        %vm673 = vcmask 326656
        %v674 = vsel %vm673, %v668, %v670
        %v675 = vsel %vm673, %v670, %v672
        %v679 = vsel %vm205, %v666, 0
        %681 = vmatprep.subr.bf16.mxu0 %v675
        %682 = vmatpush1.bf16.msra.mxu0 %v674
        %683 = vmatprep.subr.bf16.mxu0 0
        %684 = vmatpush1.bf16.msra.mxu0 0
        %685 = vmatprep.subr.bf16.mxu0 0
        %686 = vmatpush1.bf16.msra.mxu0 0
        %687 = vmatprep.subr.bf16.mxu0 0
        %688 = vmatpush1.bf16.msra.mxu0 0
        %689 = vmatprep.subr.bf16.mxu0 0
        %690 = vmatpush1.bf16.msra.mxu0 0
        %691 = vmatprep.subr.bf16.mxu0 0
        %692 = vmatpush1.bf16.msra.mxu0 0
        %693 = vmatprep.subr.bf16.mxu0 0
        %694 = vmatpush1.bf16.msra.mxu0 0
        %695 = vmatprep.subr.bf16.mxu0 0
        %696 = vmatpush1.bf16.msra.mxu0 0
        %697 = vmatprep.subr.bf16.mxu0 0
        %698 = vmatpush1.bf16.msra.mxu0 0
        %699 = vmatprep.subr.bf16.mxu0 0
        %700 = vmatpush1.bf16.msra.mxu0 0
        %701 = vmatprep.subr.bf16.mxu0 0
        %702 = vmatpush1.bf16.msra.mxu0 0
        %703 = vmatprep.subr.bf16.mxu0 0
        %704 = vmatpush1.bf16.msra.mxu0 0
        %705 = vmatprep.subr.bf16.mxu0 0
        %706 = vmatpush1.bf16.msra.mxu0 0
        %707 = vmatprep.subr.bf16.mxu0 0
        %708 = vmatpush1.bf16.msra.mxu0 0
        %709 = vmatprep.subr.bf16.mxu0 0
        %710 = vmatpush1.bf16.msra.mxu0 0
        %711 = vmatprep.subr.bf16.mxu0 0
        %712 = vmatpush1.bf16.msra.mxu0 0
        %713 = vmatprep.mubr.bf16.mxu0 0
        %714 = vmatmul.mubr.bf16.gmra.mrb[0].mxu0 %v679
        %v715 = vpop.f32.mrb[0].mxu0
        %v716 = vadd.f32 0.0, %v715
        %v717 = vpop.f32.mrb[0].mxu0
        %v718 = vadd.f32 0.0, %v717
        %v719 = vpop.f32.mrb[0].mxu0
        %v720 = vadd.f32 0.0, %v719
        %v721 = vpop.f32.mrb[0].mxu0
        %v722 = vadd.f32 0.0, %v721
        %723 = vdwg.mxu0
        %v724 = vadd.f32 %v655, %v716
        %v725 = vadd.f32 %v656, %v718
        %v726 = vadd.f32 %v657, %v720
        %v727 = vadd.f32 %v658, %v722
        %s728 = scalar_lea.vmem %s1, 64
        %v729 = vld [vmem:[%s728] sm:$0xf]
        %v730 = vld [vmem:[%s728 + $0x4] sm:$0xf]
        %v733 = vunpack.c.l.b16 %v729
        %v734 = vunpack.c.l.b16 %v730
        %v735 = vpack.c.b16 %v734, %v733
        %736 = vrot.lane.b32.xlu0 %v191, 38
        %v737 = vpop.permute.xlu0 %736
        %738 = vrot.lane.b32.xlu0 %v192, 38
        %v739 = vpop.permute.xlu0 %738
        %740 = vrot.lane.b32.xlu0 %v193, 38
        %v741 = vpop.permute.xlu0 %740
        %vm742 = vcmask 310272
        %v743 = vsel %vm742, %v737, %v739
        %v744 = vsel %vm742, %v739, %v741
        %v748 = vsel %vm205, %v735, 0
        %750 = vmatprep.subr.bf16.mxu0 %v744
        %751 = vmatpush1.bf16.msra.mxu0 %v743
        %752 = vmatprep.subr.bf16.mxu0 0
        %753 = vmatpush1.bf16.msra.mxu0 0
        %754 = vmatprep.subr.bf16.mxu0 0
        %755 = vmatpush1.bf16.msra.mxu0 0
        %756 = vmatprep.subr.bf16.mxu0 0
        %757 = vmatpush1.bf16.msra.mxu0 0
        %758 = vmatprep.subr.bf16.mxu0 0
        %759 = vmatpush1.bf16.msra.mxu0 0
        %760 = vmatprep.subr.bf16.mxu0 0
        %761 = vmatpush1.bf16.msra.mxu0 0
        %762 = vmatprep.subr.bf16.mxu0 0
        %763 = vmatpush1.bf16.msra.mxu0 0
        %764 = vmatprep.subr.bf16.mxu0 0
        %765 = vmatpush1.bf16.msra.mxu0 0
        %766 = vmatprep.subr.bf16.mxu0 0
        %767 = vmatpush1.bf16.msra.mxu0 0
        %768 = vmatprep.subr.bf16.mxu0 0
        %769 = vmatpush1.bf16.msra.mxu0 0
        %770 = vmatprep.subr.bf16.mxu0 0
        %771 = vmatpush1.bf16.msra.mxu0 0
        %772 = vmatprep.subr.bf16.mxu0 0
        %773 = vmatpush1.bf16.msra.mxu0 0
        %774 = vmatprep.subr.bf16.mxu0 0
        %775 = vmatpush1.bf16.msra.mxu0 0
        %776 = vmatprep.subr.bf16.mxu0 0
        %777 = vmatpush1.bf16.msra.mxu0 0
        %778 = vmatprep.subr.bf16.mxu0 0
        %779 = vmatpush1.bf16.msra.mxu0 0
        %780 = vmatprep.subr.bf16.mxu0 0
        %781 = vmatpush1.bf16.msra.mxu0 0
        %782 = vmatprep.mubr.bf16.mxu0 0
        %783 = vmatmul.mubr.bf16.gmra.mrb[0].mxu0 %v748
        %v784 = vpop.f32.mrb[0].mxu0
        %v785 = vadd.f32 0.0, %v784
        %v786 = vpop.f32.mrb[0].mxu0
        %v787 = vadd.f32 0.0, %v786
        %v788 = vpop.f32.mrb[0].mxu0
        %v789 = vadd.f32 0.0, %v788
        %v790 = vpop.f32.mrb[0].mxu0
        %v791 = vadd.f32 0.0, %v790
        %792 = vdwg.mxu0
        %v793 = vadd.f32 %v724, %v785
        %v794 = vadd.f32 %v725, %v787
        %v795 = vadd.f32 %v726, %v789
        %v796 = vadd.f32 %v727, %v791
        %v797 = vld [vmem:[%s2] sm:$0xff]
        %v798 = vld [vmem:[%s2 + $0x8] sm:$0xff]
        %800 = vset.pattern.permute.xlu0 0
        %801 = vperm.xlu0 %800, %v797
        %v802 = vpop.permute.xlu0 %801
        %805 = vset.pattern.permute.xlu0 0
        %806 = vperm.xlu0 %805, %v798
        %v807 = vpop.permute.xlu0 %806
        %v809 = vadd.f32 %v793, %v802
        %v810 = vadd.f32 %v794, %v802
        %v811 = vadd.f32 %v795, %v807
        %v812 = vadd.f32 %v796, %v807
        %v813 = vmax.f32 %v809, 0.0
        %v814 = vmax.f32 %v810, 0.0
        %v815 = vmax.f32 %v811, 0.0
        %v816 = vmax.f32 %v812, 0.0
        %v817 = vpack.c.bf16 %v815, %v813
        %v818 = vpack.c.bf16 %v816, %v814
        %v821 = vunpack.c.l.b16 %v817
        %v822 = vunpack.c.l.b16 %v818
        %v823 = vunpack.c.h.b16 %v817
        %v824 = vunpack.c.h.b16 %v818
        %v825 = vpack.c.b16 %v822, %v821
        %v826 = vpack.c.b16 %v824, %v823
        %829 = vst [vmem:[%s159] sm:$0xff] %v825
        %830 = vst [vmem:[%s159 + $0x8] sm:$0xff] %v826
        %s831 = sand.u32 %s90, 1
        %s832 = sand.u32 %s90, 1
        %s833 = smul.addr %s832, 16
        %s834 = scalar_lea.vmem [#allocation2], %s833
        // Predicated region
        $region33: #{rsu4_apply_nchw.12} parent=31 // pred_check
          %p835 = pneg %p100
        $region34: #{rsu4_apply_nchw.12} parent=31 // pred_check_branch
          %837 = sbr.rel (%p835) target = $region36
        $region35: #{rsu4_apply_nchw.12} parent=31 // pred_region
          %s838 = smul.u32 2, %s14
          %s839 = smul.addr %s838, 4
          %s840 = scalar_lea.vmem %s3, %s839
          // Predicated region
          $region37: #{rsu4_apply_nchw.12} parent=35 // pred_check
            _
          $region38: #{rsu4_apply_nchw.12} parent=35 // pred_check_branch
            %842 = sbr.rel (0) target = $region40
          $region39: #{rsu4_apply_nchw.12} parent=35 // pred_region
            // Predicated region
            $region41: #{rsu4_apply_nchw.12} parent=39 // pred_check
              _
            $region42: #{rsu4_apply_nchw.12} parent=39 // pred_check_branch
              %844 = sbr.rel (0) target = $region44
            $region43: #{rsu4_apply_nchw.12} parent=39 // pred_region
              // Predicated region
              $region56: #{rsu4_apply_nchw.12} parent=43 // pred_check
                _
              $region57: #{rsu4_apply_nchw.12} parent=43 // pred_check_branch
                %861 = sbr.rel (0) target = $region59
              $region58: #{rsu4_apply_nchw.12} parent=43 // pred_region
                loop: start=0, step=1, limit=1
                $region60: #{rsu4_apply_nchw.12} parent=58 // loop_pre_header
                  _
                $region61: #{rsu4_apply_nchw.12} parent=58 // loop_header
                  %s863 = sphi 0, %s867
                  %p864 = scmp.ge.s32.totalorder %s863, 1
                  %s868 = sphi %s834, %s834
                  %s869 = sphi %s840, %s840
                $region62: #{rsu4_apply_nchw.12} parent=58 // loop_header_branch
                  %866 = sbr.rel (%p864) target = $region66
                $region63: #{rsu4_apply_nchw.12} parent=58 // loop_body
                  %v870 = vld [vmem:[%s868] sm:$0xff]
                  %871 = vst [vmem:[%s869] sm:$0xff] %v870
                  %v872 = vld [vmem:[%s868 + $0x8] sm:$0xff]
                  %873 = vst [vmem:[%s869 + $0x10] sm:$0xff] %v872
                $region64: #{rsu4_apply_nchw.12} parent=58 // loop_footer
                  %s867 = sadd.s32 1, %s863
                $region65: #{rsu4_apply_nchw.12} parent=58 // loop_footer_branch
                  %862 = sbr.rel target = $region61
                $region66: #{rsu4_apply_nchw.12} parent=58 // loop_exit
                  _
              $region59: #{rsu4_apply_nchw.12} parent=43 // pred_fallthru
                _
              // Predicated region
              $region67: #{rsu4_apply_nchw.12} parent=43 // pred_check
                _
              $region68: #{rsu4_apply_nchw.12} parent=43 // pred_check_branch
                %875 = sbr.rel target = $region70
              $region69: #{rsu4_apply_nchw.12} parent=43 // pred_region
                _
              $region70: #{rsu4_apply_nchw.12} parent=43 // pred_fallthru
                _
            $region44: #{rsu4_apply_nchw.12} parent=39 // pred_fallthru
              _
            // Predicated region
            $region45: #{rsu4_apply_nchw.12} parent=39 // pred_check
              _
            $region46: #{rsu4_apply_nchw.12} parent=39 // pred_check_branch
              %846 = sbr.rel target = $region48
            $region47: #{rsu4_apply_nchw.12} parent=39 // pred_region
              loop: start=0, step=1, limit=1
              $region49: #{rsu4_apply_nchw.12} parent=47 // loop_pre_header
                _
              $region50: #{rsu4_apply_nchw.12} parent=47 // loop_header
                %s849 = sphi 0, %s853
                %p850 = scmp.ge.s32.totalorder %s849, 1
                %s854 = sphi %s834, %s834
                %s855 = sphi %s840, %s840
              $region51: #{rsu4_apply_nchw.12} parent=47 // loop_header_branch
                %852 = sbr.rel (%p850) target = $region55
              $region52: #{rsu4_apply_nchw.12} parent=47 // loop_body
                %v856 = vld [vmem:[%s854] sm:$0xff]
                %857 = vst [vmem:[%s855] sm:$0xff] %v856
                %v858 = vld [vmem:[%s854 + $0x8] sm:$0xff]
                %859 = vst [vmem:[%s855 + $0x10] sm:$0xff] %v858
              $region53: #{rsu4_apply_nchw.12} parent=47 // loop_footer
                %s853 = sadd.s32 1, %s849
              $region54: #{rsu4_apply_nchw.12} parent=47 // loop_footer_branch
                %848 = sbr.rel target = $region50
              $region55: #{rsu4_apply_nchw.12} parent=47 // loop_exit
                _
            $region48: #{rsu4_apply_nchw.12} parent=39 // pred_fallthru
              _
          $region40: #{rsu4_apply_nchw.12} parent=35 // pred_fallthru
            _
          %876 = vnop
        $region36: #{rsu4_apply_nchw.12} parent=31 // pred_fallthru
          _
      $region32: #{rsu4_apply_nchw.12} parent=5 // pred_fallthru
        _
      %p877 = scmp.le.s32.totalorder 2, %s9
      // Predicated region
      $region71: #{rsu4_apply_nchw.12} parent=5 // pred_check
        %p878 = pneg %p877
      $region72: #{rsu4_apply_nchw.12} parent=5 // pred_check_branch
        %880 = sbr.rel (%p878) target = $region74
      $region73: #{rsu4_apply_nchw.12} parent=5 // pred_region
        %s881 = ssub.s32 %s9, 2
        // Predicated region
        $region75: #{rsu4_apply_nchw.12} parent=73 // pred_check
          %p882 = pneg %p106
        $region76: #{rsu4_apply_nchw.12} parent=73 // pred_check_branch
          %884 = sbr.rel (%p882) target = $region78
        $region77: #{rsu4_apply_nchw.12} parent=73 // pred_region
          %s885 = sand.u32 %s91, 1
          %s886 = sand.u32 %s91, 1
          %s887 = smul.addr %s886, 16
          %s888 = scalar_lea.vmem [#allocation2], %s887
        $region78: #{rsu4_apply_nchw.12} parent=73 // pred_fallthru
          _
      $region74: #{rsu4_apply_nchw.12} parent=5 // pred_fallthru
        _
    $region6: #{rsu4_apply_nchw.12} parent=1 // loop_footer
      %s13 = sadd.s32 1, %s9
    $region7: #{rsu4_apply_nchw.12} parent=1 // loop_footer_branch
      %8 = sbr.rel target = $region3
    $region8: #{rsu4_apply_nchw.12} parent=1 // loop_exit
      _

// kernel: rsu4_apply_nchw.11
$region0: #{rsu4_apply_nchw.11}
  #allocation0 [shape = 'u32[]', space=smem, size = 0x4, offset = 0x4, fixed_abs, tag = 'smem constant byte address 0x4 - core index']
  #allocation1 [shape = 'u32[144,128]{1,0:T(1,128)}', space=vmem, size = 0x12000, scoped, tag = 'internal scratch']
  %s0 = inlined_call_operand.vmem [shape: bf16[2,16,256], index: 0, kind: input, shape index: {}]
  %s1 = inlined_call_operand.vmem [shape: bf16[9,16,16], index: 1, kind: input, shape index: {}]
  %s2 = inlined_call_operand.vmem [shape: f32[16,1], index: 2, kind: input, shape index: {}]
  %s3 = inlined_call_operand.vmem [shape: bf16[16,256], index: 3, kind: output, shape index: {}]
  %s4 = sld [smem:[#allocation0]]
  $region82: #{rsu4_apply_nchw.11} parent=0
    _
  %s6 = ssub.s32 1, %s4
  %s7 = scalar_select 0, %s6, %s4
  $region1: #{rsu4_apply_nchw.11} parent=0
    #allocation2 [shape = 'u8[8192]{0}', space=vmem, size = 0x2000, scoped, tag = 'output window, operand 0']
    loop: start=0, step=1, limit=4
    $region2: #{rsu4_apply_nchw.11} parent=1 // loop_pre_header
      _
    $region3: #{rsu4_apply_nchw.11} parent=1 // loop_header
      %s9 = sphi 0, %s13
      %p10 = scmp.ge.s32.totalorder %s9, 4
      %s19 = sphi 0, %s21
      %s22 = sphi 0, %s19
      %s23 = sphi 0, %s22
      %s39 = sphi 0, %s23
      %s43 = sphi 0, %s43
      %s45 = sphi 0, %s43
      %s46 = sphi 0, %s45
      %s60 = sphi 0, %s46
      %s64 = sphi 0, %s64
      %s66 = sphi 0, %s64
      %s67 = sphi 0, %s66
      %s81 = sphi 0, %s67
      %s87 = sphi 0, %s89
      %s90 = sphi 0, %s87
      %s91 = sphi 0, %s90
      %s107 = sphi 0, %s91
    $region4: #{rsu4_apply_nchw.11} parent=1 // loop_header_branch
      %12 = sbr.rel (%p10) target = $region8
    $region5: #{rsu4_apply_nchw.11} parent=1 // loop_body
      %s14 = ssub.s32 %s9, 1
      %s15 = ssub.s32 %s9, 2
      %s16 = sadd.s32 %s9, 1
      %s17 = ssub.s32 %s9, %s16
      %p18 = scmp.eq.s32.totalorder %s17, 0
      %s20 = sadd.s32 %s19, 1
      %s21 = scalar_select %p18, %s19, %s20
      %p24 = pneg %p18
      %p25 = scmp.eq.s32.totalorder %s9, 1
      %p26 = por %p24, %p25
      %p27 = scmp.ne.s32.totalorder %s19, %s22
      %p28 = scmp.eq.s32.totalorder %s9, 0
      %p29 = por %p27, %p28
      %p30 = scmp.ne.s32.totalorder %s19, %s22
      %p31 = scmp.eq.s32.totalorder %s14, 1
      %p32 = por %p30, %p31
      %p33 = scmp.ne.s32.totalorder %s22, %s23
      %p34 = scmp.eq.s32.totalorder %s14, 0
      %p35 = por %p33, %p34
      %p36 = scmp.ne.s32.totalorder %s22, %s23
      %p37 = scmp.eq.s32.totalorder %s15, 1
      %p38 = por %p36, %p37
      %p40 = scmp.ne.s32.totalorder %s23, %s39
      %p41 = scmp.eq.s32.totalorder %s15, 0
      %p42 = por %p40, %p41
      %s44 = sadd.s32 %s43, 1
      %p47 = scmp.eq.s32.totalorder %s9, 1
      %p48 = scmp.ne.s32.totalorder %s43, %s45
      %p49 = scmp.eq.s32.totalorder %s9, 0
      %p50 = por %p48, %p49
      %p51 = scmp.ne.s32.totalorder %s43, %s45
      %p52 = scmp.eq.s32.totalorder %s14, 1
      %p53 = por %p51, %p52
      %p54 = scmp.ne.s32.totalorder %s45, %s46
      %p55 = scmp.eq.s32.totalorder %s14, 0
      %p56 = por %p54, %p55
      %p57 = scmp.ne.s32.totalorder %s45, %s46
      %p58 = scmp.eq.s32.totalorder %s15, 1
      %p59 = por %p57, %p58
      %p61 = scmp.ne.s32.totalorder %s46, %s60
      %p62 = scmp.eq.s32.totalorder %s15, 0
      %p63 = por %p61, %p62
      %s65 = sadd.s32 %s64, 1
      %p68 = scmp.eq.s32.totalorder %s9, 1
      %p69 = scmp.ne.s32.totalorder %s64, %s66
      %p70 = scmp.eq.s32.totalorder %s9, 0
      %p71 = por %p69, %p70
      %p72 = scmp.ne.s32.totalorder %s64, %s66
      %p73 = scmp.eq.s32.totalorder %s14, 1
      %p74 = por %p72, %p73
      %p75 = scmp.ne.s32.totalorder %s66, %s67
      %p76 = scmp.eq.s32.totalorder %s14, 0
      %p77 = por %p75, %p76
      %p78 = scmp.ne.s32.totalorder %s66, %s67
      %p79 = scmp.eq.s32.totalorder %s15, 1
      %p80 = por %p78, %p79
      %p82 = scmp.ne.s32.totalorder %s67, %s81
      %p83 = scmp.eq.s32.totalorder %s15, 0
      %p84 = por %p82, %p83
      %s85 = ssub.s32 %s9, %s16
      %p86 = scmp.eq.s32.totalorder %s85, 0
      %s88 = sadd.s32 %s87, 1
      %s89 = scalar_select %p86, %s87, %s88
      %p92 = pneg %p86
      %p93 = scmp.eq.s32.totalorder %s9, 1
      %p94 = por %p92, %p93
      %p95 = scmp.ne.s32.totalorder %s87, %s90
      %p96 = scmp.eq.s32.totalorder %s9, 0
      %p97 = por %p95, %p96
      %p98 = scmp.ne.s32.totalorder %s87, %s90
      %p99 = scmp.eq.s32.totalorder %s14, 1
      %p100 = por %p98, %p99
      %p101 = scmp.ne.s32.totalorder %s90, %s91
      %p102 = scmp.eq.s32.totalorder %s14, 0
      %p103 = por %p101, %p102
      %p104 = scmp.ne.s32.totalorder %s90, %s91
      %p105 = scmp.eq.s32.totalorder %s15, 1
      %p106 = por %p104, %p105
      %p108 = scmp.ne.s32.totalorder %s91, %s107
      %p109 = scmp.eq.s32.totalorder %s15, 0
      %p110 = por %p108, %p109
      %p111 = scmp.le.s32.totalorder 1, %s9
      %p112 = scmp.lt.s32.totalorder %s9, 3
      %p113 = pnand %p111, %p112
      %p114 = pneg %p113
      // Predicated region
      $region9: #{rsu4_apply_nchw.11} parent=5 // pred_check
        _
      $region10: #{rsu4_apply_nchw.11} parent=5 // pred_check_branch
        %116 = sbr.rel (%p113) target = $region12
      $region11: #{rsu4_apply_nchw.11} parent=5 // pred_region
        %s117 = ssub.s32 %s9, 1
        // Predicated region
        $region13: #{rsu4_apply_nchw.11} parent=11 // pred_check
          %p118 = pneg %p56
        $region14: #{rsu4_apply_nchw.11} parent=11 // pred_check_branch
          %120 = sbr.rel (%p118) target = $region16
        $region15: #{rsu4_apply_nchw.11} parent=11 // pred_region
          _
        $region16: #{rsu4_apply_nchw.11} parent=11 // pred_fallthru
          _
        // Predicated region
        $region17: #{rsu4_apply_nchw.11} parent=11 // pred_check
          %p121 = pneg %p77
        $region18: #{rsu4_apply_nchw.11} parent=11 // pred_check_branch
          %123 = sbr.rel (%p121) target = $region20
        $region19: #{rsu4_apply_nchw.11} parent=11 // pred_region
          _
        $region20: #{rsu4_apply_nchw.11} parent=11 // pred_fallthru
          _
      $region12: #{rsu4_apply_nchw.11} parent=5 // pred_fallthru
        _
      %p124 = scmp.lt.s32.totalorder %s9, 2
      // Predicated region
      $region21: #{rsu4_apply_nchw.11} parent=5 // pred_check
        %p125 = pneg %p124
      $region22: #{rsu4_apply_nchw.11} parent=5 // pred_check_branch
        %127 = sbr.rel (%p125) target = $region24
      $region23: #{rsu4_apply_nchw.11} parent=5 // pred_region
        // Predicated region
        $region25: #{rsu4_apply_nchw.11} parent=23 // pred_check
          %p128 = pneg %p29
        $region26: #{rsu4_apply_nchw.11} parent=23 // pred_check_branch
          %130 = sbr.rel (%p128) target = $region28
        $region27: #{rsu4_apply_nchw.11} parent=23 // pred_region
          %p131 = scmp.lt.s32.totalorder %s9, 1
          %s132 = scalar_select %p131, %s9, 1
          %s133 = smul.addr %s132, 4
          %s134 = smul.addr %s133, 4
          %s135 = scalar_lea.vmem %s0, %s134
        $region28: #{rsu4_apply_nchw.11} parent=23 // pred_fallthru
          _
      $region24: #{rsu4_apply_nchw.11} parent=5 // pred_fallthru
        _
      %p136 = scmp.le.s32.totalorder 1, %s9
      %p137 = scmp.lt.s32.totalorder %s9, 3
      %p138 = pnand %p136, %p137
      %p139 = pneg %p138
      // Predicated region
      $region29: #{rsu4_apply_nchw.11} parent=5 // pred_check
        _
      $region30: #{rsu4_apply_nchw.11} parent=5 // pred_check_branch
        %141 = sbr.rel (%p138) target = $region32
      $region31: #{rsu4_apply_nchw.11} parent=5 // pred_region
        %s142 = ssub.s32 %s9, 1
        %p143 = scmp.lt.s32.totalorder %s14, 1
        %s144 = scalar_select %p143, %s14, 1
        %s145 = smul.addr %s144, 4
        %s146 = smul.addr %s145, 4
        %s147 = scalar_lea.vmem %s0, %s146
        %p148 = pneg %p35
        %p149 = pneg %p32
        %p150 = pneg %p56
        %p151 = pneg %p53
        %p152 = pneg %p77
        %p153 = pneg %p74
        %p154 = pneg %p103
        %p155 = pneg %p100
        %s156 = sand.u32 %s90, 1
        %s157 = sand.u32 %s90, 1
        %s158 = smul.addr %s157, 8
        %s159 = scalar_lea.vmem [#allocation2], %s158
        %p160 = scmp.lt.s32.totalorder %s14, 1
        %s161 = scalar_select %p160, %s14, 1
        %s162 = smul.addr %s161, 4
        %s163 = smul.addr %s162, 4
        %s164 = scalar_lea.vmem %s0, %s163
        %v166 = vld [vmem:[%s1] sm:$0xf]
        %v167 = vld [vmem:[%s1 + $0x4] sm:$0xf]
        %v168 = vld [vmem:[%s164] sm:$0xff]
        %v169 = vld [vmem:[%s164 + $0x8] sm:$0xff]
        %s170 = scalar_lea.vmem %s1, 8
        %v171 = vld [vmem:[%s170] sm:$0xf]
        %v172 = vld [vmem:[%s170 + $0x4] sm:$0xf]
        %v175 = vunpack.c.l.b16 %v171
        %v176 = vunpack.c.l.b16 %v172
        %v177 = vpack.c.b16 %v176, %v175
        %v180 = vunpack.c.l.b16 %v168
        %v181 = vunpack.c.h.b16 %v168
        %v182 = vunpack.c.l.b16 %v169
        %v183 = vunpack.c.h.b16 %v169
        %v184 = vpack.c.b16 %v182, %v180
        %v185 = vpack.c.b16 %v183, %v181
        %186 = vrot.lane.b32.xlu0 %v184, 74
        %v187 = vpop.permute.xlu0 %186
        %188 = vrot.lane.b32.xlu0 %v185, 74
        %v189 = vpop.permute.xlu0 %188
        %vm190 = vcmask 605184
        %v191 = vsel %vm190, %v187, %v189
        %vm193 = vcmask 130048
        %v195 = vsel %vm193, %v177, 0
        %197 = vmatprep.subr.bf16.mxu0 0
        %198 = vmatpush1.bf16.msra.mxu0 %v191
        %199 = vmatprep.subr.bf16.mxu0 0
        %200 = vmatpush1.bf16.msra.mxu0 0
        %201 = vmatprep.subr.bf16.mxu0 0
        %202 = vmatpush1.bf16.msra.mxu0 0
        %203 = vmatprep.subr.bf16.mxu0 0
        %204 = vmatpush1.bf16.msra.mxu0 0
        %205 = vmatprep.subr.bf16.mxu0 0
        %206 = vmatpush1.bf16.msra.mxu0 0
        %207 = vmatprep.subr.bf16.mxu0 0
        %208 = vmatpush1.bf16.msra.mxu0 0
        %209 = vmatprep.subr.bf16.mxu0 0
        %210 = vmatpush1.bf16.msra.mxu0 0
        %211 = vmatprep.subr.bf16.mxu0 0
        %212 = vmatpush1.bf16.msra.mxu0 0
        %213 = vmatprep.subr.bf16.mxu0 0
        %214 = vmatpush1.bf16.msra.mxu0 0
        %215 = vmatprep.subr.bf16.mxu0 0
        %216 = vmatpush1.bf16.msra.mxu0 0
        %217 = vmatprep.subr.bf16.mxu0 0
        %218 = vmatpush1.bf16.msra.mxu0 0
        %219 = vmatprep.subr.bf16.mxu0 0
        %220 = vmatpush1.bf16.msra.mxu0 0
        %221 = vmatprep.subr.bf16.mxu0 0
        %222 = vmatpush1.bf16.msra.mxu0 0
        %223 = vmatprep.subr.bf16.mxu0 0
        %224 = vmatpush1.bf16.msra.mxu0 0
        %225 = vmatprep.subr.bf16.mxu0 0
        %226 = vmatpush1.bf16.msra.mxu0 0
        %227 = vmatprep.subr.bf16.mxu0 0
        %228 = vmatpush1.bf16.msra.mxu0 0
        %229 = vmatprep.mubr.bf16.mxu0 0
        %230 = vmatmul.mubr.bf16.gmra.mrb[0].mxu0 %v195
        %v231 = vpop.f32.mrb[0].mxu0
        %v232 = vadd.f32 0.0, %v231
        %v233 = vpop.f32.mrb[0].mxu0
        %v234 = vpop.f32.mrb[0].mxu0
        %v235 = vadd.f32 0.0, %v234
        %v236 = vpop.f32.mrb[0].mxu0
        %237 = vdwg.mxu0
        %v240 = vunpack.c.l.b16 %v166
        %v241 = vunpack.c.l.b16 %v167
        %v242 = vpack.c.b16 %v241, %v240
        %243 = vrot.lane.b32.xlu0 %v184, 75
        %v244 = vpop.permute.xlu0 %243
        %245 = vrot.lane.b32.xlu0 %v185, 75
        %v246 = vpop.permute.xlu0 %245
        %vm247 = vcmask 613376
        %v248 = vsel %vm247, %v244, %v246
        %v251 = vsel %vm193, %v242, 0
        %253 = vmatprep.subr.bf16.mxu0 0
        %254 = vmatpush1.bf16.msra.mxu0 %v248
        %255 = vmatprep.subr.bf16.mxu0 0
        %256 = vmatpush1.bf16.msra.mxu0 0
        %257 = vmatprep.subr.bf16.mxu0 0
        %258 = vmatpush1.bf16.msra.mxu0 0
        %259 = vmatprep.subr.bf16.mxu0 0
        %260 = vmatpush1.bf16.msra.mxu0 0
        %261 = vmatprep.subr.bf16.mxu0 0
        %262 = vmatpush1.bf16.msra.mxu0 0
        %263 = vmatprep.subr.bf16.mxu0 0
        %264 = vmatpush1.bf16.msra.mxu0 0
        %265 = vmatprep.subr.bf16.mxu0 0
        %266 = vmatpush1.bf16.msra.mxu0 0
        %267 = vmatprep.subr.bf16.mxu0 0
        %268 = vmatpush1.bf16.msra.mxu0 0
        %269 = vmatprep.subr.bf16.mxu0 0
        %270 = vmatpush1.bf16.msra.mxu0 0
        %271 = vmatprep.subr.bf16.mxu0 0
        %272 = vmatpush1.bf16.msra.mxu0 0
        %273 = vmatprep.subr.bf16.mxu0 0
        %274 = vmatpush1.bf16.msra.mxu0 0
        %275 = vmatprep.subr.bf16.mxu0 0
        %276 = vmatpush1.bf16.msra.mxu0 0
        %277 = vmatprep.subr.bf16.mxu0 0
        %278 = vmatpush1.bf16.msra.mxu0 0
        %279 = vmatprep.subr.bf16.mxu0 0
        %280 = vmatpush1.bf16.msra.mxu0 0
        %281 = vmatprep.subr.bf16.mxu0 0
        %282 = vmatpush1.bf16.msra.mxu0 0
        %283 = vmatprep.subr.bf16.mxu0 0
        %284 = vmatpush1.bf16.msra.mxu0 0
        %285 = vmatprep.mubr.bf16.mxu0 0
        %286 = vmatmul.mubr.bf16.gmra.mrb[0].mxu0 %v251
        %v287 = vpop.f32.mrb[0].mxu0
        %v288 = vadd.f32 %v232, %v287
        %v289 = vpop.f32.mrb[0].mxu0
        %v290 = vpop.f32.mrb[0].mxu0
        %v291 = vadd.f32 %v235, %v290
        %v292 = vpop.f32.mrb[0].mxu0
        %293 = vdwg.mxu0
        %s294 = scalar_lea.vmem %s1, 16
        %v295 = vld [vmem:[%s294] sm:$0xf]
        %v296 = vld [vmem:[%s294 + $0x4] sm:$0xf]
        %v299 = vunpack.c.l.b16 %v295
        %v300 = vunpack.c.l.b16 %v296
        %v301 = vpack.c.b16 %v300, %v299
        %302 = vrot.lane.b32.xlu0 %v184, 73
        %v303 = vpop.permute.xlu0 %302
        %304 = vrot.lane.b32.xlu0 %v185, 73
        %v305 = vpop.permute.xlu0 %304
        %vm306 = vcmask 596992
        %v307 = vsel %vm306, %v303, %v305
        %v310 = vsel %vm193, %v301, 0
        %312 = vmatprep.subr.bf16.mxu0 0
        %313 = vmatpush1.bf16.msra.mxu0 %v307
        %314 = vmatprep.subr.bf16.mxu0 0
        %315 = vmatpush1.bf16.msra.mxu0 0
        %316 = vmatprep.subr.bf16.mxu0 0
        %317 = vmatpush1.bf16.msra.mxu0 0
        %318 = vmatprep.subr.bf16.mxu0 0
        %319 = vmatpush1.bf16.msra.mxu0 0
        %320 = vmatprep.subr.bf16.mxu0 0
        %321 = vmatpush1.bf16.msra.mxu0 0
        %322 = vmatprep.subr.bf16.mxu0 0
        %323 = vmatpush1.bf16.msra.mxu0 0
        %324 = vmatprep.subr.bf16.mxu0 0
        %325 = vmatpush1.bf16.msra.mxu0 0
        %326 = vmatprep.subr.bf16.mxu0 0
        %327 = vmatpush1.bf16.msra.mxu0 0
        %328 = vmatprep.subr.bf16.mxu0 0
        %329 = vmatpush1.bf16.msra.mxu0 0
        %330 = vmatprep.subr.bf16.mxu0 0
        %331 = vmatpush1.bf16.msra.mxu0 0
        %332 = vmatprep.subr.bf16.mxu0 0
        %333 = vmatpush1.bf16.msra.mxu0 0
        %334 = vmatprep.subr.bf16.mxu0 0
        %335 = vmatpush1.bf16.msra.mxu0 0
        %336 = vmatprep.subr.bf16.mxu0 0
        %337 = vmatpush1.bf16.msra.mxu0 0
        %338 = vmatprep.subr.bf16.mxu0 0
        %339 = vmatpush1.bf16.msra.mxu0 0
        %340 = vmatprep.subr.bf16.mxu0 0
        %341 = vmatpush1.bf16.msra.mxu0 0
        %342 = vmatprep.subr.bf16.mxu0 0
        %343 = vmatpush1.bf16.msra.mxu0 0
        %344 = vmatprep.mubr.bf16.mxu0 0
        %345 = vmatmul.mubr.bf16.gmra.mrb[0].mxu0 %v310
        %v346 = vpop.f32.mrb[0].mxu0
        %v347 = vadd.f32 0.0, %v346
        %v348 = vpop.f32.mrb[0].mxu0
        %v349 = vpop.f32.mrb[0].mxu0
        %v350 = vadd.f32 0.0, %v349
        %v351 = vpop.f32.mrb[0].mxu0
        %352 = vdwg.mxu0
        %v353 = vadd.f32 %v288, %v347
        %v354 = vadd.f32 %v291, %v350
        %s355 = scalar_lea.vmem %s1, 24
        %v356 = vld [vmem:[%s355] sm:$0xf]
        %v357 = vld [vmem:[%s355 + $0x4] sm:$0xf]
        %v360 = vunpack.c.l.b16 %v356
        %v361 = vunpack.c.l.b16 %v357
        %v362 = vpack.c.b16 %v361, %v360
        %363 = vrot.lane.b32.xlu0 %v184, 65
        %v364 = vpop.permute.xlu0 %363
        %365 = vrot.lane.b32.xlu0 %v185, 65
        %v366 = vpop.permute.xlu0 %365
        %vm367 = vcmask 531456
        %v368 = vsel %vm367, %v364, %v366
        %v371 = vsel %vm193, %v362, 0
        %373 = vmatprep.subr.bf16.mxu0 0
        %374 = vmatpush1.bf16.msra.mxu0 %v368
        %375 = vmatprep.subr.bf16.mxu0 0
        %376 = vmatpush1.bf16.msra.mxu0 0
        %377 = vmatprep.subr.bf16.mxu0 0
        %378 = vmatpush1.bf16.msra.mxu0 0
        %379 = vmatprep.subr.bf16.mxu0 0
        %380 = vmatpush1.bf16.msra.mxu0 0
        %381 = vmatprep.subr.bf16.mxu0 0
        %382 = vmatpush1.bf16.msra.mxu0 0
        %383 = vmatprep.subr.bf16.mxu0 0
        %384 = vmatpush1.bf16.msra.mxu0 0
        %385 = vmatprep.subr.bf16.mxu0 0
        %386 = vmatpush1.bf16.msra.mxu0 0
        %387 = vmatprep.subr.bf16.mxu0 0
        %388 = vmatpush1.bf16.msra.mxu0 0
        %389 = vmatprep.subr.bf16.mxu0 0
        %390 = vmatpush1.bf16.msra.mxu0 0
        %391 = vmatprep.subr.bf16.mxu0 0
        %392 = vmatpush1.bf16.msra.mxu0 0
        %393 = vmatprep.subr.bf16.mxu0 0
        %394 = vmatpush1.bf16.msra.mxu0 0
        %395 = vmatprep.subr.bf16.mxu0 0
        %396 = vmatpush1.bf16.msra.mxu0 0
        %397 = vmatprep.subr.bf16.mxu0 0
        %398 = vmatpush1.bf16.msra.mxu0 0
        %399 = vmatprep.subr.bf16.mxu0 0
        %400 = vmatpush1.bf16.msra.mxu0 0
        %401 = vmatprep.subr.bf16.mxu0 0
        %402 = vmatpush1.bf16.msra.mxu0 0
        %403 = vmatprep.subr.bf16.mxu0 0
        %404 = vmatpush1.bf16.msra.mxu0 0
        %405 = vmatprep.mubr.bf16.mxu0 0
        %406 = vmatmul.mubr.bf16.gmra.mrb[0].mxu0 %v371
        %v407 = vpop.f32.mrb[0].mxu0
        %v408 = vadd.f32 0.0, %v407
        %v409 = vpop.f32.mrb[0].mxu0
        %v410 = vpop.f32.mrb[0].mxu0
        %v411 = vadd.f32 0.0, %v410
        %v412 = vpop.f32.mrb[0].mxu0
        %413 = vdwg.mxu0
        %v414 = vadd.f32 %v353, %v408
        %v415 = vadd.f32 %v354, %v411
        %s416 = scalar_lea.vmem %s1, 32
        %v417 = vld [vmem:[%s416] sm:$0xf]
        %v418 = vld [vmem:[%s416 + $0x4] sm:$0xf]
        %v421 = vunpack.c.l.b16 %v417
        %v422 = vunpack.c.l.b16 %v418
        %v423 = vpack.c.b16 %v422, %v421
        %424 = vrot.lane.b32.xlu0 %v184, 64
        %v425 = vpop.permute.xlu0 %424
        %426 = vrot.lane.b32.xlu0 %v185, 64
        %v427 = vpop.permute.xlu0 %426
        %vm428 = vcmask 523264
        %v429 = vsel %vm428, %v425, %v427
        %v432 = vsel %vm193, %v423, 0
        %434 = vmatprep.subr.bf16.mxu0 0
        %435 = vmatpush1.bf16.msra.mxu0 %v429
        %436 = vmatprep.subr.bf16.mxu0 0
        %437 = vmatpush1.bf16.msra.mxu0 0
        %438 = vmatprep.subr.bf16.mxu0 0
        %439 = vmatpush1.bf16.msra.mxu0 0
        %440 = vmatprep.subr.bf16.mxu0 0
        %441 = vmatpush1.bf16.msra.mxu0 0
        %442 = vmatprep.subr.bf16.mxu0 0
        %443 = vmatpush1.bf16.msra.mxu0 0
        %444 = vmatprep.subr.bf16.mxu0 0
        %445 = vmatpush1.bf16.msra.mxu0 0
        %446 = vmatprep.subr.bf16.mxu0 0
        %447 = vmatpush1.bf16.msra.mxu0 0
        %448 = vmatprep.subr.bf16.mxu0 0
        %449 = vmatpush1.bf16.msra.mxu0 0
        %450 = vmatprep.subr.bf16.mxu0 0
        %451 = vmatpush1.bf16.msra.mxu0 0
        %452 = vmatprep.subr.bf16.mxu0 0
        %453 = vmatpush1.bf16.msra.mxu0 0
        %454 = vmatprep.subr.bf16.mxu0 0
        %455 = vmatpush1.bf16.msra.mxu0 0
        %456 = vmatprep.subr.bf16.mxu0 0
        %457 = vmatpush1.bf16.msra.mxu0 0
        %458 = vmatprep.subr.bf16.mxu0 0
        %459 = vmatpush1.bf16.msra.mxu0 0
        %460 = vmatprep.subr.bf16.mxu0 0
        %461 = vmatpush1.bf16.msra.mxu0 0
        %462 = vmatprep.subr.bf16.mxu0 0
        %463 = vmatpush1.bf16.msra.mxu0 0
        %464 = vmatprep.subr.bf16.mxu0 0
        %465 = vmatpush1.bf16.msra.mxu0 0
        %466 = vmatprep.mubr.bf16.mxu0 0
        %467 = vmatmul.mubr.bf16.gmra.mrb[0].mxu0 %v432
        %v468 = vpop.f32.mrb[0].mxu0
        %v469 = vadd.f32 0.0, %v468
        %v470 = vpop.f32.mrb[0].mxu0
        %v471 = vpop.f32.mrb[0].mxu0
        %v472 = vadd.f32 0.0, %v471
        %v473 = vpop.f32.mrb[0].mxu0
        %474 = vdwg.mxu0
        %v475 = vadd.f32 %v414, %v469
        %v476 = vadd.f32 %v415, %v472
        %s477 = scalar_lea.vmem %s1, 40
        %v478 = vld [vmem:[%s477] sm:$0xf]
        %v479 = vld [vmem:[%s477 + $0x4] sm:$0xf]
        %v482 = vunpack.c.l.b16 %v478
        %v483 = vunpack.c.l.b16 %v479
        %v484 = vpack.c.b16 %v483, %v482
        %485 = vrot.lane.b32.xlu0 %v184, 63
        %v486 = vpop.permute.xlu0 %485
        %487 = vrot.lane.b32.xlu0 %v185, 63
        %v488 = vpop.permute.xlu0 %487
        %vm489 = vcmask 515072
        %v490 = vsel %vm489, %v486, %v488
        %v493 = vsel %vm193, %v484, 0
        %495 = vmatprep.subr.bf16.mxu0 0
        %496 = vmatpush1.bf16.msra.mxu0 %v490
        %497 = vmatprep.subr.bf16.mxu0 0
        %498 = vmatpush1.bf16.msra.mxu0 0
        %499 = vmatprep.subr.bf16.mxu0 0
        %500 = vmatpush1.bf16.msra.mxu0 0
        %501 = vmatprep.subr.bf16.mxu0 0
        %502 = vmatpush1.bf16.msra.mxu0 0
        %503 = vmatprep.subr.bf16.mxu0 0
        %504 = vmatpush1.bf16.msra.mxu0 0
        %505 = vmatprep.subr.bf16.mxu0 0
        %506 = vmatpush1.bf16.msra.mxu0 0
        %507 = vmatprep.subr.bf16.mxu0 0
        %508 = vmatpush1.bf16.msra.mxu0 0
        %509 = vmatprep.subr.bf16.mxu0 0
        %510 = vmatpush1.bf16.msra.mxu0 0
        %511 = vmatprep.subr.bf16.mxu0 0
        %512 = vmatpush1.bf16.msra.mxu0 0
        %513 = vmatprep.subr.bf16.mxu0 0
        %514 = vmatpush1.bf16.msra.mxu0 0
        %515 = vmatprep.subr.bf16.mxu0 0
        %516 = vmatpush1.bf16.msra.mxu0 0
        %517 = vmatprep.subr.bf16.mxu0 0
        %518 = vmatpush1.bf16.msra.mxu0 0
        %519 = vmatprep.subr.bf16.mxu0 0
        %520 = vmatpush1.bf16.msra.mxu0 0
        %521 = vmatprep.subr.bf16.mxu0 0
        %522 = vmatpush1.bf16.msra.mxu0 0
        %523 = vmatprep.subr.bf16.mxu0 0
        %524 = vmatpush1.bf16.msra.mxu0 0
        %525 = vmatprep.subr.bf16.mxu0 0
        %526 = vmatpush1.bf16.msra.mxu0 0
        %527 = vmatprep.mubr.bf16.mxu0 0
        %528 = vmatmul.mubr.bf16.gmra.mrb[0].mxu0 %v493
        %v529 = vpop.f32.mrb[0].mxu0
        %v530 = vadd.f32 0.0, %v529
        %v531 = vpop.f32.mrb[0].mxu0
        %v532 = vpop.f32.mrb[0].mxu0
        %v533 = vadd.f32 0.0, %v532
        %v534 = vpop.f32.mrb[0].mxu0
        %535 = vdwg.mxu0
        %v536 = vadd.f32 %v475, %v530
        %v537 = vadd.f32 %v476, %v533
        %s538 = scalar_lea.vmem %s1, 48
        %v539 = vld [vmem:[%s538] sm:$0xf]
        %v540 = vld [vmem:[%s538 + $0x4] sm:$0xf]
        %v543 = vunpack.c.l.b16 %v539
        %v544 = vunpack.c.l.b16 %v540
        %v545 = vpack.c.b16 %v544, %v543
        %546 = vrot.lane.b32.xlu0 %v184, 55
        %v547 = vpop.permute.xlu0 %546
        %548 = vrot.lane.b32.xlu0 %v185, 55
        %v549 = vpop.permute.xlu0 %548
        %vm550 = vcmask 449536
        %v551 = vsel %vm550, %v547, %v549
        %v554 = vsel %vm193, %v545, 0
        %556 = vmatprep.subr.bf16.mxu0 0
        %557 = vmatpush1.bf16.msra.mxu0 %v551
        %558 = vmatprep.subr.bf16.mxu0 0
        %559 = vmatpush1.bf16.msra.mxu0 0
        %560 = vmatprep.subr.bf16.mxu0 0
        %561 = vmatpush1.bf16.msra.mxu0 0
        %562 = vmatprep.subr.bf16.mxu0 0
        %563 = vmatpush1.bf16.msra.mxu0 0
        %564 = vmatprep.subr.bf16.mxu0 0
        %565 = vmatpush1.bf16.msra.mxu0 0
        %566 = vmatprep.subr.bf16.mxu0 0
        %567 = vmatpush1.bf16.msra.mxu0 0
        %568 = vmatprep.subr.bf16.mxu0 0
        %569 = vmatpush1.bf16.msra.mxu0 0
        %570 = vmatprep.subr.bf16.mxu0 0
        %571 = vmatpush1.bf16.msra.mxu0 0
        %572 = vmatprep.subr.bf16.mxu0 0
        %573 = vmatpush1.bf16.msra.mxu0 0
        %574 = vmatprep.subr.bf16.mxu0 0
        %575 = vmatpush1.bf16.msra.mxu0 0
        %576 = vmatprep.subr.bf16.mxu0 0
        %577 = vmatpush1.bf16.msra.mxu0 0
        %578 = vmatprep.subr.bf16.mxu0 0
        %579 = vmatpush1.bf16.msra.mxu0 0
        %580 = vmatprep.subr.bf16.mxu0 0
        %581 = vmatpush1.bf16.msra.mxu0 0
        %582 = vmatprep.subr.bf16.mxu0 0
        %583 = vmatpush1.bf16.msra.mxu0 0
        %584 = vmatprep.subr.bf16.mxu0 0
        %585 = vmatpush1.bf16.msra.mxu0 0
        %586 = vmatprep.subr.bf16.mxu0 0
        %587 = vmatpush1.bf16.msra.mxu0 0
        %588 = vmatprep.mubr.bf16.mxu0 0
        %589 = vmatmul.mubr.bf16.gmra.mrb[0].mxu0 %v554
        %v590 = vpop.f32.mrb[0].mxu0
        %v591 = vadd.f32 0.0, %v590
        %v592 = vpop.f32.mrb[0].mxu0
        %v593 = vpop.f32.mrb[0].mxu0
        %v594 = vadd.f32 0.0, %v593
        %v595 = vpop.f32.mrb[0].mxu0
        %596 = vdwg.mxu0
        %v597 = vadd.f32 %v536, %v591
        %v598 = vadd.f32 %v537, %v594
        %s599 = scalar_lea.vmem %s1, 56
        %v600 = vld [vmem:[%s599] sm:$0xf]
        %v601 = vld [vmem:[%s599 + $0x4] sm:$0xf]
        %v604 = vunpack.c.l.b16 %v600
        %v605 = vunpack.c.l.b16 %v601
        %v606 = vpack.c.b16 %v605, %v604
        %607 = vrot.lane.b32.xlu0 %v184, 54
        %v608 = vpop.permute.xlu0 %607
        %609 = vrot.lane.b32.xlu0 %v185, 54
        %v610 = vpop.permute.xlu0 %609
        %vm611 = vcmask 441344
        %v612 = vsel %vm611, %v608, %v610
        %v615 = vsel %vm193, %v606, 0
        %617 = vmatprep.subr.bf16.mxu0 0
        %618 = vmatpush1.bf16.msra.mxu0 %v612
        %619 = vmatprep.subr.bf16.mxu0 0
        %620 = vmatpush1.bf16.msra.mxu0 0
        %621 = vmatprep.subr.bf16.mxu0 0
        %622 = vmatpush1.bf16.msra.mxu0 0
        %623 = vmatprep.subr.bf16.mxu0 0
        %624 = vmatpush1.bf16.msra.mxu0 0
        %625 = vmatprep.subr.bf16.mxu0 0
        %626 = vmatpush1.bf16.msra.mxu0 0
        %627 = vmatprep.subr.bf16.mxu0 0
        %628 = vmatpush1.bf16.msra.mxu0 0
        %629 = vmatprep.subr.bf16.mxu0 0
        %630 = vmatpush1.bf16.msra.mxu0 0
        %631 = vmatprep.subr.bf16.mxu0 0
        %632 = vmatpush1.bf16.msra.mxu0 0
        %633 = vmatprep.subr.bf16.mxu0 0
        %634 = vmatpush1.bf16.msra.mxu0 0
        %635 = vmatprep.subr.bf16.mxu0 0
        %636 = vmatpush1.bf16.msra.mxu0 0
        %637 = vmatprep.subr.bf16.mxu0 0
        %638 = vmatpush1.bf16.msra.mxu0 0
        %639 = vmatprep.subr.bf16.mxu0 0
        %640 = vmatpush1.bf16.msra.mxu0 0
        %641 = vmatprep.subr.bf16.mxu0 0
        %642 = vmatpush1.bf16.msra.mxu0 0
        %643 = vmatprep.subr.bf16.mxu0 0
        %644 = vmatpush1.bf16.msra.mxu0 0
        %645 = vmatprep.subr.bf16.mxu0 0
        %646 = vmatpush1.bf16.msra.mxu0 0
        %647 = vmatprep.subr.bf16.mxu0 0
        %648 = vmatpush1.bf16.msra.mxu0 0
        %649 = vmatprep.mubr.bf16.mxu0 0
        %650 = vmatmul.mubr.bf16.gmra.mrb[0].mxu0 %v615
        %v651 = vpop.f32.mrb[0].mxu0
        %v652 = vadd.f32 0.0, %v651
        %v653 = vpop.f32.mrb[0].mxu0
        %v654 = vpop.f32.mrb[0].mxu0
        %v655 = vadd.f32 0.0, %v654
        %v656 = vpop.f32.mrb[0].mxu0
        %657 = vdwg.mxu0
        %v658 = vadd.f32 %v597, %v652
        %v659 = vadd.f32 %v598, %v655
        %s660 = scalar_lea.vmem %s1, 64
        %v661 = vld [vmem:[%s660] sm:$0xf]
        %v662 = vld [vmem:[%s660 + $0x4] sm:$0xf]
        %v665 = vunpack.c.l.b16 %v661
        %v666 = vunpack.c.l.b16 %v662
        %v667 = vpack.c.b16 %v666, %v665
        %668 = vrot.lane.b32.xlu0 %v184, 53
        %v669 = vpop.permute.xlu0 %668
        %670 = vrot.lane.b32.xlu0 %v185, 53
        %v671 = vpop.permute.xlu0 %670
        %vm672 = vcmask 433152
        %v673 = vsel %vm672, %v669, %v671
        %v676 = vsel %vm193, %v667, 0
        %678 = vmatprep.subr.bf16.mxu0 0
        %679 = vmatpush1.bf16.msra.mxu0 %v673
        %680 = vmatprep.subr.bf16.mxu0 0
        %681 = vmatpush1.bf16.msra.mxu0 0
        %682 = vmatprep.subr.bf16.mxu0 0
        %683 = vmatpush1.bf16.msra.mxu0 0
        %684 = vmatprep.subr.bf16.mxu0 0
        %685 = vmatpush1.bf16.msra.mxu0 0
        %686 = vmatprep.subr.bf16.mxu0 0
        %687 = vmatpush1.bf16.msra.mxu0 0
        %688 = vmatprep.subr.bf16.mxu0 0
        %689 = vmatpush1.bf16.msra.mxu0 0
        %690 = vmatprep.subr.bf16.mxu0 0
        %691 = vmatpush1.bf16.msra.mxu0 0
        %692 = vmatprep.subr.bf16.mxu0 0
        %693 = vmatpush1.bf16.msra.mxu0 0
        %694 = vmatprep.subr.bf16.mxu0 0
        %695 = vmatpush1.bf16.msra.mxu0 0
        %696 = vmatprep.subr.bf16.mxu0 0
        %697 = vmatpush1.bf16.msra.mxu0 0
        %698 = vmatprep.subr.bf16.mxu0 0
        %699 = vmatpush1.bf16.msra.mxu0 0
        %700 = vmatprep.subr.bf16.mxu0 0
        %701 = vmatpush1.bf16.msra.mxu0 0
        %702 = vmatprep.subr.bf16.mxu0 0
        %703 = vmatpush1.bf16.msra.mxu0 0
        %704 = vmatprep.subr.bf16.mxu0 0
        %705 = vmatpush1.bf16.msra.mxu0 0
        %706 = vmatprep.subr.bf16.mxu0 0
        %707 = vmatpush1.bf16.msra.mxu0 0
        %708 = vmatprep.subr.bf16.mxu0 0
        %709 = vmatpush1.bf16.msra.mxu0 0
        %710 = vmatprep.mubr.bf16.mxu0 0
        %711 = vmatmul.mubr.bf16.gmra.mrb[0].mxu0 %v676
        %v712 = vpop.f32.mrb[0].mxu0
        %v713 = vadd.f32 0.0, %v712
        %v714 = vpop.f32.mrb[0].mxu0
        %v715 = vpop.f32.mrb[0].mxu0
        %v716 = vadd.f32 0.0, %v715
        %v717 = vpop.f32.mrb[0].mxu0
        %718 = vdwg.mxu0
        %v719 = vadd.f32 %v658, %v713
        %v720 = vadd.f32 %v659, %v716
        %v721 = vld [vmem:[%s2] sm:$0xff]
        %v722 = vld [vmem:[%s2 + $0x8] sm:$0xff]
        %724 = vset.pattern.permute.xlu0 0
        %725 = vperm.xlu0 %724, %v721
        %v726 = vpop.permute.xlu0 %725
        %729 = vset.pattern.permute.xlu0 0
        %730 = vperm.xlu0 %729, %v722
        %v731 = vpop.permute.xlu0 %730
        %v733 = vadd.f32 %v719, %v726
        %v734 = vadd.f32 %v720, %v731
        %v735 = vmax.f32 %v733, 0.0
        %v736 = vmax.f32 %v734, 0.0
        %v737 = vpack.c.bf16 %v736, %v735
        %v739 = vunpack.c.l.b16 %v737
        %v740 = vunpack.c.h.b16 %v737
        %v741 = vpack.c.b16 %v739, %v739
        %v742 = vpack.c.b16 %v740, %v740
        %745 = vst [vmem:[%s159] sm:$0xf] %v741
        %746 = vst [vmem:[%s159 + $0x4] sm:$0xf] %v742
        %s747 = sand.u32 %s90, 1
        %s748 = sand.u32 %s90, 1
        %s749 = smul.addr %s748, 8
        %s750 = scalar_lea.vmem [#allocation2], %s749
        // Predicated region
        $region33: #{rsu4_apply_nchw.11} parent=31 // pred_check
          %p751 = pneg %p100
        $region34: #{rsu4_apply_nchw.11} parent=31 // pred_check_branch
          %753 = sbr.rel (%p751) target = $region36
        $region35: #{rsu4_apply_nchw.11} parent=31 // pred_region
          %s754 = smul.addr %s14, 4
          %s755 = scalar_lea.vmem %s3, %s754
          // Predicated region
          $region37: #{rsu4_apply_nchw.11} parent=35 // pred_check
            _
          $region38: #{rsu4_apply_nchw.11} parent=35 // pred_check_branch
            %757 = sbr.rel (0) target = $region40
          $region39: #{rsu4_apply_nchw.11} parent=35 // pred_region
            // Predicated region
            $region41: #{rsu4_apply_nchw.11} parent=39 // pred_check
              _
            $region42: #{rsu4_apply_nchw.11} parent=39 // pred_check_branch
              %759 = sbr.rel target = $region44
            $region43: #{rsu4_apply_nchw.11} parent=39 // pred_region
              // Predicated region
              $region56: #{rsu4_apply_nchw.11} parent=43 // pred_check
                _
              $region57: #{rsu4_apply_nchw.11} parent=43 // pred_check_branch
                %776 = sbr.rel (0) target = $region59
              $region58: #{rsu4_apply_nchw.11} parent=43 // pred_region
                loop: start=0, step=1, limit=1
                $region60: #{rsu4_apply_nchw.11} parent=58 // loop_pre_header
                  _
                $region61: #{rsu4_apply_nchw.11} parent=58 // loop_header
                  %s778 = sphi 0, %s782
                  %p779 = scmp.ge.s32.totalorder %s778, 1
                  %s783 = sphi %s750, %s750
                  %s784 = sphi %s755, %s755
                $region62: #{rsu4_apply_nchw.11} parent=58 // loop_header_branch
                  %781 = sbr.rel (%p779) target = $region66
                $region63: #{rsu4_apply_nchw.11} parent=58 // loop_body
                  _
                $region64: #{rsu4_apply_nchw.11} parent=58 // loop_footer
                  %s782 = sadd.s32 1, %s778
                $region65: #{rsu4_apply_nchw.11} parent=58 // loop_footer_branch
                  %777 = sbr.rel target = $region61
                $region66: #{rsu4_apply_nchw.11} parent=58 // loop_exit
                  _
                loop: start=0, step=1, limit=1
                $region67: #{rsu4_apply_nchw.11} parent=58 // loop_pre_header
                  _
                $region68: #{rsu4_apply_nchw.11} parent=58 // loop_header
                  %s787 = sphi 0, %s791
                  %p788 = scmp.ge.s32.totalorder %s787, 1
                  %s792 = sphi %s750, %s750
                  %s793 = sphi %s755, %s755
                $region69: #{rsu4_apply_nchw.11} parent=58 // loop_header_branch
                  %790 = sbr.rel (%p788) target = $region73
                $region70: #{rsu4_apply_nchw.11} parent=58 // loop_body
                  %v794 = vld [vmem:[%s792] sm:$0xf]
                  %795 = vst [vmem:[%s793] sm:$0xf] %v794
                  %v796 = vld [vmem:[%s792 + $0x4] sm:$0xf]
                  %797 = vst [vmem:[%s793 + $0x8] sm:$0xf] %v796
                $region71: #{rsu4_apply_nchw.11} parent=58 // loop_footer
                  %s791 = sadd.s32 1, %s787
                $region72: #{rsu4_apply_nchw.11} parent=58 // loop_footer_branch
                  %786 = sbr.rel target = $region68
                $region73: #{rsu4_apply_nchw.11} parent=58 // loop_exit
                  _
              $region59: #{rsu4_apply_nchw.11} parent=43 // pred_fallthru
                _
            $region44: #{rsu4_apply_nchw.11} parent=39 // pred_fallthru
              _
            // Predicated region
            $region45: #{rsu4_apply_nchw.11} parent=39 // pred_check
              _
            $region46: #{rsu4_apply_nchw.11} parent=39 // pred_check_branch
              %761 = sbr.rel (0) target = $region48
            $region47: #{rsu4_apply_nchw.11} parent=39 // pred_region
              loop: start=0, step=1, limit=1
              $region49: #{rsu4_apply_nchw.11} parent=47 // loop_pre_header
                _
              $region50: #{rsu4_apply_nchw.11} parent=47 // loop_header
                %s764 = sphi 0, %s768
                %p765 = scmp.ge.s32.totalorder %s764, 1
                %s769 = sphi %s750, %s750
                %s770 = sphi %s755, %s755
              $region51: #{rsu4_apply_nchw.11} parent=47 // loop_header_branch
                %767 = sbr.rel (%p765) target = $region55
              $region52: #{rsu4_apply_nchw.11} parent=47 // loop_body
                %v771 = vld [vmem:[%s769] sm:$0xf]
                %772 = vst [vmem:[%s770] sm:$0xf] %v771
                %v773 = vld [vmem:[%s769 + $0x4] sm:$0xf]
                %774 = vst [vmem:[%s770 + $0x8] sm:$0xf] %v773
              $region53: #{rsu4_apply_nchw.11} parent=47 // loop_footer
                %s768 = sadd.s32 1, %s764
              $region54: #{rsu4_apply_nchw.11} parent=47 // loop_footer_branch
                %763 = sbr.rel target = $region50
              $region55: #{rsu4_apply_nchw.11} parent=47 // loop_exit
                _
            $region48: #{rsu4_apply_nchw.11} parent=39 // pred_fallthru
              _
          $region40: #{rsu4_apply_nchw.11} parent=35 // pred_fallthru
            _
          %798 = vnop
        $region36: #{rsu4_apply_nchw.11} parent=31 // pred_fallthru
          _
      $region32: #{rsu4_apply_nchw.11} parent=5 // pred_fallthru
        _
      %p799 = scmp.le.s32.totalorder 2, %s9
      // Predicated region
      $region74: #{rsu4_apply_nchw.11} parent=5 // pred_check
        %p800 = pneg %p799
      $region75: #{rsu4_apply_nchw.11} parent=5 // pred_check_branch
        %802 = sbr.rel (%p800) target = $region77
      $region76: #{rsu4_apply_nchw.11} parent=5 // pred_region
        %s803 = ssub.s32 %s9, 2
        // Predicated region
        $region78: #{rsu4_apply_nchw.11} parent=76 // pred_check
          %p804 = pneg %p106
        $region79: #{rsu4_apply_nchw.11} parent=76 // pred_check_branch
          %806 = sbr.rel (%p804) target = $region81
        $region80: #{rsu4_apply_nchw.11} parent=76 // pred_region
          %s807 = sand.u32 %s91, 1
          %s808 = sand.u32 %s91, 1
          %s809 = smul.addr %s808, 8
          %s810 = scalar_lea.vmem [#allocation2], %s809
        $region81: #{rsu4_apply_nchw.11} parent=76 // pred_fallthru
          _
      $region77: #{rsu4_apply_nchw.11} parent=5 // pred_fallthru
        _
    $region6: #{rsu4_apply_nchw.11} parent=1 // loop_footer
      %s13 = sadd.s32 1, %s9
    $region7: #{rsu4_apply_nchw.11} parent=1 // loop_footer_branch
      %8 = sbr.rel target = $region3
    $region8: #{rsu4_apply_nchw.11} parent=1 // loop_exit
      _

// kernel: rsu4_apply_nchw.13
$region0: #{rsu4_apply_nchw.13}
  #allocation0 [shape = 'u32[]', space=smem, size = 0x4, offset = 0x4, fixed_abs, tag = 'smem constant byte address 0x4 - core index']
  #allocation1 [shape = 'u32[144,128]{1,0:T(1,128)}', space=vmem, size = 0x12000, scoped, tag = 'internal scratch']
  %s0 = inlined_call_operand.vmem [shape: bf16[2,32,256], index: 0, kind: input, shape index: {}]
  %s1 = inlined_call_operand.vmem [shape: bf16[9,16,32], index: 1, kind: input, shape index: {}]
  %s2 = inlined_call_operand.vmem [shape: f32[16,1], index: 2, kind: input, shape index: {}]
  %s3 = inlined_call_operand.vmem [shape: bf16[16,256], index: 3, kind: output, shape index: {}]
  %s4 = sld [smem:[#allocation0]]
  $region82: #{rsu4_apply_nchw.13} parent=0
    _
  %s6 = ssub.s32 1, %s4
  %s7 = scalar_select 0, %s6, %s4
  $region1: #{rsu4_apply_nchw.13} parent=0
    #allocation2 [shape = 'u8[8192]{0}', space=vmem, size = 0x2000, scoped, tag = 'output window, operand 0']
    loop: start=0, step=1, limit=4
    $region2: #{rsu4_apply_nchw.13} parent=1 // loop_pre_header
      _
    $region3: #{rsu4_apply_nchw.13} parent=1 // loop_header
      %s9 = sphi 0, %s13
      %p10 = scmp.ge.s32.totalorder %s9, 4
      %s19 = sphi 0, %s21
      %s22 = sphi 0, %s19
      %s23 = sphi 0, %s22
      %s39 = sphi 0, %s23
      %s43 = sphi 0, %s43
      %s45 = sphi 0, %s43
      %s46 = sphi 0, %s45
      %s60 = sphi 0, %s46
      %s64 = sphi 0, %s64
      %s66 = sphi 0, %s64
      %s67 = sphi 0, %s66
      %s81 = sphi 0, %s67
      %s87 = sphi 0, %s89
      %s90 = sphi 0, %s87
      %s91 = sphi 0, %s90
      %s107 = sphi 0, %s91
    $region4: #{rsu4_apply_nchw.13} parent=1 // loop_header_branch
      %12 = sbr.rel (%p10) target = $region8
    $region5: #{rsu4_apply_nchw.13} parent=1 // loop_body
      %s14 = ssub.s32 %s9, 1
      %s15 = ssub.s32 %s9, 2
      %s16 = sadd.s32 %s9, 1
      %s17 = ssub.s32 %s9, %s16
      %p18 = scmp.eq.s32.totalorder %s17, 0
      %s20 = sadd.s32 %s19, 1
      %s21 = scalar_select %p18, %s19, %s20
      %p24 = pneg %p18
      %p25 = scmp.eq.s32.totalorder %s9, 1
      %p26 = por %p24, %p25
      %p27 = scmp.ne.s32.totalorder %s19, %s22
      %p28 = scmp.eq.s32.totalorder %s9, 0
      %p29 = por %p27, %p28
      %p30 = scmp.ne.s32.totalorder %s19, %s22
      %p31 = scmp.eq.s32.totalorder %s14, 1
      %p32 = por %p30, %p31
      %p33 = scmp.ne.s32.totalorder %s22, %s23
      %p34 = scmp.eq.s32.totalorder %s14, 0
      %p35 = por %p33, %p34
      %p36 = scmp.ne.s32.totalorder %s22, %s23
      %p37 = scmp.eq.s32.totalorder %s15, 1
      %p38 = por %p36, %p37
      %p40 = scmp.ne.s32.totalorder %s23, %s39
      %p41 = scmp.eq.s32.totalorder %s15, 0
      %p42 = por %p40, %p41
      %s44 = sadd.s32 %s43, 1
      %p47 = scmp.eq.s32.totalorder %s9, 1
      %p48 = scmp.ne.s32.totalorder %s43, %s45
      %p49 = scmp.eq.s32.totalorder %s9, 0
      %p50 = por %p48, %p49
      %p51 = scmp.ne.s32.totalorder %s43, %s45
      %p52 = scmp.eq.s32.totalorder %s14, 1
      %p53 = por %p51, %p52
      %p54 = scmp.ne.s32.totalorder %s45, %s46
      %p55 = scmp.eq.s32.totalorder %s14, 0
      %p56 = por %p54, %p55
      %p57 = scmp.ne.s32.totalorder %s45, %s46
      %p58 = scmp.eq.s32.totalorder %s15, 1
      %p59 = por %p57, %p58
      %p61 = scmp.ne.s32.totalorder %s46, %s60
      %p62 = scmp.eq.s32.totalorder %s15, 0
      %p63 = por %p61, %p62
      %s65 = sadd.s32 %s64, 1
      %p68 = scmp.eq.s32.totalorder %s9, 1
      %p69 = scmp.ne.s32.totalorder %s64, %s66
      %p70 = scmp.eq.s32.totalorder %s9, 0
      %p71 = por %p69, %p70
      %p72 = scmp.ne.s32.totalorder %s64, %s66
      %p73 = scmp.eq.s32.totalorder %s14, 1
      %p74 = por %p72, %p73
      %p75 = scmp.ne.s32.totalorder %s66, %s67
      %p76 = scmp.eq.s32.totalorder %s14, 0
      %p77 = por %p75, %p76
      %p78 = scmp.ne.s32.totalorder %s66, %s67
      %p79 = scmp.eq.s32.totalorder %s15, 1
      %p80 = por %p78, %p79
      %p82 = scmp.ne.s32.totalorder %s67, %s81
      %p83 = scmp.eq.s32.totalorder %s15, 0
      %p84 = por %p82, %p83
      %s85 = ssub.s32 %s9, %s16
      %p86 = scmp.eq.s32.totalorder %s85, 0
      %s88 = sadd.s32 %s87, 1
      %s89 = scalar_select %p86, %s87, %s88
      %p92 = pneg %p86
      %p93 = scmp.eq.s32.totalorder %s9, 1
      %p94 = por %p92, %p93
      %p95 = scmp.ne.s32.totalorder %s87, %s90
      %p96 = scmp.eq.s32.totalorder %s9, 0
      %p97 = por %p95, %p96
      %p98 = scmp.ne.s32.totalorder %s87, %s90
      %p99 = scmp.eq.s32.totalorder %s14, 1
      %p100 = por %p98, %p99
      %p101 = scmp.ne.s32.totalorder %s90, %s91
      %p102 = scmp.eq.s32.totalorder %s14, 0
      %p103 = por %p101, %p102
      %p104 = scmp.ne.s32.totalorder %s90, %s91
      %p105 = scmp.eq.s32.totalorder %s15, 1
      %p106 = por %p104, %p105
      %p108 = scmp.ne.s32.totalorder %s91, %s107
      %p109 = scmp.eq.s32.totalorder %s15, 0
      %p110 = por %p108, %p109
      %p111 = scmp.le.s32.totalorder 1, %s9
      %p112 = scmp.lt.s32.totalorder %s9, 3
      %p113 = pnand %p111, %p112
      %p114 = pneg %p113
      // Predicated region
      $region9: #{rsu4_apply_nchw.13} parent=5 // pred_check
        _
      $region10: #{rsu4_apply_nchw.13} parent=5 // pred_check_branch
        %116 = sbr.rel (%p113) target = $region12
      $region11: #{rsu4_apply_nchw.13} parent=5 // pred_region
        %s117 = ssub.s32 %s9, 1
        // Predicated region
        $region13: #{rsu4_apply_nchw.13} parent=11 // pred_check
          %p118 = pneg %p56
        $region14: #{rsu4_apply_nchw.13} parent=11 // pred_check_branch
          %120 = sbr.rel (%p118) target = $region16
        $region15: #{rsu4_apply_nchw.13} parent=11 // pred_region
          _
        $region16: #{rsu4_apply_nchw.13} parent=11 // pred_fallthru
          _
        // Predicated region
        $region17: #{rsu4_apply_nchw.13} parent=11 // pred_check
          %p121 = pneg %p77
        $region18: #{rsu4_apply_nchw.13} parent=11 // pred_check_branch
          %123 = sbr.rel (%p121) target = $region20
        $region19: #{rsu4_apply_nchw.13} parent=11 // pred_region
          _
        $region20: #{rsu4_apply_nchw.13} parent=11 // pred_fallthru
          _
      $region12: #{rsu4_apply_nchw.13} parent=5 // pred_fallthru
        _
      %p124 = scmp.lt.s32.totalorder %s9, 2
      // Predicated region
      $region21: #{rsu4_apply_nchw.13} parent=5 // pred_check
        %p125 = pneg %p124
      $region22: #{rsu4_apply_nchw.13} parent=5 // pred_check_branch
        %127 = sbr.rel (%p125) target = $region24
      $region23: #{rsu4_apply_nchw.13} parent=5 // pred_region
        // Predicated region
        $region25: #{rsu4_apply_nchw.13} parent=23 // pred_check
          %p128 = pneg %p29
        $region26: #{rsu4_apply_nchw.13} parent=23 // pred_check_branch
          %130 = sbr.rel (%p128) target = $region28
        $region27: #{rsu4_apply_nchw.13} parent=23 // pred_region
          %p131 = scmp.lt.s32.totalorder %s9, 1
          %s132 = scalar_select %p131, %s9, 1
          %s133 = smul.addr %s132, 8
          %s134 = smul.addr %s133, 4
          %s135 = scalar_lea.vmem %s0, %s134
        $region28: #{rsu4_apply_nchw.13} parent=23 // pred_fallthru
          _
      $region24: #{rsu4_apply_nchw.13} parent=5 // pred_fallthru
        _
      %p136 = scmp.le.s32.totalorder 1, %s9
      %p137 = scmp.lt.s32.totalorder %s9, 3
      %p138 = pnand %p136, %p137
      %p139 = pneg %p138
      // Predicated region
      $region29: #{rsu4_apply_nchw.13} parent=5 // pred_check
        _
      $region30: #{rsu4_apply_nchw.13} parent=5 // pred_check_branch
        %141 = sbr.rel (%p138) target = $region32
      $region31: #{rsu4_apply_nchw.13} parent=5 // pred_region
        %s142 = ssub.s32 %s9, 1
        %p143 = scmp.lt.s32.totalorder %s14, 1
        %s144 = scalar_select %p143, %s14, 1
        %s145 = smul.addr %s144, 8
        %s146 = smul.addr %s145, 4
        %s147 = scalar_lea.vmem %s0, %s146
        %p148 = pneg %p35
        %p149 = pneg %p32
        %p150 = pneg %p56
        %p151 = pneg %p53
        %p152 = pneg %p77
        %p153 = pneg %p74
        %p154 = pneg %p103
        %p155 = pneg %p100
        %s156 = sand.u32 %s90, 1
        %s157 = sand.u32 %s90, 1
        %s158 = smul.addr %s157, 8
        %s159 = scalar_lea.vmem [#allocation2], %s158
        %p160 = scmp.lt.s32.totalorder %s14, 1
        %s161 = scalar_select %p160, %s14, 1
        %s162 = smul.addr %s161, 8
        %s163 = smul.addr %s162, 4
        %s164 = scalar_lea.vmem %s0, %s163
        %v166 = vld [vmem:[%s1] sm:$0xf]
        %v167 = vld [vmem:[%s1 + $0x4] sm:$0xf]
        %v168 = vld [vmem:[%s164] sm:$0xff]
        %v169 = vld [vmem:[%s164 + $0x8] sm:$0xff]
        %v170 = vld [vmem:[%s164 + $0x10] sm:$0xff]
        %v171 = vld [vmem:[%s164 + $0x18] sm:$0xff]
        %s172 = scalar_lea.vmem %s1, 8
        %v173 = vld [vmem:[%s172] sm:$0xf]
        %v174 = vld [vmem:[%s172 + $0x4] sm:$0xf]
        %v177 = vunpack.c.l.b16 %v173
        %v178 = vunpack.c.l.b16 %v174
        %v179 = vpack.c.b16 %v178, %v177
        %v184 = vunpack.c.l.b16 %v168
        %v185 = vunpack.c.h.b16 %v168
        %v186 = vunpack.c.l.b16 %v169
        %v187 = vunpack.c.h.b16 %v169
        %v188 = vunpack.c.l.b16 %v170
        %v189 = vunpack.c.h.b16 %v170
        %v190 = vunpack.c.l.b16 %v171
        %v191 = vunpack.c.h.b16 %v171
        %v192 = vpack.c.b16 %v186, %v184
        %v193 = vpack.c.b16 %v187, %v185
        %v194 = vpack.c.b16 %v190, %v188
        %v195 = vpack.c.b16 %v191, %v189
        %196 = vrot.lane.b32.xlu0 %v192, 74
        %v197 = vpop.permute.xlu0 %196
        %198 = vrot.lane.b32.xlu0 %v193, 74
        %v199 = vpop.permute.xlu0 %198
        %200 = vrot.lane.b32.xlu0 %v194, 74
        %v201 = vpop.permute.xlu0 %200
        %202 = vrot.lane.b32.xlu0 %v195, 74
        %v203 = vpop.permute.xlu0 %202
        %vm204 = vcmask 605184
        %v205 = vsel %vm204, %v197, %v199
        %v206 = vsel %vm204, %v201, %v203
        %vm209 = vcmask 261120
        %v211 = vsel %vm209, %v179, 0
        %213 = vmatprep.subr.bf16.mxu0 0
        %214 = vmatpush1.bf16.msra.mxu0 %v205
        %215 = vmatprep.subr.bf16.mxu0 0
        %216 = vmatpush1.bf16.msra.mxu0 %v206
        %217 = vmatprep.subr.bf16.mxu0 0
        %218 = vmatpush1.bf16.msra.mxu0 0
        %219 = vmatprep.subr.bf16.mxu0 0
        %220 = vmatpush1.bf16.msra.mxu0 0
        %221 = vmatprep.subr.bf16.mxu0 0
        %222 = vmatpush1.bf16.msra.mxu0 0
        %223 = vmatprep.subr.bf16.mxu0 0
        %224 = vmatpush1.bf16.msra.mxu0 0
        %225 = vmatprep.subr.bf16.mxu0 0
        %226 = vmatpush1.bf16.msra.mxu0 0
        %227 = vmatprep.subr.bf16.mxu0 0
        %228 = vmatpush1.bf16.msra.mxu0 0
        %229 = vmatprep.subr.bf16.mxu0 0
        %230 = vmatpush1.bf16.msra.mxu0 0
        %231 = vmatprep.subr.bf16.mxu0 0
        %232 = vmatpush1.bf16.msra.mxu0 0
        %233 = vmatprep.subr.bf16.mxu0 0
        %234 = vmatpush1.bf16.msra.mxu0 0
        %235 = vmatprep.subr.bf16.mxu0 0
        %236 = vmatpush1.bf16.msra.mxu0 0
        %237 = vmatprep.subr.bf16.mxu0 0
        %238 = vmatpush1.bf16.msra.mxu0 0
        %239 = vmatprep.subr.bf16.mxu0 0
        %240 = vmatpush1.bf16.msra.mxu0 0
        %241 = vmatprep.subr.bf16.mxu0 0
        %242 = vmatpush1.bf16.msra.mxu0 0
        %243 = vmatprep.subr.bf16.mxu0 0
        %244 = vmatpush1.bf16.msra.mxu0 0
        %245 = vmatprep.mubr.bf16.mxu0 0
        %246 = vmatmul.mubr.bf16.gmra.mrb[0].mxu0 %v211
        %v247 = vpop.f32.mrb[0].mxu0
        %v248 = vadd.f32 0.0, %v247
        %v249 = vpop.f32.mrb[0].mxu0
        %v250 = vpop.f32.mrb[0].mxu0
        %v251 = vadd.f32 0.0, %v250
        %v252 = vpop.f32.mrb[0].mxu0
        %253 = vdwg.mxu0
        %v256 = vunpack.c.l.b16 %v166
        %v257 = vunpack.c.l.b16 %v167
        %v258 = vpack.c.b16 %v257, %v256
        %259 = vrot.lane.b32.xlu0 %v192, 75
        %v260 = vpop.permute.xlu0 %259
        %261 = vrot.lane.b32.xlu0 %v193, 75
        %v262 = vpop.permute.xlu0 %261
        %263 = vrot.lane.b32.xlu0 %v194, 75
        %v264 = vpop.permute.xlu0 %263
        %265 = vrot.lane.b32.xlu0 %v195, 75
        %v266 = vpop.permute.xlu0 %265
        %vm267 = vcmask 613376
        %v268 = vsel %vm267, %v260, %v262
        %v269 = vsel %vm267, %v264, %v266
        %v273 = vsel %vm209, %v258, 0
        %275 = vmatprep.subr.bf16.mxu0 0
        %276 = vmatpush1.bf16.msra.mxu0 %v268
        %277 = vmatprep.subr.bf16.mxu0 0
        %278 = vmatpush1.bf16.msra.mxu0 %v269
        %279 = vmatprep.subr.bf16.mxu0 0
        %280 = vmatpush1.bf16.msra.mxu0 0
        %281 = vmatprep.subr.bf16.mxu0 0
        %282 = vmatpush1.bf16.msra.mxu0 0
        %283 = vmatprep.subr.bf16.mxu0 0
        %284 = vmatpush1.bf16.msra.mxu0 0
        %285 = vmatprep.subr.bf16.mxu0 0
        %286 = vmatpush1.bf16.msra.mxu0 0
        %287 = vmatprep.subr.bf16.mxu0 0
        %288 = vmatpush1.bf16.msra.mxu0 0
        %289 = vmatprep.subr.bf16.mxu0 0
        %290 = vmatpush1.bf16.msra.mxu0 0
        %291 = vmatprep.subr.bf16.mxu0 0
        %292 = vmatpush1.bf16.msra.mxu0 0
        %293 = vmatprep.subr.bf16.mxu0 0
        %294 = vmatpush1.bf16.msra.mxu0 0
        %295 = vmatprep.subr.bf16.mxu0 0
        %296 = vmatpush1.bf16.msra.mxu0 0
        %297 = vmatprep.subr.bf16.mxu0 0
        %298 = vmatpush1.bf16.msra.mxu0 0
        %299 = vmatprep.subr.bf16.mxu0 0
        %300 = vmatpush1.bf16.msra.mxu0 0
        %301 = vmatprep.subr.bf16.mxu0 0
        %302 = vmatpush1.bf16.msra.mxu0 0
        %303 = vmatprep.subr.bf16.mxu0 0
        %304 = vmatpush1.bf16.msra.mxu0 0
        %305 = vmatprep.subr.bf16.mxu0 0
        %306 = vmatpush1.bf16.msra.mxu0 0
        %307 = vmatprep.mubr.bf16.mxu0 0
        %308 = vmatmul.mubr.bf16.gmra.mrb[0].mxu0 %v273
        %v309 = vpop.f32.mrb[0].mxu0
        %v310 = vadd.f32 %v248, %v309
        %v311 = vpop.f32.mrb[0].mxu0
        %v312 = vpop.f32.mrb[0].mxu0
        %v313 = vadd.f32 %v251, %v312
        %v314 = vpop.f32.mrb[0].mxu0
        %315 = vdwg.mxu0
        %s316 = scalar_lea.vmem %s1, 16
        %v317 = vld [vmem:[%s316] sm:$0xf]
        %v318 = vld [vmem:[%s316 + $0x4] sm:$0xf]
        %v321 = vunpack.c.l.b16 %v317
        %v322 = vunpack.c.l.b16 %v318
        %v323 = vpack.c.b16 %v322, %v321
        %324 = vrot.lane.b32.xlu0 %v192, 73
        %v325 = vpop.permute.xlu0 %324
        %326 = vrot.lane.b32.xlu0 %v193, 73
        %v327 = vpop.permute.xlu0 %326
        %328 = vrot.lane.b32.xlu0 %v194, 73
        %v329 = vpop.permute.xlu0 %328
        %330 = vrot.lane.b32.xlu0 %v195, 73
        %v331 = vpop.permute.xlu0 %330
        %vm332 = vcmask 596992
        %v333 = vsel %vm332, %v325, %v327
        %v334 = vsel %vm332, %v329, %v331
        %v338 = vsel %vm209, %v323, 0
        %340 = vmatprep.subr.bf16.mxu0 0
        %341 = vmatpush1.bf16.msra.mxu0 %v333
        %342 = vmatprep.subr.bf16.mxu0 0
        %343 = vmatpush1.bf16.msra.mxu0 %v334
        %344 = vmatprep.subr.bf16.mxu0 0
        %345 = vmatpush1.bf16.msra.mxu0 0
        %346 = vmatprep.subr.bf16.mxu0 0
        %347 = vmatpush1.bf16.msra.mxu0 0
        %348 = vmatprep.subr.bf16.mxu0 0
        %349 = vmatpush1.bf16.msra.mxu0 0
        %350 = vmatprep.subr.bf16.mxu0 0
        %351 = vmatpush1.bf16.msra.mxu0 0
        %352 = vmatprep.subr.bf16.mxu0 0
        %353 = vmatpush1.bf16.msra.mxu0 0
        %354 = vmatprep.subr.bf16.mxu0 0
        %355 = vmatpush1.bf16.msra.mxu0 0
        %356 = vmatprep.subr.bf16.mxu0 0
        %357 = vmatpush1.bf16.msra.mxu0 0
        %358 = vmatprep.subr.bf16.mxu0 0
        %359 = vmatpush1.bf16.msra.mxu0 0
        %360 = vmatprep.subr.bf16.mxu0 0
        %361 = vmatpush1.bf16.msra.mxu0 0
        %362 = vmatprep.subr.bf16.mxu0 0
        %363 = vmatpush1.bf16.msra.mxu0 0
        %364 = vmatprep.subr.bf16.mxu0 0
        %365 = vmatpush1.bf16.msra.mxu0 0
        %366 = vmatprep.subr.bf16.mxu0 0
        %367 = vmatpush1.bf16.msra.mxu0 0
        %368 = vmatprep.subr.bf16.mxu0 0
        %369 = vmatpush1.bf16.msra.mxu0 0
        %370 = vmatprep.subr.bf16.mxu0 0
        %371 = vmatpush1.bf16.msra.mxu0 0
        %372 = vmatprep.mubr.bf16.mxu0 0
        %373 = vmatmul.mubr.bf16.gmra.mrb[0].mxu0 %v338
        %v374 = vpop.f32.mrb[0].mxu0
        %v375 = vadd.f32 0.0, %v374
        %v376 = vpop.f32.mrb[0].mxu0
        %v377 = vpop.f32.mrb[0].mxu0
        %v378 = vadd.f32 0.0, %v377
        %v379 = vpop.f32.mrb[0].mxu0
        %380 = vdwg.mxu0
        %v381 = vadd.f32 %v310, %v375
        %v382 = vadd.f32 %v313, %v378
        %s383 = scalar_lea.vmem %s1, 24
        %v384 = vld [vmem:[%s383] sm:$0xf]
        %v385 = vld [vmem:[%s383 + $0x4] sm:$0xf]
        %v388 = vunpack.c.l.b16 %v384
        %v389 = vunpack.c.l.b16 %v385
        %v390 = vpack.c.b16 %v389, %v388
        %391 = vrot.lane.b32.xlu0 %v192, 65
        %v392 = vpop.permute.xlu0 %391
        %393 = vrot.lane.b32.xlu0 %v193, 65
        %v394 = vpop.permute.xlu0 %393
        %395 = vrot.lane.b32.xlu0 %v194, 65
        %v396 = vpop.permute.xlu0 %395
        %397 = vrot.lane.b32.xlu0 %v195, 65
        %v398 = vpop.permute.xlu0 %397
        %vm399 = vcmask 531456
        %v400 = vsel %vm399, %v392, %v394
        %v401 = vsel %vm399, %v396, %v398
        %v405 = vsel %vm209, %v390, 0
        %407 = vmatprep.subr.bf16.mxu0 0
        %408 = vmatpush1.bf16.msra.mxu0 %v400
        %409 = vmatprep.subr.bf16.mxu0 0
        %410 = vmatpush1.bf16.msra.mxu0 %v401
        %411 = vmatprep.subr.bf16.mxu0 0
        %412 = vmatpush1.bf16.msra.mxu0 0
        %413 = vmatprep.subr.bf16.mxu0 0
        %414 = vmatpush1.bf16.msra.mxu0 0
        %415 = vmatprep.subr.bf16.mxu0 0
        %416 = vmatpush1.bf16.msra.mxu0 0
        %417 = vmatprep.subr.bf16.mxu0 0
        %418 = vmatpush1.bf16.msra.mxu0 0
        %419 = vmatprep.subr.bf16.mxu0 0
        %420 = vmatpush1.bf16.msra.mxu0 0
        %421 = vmatprep.subr.bf16.mxu0 0
        %422 = vmatpush1.bf16.msra.mxu0 0
        %423 = vmatprep.subr.bf16.mxu0 0
        %424 = vmatpush1.bf16.msra.mxu0 0
        %425 = vmatprep.subr.bf16.mxu0 0
        %426 = vmatpush1.bf16.msra.mxu0 0
        %427 = vmatprep.subr.bf16.mxu0 0
        %428 = vmatpush1.bf16.msra.mxu0 0
        %429 = vmatprep.subr.bf16.mxu0 0
        %430 = vmatpush1.bf16.msra.mxu0 0
        %431 = vmatprep.subr.bf16.mxu0 0
        %432 = vmatpush1.bf16.msra.mxu0 0
        %433 = vmatprep.subr.bf16.mxu0 0
        %434 = vmatpush1.bf16.msra.mxu0 0
        %435 = vmatprep.subr.bf16.mxu0 0
        %436 = vmatpush1.bf16.msra.mxu0 0
        %437 = vmatprep.subr.bf16.mxu0 0
        %438 = vmatpush1.bf16.msra.mxu0 0
        %439 = vmatprep.mubr.bf16.mxu0 0
        %440 = vmatmul.mubr.bf16.gmra.mrb[0].mxu0 %v405
        %v441 = vpop.f32.mrb[0].mxu0
        %v442 = vadd.f32 0.0, %v441
        %v443 = vpop.f32.mrb[0].mxu0
        %v444 = vpop.f32.mrb[0].mxu0
        %v445 = vadd.f32 0.0, %v444
        %v446 = vpop.f32.mrb[0].mxu0
        %447 = vdwg.mxu0
        %v448 = vadd.f32 %v381, %v442
        %v449 = vadd.f32 %v382, %v445
        %s450 = scalar_lea.vmem %s1, 32
        %v451 = vld [vmem:[%s450] sm:$0xf]
        %v452 = vld [vmem:[%s450 + $0x4] sm:$0xf]
        %v455 = vunpack.c.l.b16 %v451
        %v456 = vunpack.c.l.b16 %v452
        %v457 = vpack.c.b16 %v456, %v455
        %458 = vrot.lane.b32.xlu0 %v192, 64
        %v459 = vpop.permute.xlu0 %458
        %460 = vrot.lane.b32.xlu0 %v193, 64
        %v461 = vpop.permute.xlu0 %460
        %462 = vrot.lane.b32.xlu0 %v194, 64
        %v463 = vpop.permute.xlu0 %462
        %464 = vrot.lane.b32.xlu0 %v195, 64
        %v465 = vpop.permute.xlu0 %464
        %vm466 = vcmask 523264
        %v467 = vsel %vm466, %v459, %v461
        %v468 = vsel %vm466, %v463, %v465
        %v472 = vsel %vm209, %v457, 0
        %474 = vmatprep.subr.bf16.mxu0 0
        %475 = vmatpush1.bf16.msra.mxu0 %v467
        %476 = vmatprep.subr.bf16.mxu0 0
        %477 = vmatpush1.bf16.msra.mxu0 %v468
        %478 = vmatprep.subr.bf16.mxu0 0
        %479 = vmatpush1.bf16.msra.mxu0 0
        %480 = vmatprep.subr.bf16.mxu0 0
        %481 = vmatpush1.bf16.msra.mxu0 0
        %482 = vmatprep.subr.bf16.mxu0 0
        %483 = vmatpush1.bf16.msra.mxu0 0
        %484 = vmatprep.subr.bf16.mxu0 0
        %485 = vmatpush1.bf16.msra.mxu0 0
        %486 = vmatprep.subr.bf16.mxu0 0
        %487 = vmatpush1.bf16.msra.mxu0 0
        %488 = vmatprep.subr.bf16.mxu0 0
        %489 = vmatpush1.bf16.msra.mxu0 0
        %490 = vmatprep.subr.bf16.mxu0 0
        %491 = vmatpush1.bf16.msra.mxu0 0
        %492 = vmatprep.subr.bf16.mxu0 0
        %493 = vmatpush1.bf16.msra.mxu0 0
        %494 = vmatprep.subr.bf16.mxu0 0
        %495 = vmatpush1.bf16.msra.mxu0 0
        %496 = vmatprep.subr.bf16.mxu0 0
        %497 = vmatpush1.bf16.msra.mxu0 0
        %498 = vmatprep.subr.bf16.mxu0 0
        %499 = vmatpush1.bf16.msra.mxu0 0
        %500 = vmatprep.subr.bf16.mxu0 0
        %501 = vmatpush1.bf16.msra.mxu0 0
        %502 = vmatprep.subr.bf16.mxu0 0
        %503 = vmatpush1.bf16.msra.mxu0 0
        %504 = vmatprep.subr.bf16.mxu0 0
        %505 = vmatpush1.bf16.msra.mxu0 0
        %506 = vmatprep.mubr.bf16.mxu0 0
        %507 = vmatmul.mubr.bf16.gmra.mrb[0].mxu0 %v472
        %v508 = vpop.f32.mrb[0].mxu0
        %v509 = vadd.f32 0.0, %v508
        %v510 = vpop.f32.mrb[0].mxu0
        %v511 = vpop.f32.mrb[0].mxu0
        %v512 = vadd.f32 0.0, %v511
        %v513 = vpop.f32.mrb[0].mxu0
        %514 = vdwg.mxu0
        %v515 = vadd.f32 %v448, %v509
        %v516 = vadd.f32 %v449, %v512
        %s517 = scalar_lea.vmem %s1, 40
        %v518 = vld [vmem:[%s517] sm:$0xf]
        %v519 = vld [vmem:[%s517 + $0x4] sm:$0xf]
        %v522 = vunpack.c.l.b16 %v518
        %v523 = vunpack.c.l.b16 %v519
        %v524 = vpack.c.b16 %v523, %v522
        %525 = vrot.lane.b32.xlu0 %v192, 63
        %v526 = vpop.permute.xlu0 %525
        %527 = vrot.lane.b32.xlu0 %v193, 63
        %v528 = vpop.permute.xlu0 %527
        %529 = vrot.lane.b32.xlu0 %v194, 63
        %v530 = vpop.permute.xlu0 %529
        %531 = vrot.lane.b32.xlu0 %v195, 63
        %v532 = vpop.permute.xlu0 %531
        %vm533 = vcmask 515072
        %v534 = vsel %vm533, %v526, %v528
        %v535 = vsel %vm533, %v530, %v532
        %v539 = vsel %vm209, %v524, 0
        %541 = vmatprep.subr.bf16.mxu0 0
        %542 = vmatpush1.bf16.msra.mxu0 %v534
        %543 = vmatprep.subr.bf16.mxu0 0
        %544 = vmatpush1.bf16.msra.mxu0 %v535
        %545 = vmatprep.subr.bf16.mxu0 0
        %546 = vmatpush1.bf16.msra.mxu0 0
        %547 = vmatprep.subr.bf16.mxu0 0
        %548 = vmatpush1.bf16.msra.mxu0 0
        %549 = vmatprep.subr.bf16.mxu0 0
        %550 = vmatpush1.bf16.msra.mxu0 0
        %551 = vmatprep.subr.bf16.mxu0 0
        %552 = vmatpush1.bf16.msra.mxu0 0
        %553 = vmatprep.subr.bf16.mxu0 0
        %554 = vmatpush1.bf16.msra.mxu0 0
        %555 = vmatprep.subr.bf16.mxu0 0
        %556 = vmatpush1.bf16.msra.mxu0 0
        %557 = vmatprep.subr.bf16.mxu0 0
        %558 = vmatpush1.bf16.msra.mxu0 0
        %559 = vmatprep.subr.bf16.mxu0 0
        %560 = vmatpush1.bf16.msra.mxu0 0
        %561 = vmatprep.subr.bf16.mxu0 0
        %562 = vmatpush1.bf16.msra.mxu0 0
        %563 = vmatprep.subr.bf16.mxu0 0
        %564 = vmatpush1.bf16.msra.mxu0 0
        %565 = vmatprep.subr.bf16.mxu0 0
        %566 = vmatpush1.bf16.msra.mxu0 0
        %567 = vmatprep.subr.bf16.mxu0 0
        %568 = vmatpush1.bf16.msra.mxu0 0
        %569 = vmatprep.subr.bf16.mxu0 0
        %570 = vmatpush1.bf16.msra.mxu0 0
        %571 = vmatprep.subr.bf16.mxu0 0
        %572 = vmatpush1.bf16.msra.mxu0 0
        %573 = vmatprep.mubr.bf16.mxu0 0
        %574 = vmatmul.mubr.bf16.gmra.mrb[0].mxu0 %v539
        %v575 = vpop.f32.mrb[0].mxu0
        %v576 = vadd.f32 0.0, %v575
        %v577 = vpop.f32.mrb[0].mxu0
        %v578 = vpop.f32.mrb[0].mxu0
        %v579 = vadd.f32 0.0, %v578
        %v580 = vpop.f32.mrb[0].mxu0
        %581 = vdwg.mxu0
        %v582 = vadd.f32 %v515, %v576
        %v583 = vadd.f32 %v516, %v579
        %s584 = scalar_lea.vmem %s1, 48
        %v585 = vld [vmem:[%s584] sm:$0xf]
        %v586 = vld [vmem:[%s584 + $0x4] sm:$0xf]
        %v589 = vunpack.c.l.b16 %v585
        %v590 = vunpack.c.l.b16 %v586
        %v591 = vpack.c.b16 %v590, %v589
        %592 = vrot.lane.b32.xlu0 %v192, 55
        %v593 = vpop.permute.xlu0 %592
        %594 = vrot.lane.b32.xlu0 %v193, 55
        %v595 = vpop.permute.xlu0 %594
        %596 = vrot.lane.b32.xlu0 %v194, 55
        %v597 = vpop.permute.xlu0 %596
        %598 = vrot.lane.b32.xlu0 %v195, 55
        %v599 = vpop.permute.xlu0 %598
        %vm600 = vcmask 449536
        %v601 = vsel %vm600, %v593, %v595
        %v602 = vsel %vm600, %v597, %v599
        %v606 = vsel %vm209, %v591, 0
        %608 = vmatprep.subr.bf16.mxu0 0
        %609 = vmatpush1.bf16.msra.mxu0 %v601
        %610 = vmatprep.subr.bf16.mxu0 0
        %611 = vmatpush1.bf16.msra.mxu0 %v602
        %612 = vmatprep.subr.bf16.mxu0 0
        %613 = vmatpush1.bf16.msra.mxu0 0
        %614 = vmatprep.subr.bf16.mxu0 0
        %615 = vmatpush1.bf16.msra.mxu0 0
        %616 = vmatprep.subr.bf16.mxu0 0
        %617 = vmatpush1.bf16.msra.mxu0 0
        %618 = vmatprep.subr.bf16.mxu0 0
        %619 = vmatpush1.bf16.msra.mxu0 0
        %620 = vmatprep.subr.bf16.mxu0 0
        %621 = vmatpush1.bf16.msra.mxu0 0
        %622 = vmatprep.subr.bf16.mxu0 0
        %623 = vmatpush1.bf16.msra.mxu0 0
        %624 = vmatprep.subr.bf16.mxu0 0
        %625 = vmatpush1.bf16.msra.mxu0 0
        %626 = vmatprep.subr.bf16.mxu0 0
        %627 = vmatpush1.bf16.msra.mxu0 0
        %628 = vmatprep.subr.bf16.mxu0 0
        %629 = vmatpush1.bf16.msra.mxu0 0
        %630 = vmatprep.subr.bf16.mxu0 0
        %631 = vmatpush1.bf16.msra.mxu0 0
        %632 = vmatprep.subr.bf16.mxu0 0
        %633 = vmatpush1.bf16.msra.mxu0 0
        %634 = vmatprep.subr.bf16.mxu0 0
        %635 = vmatpush1.bf16.msra.mxu0 0
        %636 = vmatprep.subr.bf16.mxu0 0
        %637 = vmatpush1.bf16.msra.mxu0 0
        %638 = vmatprep.subr.bf16.mxu0 0
        %639 = vmatpush1.bf16.msra.mxu0 0
        %640 = vmatprep.mubr.bf16.mxu0 0
        %641 = vmatmul.mubr.bf16.gmra.mrb[0].mxu0 %v606
        %v642 = vpop.f32.mrb[0].mxu0
        %v643 = vadd.f32 0.0, %v642
        %v644 = vpop.f32.mrb[0].mxu0
        %v645 = vpop.f32.mrb[0].mxu0
        %v646 = vadd.f32 0.0, %v645
        %v647 = vpop.f32.mrb[0].mxu0
        %648 = vdwg.mxu0
        %v649 = vadd.f32 %v582, %v643
        %v650 = vadd.f32 %v583, %v646
        %s651 = scalar_lea.vmem %s1, 56
        %v652 = vld [vmem:[%s651] sm:$0xf]
        %v653 = vld [vmem:[%s651 + $0x4] sm:$0xf]
        %v656 = vunpack.c.l.b16 %v652
        %v657 = vunpack.c.l.b16 %v653
        %v658 = vpack.c.b16 %v657, %v656
        %659 = vrot.lane.b32.xlu0 %v192, 54
        %v660 = vpop.permute.xlu0 %659
        %661 = vrot.lane.b32.xlu0 %v193, 54
        %v662 = vpop.permute.xlu0 %661
        %663 = vrot.lane.b32.xlu0 %v194, 54
        %v664 = vpop.permute.xlu0 %663
        %665 = vrot.lane.b32.xlu0 %v195, 54
        %v666 = vpop.permute.xlu0 %665
        %vm667 = vcmask 441344
        %v668 = vsel %vm667, %v660, %v662
        %v669 = vsel %vm667, %v664, %v666
        %v673 = vsel %vm209, %v658, 0
        %675 = vmatprep.subr.bf16.mxu0 0
        %676 = vmatpush1.bf16.msra.mxu0 %v668
        %677 = vmatprep.subr.bf16.mxu0 0
        %678 = vmatpush1.bf16.msra.mxu0 %v669
        %679 = vmatprep.subr.bf16.mxu0 0
        %680 = vmatpush1.bf16.msra.mxu0 0
        %681 = vmatprep.subr.bf16.mxu0 0
        %682 = vmatpush1.bf16.msra.mxu0 0
        %683 = vmatprep.subr.bf16.mxu0 0
        %684 = vmatpush1.bf16.msra.mxu0 0
        %685 = vmatprep.subr.bf16.mxu0 0
        %686 = vmatpush1.bf16.msra.mxu0 0
        %687 = vmatprep.subr.bf16.mxu0 0
        %688 = vmatpush1.bf16.msra.mxu0 0
        %689 = vmatprep.subr.bf16.mxu0 0
        %690 = vmatpush1.bf16.msra.mxu0 0
        %691 = vmatprep.subr.bf16.mxu0 0
        %692 = vmatpush1.bf16.msra.mxu0 0
        %693 = vmatprep.subr.bf16.mxu0 0
        %694 = vmatpush1.bf16.msra.mxu0 0
        %695 = vmatprep.subr.bf16.mxu0 0
        %696 = vmatpush1.bf16.msra.mxu0 0
        %697 = vmatprep.subr.bf16.mxu0 0
        %698 = vmatpush1.bf16.msra.mxu0 0
        %699 = vmatprep.subr.bf16.mxu0 0
        %700 = vmatpush1.bf16.msra.mxu0 0
        %701 = vmatprep.subr.bf16.mxu0 0
        %702 = vmatpush1.bf16.msra.mxu0 0
        %703 = vmatprep.subr.bf16.mxu0 0
        %704 = vmatpush1.bf16.msra.mxu0 0
        %705 = vmatprep.subr.bf16.mxu0 0
        %706 = vmatpush1.bf16.msra.mxu0 0
        %707 = vmatprep.mubr.bf16.mxu0 0
        %708 = vmatmul.mubr.bf16.gmra.mrb[0].mxu0 %v673
        %v709 = vpop.f32.mrb[0].mxu0
        %v710 = vadd.f32 0.0, %v709
        %v711 = vpop.f32.mrb[0].mxu0
        %v712 = vpop.f32.mrb[0].mxu0
        %v713 = vadd.f32 0.0, %v712
        %v714 = vpop.f32.mrb[0].mxu0
        %715 = vdwg.mxu0
        %v716 = vadd.f32 %v649, %v710
        %v717 = vadd.f32 %v650, %v713
        %s718 = scalar_lea.vmem %s1, 64
        %v719 = vld [vmem:[%s718] sm:$0xf]
        %v720 = vld [vmem:[%s718 + $0x4] sm:$0xf]
        %v723 = vunpack.c.l.b16 %v719
        %v724 = vunpack.c.l.b16 %v720
        %v725 = vpack.c.b16 %v724, %v723
        %726 = vrot.lane.b32.xlu0 %v192, 53
        %v727 = vpop.permute.xlu0 %726
        %728 = vrot.lane.b32.xlu0 %v193, 53
        %v729 = vpop.permute.xlu0 %728
        %730 = vrot.lane.b32.xlu0 %v194, 53
        %v731 = vpop.permute.xlu0 %730
        %732 = vrot.lane.b32.xlu0 %v195, 53
        %v733 = vpop.permute.xlu0 %732
        %vm734 = vcmask 433152
        %v735 = vsel %vm734, %v727, %v729
        %v736 = vsel %vm734, %v731, %v733
        %v740 = vsel %vm209, %v725, 0
        %742 = vmatprep.subr.bf16.mxu0 0
        %743 = vmatpush1.bf16.msra.mxu0 %v735
        %744 = vmatprep.subr.bf16.mxu0 0
        %745 = vmatpush1.bf16.msra.mxu0 %v736
        %746 = vmatprep.subr.bf16.mxu0 0
        %747 = vmatpush1.bf16.msra.mxu0 0
        %748 = vmatprep.subr.bf16.mxu0 0
        %749 = vmatpush1.bf16.msra.mxu0 0
        %750 = vmatprep.subr.bf16.mxu0 0
        %751 = vmatpush1.bf16.msra.mxu0 0
        %752 = vmatprep.subr.bf16.mxu0 0
        %753 = vmatpush1.bf16.msra.mxu0 0
        %754 = vmatprep.subr.bf16.mxu0 0
        %755 = vmatpush1.bf16.msra.mxu0 0
        %756 = vmatprep.subr.bf16.mxu0 0
        %757 = vmatpush1.bf16.msra.mxu0 0
        %758 = vmatprep.subr.bf16.mxu0 0
        %759 = vmatpush1.bf16.msra.mxu0 0
        %760 = vmatprep.subr.bf16.mxu0 0
        %761 = vmatpush1.bf16.msra.mxu0 0
        %762 = vmatprep.subr.bf16.mxu0 0
        %763 = vmatpush1.bf16.msra.mxu0 0
        %764 = vmatprep.subr.bf16.mxu0 0
        %765 = vmatpush1.bf16.msra.mxu0 0
        %766 = vmatprep.subr.bf16.mxu0 0
        %767 = vmatpush1.bf16.msra.mxu0 0
        %768 = vmatprep.subr.bf16.mxu0 0
        %769 = vmatpush1.bf16.msra.mxu0 0
        %770 = vmatprep.subr.bf16.mxu0 0
        %771 = vmatpush1.bf16.msra.mxu0 0
        %772 = vmatprep.subr.bf16.mxu0 0
        %773 = vmatpush1.bf16.msra.mxu0 0
        %774 = vmatprep.mubr.bf16.mxu0 0
        %775 = vmatmul.mubr.bf16.gmra.mrb[0].mxu0 %v740
        %v776 = vpop.f32.mrb[0].mxu0
        %v777 = vadd.f32 0.0, %v776
        %v778 = vpop.f32.mrb[0].mxu0
        %v779 = vpop.f32.mrb[0].mxu0
        %v780 = vadd.f32 0.0, %v779
        %v781 = vpop.f32.mrb[0].mxu0
        %782 = vdwg.mxu0
        %v783 = vadd.f32 %v716, %v777
        %v784 = vadd.f32 %v717, %v780
        %v785 = vld [vmem:[%s2] sm:$0xff]
        %v786 = vld [vmem:[%s2 + $0x8] sm:$0xff]
        %788 = vset.pattern.permute.xlu0 0
        %789 = vperm.xlu0 %788, %v785
        %v790 = vpop.permute.xlu0 %789
        %793 = vset.pattern.permute.xlu0 0
        %794 = vperm.xlu0 %793, %v786
        %v795 = vpop.permute.xlu0 %794
        %v797 = vadd.f32 %v783, %v790
        %v798 = vadd.f32 %v784, %v795
        %v799 = vmax.f32 %v797, 0.0
        %v800 = vmax.f32 %v798, 0.0
        %v801 = vpack.c.bf16 %v800, %v799
        %v803 = vunpack.c.l.b16 %v801
        %v804 = vunpack.c.h.b16 %v801
        %v805 = vpack.c.b16 %v803, %v803
        %v806 = vpack.c.b16 %v804, %v804
        %809 = vst [vmem:[%s159] sm:$0xf] %v805
        %810 = vst [vmem:[%s159 + $0x4] sm:$0xf] %v806
        %s811 = sand.u32 %s90, 1
        %s812 = sand.u32 %s90, 1
        %s813 = smul.addr %s812, 8
        %s814 = scalar_lea.vmem [#allocation2], %s813
        // Predicated region
        $region33: #{rsu4_apply_nchw.13} parent=31 // pred_check
          %p815 = pneg %p100
        $region34: #{rsu4_apply_nchw.13} parent=31 // pred_check_branch
          %817 = sbr.rel (%p815) target = $region36
        $region35: #{rsu4_apply_nchw.13} parent=31 // pred_region
          %s818 = smul.addr %s14, 4
          %s819 = scalar_lea.vmem %s3, %s818
          // Predicated region
          $region37: #{rsu4_apply_nchw.13} parent=35 // pred_check
            _
          $region38: #{rsu4_apply_nchw.13} parent=35 // pred_check_branch
            %821 = sbr.rel (0) target = $region40
          $region39: #{rsu4_apply_nchw.13} parent=35 // pred_region
            // Predicated region
            $region41: #{rsu4_apply_nchw.13} parent=39 // pred_check
              _
            $region42: #{rsu4_apply_nchw.13} parent=39 // pred_check_branch
              %823 = sbr.rel target = $region44
            $region43: #{rsu4_apply_nchw.13} parent=39 // pred_region
              // Predicated region
              $region56: #{rsu4_apply_nchw.13} parent=43 // pred_check
                _
              $region57: #{rsu4_apply_nchw.13} parent=43 // pred_check_branch
                %840 = sbr.rel (0) target = $region59
              $region58: #{rsu4_apply_nchw.13} parent=43 // pred_region
                loop: start=0, step=1, limit=1
                $region60: #{rsu4_apply_nchw.13} parent=58 // loop_pre_header
                  _
                $region61: #{rsu4_apply_nchw.13} parent=58 // loop_header
                  %s842 = sphi 0, %s846
                  %p843 = scmp.ge.s32.totalorder %s842, 1
                  %s847 = sphi %s814, %s814
                  %s848 = sphi %s819, %s819
                $region62: #{rsu4_apply_nchw.13} parent=58 // loop_header_branch
                  %845 = sbr.rel (%p843) target = $region66
                $region63: #{rsu4_apply_nchw.13} parent=58 // loop_body
                  _
                $region64: #{rsu4_apply_nchw.13} parent=58 // loop_footer
                  %s846 = sadd.s32 1, %s842
                $region65: #{rsu4_apply_nchw.13} parent=58 // loop_footer_branch
                  %841 = sbr.rel target = $region61
                $region66: #{rsu4_apply_nchw.13} parent=58 // loop_exit
                  _
                loop: start=0, step=1, limit=1
                $region67: #{rsu4_apply_nchw.13} parent=58 // loop_pre_header
                  _
                $region68: #{rsu4_apply_nchw.13} parent=58 // loop_header
                  %s851 = sphi 0, %s855
                  %p852 = scmp.ge.s32.totalorder %s851, 1
                  %s856 = sphi %s814, %s814
                  %s857 = sphi %s819, %s819
                $region69: #{rsu4_apply_nchw.13} parent=58 // loop_header_branch
                  %854 = sbr.rel (%p852) target = $region73
                $region70: #{rsu4_apply_nchw.13} parent=58 // loop_body
                  %v858 = vld [vmem:[%s856] sm:$0xf]
                  %859 = vst [vmem:[%s857] sm:$0xf] %v858
                  %v860 = vld [vmem:[%s856 + $0x4] sm:$0xf]
                  %861 = vst [vmem:[%s857 + $0x8] sm:$0xf] %v860
                $region71: #{rsu4_apply_nchw.13} parent=58 // loop_footer
                  %s855 = sadd.s32 1, %s851
                $region72: #{rsu4_apply_nchw.13} parent=58 // loop_footer_branch
                  %850 = sbr.rel target = $region68
                $region73: #{rsu4_apply_nchw.13} parent=58 // loop_exit
                  _
              $region59: #{rsu4_apply_nchw.13} parent=43 // pred_fallthru
                _
            $region44: #{rsu4_apply_nchw.13} parent=39 // pred_fallthru
              _
            // Predicated region
            $region45: #{rsu4_apply_nchw.13} parent=39 // pred_check
              _
            $region46: #{rsu4_apply_nchw.13} parent=39 // pred_check_branch
              %825 = sbr.rel (0) target = $region48
            $region47: #{rsu4_apply_nchw.13} parent=39 // pred_region
              loop: start=0, step=1, limit=1
              $region49: #{rsu4_apply_nchw.13} parent=47 // loop_pre_header
                _
              $region50: #{rsu4_apply_nchw.13} parent=47 // loop_header
                %s828 = sphi 0, %s832
                %p829 = scmp.ge.s32.totalorder %s828, 1
                %s833 = sphi %s814, %s814
                %s834 = sphi %s819, %s819
              $region51: #{rsu4_apply_nchw.13} parent=47 // loop_header_branch
                %831 = sbr.rel (%p829) target = $region55
              $region52: #{rsu4_apply_nchw.13} parent=47 // loop_body
                %v835 = vld [vmem:[%s833] sm:$0xf]
                %836 = vst [vmem:[%s834] sm:$0xf] %v835
                %v837 = vld [vmem:[%s833 + $0x4] sm:$0xf]
                %838 = vst [vmem:[%s834 + $0x8] sm:$0xf] %v837
              $region53: #{rsu4_apply_nchw.13} parent=47 // loop_footer
                %s832 = sadd.s32 1, %s828
              $region54: #{rsu4_apply_nchw.13} parent=47 // loop_footer_branch
                %827 = sbr.rel target = $region50
              $region55: #{rsu4_apply_nchw.13} parent=47 // loop_exit
                _
            $region48: #{rsu4_apply_nchw.13} parent=39 // pred_fallthru
              _
          $region40: #{rsu4_apply_nchw.13} parent=35 // pred_fallthru
            _
          %862 = vnop
        $region36: #{rsu4_apply_nchw.13} parent=31 // pred_fallthru
          _
      $region32: #{rsu4_apply_nchw.13} parent=5 // pred_fallthru
        _
      %p863 = scmp.le.s32.totalorder 2, %s9
      // Predicated region
      $region74: #{rsu4_apply_nchw.13} parent=5 // pred_check
        %p864 = pneg %p863
      $region75: #{rsu4_apply_nchw.13} parent=5 // pred_check_branch
        %866 = sbr.rel (%p864) target = $region77
      $region76: #{rsu4_apply_nchw.13} parent=5 // pred_region
        %s867 = ssub.s32 %s9, 2
        // Predicated region
        $region78: #{rsu4_apply_nchw.13} parent=76 // pred_check
          %p868 = pneg %p106
        $region79: #{rsu4_apply_nchw.13} parent=76 // pred_check_branch
          %870 = sbr.rel (%p868) target = $region81
        $region80: #{rsu4_apply_nchw.13} parent=76 // pred_region
          %s871 = sand.u32 %s91, 1
          %s872 = sand.u32 %s91, 1
          %s873 = smul.addr %s872, 8
          %s874 = scalar_lea.vmem [#allocation2], %s873
        $region81: #{rsu4_apply_nchw.13} parent=76 // pred_fallthru
          _
      $region77: #{rsu4_apply_nchw.13} parent=5 // pred_fallthru
        _
    $region6: #{rsu4_apply_nchw.13} parent=1 // loop_footer
      %s13 = sadd.s32 1, %s9
    $region7: #{rsu4_apply_nchw.13} parent=1 // loop_footer_branch
      %8 = sbr.rel target = $region3
    $region8: #{rsu4_apply_nchw.13} parent=1 // loop_exit
      _

// kernel: rsu4_apply_nchw.14
$region0: #{rsu4_apply_nchw.14}
  #allocation0 [shape = 'u32[]', space=smem, size = 0x4, offset = 0x4, fixed_abs, tag = 'smem constant byte address 0x4 - core index']
  #allocation1 [shape = 'u32[144,128]{1,0:T(1,128)}', space=vmem, size = 0x12000, scoped, tag = 'internal scratch']
  %s0 = inlined_call_operand.vmem [shape: bf16[2,32,640], index: 0, kind: input, shape index: {}]
  %s1 = inlined_call_operand.vmem [shape: bf16[9,16,32], index: 1, kind: input, shape index: {}]
  %s2 = inlined_call_operand.vmem [shape: f32[16,1], index: 2, kind: input, shape index: {}]
  %s3 = inlined_call_operand.vmem [shape: bf16[16,1024], index: 3, kind: output, shape index: {}]
  %s4 = sld [smem:[#allocation0]]
  $region64: #{rsu4_apply_nchw.14} parent=0
    _
  %s6 = ssub.s32 1, %s4
  %s7 = scalar_select 0, %s6, %s4
  $region1: #{rsu4_apply_nchw.14} parent=0
    #allocation2 [shape = 'u8[32768]{0}', space=vmem, size = 0x8000, scoped, tag = 'output window, operand 0']
    loop: start=0, step=1, limit=4
    $region2: #{rsu4_apply_nchw.14} parent=1 // loop_pre_header
      _
    $region3: #{rsu4_apply_nchw.14} parent=1 // loop_header
      %s9 = sphi 0, %s13
      %p10 = scmp.ge.s32.totalorder %s9, 4
      %s19 = sphi 0, %s21
      %s22 = sphi 0, %s19
      %s23 = sphi 0, %s22
      %s39 = sphi 0, %s23
      %s43 = sphi 0, %s43
      %s45 = sphi 0, %s43
      %s46 = sphi 0, %s45
      %s60 = sphi 0, %s46
      %s64 = sphi 0, %s64
      %s66 = sphi 0, %s64
      %s67 = sphi 0, %s66
      %s81 = sphi 0, %s67
      %s87 = sphi 0, %s89
      %s90 = sphi 0, %s87
      %s91 = sphi 0, %s90
      %s107 = sphi 0, %s91
    $region4: #{rsu4_apply_nchw.14} parent=1 // loop_header_branch
      %12 = sbr.rel (%p10) target = $region8
    $region5: #{rsu4_apply_nchw.14} parent=1 // loop_body
      %s14 = ssub.s32 %s9, 1
      %s15 = ssub.s32 %s9, 2
      %s16 = sadd.s32 %s9, 1
      %s17 = ssub.s32 %s9, %s16
      %p18 = scmp.eq.s32.totalorder %s17, 0
      %s20 = sadd.s32 %s19, 1
      %s21 = scalar_select %p18, %s19, %s20
      %p24 = pneg %p18
      %p25 = scmp.eq.s32.totalorder %s9, 1
      %p26 = por %p24, %p25
      %p27 = scmp.ne.s32.totalorder %s19, %s22
      %p28 = scmp.eq.s32.totalorder %s9, 0
      %p29 = por %p27, %p28
      %p30 = scmp.ne.s32.totalorder %s19, %s22
      %p31 = scmp.eq.s32.totalorder %s14, 1
      %p32 = por %p30, %p31
      %p33 = scmp.ne.s32.totalorder %s22, %s23
      %p34 = scmp.eq.s32.totalorder %s14, 0
      %p35 = por %p33, %p34
      %p36 = scmp.ne.s32.totalorder %s22, %s23
      %p37 = scmp.eq.s32.totalorder %s15, 1
      %p38 = por %p36, %p37
      %p40 = scmp.ne.s32.totalorder %s23, %s39
      %p41 = scmp.eq.s32.totalorder %s15, 0
      %p42 = por %p40, %p41
      %s44 = sadd.s32 %s43, 1
      %p47 = scmp.eq.s32.totalorder %s9, 1
      %p48 = scmp.ne.s32.totalorder %s43, %s45
      %p49 = scmp.eq.s32.totalorder %s9, 0
      %p50 = por %p48, %p49
      %p51 = scmp.ne.s32.totalorder %s43, %s45
      %p52 = scmp.eq.s32.totalorder %s14, 1
      %p53 = por %p51, %p52
      %p54 = scmp.ne.s32.totalorder %s45, %s46
      %p55 = scmp.eq.s32.totalorder %s14, 0
      %p56 = por %p54, %p55
      %p57 = scmp.ne.s32.totalorder %s45, %s46
      %p58 = scmp.eq.s32.totalorder %s15, 1
      %p59 = por %p57, %p58
      %p61 = scmp.ne.s32.totalorder %s46, %s60
      %p62 = scmp.eq.s32.totalorder %s15, 0
      %p63 = por %p61, %p62
      %s65 = sadd.s32 %s64, 1
      %p68 = scmp.eq.s32.totalorder %s9, 1
      %p69 = scmp.ne.s32.totalorder %s64, %s66
      %p70 = scmp.eq.s32.totalorder %s9, 0
      %p71 = por %p69, %p70
      %p72 = scmp.ne.s32.totalorder %s64, %s66
      %p73 = scmp.eq.s32.totalorder %s14, 1
      %p74 = por %p72, %p73
      %p75 = scmp.ne.s32.totalorder %s66, %s67
      %p76 = scmp.eq.s32.totalorder %s14, 0
      %p77 = por %p75, %p76
      %p78 = scmp.ne.s32.totalorder %s66, %s67
      %p79 = scmp.eq.s32.totalorder %s15, 1
      %p80 = por %p78, %p79
      %p82 = scmp.ne.s32.totalorder %s67, %s81
      %p83 = scmp.eq.s32.totalorder %s15, 0
      %p84 = por %p82, %p83
      %s85 = ssub.s32 %s9, %s16
      %p86 = scmp.eq.s32.totalorder %s85, 0
      %s88 = sadd.s32 %s87, 1
      %s89 = scalar_select %p86, %s87, %s88
      %p92 = pneg %p86
      %p93 = scmp.eq.s32.totalorder %s9, 1
      %p94 = por %p92, %p93
      %p95 = scmp.ne.s32.totalorder %s87, %s90
      %p96 = scmp.eq.s32.totalorder %s9, 0
      %p97 = por %p95, %p96
      %p98 = scmp.ne.s32.totalorder %s87, %s90
      %p99 = scmp.eq.s32.totalorder %s14, 1
      %p100 = por %p98, %p99
      %p101 = scmp.ne.s32.totalorder %s90, %s91
      %p102 = scmp.eq.s32.totalorder %s14, 0
      %p103 = por %p101, %p102
      %p104 = scmp.ne.s32.totalorder %s90, %s91
      %p105 = scmp.eq.s32.totalorder %s15, 1
      %p106 = por %p104, %p105
      %p108 = scmp.ne.s32.totalorder %s91, %s107
      %p109 = scmp.eq.s32.totalorder %s15, 0
      %p110 = por %p108, %p109
      %p111 = scmp.le.s32.totalorder 1, %s9
      %p112 = scmp.lt.s32.totalorder %s9, 3
      %p113 = pnand %p111, %p112
      %p114 = pneg %p113
      // Predicated region
      $region9: #{rsu4_apply_nchw.14} parent=5 // pred_check
        _
      $region10: #{rsu4_apply_nchw.14} parent=5 // pred_check_branch
        %116 = sbr.rel (%p113) target = $region12
      $region11: #{rsu4_apply_nchw.14} parent=5 // pred_region
        %s117 = ssub.s32 %s9, 1
        // Predicated region
        $region13: #{rsu4_apply_nchw.14} parent=11 // pred_check
          %p118 = pneg %p56
        $region14: #{rsu4_apply_nchw.14} parent=11 // pred_check_branch
          %120 = sbr.rel (%p118) target = $region16
        $region15: #{rsu4_apply_nchw.14} parent=11 // pred_region
          _
        $region16: #{rsu4_apply_nchw.14} parent=11 // pred_fallthru
          _
        // Predicated region
        $region17: #{rsu4_apply_nchw.14} parent=11 // pred_check
          %p121 = pneg %p77
        $region18: #{rsu4_apply_nchw.14} parent=11 // pred_check_branch
          %123 = sbr.rel (%p121) target = $region20
        $region19: #{rsu4_apply_nchw.14} parent=11 // pred_region
          _
        $region20: #{rsu4_apply_nchw.14} parent=11 // pred_fallthru
          _
      $region12: #{rsu4_apply_nchw.14} parent=5 // pred_fallthru
        _
      %p124 = scmp.lt.s32.totalorder %s9, 2
      // Predicated region
      $region21: #{rsu4_apply_nchw.14} parent=5 // pred_check
        %p125 = pneg %p124
      $region22: #{rsu4_apply_nchw.14} parent=5 // pred_check_branch
        %127 = sbr.rel (%p125) target = $region24
      $region23: #{rsu4_apply_nchw.14} parent=5 // pred_region
        // Predicated region
        $region25: #{rsu4_apply_nchw.14} parent=23 // pred_check
          %p128 = pneg %p29
        $region26: #{rsu4_apply_nchw.14} parent=23 // pred_check_branch
          %130 = sbr.rel (%p128) target = $region28
        $region27: #{rsu4_apply_nchw.14} parent=23 // pred_region
          %p131 = scmp.lt.s32.totalorder %s9, 1
          %s132 = scalar_select %p131, %s9, 1
          %s133 = smul.addr %s132, 20
          %s134 = smul.addr %s133, 4
          %s135 = scalar_lea.vmem %s0, %s134
        $region28: #{rsu4_apply_nchw.14} parent=23 // pred_fallthru
          _
      $region24: #{rsu4_apply_nchw.14} parent=5 // pred_fallthru
        _
      %p136 = scmp.le.s32.totalorder 1, %s9
      %p137 = scmp.lt.s32.totalorder %s9, 3
      %p138 = pnand %p136, %p137
      %p139 = pneg %p138
      // Predicated region
      $region29: #{rsu4_apply_nchw.14} parent=5 // pred_check
        _
      $region30: #{rsu4_apply_nchw.14} parent=5 // pred_check_branch
        %141 = sbr.rel (%p138) target = $region32
      $region31: #{rsu4_apply_nchw.14} parent=5 // pred_region
        %s142 = ssub.s32 %s9, 1
        %p143 = scmp.lt.s32.totalorder %s14, 1
        %s144 = scalar_select %p143, %s14, 1
        %s145 = smul.addr %s144, 20
        %s146 = smul.addr %s145, 4
        %s147 = scalar_lea.vmem %s0, %s146
        %p148 = pneg %p35
        %p149 = pneg %p32
        %p150 = pneg %p56
        %p151 = pneg %p53
        %p152 = pneg %p77
        %p153 = pneg %p74
        %p154 = pneg %p103
        %p155 = pneg %p100
        %s156 = sand.u32 %s90, 1
        %s157 = sand.u32 %s90, 1
        %s158 = smul.addr %s157, 32
        %s159 = scalar_lea.vmem [#allocation2], %s158
        %p160 = scmp.lt.s32.totalorder %s14, 1
        %s161 = scalar_select %p160, %s14, 1
        %s162 = smul.addr %s161, 20
        %s163 = smul.addr %s162, 4
        %s164 = scalar_lea.vmem %s0, %s163
        %s165 = smul.u32 4, %s14
        %v167 = vld [vmem:[%s1] sm:$0xf]
        %v168 = vld [vmem:[%s1 + $0x4] sm:$0xf]
        %v169 = vld [vmem:[%s164] sm:$0xff]
        %v170 = vld [vmem:[%s164 + $0x8] sm:$0xff]
        %v171 = vld [vmem:[%s164 + $0x10] sm:$0xf]
        %v172 = vld [vmem:[%s164 + $0x14] sm:$0xff]
        %v173 = vld [vmem:[%s164 + $0x1c] sm:$0xff]
        %v174 = vld [vmem:[%s164 + $0x24] sm:$0xf]
        %v175 = vld [vmem:[%s164 + $0x28] sm:$0xff]
        %v176 = vld [vmem:[%s164 + $0x30] sm:$0xff]
        %v177 = vld [vmem:[%s164 + $0x38] sm:$0xf]
        %v178 = vld [vmem:[%s164 + $0x3c] sm:$0xff]
        %v179 = vld [vmem:[%s164 + $0x44] sm:$0xff]
        %v180 = vld [vmem:[%s164 + $0x4c] sm:$0xf]
        %s181 = scalar_lea.vmem %s1, 8
        %v182 = vld [vmem:[%s181] sm:$0xf]
        %v183 = vld [vmem:[%s181 + $0x4] sm:$0xf]
        %v186 = vunpack.c.l.b16 %v182
        %v187 = vunpack.c.l.b16 %v183
        %v188 = vpack.c.b16 %v187, %v186
        %v201 = vunpack.c.l.b16 %v169
        %v202 = vunpack.c.h.b16 %v169
        %v203 = vunpack.c.l.b16 %v170
        %v204 = vunpack.c.h.b16 %v170
        %v205 = vunpack.c.l.b16 %v171
        %v206 = vunpack.c.l.b16 %v172
        %v207 = vunpack.c.h.b16 %v172
        %v208 = vunpack.c.l.b16 %v173
        %v209 = vunpack.c.h.b16 %v173
        %v210 = vunpack.c.l.b16 %v174
        %v211 = vunpack.c.l.b16 %v175
        %v212 = vunpack.c.h.b16 %v175
        %v213 = vunpack.c.l.b16 %v176
        %v214 = vunpack.c.h.b16 %v176
        %v215 = vunpack.c.l.b16 %v177
        %v216 = vunpack.c.l.b16 %v178
        %v217 = vunpack.c.h.b16 %v178
        %v218 = vunpack.c.l.b16 %v179
        %v219 = vunpack.c.h.b16 %v179
        %v220 = vunpack.c.l.b16 %v180
        %v221 = vpack.c.b16 %v206, %v201
        %v222 = vpack.c.b16 %v207, %v202
        %v223 = vpack.c.b16 %v208, %v203
        %v224 = vpack.c.b16 %v209, %v204
        %v225 = vpack.c.b16 %v210, %v205
        %v226 = vpack.c.b16 %v216, %v211
        %v227 = vpack.c.b16 %v217, %v212
        %v228 = vpack.c.b16 %v218, %v213
        %v229 = vpack.c.b16 %v219, %v214
        %v230 = vpack.c.b16 %v220, %v215
        %231 = vrot.lane.b32.xlu0 %v221, 82
        %v232 = vpop.permute.xlu0 %231
        %233 = vrot.lane.b32.xlu0 %v222, 82
        %v234 = vpop.permute.xlu0 %233
        %235 = vrot.lane.b32.xlu0 %v223, 82
        %v236 = vpop.permute.xlu0 %235
        %237 = vrot.lane.b32.xlu0 %v224, 82
        %v238 = vpop.permute.xlu0 %237
        %239 = vrot.lane.b32.xlu0 %v225, 82
        %v240 = vpop.permute.xlu0 %239
        %241 = vrot.lane.b32.xlu0 %v226, 82
        %v242 = vpop.permute.xlu0 %241
        %243 = vrot.lane.b32.xlu0 %v227, 82
        %v244 = vpop.permute.xlu0 %243
        %245 = vrot.lane.b32.xlu0 %v228, 82
        %v246 = vpop.permute.xlu0 %245
        %247 = vrot.lane.b32.xlu0 %v229, 82
        %v248 = vpop.permute.xlu0 %247
        %249 = vrot.lane.b32.xlu0 %v230, 82
        %v250 = vpop.permute.xlu0 %249
        %vm251 = vcmask 670720
        %v252 = vsel %vm251, %v232, %v234
        %v253 = vsel %vm251, %v234, %v236
        %v254 = vsel %vm251, %v236, %v238
        %v255 = vsel %vm251, %v238, %v240
        %v256 = vsel %vm251, %v242, %v244
        %v257 = vsel %vm251, %v244, %v246
        %v258 = vsel %vm251, %v246, %v248
        %v259 = vsel %vm251, %v248, %v250
        %vm268 = vcmask 261120
        %v270 = vsel %vm268, %v188, 0
        %272 = vmatprep.subr.bf16.mxu0 %v253
        %273 = vmatpush1.bf16.msra.mxu0 %v252
        %274 = vmatprep.subr.bf16.mxu0 %v257
        %275 = vmatpush1.bf16.msra.mxu0 %v256
        %276 = vmatprep.subr.bf16.mxu0 0
        %277 = vmatpush1.bf16.msra.mxu0 0
        %278 = vmatprep.subr.bf16.mxu0 0
        %279 = vmatpush1.bf16.msra.mxu0 0
        %280 = vmatprep.subr.bf16.mxu0 0
        %281 = vmatpush1.bf16.msra.mxu0 0
        %282 = vmatprep.subr.bf16.mxu0 0
        %283 = vmatpush1.bf16.msra.mxu0 0
        %284 = vmatprep.subr.bf16.mxu0 0
        %285 = vmatpush1.bf16.msra.mxu0 0
        %286 = vmatprep.subr.bf16.mxu0 0
        %287 = vmatpush1.bf16.msra.mxu0 0
        %288 = vmatprep.subr.bf16.mxu0 0
        %289 = vmatpush1.bf16.msra.mxu0 0
        %290 = vmatprep.subr.bf16.mxu0 0
        %291 = vmatpush1.bf16.msra.mxu0 0
        %292 = vmatprep.subr.bf16.mxu0 0
        %293 = vmatpush1.bf16.msra.mxu0 0
        %294 = vmatprep.subr.bf16.mxu0 0
        %295 = vmatpush1.bf16.msra.mxu0 0
        %296 = vmatprep.subr.bf16.mxu0 0
        %297 = vmatpush1.bf16.msra.mxu0 0
        %298 = vmatprep.subr.bf16.mxu0 0
        %299 = vmatpush1.bf16.msra.mxu0 0
        %300 = vmatprep.subr.bf16.mxu0 0
        %301 = vmatpush1.bf16.msra.mxu0 0
        %302 = vmatprep.subr.bf16.mxu0 0
        %303 = vmatpush1.bf16.msra.mxu0 0
        %304 = vmatprep.mubr.bf16.mxu0 0
        %305 = vmatmul.mubr.bf16.gmra.mrb[0].mxu0 %v270
        %v306 = vpop.f32.mrb[0].mxu0
        %v307 = vadd.f32 0.0, %v306
        %v308 = vpop.f32.mrb[0].mxu0
        %v309 = vadd.f32 0.0, %v308
        %v310 = vpop.f32.mrb[0].mxu0
        %v311 = vadd.f32 0.0, %v310
        %v312 = vpop.f32.mrb[0].mxu0
        %v313 = vadd.f32 0.0, %v312
        %314 = vdwg.mxu0
        %315 = vmatprep.subr.bf16.mxu0 %v255
        %316 = vmatpush1.bf16.msra.mxu0 %v254
        %317 = vmatprep.subr.bf16.mxu0 %v259
        %318 = vmatpush1.bf16.msra.mxu0 %v258
        %319 = vmatprep.subr.bf16.mxu0 0
        %320 = vmatpush1.bf16.msra.mxu0 0
        %321 = vmatprep.subr.bf16.mxu0 0
        %322 = vmatpush1.bf16.msra.mxu0 0
        %323 = vmatprep.subr.bf16.mxu0 0
        %324 = vmatpush1.bf16.msra.mxu0 0
        %325 = vmatprep.subr.bf16.mxu0 0
        %326 = vmatpush1.bf16.msra.mxu0 0
        %327 = vmatprep.subr.bf16.mxu0 0
        %328 = vmatpush1.bf16.msra.mxu0 0
        %329 = vmatprep.subr.bf16.mxu0 0
        %330 = vmatpush1.bf16.msra.mxu0 0
        %331 = vmatprep.subr.bf16.mxu0 0
        %332 = vmatpush1.bf16.msra.mxu0 0
        %333 = vmatprep.subr.bf16.mxu0 0
        %334 = vmatpush1.bf16.msra.mxu0 0
        %335 = vmatprep.subr.bf16.mxu0 0
        %336 = vmatpush1.bf16.msra.mxu0 0
        %337 = vmatprep.subr.bf16.mxu0 0
        %338 = vmatpush1.bf16.msra.mxu0 0
        %339 = vmatprep.subr.bf16.mxu0 0
        %340 = vmatpush1.bf16.msra.mxu0 0
        %341 = vmatprep.subr.bf16.mxu0 0
        %342 = vmatpush1.bf16.msra.mxu0 0
        %343 = vmatprep.subr.bf16.mxu0 0
        %344 = vmatpush1.bf16.msra.mxu0 0
        %345 = vmatprep.subr.bf16.mxu0 0
        %346 = vmatpush1.bf16.msra.mxu0 0
        %347 = vmatprep.mubr.bf16.mxu0 0
        %348 = vmatmul.mubr.bf16.gmra.mrb[0].mxu0 %v270
        %v349 = vpop.f32.mrb[0].mxu0
        %v350 = vadd.f32 0.0, %v349
        %v351 = vpop.f32.mrb[0].mxu0
        %v352 = vadd.f32 0.0, %v351
        %v353 = vpop.f32.mrb[0].mxu0
        %v354 = vadd.f32 0.0, %v353
        %v355 = vpop.f32.mrb[0].mxu0
        %v356 = vadd.f32 0.0, %v355
        %357 = vdwg.mxu0
        %v360 = vunpack.c.l.b16 %v167
        %v361 = vunpack.c.l.b16 %v168
        %v362 = vpack.c.b16 %v361, %v360
        %363 = vrot.lane.b32.xlu0 %v221, 83
        %v364 = vpop.permute.xlu0 %363
        %365 = vrot.lane.b32.xlu0 %v222, 83
        %v366 = vpop.permute.xlu0 %365
        %367 = vrot.lane.b32.xlu0 %v223, 83
        %v368 = vpop.permute.xlu0 %367
        %369 = vrot.lane.b32.xlu0 %v224, 83
        %v370 = vpop.permute.xlu0 %369
        %371 = vrot.lane.b32.xlu0 %v225, 83
        %v372 = vpop.permute.xlu0 %371
        %373 = vrot.lane.b32.xlu0 %v226, 83
        %v374 = vpop.permute.xlu0 %373
        %375 = vrot.lane.b32.xlu0 %v227, 83
        %v376 = vpop.permute.xlu0 %375
        %377 = vrot.lane.b32.xlu0 %v228, 83
        %v378 = vpop.permute.xlu0 %377
        %379 = vrot.lane.b32.xlu0 %v229, 83
        %v380 = vpop.permute.xlu0 %379
        %381 = vrot.lane.b32.xlu0 %v230, 83
        %v382 = vpop.permute.xlu0 %381
        %vm383 = vcmask 678912
        %v384 = vsel %vm383, %v364, %v366
        %v385 = vsel %vm383, %v366, %v368
        %v386 = vsel %vm383, %v368, %v370
        %v387 = vsel %vm383, %v370, %v372
        %v388 = vsel %vm383, %v374, %v376
        %v389 = vsel %vm383, %v376, %v378
        %v390 = vsel %vm383, %v378, %v380
        %v391 = vsel %vm383, %v380, %v382
        %v401 = vsel %vm268, %v362, 0
        %403 = vmatprep.subr.bf16.mxu0 %v385
        %404 = vmatpush1.bf16.msra.mxu0 %v384
        %405 = vmatprep.subr.bf16.mxu0 %v389
        %406 = vmatpush1.bf16.msra.mxu0 %v388
        %407 = vmatprep.subr.bf16.mxu0 0
        %408 = vmatpush1.bf16.msra.mxu0 0
        %409 = vmatprep.subr.bf16.mxu0 0
        %410 = vmatpush1.bf16.msra.mxu0 0
        %411 = vmatprep.subr.bf16.mxu0 0
        %412 = vmatpush1.bf16.msra.mxu0 0
        %413 = vmatprep.subr.bf16.mxu0 0
        %414 = vmatpush1.bf16.msra.mxu0 0
        %415 = vmatprep.subr.bf16.mxu0 0
        %416 = vmatpush1.bf16.msra.mxu0 0
        %417 = vmatprep.subr.bf16.mxu0 0
        %418 = vmatpush1.bf16.msra.mxu0 0
        %419 = vmatprep.subr.bf16.mxu0 0
        %420 = vmatpush1.bf16.msra.mxu0 0
        %421 = vmatprep.subr.bf16.mxu0 0
        %422 = vmatpush1.bf16.msra.mxu0 0
        %423 = vmatprep.subr.bf16.mxu0 0
        %424 = vmatpush1.bf16.msra.mxu0 0
        %425 = vmatprep.subr.bf16.mxu0 0
        %426 = vmatpush1.bf16.msra.mxu0 0
        %427 = vmatprep.subr.bf16.mxu0 0
        %428 = vmatpush1.bf16.msra.mxu0 0
        %429 = vmatprep.subr.bf16.mxu0 0
        %430 = vmatpush1.bf16.msra.mxu0 0
        %431 = vmatprep.subr.bf16.mxu0 0
        %432 = vmatpush1.bf16.msra.mxu0 0
        %433 = vmatprep.subr.bf16.mxu0 0
        %434 = vmatpush1.bf16.msra.mxu0 0
        %435 = vmatprep.mubr.bf16.mxu0 0
        %436 = vmatmul.mubr.bf16.gmra.mrb[0].mxu0 %v401
        %v437 = vpop.f32.mrb[0].mxu0
        %v438 = vadd.f32 %v307, %v437
        %v439 = vpop.f32.mrb[0].mxu0
        %v440 = vadd.f32 %v309, %v439
        %v441 = vpop.f32.mrb[0].mxu0
        %v442 = vadd.f32 %v311, %v441
        %v443 = vpop.f32.mrb[0].mxu0
        %v444 = vadd.f32 %v313, %v443
        %445 = vdwg.mxu0
        %446 = vmatprep.subr.bf16.mxu0 %v387
        %447 = vmatpush1.bf16.msra.mxu0 %v386
        %448 = vmatprep.subr.bf16.mxu0 %v391
        %449 = vmatpush1.bf16.msra.mxu0 %v390
        %450 = vmatprep.subr.bf16.mxu0 0
        %451 = vmatpush1.bf16.msra.mxu0 0
        %452 = vmatprep.subr.bf16.mxu0 0
        %453 = vmatpush1.bf16.msra.mxu0 0
        %454 = vmatprep.subr.bf16.mxu0 0
        %455 = vmatpush1.bf16.msra.mxu0 0
        %456 = vmatprep.subr.bf16.mxu0 0
        %457 = vmatpush1.bf16.msra.mxu0 0
        %458 = vmatprep.subr.bf16.mxu0 0
        %459 = vmatpush1.bf16.msra.mxu0 0
        %460 = vmatprep.subr.bf16.mxu0 0
        %461 = vmatpush1.bf16.msra.mxu0 0
        %462 = vmatprep.subr.bf16.mxu0 0
        %463 = vmatpush1.bf16.msra.mxu0 0
        %464 = vmatprep.subr.bf16.mxu0 0
        %465 = vmatpush1.bf16.msra.mxu0 0
        %466 = vmatprep.subr.bf16.mxu0 0
        %467 = vmatpush1.bf16.msra.mxu0 0
        %468 = vmatprep.subr.bf16.mxu0 0
        %469 = vmatpush1.bf16.msra.mxu0 0
        %470 = vmatprep.subr.bf16.mxu0 0
        %471 = vmatpush1.bf16.msra.mxu0 0
        %472 = vmatprep.subr.bf16.mxu0 0
        %473 = vmatpush1.bf16.msra.mxu0 0
        %474 = vmatprep.subr.bf16.mxu0 0
        %475 = vmatpush1.bf16.msra.mxu0 0
        %476 = vmatprep.subr.bf16.mxu0 0
        %477 = vmatpush1.bf16.msra.mxu0 0
        %478 = vmatprep.mubr.bf16.mxu0 0
        %479 = vmatmul.mubr.bf16.gmra.mrb[0].mxu0 %v401
        %v480 = vpop.f32.mrb[0].mxu0
        %v481 = vadd.f32 %v350, %v480
        %v482 = vpop.f32.mrb[0].mxu0
        %v483 = vadd.f32 %v352, %v482
        %v484 = vpop.f32.mrb[0].mxu0
        %v485 = vadd.f32 %v354, %v484
        %v486 = vpop.f32.mrb[0].mxu0
        %v487 = vadd.f32 %v356, %v486
        %488 = vdwg.mxu0
        %s489 = scalar_lea.vmem %s1, 16
        %v490 = vld [vmem:[%s489] sm:$0xf]
        %v491 = vld [vmem:[%s489 + $0x4] sm:$0xf]
        %v494 = vunpack.c.l.b16 %v490
        %v495 = vunpack.c.l.b16 %v491
        %v496 = vpack.c.b16 %v495, %v494
        %497 = vrot.lane.b32.xlu0 %v221, 81
        %v498 = vpop.permute.xlu0 %497
        %499 = vrot.lane.b32.xlu0 %v222, 81
        %v500 = vpop.permute.xlu0 %499
        %501 = vrot.lane.b32.xlu0 %v223, 81
        %v502 = vpop.permute.xlu0 %501
        %503 = vrot.lane.b32.xlu0 %v224, 81
        %v504 = vpop.permute.xlu0 %503
        %505 = vrot.lane.b32.xlu0 %v225, 81
        %v506 = vpop.permute.xlu0 %505
        %507 = vrot.lane.b32.xlu0 %v226, 81
        %v508 = vpop.permute.xlu0 %507
        %509 = vrot.lane.b32.xlu0 %v227, 81
        %v510 = vpop.permute.xlu0 %509
        %511 = vrot.lane.b32.xlu0 %v228, 81
        %v512 = vpop.permute.xlu0 %511
        %513 = vrot.lane.b32.xlu0 %v229, 81
        %v514 = vpop.permute.xlu0 %513
        %515 = vrot.lane.b32.xlu0 %v230, 81
        %v516 = vpop.permute.xlu0 %515
        %vm517 = vcmask 662528
        %v518 = vsel %vm517, %v498, %v500
        %v519 = vsel %vm517, %v500, %v502
        %v520 = vsel %vm517, %v502, %v504
        %v521 = vsel %vm517, %v504, %v506
        %v522 = vsel %vm517, %v508, %v510
        %v523 = vsel %vm517, %v510, %v512
        %v524 = vsel %vm517, %v512, %v514
        %v525 = vsel %vm517, %v514, %v516
        %v535 = vsel %vm268, %v496, 0
        %537 = vmatprep.subr.bf16.mxu0 %v519
        %538 = vmatpush1.bf16.msra.mxu0 %v518
        %539 = vmatprep.subr.bf16.mxu0 %v523
        %540 = vmatpush1.bf16.msra.mxu0 %v522
        %541 = vmatprep.subr.bf16.mxu0 0
        %542 = vmatpush1.bf16.msra.mxu0 0
        %543 = vmatprep.subr.bf16.mxu0 0
        %544 = vmatpush1.bf16.msra.mxu0 0
        %545 = vmatprep.subr.bf16.mxu0 0
        %546 = vmatpush1.bf16.msra.mxu0 0
        %547 = vmatprep.subr.bf16.mxu0 0
        %548 = vmatpush1.bf16.msra.mxu0 0
        %549 = vmatprep.subr.bf16.mxu0 0
        %550 = vmatpush1.bf16.msra.mxu0 0
        %551 = vmatprep.subr.bf16.mxu0 0
        %552 = vmatpush1.bf16.msra.mxu0 0
        %553 = vmatprep.subr.bf16.mxu0 0
        %554 = vmatpush1.bf16.msra.mxu0 0
        %555 = vmatprep.subr.bf16.mxu0 0
        %556 = vmatpush1.bf16.msra.mxu0 0
        %557 = vmatprep.subr.bf16.mxu0 0
        %558 = vmatpush1.bf16.msra.mxu0 0
        %559 = vmatprep.subr.bf16.mxu0 0
        %560 = vmatpush1.bf16.msra.mxu0 0
        %561 = vmatprep.subr.bf16.mxu0 0
        %562 = vmatpush1.bf16.msra.mxu0 0
        %563 = vmatprep.subr.bf16.mxu0 0
        %564 = vmatpush1.bf16.msra.mxu0 0
        %565 = vmatprep.subr.bf16.mxu0 0
        %566 = vmatpush1.bf16.msra.mxu0 0
        %567 = vmatprep.subr.bf16.mxu0 0
        %568 = vmatpush1.bf16.msra.mxu0 0
        %569 = vmatprep.mubr.bf16.mxu0 0
        %570 = vmatmul.mubr.bf16.gmra.mrb[0].mxu0 %v535
        %v571 = vpop.f32.mrb[0].mxu0
        %v572 = vadd.f32 0.0, %v571
        %v573 = vpop.f32.mrb[0].mxu0
        %v574 = vadd.f32 0.0, %v573
        %v575 = vpop.f32.mrb[0].mxu0
        %v576 = vadd.f32 0.0, %v575
        %v577 = vpop.f32.mrb[0].mxu0
        %v578 = vadd.f32 0.0, %v577
        %579 = vdwg.mxu0
        %580 = vmatprep.subr.bf16.mxu0 %v521
        %581 = vmatpush1.bf16.msra.mxu0 %v520
        %582 = vmatprep.subr.bf16.mxu0 %v525
        %583 = vmatpush1.bf16.msra.mxu0 %v524
        %584 = vmatprep.subr.bf16.mxu0 0
        %585 = vmatpush1.bf16.msra.mxu0 0
        %586 = vmatprep.subr.bf16.mxu0 0
        %587 = vmatpush1.bf16.msra.mxu0 0
        %588 = vmatprep.subr.bf16.mxu0 0
        %589 = vmatpush1.bf16.msra.mxu0 0
        %590 = vmatprep.subr.bf16.mxu0 0
        %591 = vmatpush1.bf16.msra.mxu0 0
        %592 = vmatprep.subr.bf16.mxu0 0
        %593 = vmatpush1.bf16.msra.mxu0 0
        %594 = vmatprep.subr.bf16.mxu0 0
        %595 = vmatpush1.bf16.msra.mxu0 0
        %596 = vmatprep.subr.bf16.mxu0 0
        %597 = vmatpush1.bf16.msra.mxu0 0
        %598 = vmatprep.subr.bf16.mxu0 0
        %599 = vmatpush1.bf16.msra.mxu0 0
        %600 = vmatprep.subr.bf16.mxu0 0
        %601 = vmatpush1.bf16.msra.mxu0 0
        %602 = vmatprep.subr.bf16.mxu0 0
        %603 = vmatpush1.bf16.msra.mxu0 0
        %604 = vmatprep.subr.bf16.mxu0 0
        %605 = vmatpush1.bf16.msra.mxu0 0
        %606 = vmatprep.subr.bf16.mxu0 0
        %607 = vmatpush1.bf16.msra.mxu0 0
        %608 = vmatprep.subr.bf16.mxu0 0
        %609 = vmatpush1.bf16.msra.mxu0 0
        %610 = vmatprep.subr.bf16.mxu0 0
        %611 = vmatpush1.bf16.msra.mxu0 0
        %612 = vmatprep.mubr.bf16.mxu0 0
        %613 = vmatmul.mubr.bf16.gmra.mrb[0].mxu0 %v535
        %v614 = vpop.f32.mrb[0].mxu0
        %v615 = vadd.f32 0.0, %v614
        %v616 = vpop.f32.mrb[0].mxu0
        %v617 = vadd.f32 0.0, %v616
        %v618 = vpop.f32.mrb[0].mxu0
        %v619 = vadd.f32 0.0, %v618
        %v620 = vpop.f32.mrb[0].mxu0
        %v621 = vadd.f32 0.0, %v620
        %622 = vdwg.mxu0
        %v623 = vadd.f32 %v438, %v572
        %v624 = vadd.f32 %v440, %v574
        %v625 = vadd.f32 %v481, %v615
        %v626 = vadd.f32 %v483, %v617
        %v627 = vadd.f32 %v442, %v576
        %v628 = vadd.f32 %v444, %v578
        %v629 = vadd.f32 %v485, %v619
        %v630 = vadd.f32 %v487, %v621
        %s631 = scalar_lea.vmem %s1, 24
        %v632 = vld [vmem:[%s631] sm:$0xf]
        %v633 = vld [vmem:[%s631 + $0x4] sm:$0xf]
        %v636 = vunpack.c.l.b16 %v632
        %v637 = vunpack.c.l.b16 %v633
        %v638 = vpack.c.b16 %v637, %v636
        %639 = vrot.lane.b32.xlu0 %v221, 65
        %v640 = vpop.permute.xlu0 %639
        %641 = vrot.lane.b32.xlu0 %v222, 65
        %v642 = vpop.permute.xlu0 %641
        %643 = vrot.lane.b32.xlu0 %v223, 65
        %v644 = vpop.permute.xlu0 %643
        %645 = vrot.lane.b32.xlu0 %v224, 65
        %v646 = vpop.permute.xlu0 %645
        %647 = vrot.lane.b32.xlu0 %v225, 65
        %v648 = vpop.permute.xlu0 %647
        %649 = vrot.lane.b32.xlu0 %v226, 65
        %v650 = vpop.permute.xlu0 %649
        %651 = vrot.lane.b32.xlu0 %v227, 65
        %v652 = vpop.permute.xlu0 %651
        %653 = vrot.lane.b32.xlu0 %v228, 65
        %v654 = vpop.permute.xlu0 %653
        %655 = vrot.lane.b32.xlu0 %v229, 65
        %v656 = vpop.permute.xlu0 %655
        %657 = vrot.lane.b32.xlu0 %v230, 65
        %v658 = vpop.permute.xlu0 %657
        %vm659 = vcmask 531456
        %v660 = vsel %vm659, %v640, %v642
        %v661 = vsel %vm659, %v642, %v644
        %v662 = vsel %vm659, %v644, %v646
        %v663 = vsel %vm659, %v646, %v648
        %v664 = vsel %vm659, %v650, %v652
        %v665 = vsel %vm659, %v652, %v654
        %v666 = vsel %vm659, %v654, %v656
        %v667 = vsel %vm659, %v656, %v658
        %v677 = vsel %vm268, %v638, 0
        %679 = vmatprep.subr.bf16.mxu0 %v661
        %680 = vmatpush1.bf16.msra.mxu0 %v660
        %681 = vmatprep.subr.bf16.mxu0 %v665
        %682 = vmatpush1.bf16.msra.mxu0 %v664
        %683 = vmatprep.subr.bf16.mxu0 0
        %684 = vmatpush1.bf16.msra.mxu0 0
        %685 = vmatprep.subr.bf16.mxu0 0
        %686 = vmatpush1.bf16.msra.mxu0 0
        %687 = vmatprep.subr.bf16.mxu0 0
        %688 = vmatpush1.bf16.msra.mxu0 0
        %689 = vmatprep.subr.bf16.mxu0 0
        %690 = vmatpush1.bf16.msra.mxu0 0
        %691 = vmatprep.subr.bf16.mxu0 0
        %692 = vmatpush1.bf16.msra.mxu0 0
        %693 = vmatprep.subr.bf16.mxu0 0
        %694 = vmatpush1.bf16.msra.mxu0 0
        %695 = vmatprep.subr.bf16.mxu0 0
        %696 = vmatpush1.bf16.msra.mxu0 0
        %697 = vmatprep.subr.bf16.mxu0 0
        %698 = vmatpush1.bf16.msra.mxu0 0
        %699 = vmatprep.subr.bf16.mxu0 0
        %700 = vmatpush1.bf16.msra.mxu0 0
        %701 = vmatprep.subr.bf16.mxu0 0
        %702 = vmatpush1.bf16.msra.mxu0 0
        %703 = vmatprep.subr.bf16.mxu0 0
        %704 = vmatpush1.bf16.msra.mxu0 0
        %705 = vmatprep.subr.bf16.mxu0 0
        %706 = vmatpush1.bf16.msra.mxu0 0
        %707 = vmatprep.subr.bf16.mxu0 0
        %708 = vmatpush1.bf16.msra.mxu0 0
        %709 = vmatprep.subr.bf16.mxu0 0
        %710 = vmatpush1.bf16.msra.mxu0 0
        %711 = vmatprep.mubr.bf16.mxu0 0
        %712 = vmatmul.mubr.bf16.gmra.mrb[0].mxu0 %v677
        %v713 = vpop.f32.mrb[0].mxu0
        %v714 = vadd.f32 0.0, %v713
        %v715 = vpop.f32.mrb[0].mxu0
        %v716 = vadd.f32 0.0, %v715
        %v717 = vpop.f32.mrb[0].mxu0
        %v718 = vadd.f32 0.0, %v717
        %v719 = vpop.f32.mrb[0].mxu0
        %v720 = vadd.f32 0.0, %v719
        %721 = vdwg.mxu0
        %722 = vmatprep.subr.bf16.mxu0 %v663
        %723 = vmatpush1.bf16.msra.mxu0 %v662
        %724 = vmatprep.subr.bf16.mxu0 %v667
        %725 = vmatpush1.bf16.msra.mxu0 %v666
        %726 = vmatprep.subr.bf16.mxu0 0
        %727 = vmatpush1.bf16.msra.mxu0 0
        %728 = vmatprep.subr.bf16.mxu0 0
        %729 = vmatpush1.bf16.msra.mxu0 0
        %730 = vmatprep.subr.bf16.mxu0 0
        %731 = vmatpush1.bf16.msra.mxu0 0
        %732 = vmatprep.subr.bf16.mxu0 0
        %733 = vmatpush1.bf16.msra.mxu0 0
        %734 = vmatprep.subr.bf16.mxu0 0
        %735 = vmatpush1.bf16.msra.mxu0 0
        %736 = vmatprep.subr.bf16.mxu0 0
        %737 = vmatpush1.bf16.msra.mxu0 0
        %738 = vmatprep.subr.bf16.mxu0 0
        %739 = vmatpush1.bf16.msra.mxu0 0
        %740 = vmatprep.subr.bf16.mxu0 0
        %741 = vmatpush1.bf16.msra.mxu0 0
        %742 = vmatprep.subr.bf16.mxu0 0
        %743 = vmatpush1.bf16.msra.mxu0 0
        %744 = vmatprep.subr.bf16.mxu0 0
        %745 = vmatpush1.bf16.msra.mxu0 0
        %746 = vmatprep.subr.bf16.mxu0 0
        %747 = vmatpush1.bf16.msra.mxu0 0
        %748 = vmatprep.subr.bf16.mxu0 0
        %749 = vmatpush1.bf16.msra.mxu0 0
        %750 = vmatprep.subr.bf16.mxu0 0
        %751 = vmatpush1.bf16.msra.mxu0 0
        %752 = vmatprep.subr.bf16.mxu0 0
        %753 = vmatpush1.bf16.msra.mxu0 0
        %754 = vmatprep.mubr.bf16.mxu0 0
        %755 = vmatmul.mubr.bf16.gmra.mrb[0].mxu0 %v677
        %v756 = vpop.f32.mrb[0].mxu0
        %v757 = vadd.f32 0.0, %v756
        %v758 = vpop.f32.mrb[0].mxu0
        %v759 = vadd.f32 0.0, %v758
        %v760 = vpop.f32.mrb[0].mxu0
        %v761 = vadd.f32 0.0, %v760
        %v762 = vpop.f32.mrb[0].mxu0
        %v763 = vadd.f32 0.0, %v762
        %764 = vdwg.mxu0
        %v765 = vadd.f32 %v623, %v714
        %v766 = vadd.f32 %v624, %v716
        %v767 = vadd.f32 %v625, %v757
        %v768 = vadd.f32 %v626, %v759
        %v769 = vadd.f32 %v627, %v718
        %v770 = vadd.f32 %v628, %v720
        %v771 = vadd.f32 %v629, %v761
        %v772 = vadd.f32 %v630, %v763
        %s773 = scalar_lea.vmem %s1, 32
        %v774 = vld [vmem:[%s773] sm:$0xf]
        %v775 = vld [vmem:[%s773 + $0x4] sm:$0xf]
        %v778 = vunpack.c.l.b16 %v774
        %v779 = vunpack.c.l.b16 %v775
        %v780 = vpack.c.b16 %v779, %v778
        %781 = vrot.lane.b32.xlu0 %v221, 64
        %v782 = vpop.permute.xlu0 %781
        %783 = vrot.lane.b32.xlu0 %v222, 64
        %v784 = vpop.permute.xlu0 %783
        %785 = vrot.lane.b32.xlu0 %v223, 64
        %v786 = vpop.permute.xlu0 %785
        %787 = vrot.lane.b32.xlu0 %v224, 64
        %v788 = vpop.permute.xlu0 %787
        %789 = vrot.lane.b32.xlu0 %v225, 64
        %v790 = vpop.permute.xlu0 %789
        %791 = vrot.lane.b32.xlu0 %v226, 64
        %v792 = vpop.permute.xlu0 %791
        %793 = vrot.lane.b32.xlu0 %v227, 64
        %v794 = vpop.permute.xlu0 %793
        %795 = vrot.lane.b32.xlu0 %v228, 64
        %v796 = vpop.permute.xlu0 %795
        %797 = vrot.lane.b32.xlu0 %v229, 64
        %v798 = vpop.permute.xlu0 %797
        %799 = vrot.lane.b32.xlu0 %v230, 64
        %v800 = vpop.permute.xlu0 %799
        %vm801 = vcmask 523264
        %v802 = vsel %vm801, %v782, %v784
        %v803 = vsel %vm801, %v784, %v786
        %v804 = vsel %vm801, %v786, %v788
        %v805 = vsel %vm801, %v788, %v790
        %v806 = vsel %vm801, %v792, %v794
        %v807 = vsel %vm801, %v794, %v796
        %v808 = vsel %vm801, %v796, %v798
        %v809 = vsel %vm801, %v798, %v800
        %v819 = vsel %vm268, %v780, 0
        %821 = vmatprep.subr.bf16.mxu0 %v803
        %822 = vmatpush1.bf16.msra.mxu0 %v802
        %823 = vmatprep.subr.bf16.mxu0 %v807
        %824 = vmatpush1.bf16.msra.mxu0 %v806
        %825 = vmatprep.subr.bf16.mxu0 0
        %826 = vmatpush1.bf16.msra.mxu0 0
        %827 = vmatprep.subr.bf16.mxu0 0
        %828 = vmatpush1.bf16.msra.mxu0 0
        %829 = vmatprep.subr.bf16.mxu0 0
        %830 = vmatpush1.bf16.msra.mxu0 0
        %831 = vmatprep.subr.bf16.mxu0 0
        %832 = vmatpush1.bf16.msra.mxu0 0
        %833 = vmatprep.subr.bf16.mxu0 0
        %834 = vmatpush1.bf16.msra.mxu0 0
        %835 = vmatprep.subr.bf16.mxu0 0
        %836 = vmatpush1.bf16.msra.mxu0 0
        %837 = vmatprep.subr.bf16.mxu0 0
        %838 = vmatpush1.bf16.msra.mxu0 0
        %839 = vmatprep.subr.bf16.mxu0 0
        %840 = vmatpush1.bf16.msra.mxu0 0
        %841 = vmatprep.subr.bf16.mxu0 0
        %842 = vmatpush1.bf16.msra.mxu0 0
        %843 = vmatprep.subr.bf16.mxu0 0
        %844 = vmatpush1.bf16.msra.mxu0 0
        %845 = vmatprep.subr.bf16.mxu0 0
        %846 = vmatpush1.bf16.msra.mxu0 0
        %847 = vmatprep.subr.bf16.mxu0 0
        %848 = vmatpush1.bf16.msra.mxu0 0
        %849 = vmatprep.subr.bf16.mxu0 0
        %850 = vmatpush1.bf16.msra.mxu0 0
        %851 = vmatprep.subr.bf16.mxu0 0
        %852 = vmatpush1.bf16.msra.mxu0 0
        %853 = vmatprep.mubr.bf16.mxu0 0
        %854 = vmatmul.mubr.bf16.gmra.mrb[0].mxu0 %v819
        %v855 = vpop.f32.mrb[0].mxu0
        %v856 = vadd.f32 0.0, %v855
        %v857 = vpop.f32.mrb[0].mxu0
        %v858 = vadd.f32 0.0, %v857
        %v859 = vpop.f32.mrb[0].mxu0
        %v860 = vadd.f32 0.0, %v859
        %v861 = vpop.f32.mrb[0].mxu0
        %v862 = vadd.f32 0.0, %v861
        %863 = vdwg.mxu0
        %864 = vmatprep.subr.bf16.mxu0 %v805
        %865 = vmatpush1.bf16.msra.mxu0 %v804
        %866 = vmatprep.subr.bf16.mxu0 %v809
        %867 = vmatpush1.bf16.msra.mxu0 %v808
        %868 = vmatprep.subr.bf16.mxu0 0
        %869 = vmatpush1.bf16.msra.mxu0 0
        %870 = vmatprep.subr.bf16.mxu0 0
        %871 = vmatpush1.bf16.msra.mxu0 0
        %872 = vmatprep.subr.bf16.mxu0 0
        %873 = vmatpush1.bf16.msra.mxu0 0
        %874 = vmatprep.subr.bf16.mxu0 0
        %875 = vmatpush1.bf16.msra.mxu0 0
        %876 = vmatprep.subr.bf16.mxu0 0
        %877 = vmatpush1.bf16.msra.mxu0 0
        %878 = vmatprep.subr.bf16.mxu0 0
        %879 = vmatpush1.bf16.msra.mxu0 0
        %880 = vmatprep.subr.bf16.mxu0 0
        %881 = vmatpush1.bf16.msra.mxu0 0
        %882 = vmatprep.subr.bf16.mxu0 0
        %883 = vmatpush1.bf16.msra.mxu0 0
        %884 = vmatprep.subr.bf16.mxu0 0
        %885 = vmatpush1.bf16.msra.mxu0 0
        %886 = vmatprep.subr.bf16.mxu0 0
        %887 = vmatpush1.bf16.msra.mxu0 0
        %888 = vmatprep.subr.bf16.mxu0 0
        %889 = vmatpush1.bf16.msra.mxu0 0
        %890 = vmatprep.subr.bf16.mxu0 0
        %891 = vmatpush1.bf16.msra.mxu0 0
        %892 = vmatprep.subr.bf16.mxu0 0
        %893 = vmatpush1.bf16.msra.mxu0 0
        %894 = vmatprep.subr.bf16.mxu0 0
        %895 = vmatpush1.bf16.msra.mxu0 0
        %896 = vmatprep.mubr.bf16.mxu0 0
        %897 = vmatmul.mubr.bf16.gmra.mrb[0].mxu0 %v819
        %v898 = vpop.f32.mrb[0].mxu0
        %v899 = vadd.f32 0.0, %v898
        %v900 = vpop.f32.mrb[0].mxu0
        %v901 = vadd.f32 0.0, %v900
        %v902 = vpop.f32.mrb[0].mxu0
        %v903 = vadd.f32 0.0, %v902
        %v904 = vpop.f32.mrb[0].mxu0
        %v905 = vadd.f32 0.0, %v904
        %906 = vdwg.mxu0
        %v907 = vadd.f32 %v765, %v856
        %v908 = vadd.f32 %v766, %v858
        %v909 = vadd.f32 %v767, %v899
        %v910 = vadd.f32 %v768, %v901
        %v911 = vadd.f32 %v769, %v860
        %v912 = vadd.f32 %v770, %v862
        %v913 = vadd.f32 %v771, %v903
        %v914 = vadd.f32 %v772, %v905
        %s915 = scalar_lea.vmem %s1, 40
        %v916 = vld [vmem:[%s915] sm:$0xf]
        %v917 = vld [vmem:[%s915 + $0x4] sm:$0xf]
        %v920 = vunpack.c.l.b16 %v916
        %v921 = vunpack.c.l.b16 %v917
        %v922 = vpack.c.b16 %v921, %v920
        %923 = vrot.lane.b32.xlu0 %v221, 63
        %v924 = vpop.permute.xlu0 %923
        %925 = vrot.lane.b32.xlu0 %v222, 63
        %v926 = vpop.permute.xlu0 %925
        %927 = vrot.lane.b32.xlu0 %v223, 63
        %v928 = vpop.permute.xlu0 %927
        %929 = vrot.lane.b32.xlu0 %v224, 63
        %v930 = vpop.permute.xlu0 %929
        %931 = vrot.lane.b32.xlu0 %v225, 63
        %v932 = vpop.permute.xlu0 %931
        %933 = vrot.lane.b32.xlu0 %v226, 63
        %v934 = vpop.permute.xlu0 %933
        %935 = vrot.lane.b32.xlu0 %v227, 63
        %v936 = vpop.permute.xlu0 %935
        %937 = vrot.lane.b32.xlu0 %v228, 63
        %v938 = vpop.permute.xlu0 %937
        %939 = vrot.lane.b32.xlu0 %v229, 63
        %v940 = vpop.permute.xlu0 %939
        %941 = vrot.lane.b32.xlu0 %v230, 63
        %v942 = vpop.permute.xlu0 %941
        %vm943 = vcmask 515072
        %v944 = vsel %vm943, %v924, %v926
        %v945 = vsel %vm943, %v926, %v928
        %v946 = vsel %vm943, %v928, %v930
        %v947 = vsel %vm943, %v930, %v932
        %v948 = vsel %vm943, %v934, %v936
        %v949 = vsel %vm943, %v936, %v938
        %v950 = vsel %vm943, %v938, %v940
        %v951 = vsel %vm943, %v940, %v942
        %v961 = vsel %vm268, %v922, 0
        %963 = vmatprep.subr.bf16.mxu0 %v945
        %964 = vmatpush1.bf16.msra.mxu0 %v944
        %965 = vmatprep.subr.bf16.mxu0 %v949
        %966 = vmatpush1.bf16.msra.mxu0 %v948
        %967 = vmatprep.subr.bf16.mxu0 0
        %968 = vmatpush1.bf16.msra.mxu0 0
        %969 = vmatprep.subr.bf16.mxu0 0
        %970 = vmatpush1.bf16.msra.mxu0 0
        %971 = vmatprep.subr.bf16.mxu0 0
        %972 = vmatpush1.bf16.msra.mxu0 0
        %973 = vmatprep.subr.bf16.mxu0 0
        %974 = vmatpush1.bf16.msra.mxu0 0
        %975 = vmatprep.subr.bf16.mxu0 0
        %976 = vmatpush1.bf16.msra.mxu0 0
        %977 = vmatprep.subr.bf16.mxu0 0
        %978 = vmatpush1.bf16.msra.mxu0 0
        %979 = vmatprep.subr.bf16.mxu0 0
        %980 = vmatpush1.bf16.msra.mxu0 0
        %981 = vmatprep.subr.bf16.mxu0 0
        %982 = vmatpush1.bf16.msra.mxu0 0
        %983 = vmatprep.subr.bf16.mxu0 0
        %984 = vmatpush1.bf16.msra.mxu0 0
        %985 = vmatprep.subr.bf16.mxu0 0
        %986 = vmatpush1.bf16.msra.mxu0 0
        %987 = vmatprep.subr.bf16.mxu0 0
        %988 = vmatpush1.bf16.msra.mxu0 0
        %989 = vmatprep.subr.bf16.mxu0 0
        %990 = vmatpush1.bf16.msra.mxu0 0
        %991 = vmatprep.subr.bf16.mxu0 0
        %992 = vmatpush1.bf16.msra.mxu0 0
        %993 = vmatprep.subr.bf16.mxu0 0
        %994 = vmatpush1.bf16.msra.mxu0 0
        %995 = vmatprep.mubr.bf16.mxu0 0
        %996 = vmatmul.mubr.bf16.gmra.mrb[0].mxu0 %v961
        %v997 = vpop.f32.mrb[0].mxu0
        %v998 = vadd.f32 0.0, %v997
        %v999 = vpop.f32.mrb[0].mxu0
        %v1000 = vadd.f32 0.0, %v999
        %v1001 = vpop.f32.mrb[0].mxu0
        %v1002 = vadd.f32 0.0, %v1001
        %v1003 = vpop.f32.mrb[0].mxu0
        %v1004 = vadd.f32 0.0, %v1003
        %1005 = vdwg.mxu0
        %1006 = vmatprep.subr.bf16.mxu0 %v947
        %1007 = vmatpush1.bf16.msra.mxu0 %v946
        %1008 = vmatprep.subr.bf16.mxu0 %v951
        %1009 = vmatpush1.bf16.msra.mxu0 %v950
        %1010 = vmatprep.subr.bf16.mxu0 0
        %1011 = vmatpush1.bf16.msra.mxu0 0
        %1012 = vmatprep.subr.bf16.mxu0 0
        %1013 = vmatpush1.bf16.msra.mxu0 0
        %1014 = vmatprep.subr.bf16.mxu0 0
        %1015 = vmatpush1.bf16.msra.mxu0 0
        %1016 = vmatprep.subr.bf16.mxu0 0
        %1017 = vmatpush1.bf16.msra.mxu0 0
        %1018 = vmatprep.subr.bf16.mxu0 0
        %1019 = vmatpush1.bf16.msra.mxu0 0
        %1020 = vmatprep.subr.bf16.mxu0 0
        %1021 = vmatpush1.bf16.msra.mxu0 0
        %1022 = vmatprep.subr.bf16.mxu0 0
        %1023 = vmatpush1.bf16.msra.mxu0 0
        %1024 = vmatprep.subr.bf16.mxu0 0
        %1025 = vmatpush1.bf16.msra.mxu0 0
        %1026 = vmatprep.subr.bf16.mxu0 0
        %1027 = vmatpush1.bf16.msra.mxu0 0
        %1028 = vmatprep.subr.bf16.mxu0 0
        %1029 = vmatpush1.bf16.msra.mxu0 0
        %1030 = vmatprep.subr.bf16.mxu0 0
        %1031 = vmatpush1.bf16.msra.mxu0 0
        %1032 = vmatprep.subr.bf16.mxu0 0
        %1033 = vmatpush1.bf16.msra.mxu0 0
        %1034 = vmatprep.subr.bf16.mxu0 0
        %1035 = vmatpush1.bf16.msra.mxu0 0
        %1036 = vmatprep.subr.bf16.mxu0 0
        %1037 = vmatpush1.bf16.msra.mxu0 0
        %1038 = vmatprep.mubr.bf16.mxu0 0
        %1039 = vmatmul.mubr.bf16.gmra.mrb[0].mxu0 %v961
        %v1040 = vpop.f32.mrb[0].mxu0
        %v1041 = vadd.f32 0.0, %v1040
        %v1042 = vpop.f32.mrb[0].mxu0
        %v1043 = vadd.f32 0.0, %v1042
        %v1044 = vpop.f32.mrb[0].mxu0
        %v1045 = vadd.f32 0.0, %v1044
        %v1046 = vpop.f32.mrb[0].mxu0
        %v1047 = vadd.f32 0.0, %v1046
        %1048 = vdwg.mxu0
        %v1049 = vadd.f32 %v907, %v998
        %v1050 = vadd.f32 %v908, %v1000
        %v1051 = vadd.f32 %v909, %v1041
        %v1052 = vadd.f32 %v910, %v1043
        %v1053 = vadd.f32 %v911, %v1002
        %v1054 = vadd.f32 %v912, %v1004
        %v1055 = vadd.f32 %v913, %v1045
        %v1056 = vadd.f32 %v914, %v1047
        %s1057 = scalar_lea.vmem %s1, 48
        %v1058 = vld [vmem:[%s1057] sm:$0xf]
        %v1059 = vld [vmem:[%s1057 + $0x4] sm:$0xf]
        %v1062 = vunpack.c.l.b16 %v1058
        %v1063 = vunpack.c.l.b16 %v1059
        %v1064 = vpack.c.b16 %v1063, %v1062
        %1065 = vrot.lane.b32.xlu0 %v221, 47
        %v1066 = vpop.permute.xlu0 %1065
        %1067 = vrot.lane.b32.xlu0 %v222, 47
        %v1068 = vpop.permute.xlu0 %1067
        %1069 = vrot.lane.b32.xlu0 %v223, 47
        %v1070 = vpop.permute.xlu0 %1069
        %1071 = vrot.lane.b32.xlu0 %v224, 47
        %v1072 = vpop.permute.xlu0 %1071
        %1073 = vrot.lane.b32.xlu0 %v225, 47
        %v1074 = vpop.permute.xlu0 %1073
        %1075 = vrot.lane.b32.xlu0 %v226, 47
        %v1076 = vpop.permute.xlu0 %1075
        %1077 = vrot.lane.b32.xlu0 %v227, 47
        %v1078 = vpop.permute.xlu0 %1077
        %1079 = vrot.lane.b32.xlu0 %v228, 47
        %v1080 = vpop.permute.xlu0 %1079
        %1081 = vrot.lane.b32.xlu0 %v229, 47
        %v1082 = vpop.permute.xlu0 %1081
        %1083 = vrot.lane.b32.xlu0 %v230, 47
        %v1084 = vpop.permute.xlu0 %1083
        %vm1085 = vcmask 384000
        %v1086 = vsel %vm1085, %v1066, %v1068
        %v1087 = vsel %vm1085, %v1068, %v1070
        %v1088 = vsel %vm1085, %v1070, %v1072
        %v1089 = vsel %vm1085, %v1072, %v1074
        %v1090 = vsel %vm1085, %v1076, %v1078
        %v1091 = vsel %vm1085, %v1078, %v1080
        %v1092 = vsel %vm1085, %v1080, %v1082
        %v1093 = vsel %vm1085, %v1082, %v1084
        %v1103 = vsel %vm268, %v1064, 0
        %1105 = vmatprep.subr.bf16.mxu0 %v1087
        %1106 = vmatpush1.bf16.msra.mxu0 %v1086
        %1107 = vmatprep.subr.bf16.mxu0 %v1091
        %1108 = vmatpush1.bf16.msra.mxu0 %v1090
        %1109 = vmatprep.subr.bf16.mxu0 0
        %1110 = vmatpush1.bf16.msra.mxu0 0
        %1111 = vmatprep.subr.bf16.mxu0 0
        %1112 = vmatpush1.bf16.msra.mxu0 0
        %1113 = vmatprep.subr.bf16.mxu0 0
        %1114 = vmatpush1.bf16.msra.mxu0 0
        %1115 = vmatprep.subr.bf16.mxu0 0
        %1116 = vmatpush1.bf16.msra.mxu0 0
        %1117 = vmatprep.subr.bf16.mxu0 0
        %1118 = vmatpush1.bf16.msra.mxu0 0
        %1119 = vmatprep.subr.bf16.mxu0 0
        %1120 = vmatpush1.bf16.msra.mxu0 0
        %1121 = vmatprep.subr.bf16.mxu0 0
        %1122 = vmatpush1.bf16.msra.mxu0 0
        %1123 = vmatprep.subr.bf16.mxu0 0
        %1124 = vmatpush1.bf16.msra.mxu0 0
        %1125 = vmatprep.subr.bf16.mxu0 0
        %1126 = vmatpush1.bf16.msra.mxu0 0
        %1127 = vmatprep.subr.bf16.mxu0 0
        %1128 = vmatpush1.bf16.msra.mxu0 0
        %1129 = vmatprep.subr.bf16.mxu0 0
        %1130 = vmatpush1.bf16.msra.mxu0 0
        %1131 = vmatprep.subr.bf16.mxu0 0
        %1132 = vmatpush1.bf16.msra.mxu0 0
        %1133 = vmatprep.subr.bf16.mxu0 0
        %1134 = vmatpush1.bf16.msra.mxu0 0
        %1135 = vmatprep.subr.bf16.mxu0 0
        %1136 = vmatpush1.bf16.msra.mxu0 0
        %1137 = vmatprep.mubr.bf16.mxu0 0
        %1138 = vmatmul.mubr.bf16.gmra.mrb[0].mxu0 %v1103
        %v1139 = vpop.f32.mrb[0].mxu0
        %v1140 = vadd.f32 0.0, %v1139
        %v1141 = vpop.f32.mrb[0].mxu0
        %v1142 = vadd.f32 0.0, %v1141
        %v1143 = vpop.f32.mrb[0].mxu0
        %v1144 = vadd.f32 0.0, %v1143
        %v1145 = vpop.f32.mrb[0].mxu0
        %v1146 = vadd.f32 0.0, %v1145
        %1147 = vdwg.mxu0
        %1148 = vmatprep.subr.bf16.mxu0 %v1089
        %1149 = vmatpush1.bf16.msra.mxu0 %v1088
        %1150 = vmatprep.subr.bf16.mxu0 %v1093
        %1151 = vmatpush1.bf16.msra.mxu0 %v1092
        %1152 = vmatprep.subr.bf16.mxu0 0
        %1153 = vmatpush1.bf16.msra.mxu0 0
        %1154 = vmatprep.subr.bf16.mxu0 0
        %1155 = vmatpush1.bf16.msra.mxu0 0
        %1156 = vmatprep.subr.bf16.mxu0 0
        %1157 = vmatpush1.bf16.msra.mxu0 0
        %1158 = vmatprep.subr.bf16.mxu0 0
        %1159 = vmatpush1.bf16.msra.mxu0 0
        %1160 = vmatprep.subr.bf16.mxu0 0
        %1161 = vmatpush1.bf16.msra.mxu0 0
        %1162 = vmatprep.subr.bf16.mxu0 0
        %1163 = vmatpush1.bf16.msra.mxu0 0
        %1164 = vmatprep.subr.bf16.mxu0 0
        %1165 = vmatpush1.bf16.msra.mxu0 0
        %1166 = vmatprep.subr.bf16.mxu0 0
        %1167 = vmatpush1.bf16.msra.mxu0 0
        %1168 = vmatprep.subr.bf16.mxu0 0
        %1169 = vmatpush1.bf16.msra.mxu0 0
        %1170 = vmatprep.subr.bf16.mxu0 0
        %1171 = vmatpush1.bf16.msra.mxu0 0
        %1172 = vmatprep.subr.bf16.mxu0 0
        %1173 = vmatpush1.bf16.msra.mxu0 0
        %1174 = vmatprep.subr.bf16.mxu0 0
        %1175 = vmatpush1.bf16.msra.mxu0 0
        %1176 = vmatprep.subr.bf16.mxu0 0
        %1177 = vmatpush1.bf16.msra.mxu0 0
        %1178 = vmatprep.subr.bf16.mxu0 0
        %1179 = vmatpush1.bf16.msra.mxu0 0
        %1180 = vmatprep.mubr.bf16.mxu0 0
        %1181 = vmatmul.mubr.bf16.gmra.mrb[0].mxu0 %v1103
        %v1182 = vpop.f32.mrb[0].mxu0
        %v1183 = vadd.f32 0.0, %v1182
        %v1184 = vpop.f32.mrb[0].mxu0
        %v1185 = vadd.f32 0.0, %v1184
        %v1186 = vpop.f32.mrb[0].mxu0
        %v1187 = vadd.f32 0.0, %v1186
        %v1188 = vpop.f32.mrb[0].mxu0
        %v1189 = vadd.f32 0.0, %v1188
        %1190 = vdwg.mxu0
        %v1191 = vadd.f32 %v1049, %v1140
        %v1192 = vadd.f32 %v1050, %v1142
        %v1193 = vadd.f32 %v1051, %v1183
        %v1194 = vadd.f32 %v1052, %v1185
        %v1195 = vadd.f32 %v1053, %v1144
        %v1196 = vadd.f32 %v1054, %v1146
        %v1197 = vadd.f32 %v1055, %v1187
        %v1198 = vadd.f32 %v1056, %v1189
        %s1199 = scalar_lea.vmem %s1, 56
        %v1200 = vld [vmem:[%s1199] sm:$0xf]
        %v1201 = vld [vmem:[%s1199 + $0x4] sm:$0xf]
        %v1204 = vunpack.c.l.b16 %v1200
        %v1205 = vunpack.c.l.b16 %v1201
        %v1206 = vpack.c.b16 %v1205, %v1204
        %1207 = vrot.lane.b32.xlu0 %v221, 46
        %v1208 = vpop.permute.xlu0 %1207
        %1209 = vrot.lane.b32.xlu0 %v222, 46
        %v1210 = vpop.permute.xlu0 %1209
        %1211 = vrot.lane.b32.xlu0 %v223, 46
        %v1212 = vpop.permute.xlu0 %1211
        %1213 = vrot.lane.b32.xlu0 %v224, 46
        %v1214 = vpop.permute.xlu0 %1213
        %1215 = vrot.lane.b32.xlu0 %v225, 46
        %v1216 = vpop.permute.xlu0 %1215
        %1217 = vrot.lane.b32.xlu0 %v226, 46
        %v1218 = vpop.permute.xlu0 %1217
        %1219 = vrot.lane.b32.xlu0 %v227, 46
        %v1220 = vpop.permute.xlu0 %1219
        %1221 = vrot.lane.b32.xlu0 %v228, 46
        %v1222 = vpop.permute.xlu0 %1221
        %1223 = vrot.lane.b32.xlu0 %v229, 46
        %v1224 = vpop.permute.xlu0 %1223
        %1225 = vrot.lane.b32.xlu0 %v230, 46
        %v1226 = vpop.permute.xlu0 %1225
        %vm1227 = vcmask 375808
        %v1228 = vsel %vm1227, %v1208, %v1210
        %v1229 = vsel %vm1227, %v1210, %v1212
        %v1230 = vsel %vm1227, %v1212, %v1214
        %v1231 = vsel %vm1227, %v1214, %v1216
        %v1232 = vsel %vm1227, %v1218, %v1220
        %v1233 = vsel %vm1227, %v1220, %v1222
        %v1234 = vsel %vm1227, %v1222, %v1224
        %v1235 = vsel %vm1227, %v1224, %v1226
        %v1245 = vsel %vm268, %v1206, 0
        %1247 = vmatprep.subr.bf16.mxu0 %v1229
        %1248 = vmatpush1.bf16.msra.mxu0 %v1228
        %1249 = vmatprep.subr.bf16.mxu0 %v1233
        %1250 = vmatpush1.bf16.msra.mxu0 %v1232
        %1251 = vmatprep.subr.bf16.mxu0 0
        %1252 = vmatpush1.bf16.msra.mxu0 0
        %1253 = vmatprep.subr.bf16.mxu0 0
        %1254 = vmatpush1.bf16.msra.mxu0 0
        %1255 = vmatprep.subr.bf16.mxu0 0
        %1256 = vmatpush1.bf16.msra.mxu0 0
        %1257 = vmatprep.subr.bf16.mxu0 0
        %1258 = vmatpush1.bf16.msra.mxu0 0
        %1259 = vmatprep.subr.bf16.mxu0 0
        %1260 = vmatpush1.bf16.msra.mxu0 0
        %1261 = vmatprep.subr.bf16.mxu0 0
        %1262 = vmatpush1.bf16.msra.mxu0 0
        %1263 = vmatprep.subr.bf16.mxu0 0
        %1264 = vmatpush1.bf16.msra.mxu0 0
        %1265 = vmatprep.subr.bf16.mxu0 0
        %1266 = vmatpush1.bf16.msra.mxu0 0
        %1267 = vmatprep.subr.bf16.mxu0 0
        %1268 = vmatpush1.bf16.msra.mxu0 0
        %1269 = vmatprep.subr.bf16.mxu0 0
        %1270 = vmatpush1.bf16.msra.mxu0 0
        %1271 = vmatprep.subr.bf16.mxu0 0
        %1272 = vmatpush1.bf16.msra.mxu0 0
        %1273 = vmatprep.subr.bf16.mxu0 0
        %1274 = vmatpush1.bf16.msra.mxu0 0
        %1275 = vmatprep.subr.bf16.mxu0 0
        %1276 = vmatpush1.bf16.msra.mxu0 0
        %1277 = vmatprep.subr.bf16.mxu0 0
        %1278 = vmatpush1.bf16.msra.mxu0 0
        %1279 = vmatprep.mubr.bf16.mxu0 0
        %1280 = vmatmul.mubr.bf16.gmra.mrb[0].mxu0 %v1245
        %v1281 = vpop.f32.mrb[0].mxu0
        %v1282 = vadd.f32 0.0, %v1281
        %v1283 = vpop.f32.mrb[0].mxu0
        %v1284 = vadd.f32 0.0, %v1283
        %v1285 = vpop.f32.mrb[0].mxu0
        %v1286 = vadd.f32 0.0, %v1285
        %v1287 = vpop.f32.mrb[0].mxu0
        %v1288 = vadd.f32 0.0, %v1287
        %1289 = vdwg.mxu0
        %1290 = vmatprep.subr.bf16.mxu0 %v1231
        %1291 = vmatpush1.bf16.msra.mxu0 %v1230
        %1292 = vmatprep.subr.bf16.mxu0 %v1235
        %1293 = vmatpush1.bf16.msra.mxu0 %v1234
        %1294 = vmatprep.subr.bf16.mxu0 0
        %1295 = vmatpush1.bf16.msra.mxu0 0
        %1296 = vmatprep.subr.bf16.mxu0 0
        %1297 = vmatpush1.bf16.msra.mxu0 0
        %1298 = vmatprep.subr.bf16.mxu0 0
        %1299 = vmatpush1.bf16.msra.mxu0 0
        %1300 = vmatprep.subr.bf16.mxu0 0
        %1301 = vmatpush1.bf16.msra.mxu0 0
        %1302 = vmatprep.subr.bf16.mxu0 0
        %1303 = vmatpush1.bf16.msra.mxu0 0
        %1304 = vmatprep.subr.bf16.mxu0 0
        %1305 = vmatpush1.bf16.msra.mxu0 0
        %1306 = vmatprep.subr.bf16.mxu0 0
        %1307 = vmatpush1.bf16.msra.mxu0 0
        %1308 = vmatprep.subr.bf16.mxu0 0
        %1309 = vmatpush1.bf16.msra.mxu0 0
        %1310 = vmatprep.subr.bf16.mxu0 0
        %1311 = vmatpush1.bf16.msra.mxu0 0
        %1312 = vmatprep.subr.bf16.mxu0 0
        %1313 = vmatpush1.bf16.msra.mxu0 0
        %1314 = vmatprep.subr.bf16.mxu0 0
        %1315 = vmatpush1.bf16.msra.mxu0 0
        %1316 = vmatprep.subr.bf16.mxu0 0
        %1317 = vmatpush1.bf16.msra.mxu0 0
        %1318 = vmatprep.subr.bf16.mxu0 0
        %1319 = vmatpush1.bf16.msra.mxu0 0
        %1320 = vmatprep.subr.bf16.mxu0 0
        %1321 = vmatpush1.bf16.msra.mxu0 0
        %1322 = vmatprep.mubr.bf16.mxu0 0
        %1323 = vmatmul.mubr.bf16.gmra.mrb[0].mxu0 %v1245
        %v1324 = vpop.f32.mrb[0].mxu0
        %v1325 = vadd.f32 0.0, %v1324
        %v1326 = vpop.f32.mrb[0].mxu0
        %v1327 = vadd.f32 0.0, %v1326
        %v1328 = vpop.f32.mrb[0].mxu0
        %v1329 = vadd.f32 0.0, %v1328
        %v1330 = vpop.f32.mrb[0].mxu0
        %v1331 = vadd.f32 0.0, %v1330
        %1332 = vdwg.mxu0
        %v1333 = vadd.f32 %v1191, %v1282
        %v1334 = vadd.f32 %v1192, %v1284
        %v1335 = vadd.f32 %v1193, %v1325
        %v1336 = vadd.f32 %v1194, %v1327
        %v1337 = vadd.f32 %v1195, %v1286
        %v1338 = vadd.f32 %v1196, %v1288
        %v1339 = vadd.f32 %v1197, %v1329
        %v1340 = vadd.f32 %v1198, %v1331
        %s1341 = scalar_lea.vmem %s1, 64
        %v1342 = vld [vmem:[%s1341] sm:$0xf]
        %v1343 = vld [vmem:[%s1341 + $0x4] sm:$0xf]
        %v1346 = vunpack.c.l.b16 %v1342
        %v1347 = vunpack.c.l.b16 %v1343
        %v1348 = vpack.c.b16 %v1347, %v1346
        %1349 = vrot.lane.b32.xlu0 %v221, 45
        %v1350 = vpop.permute.xlu0 %1349
        %1351 = vrot.lane.b32.xlu0 %v222, 45
        %v1352 = vpop.permute.xlu0 %1351
        %1353 = vrot.lane.b32.xlu0 %v223, 45
        %v1354 = vpop.permute.xlu0 %1353
        %1355 = vrot.lane.b32.xlu0 %v224, 45
        %v1356 = vpop.permute.xlu0 %1355
        %1357 = vrot.lane.b32.xlu0 %v225, 45
        %v1358 = vpop.permute.xlu0 %1357
        %1359 = vrot.lane.b32.xlu0 %v226, 45
        %v1360 = vpop.permute.xlu0 %1359
        %1361 = vrot.lane.b32.xlu0 %v227, 45
        %v1362 = vpop.permute.xlu0 %1361
        %1363 = vrot.lane.b32.xlu0 %v228, 45
        %v1364 = vpop.permute.xlu0 %1363
        %1365 = vrot.lane.b32.xlu0 %v229, 45
        %v1366 = vpop.permute.xlu0 %1365
        %1367 = vrot.lane.b32.xlu0 %v230, 45
        %v1368 = vpop.permute.xlu0 %1367
        %vm1369 = vcmask 367616
        %v1370 = vsel %vm1369, %v1350, %v1352
        %v1371 = vsel %vm1369, %v1352, %v1354
        %v1372 = vsel %vm1369, %v1354, %v1356
        %v1373 = vsel %vm1369, %v1356, %v1358
        %v1374 = vsel %vm1369, %v1360, %v1362
        %v1375 = vsel %vm1369, %v1362, %v1364
        %v1376 = vsel %vm1369, %v1364, %v1366
        %v1377 = vsel %vm1369, %v1366, %v1368
        %v1387 = vsel %vm268, %v1348, 0
        %1389 = vmatprep.subr.bf16.mxu0 %v1371
        %1390 = vmatpush1.bf16.msra.mxu0 %v1370
        %1391 = vmatprep.subr.bf16.mxu0 %v1375
        %1392 = vmatpush1.bf16.msra.mxu0 %v1374
        %1393 = vmatprep.subr.bf16.mxu0 0
        %1394 = vmatpush1.bf16.msra.mxu0 0
        %1395 = vmatprep.subr.bf16.mxu0 0
        %1396 = vmatpush1.bf16.msra.mxu0 0
        %1397 = vmatprep.subr.bf16.mxu0 0
        %1398 = vmatpush1.bf16.msra.mxu0 0
        %1399 = vmatprep.subr.bf16.mxu0 0
        %1400 = vmatpush1.bf16.msra.mxu0 0
        %1401 = vmatprep.subr.bf16.mxu0 0
        %1402 = vmatpush1.bf16.msra.mxu0 0
        %1403 = vmatprep.subr.bf16.mxu0 0
        %1404 = vmatpush1.bf16.msra.mxu0 0
        %1405 = vmatprep.subr.bf16.mxu0 0
        %1406 = vmatpush1.bf16.msra.mxu0 0
        %1407 = vmatprep.subr.bf16.mxu0 0
        %1408 = vmatpush1.bf16.msra.mxu0 0
        %1409 = vmatprep.subr.bf16.mxu0 0
        %1410 = vmatpush1.bf16.msra.mxu0 0
        %1411 = vmatprep.subr.bf16.mxu0 0
        %1412 = vmatpush1.bf16.msra.mxu0 0
        %1413 = vmatprep.subr.bf16.mxu0 0
        %1414 = vmatpush1.bf16.msra.mxu0 0
        %1415 = vmatprep.subr.bf16.mxu0 0
        %1416 = vmatpush1.bf16.msra.mxu0 0
        %1417 = vmatprep.subr.bf16.mxu0 0
        %1418 = vmatpush1.bf16.msra.mxu0 0
        %1419 = vmatprep.subr.bf16.mxu0 0
        %1420 = vmatpush1.bf16.msra.mxu0 0
        %1421 = vmatprep.mubr.bf16.mxu0 0
        %1422 = vmatmul.mubr.bf16.gmra.mrb[0].mxu0 %v1387
        %v1423 = vpop.f32.mrb[0].mxu0
        %v1424 = vadd.f32 0.0, %v1423
        %v1425 = vpop.f32.mrb[0].mxu0
        %v1426 = vadd.f32 0.0, %v1425
        %v1427 = vpop.f32.mrb[0].mxu0
        %v1428 = vadd.f32 0.0, %v1427
        %v1429 = vpop.f32.mrb[0].mxu0
        %v1430 = vadd.f32 0.0, %v1429
        %1431 = vdwg.mxu0
        %1432 = vmatprep.subr.bf16.mxu0 %v1373
        %1433 = vmatpush1.bf16.msra.mxu0 %v1372
        %1434 = vmatprep.subr.bf16.mxu0 %v1377
        %1435 = vmatpush1.bf16.msra.mxu0 %v1376
        %1436 = vmatprep.subr.bf16.mxu0 0
        %1437 = vmatpush1.bf16.msra.mxu0 0
        %1438 = vmatprep.subr.bf16.mxu0 0
        %1439 = vmatpush1.bf16.msra.mxu0 0
        %1440 = vmatprep.subr.bf16.mxu0 0
        %1441 = vmatpush1.bf16.msra.mxu0 0
        %1442 = vmatprep.subr.bf16.mxu0 0
        %1443 = vmatpush1.bf16.msra.mxu0 0
        %1444 = vmatprep.subr.bf16.mxu0 0
        %1445 = vmatpush1.bf16.msra.mxu0 0
        %1446 = vmatprep.subr.bf16.mxu0 0
        %1447 = vmatpush1.bf16.msra.mxu0 0
        %1448 = vmatprep.subr.bf16.mxu0 0
        %1449 = vmatpush1.bf16.msra.mxu0 0
        %1450 = vmatprep.subr.bf16.mxu0 0
        %1451 = vmatpush1.bf16.msra.mxu0 0
        %1452 = vmatprep.subr.bf16.mxu0 0
        %1453 = vmatpush1.bf16.msra.mxu0 0
        %1454 = vmatprep.subr.bf16.mxu0 0
        %1455 = vmatpush1.bf16.msra.mxu0 0
        %1456 = vmatprep.subr.bf16.mxu0 0
        %1457 = vmatpush1.bf16.msra.mxu0 0
        %1458 = vmatprep.subr.bf16.mxu0 0
        %1459 = vmatpush1.bf16.msra.mxu0 0
        %1460 = vmatprep.subr.bf16.mxu0 0
        %1461 = vmatpush1.bf16.msra.mxu0 0
        %1462 = vmatprep.subr.bf16.mxu0 0
        %1463 = vmatpush1.bf16.msra.mxu0 0
        %1464 = vmatprep.mubr.bf16.mxu0 0
        %1465 = vmatmul.mubr.bf16.gmra.mrb[0].mxu0 %v1387
        %v1466 = vpop.f32.mrb[0].mxu0
        %v1467 = vadd.f32 0.0, %v1466
        %v1468 = vpop.f32.mrb[0].mxu0
        %v1469 = vadd.f32 0.0, %v1468
        %v1470 = vpop.f32.mrb[0].mxu0
        %v1471 = vadd.f32 0.0, %v1470
        %v1472 = vpop.f32.mrb[0].mxu0
        %v1473 = vadd.f32 0.0, %v1472
        %1474 = vdwg.mxu0
        %v1475 = vadd.f32 %v1333, %v1424
        %v1476 = vadd.f32 %v1334, %v1426
        %v1477 = vadd.f32 %v1335, %v1467
        %v1478 = vadd.f32 %v1336, %v1469
        %v1479 = vadd.f32 %v1337, %v1428
        %v1480 = vadd.f32 %v1338, %v1430
        %v1481 = vadd.f32 %v1339, %v1471
        %v1482 = vadd.f32 %v1340, %v1473
        %v1483 = vld [vmem:[%s2] sm:$0xff]
        %v1484 = vld [vmem:[%s2 + $0x8] sm:$0xff]
        %1486 = vset.pattern.permute.xlu0 0
        %1487 = vperm.xlu0 %1486, %v1483
        %v1488 = vpop.permute.xlu0 %1487
        %1491 = vset.pattern.permute.xlu0 0
        %1492 = vperm.xlu0 %1491, %v1484
        %v1493 = vpop.permute.xlu0 %1492
        %v1495 = vadd.f32 %v1475, %v1488
        %v1496 = vadd.f32 %v1476, %v1488
        %v1497 = vadd.f32 %v1477, %v1488
        %v1498 = vadd.f32 %v1478, %v1488
        %v1499 = vadd.f32 %v1479, %v1493
        %v1500 = vadd.f32 %v1480, %v1493
        %v1501 = vadd.f32 %v1481, %v1493
        %v1502 = vadd.f32 %v1482, %v1493
        %v1503 = vmax.f32 %v1495, 0.0
        %v1504 = vmax.f32 %v1496, 0.0
        %v1505 = vmax.f32 %v1497, 0.0
        %v1506 = vmax.f32 %v1498, 0.0
        %v1507 = vmax.f32 %v1499, 0.0
        %v1508 = vmax.f32 %v1500, 0.0
        %v1509 = vmax.f32 %v1501, 0.0
        %v1510 = vmax.f32 %v1502, 0.0
        %v1511 = vpack.c.bf16 %v1507, %v1503
        %v1512 = vpack.c.bf16 %v1508, %v1504
        %v1513 = vpack.c.bf16 %v1509, %v1505
        %v1514 = vpack.c.bf16 %v1510, %v1506
        %v1519 = vunpack.c.l.b16 %v1511
        %v1520 = vunpack.c.l.b16 %v1512
        %v1521 = vunpack.c.l.b16 %v1513
        %v1522 = vunpack.c.l.b16 %v1514
        %v1523 = vunpack.c.h.b16 %v1511
        %v1524 = vunpack.c.h.b16 %v1512
        %v1525 = vunpack.c.h.b16 %v1513
        %v1526 = vunpack.c.h.b16 %v1514
        %v1527 = vpack.c.b16 %v1520, %v1519
        %v1528 = vpack.c.b16 %v1522, %v1521
        %v1529 = vpack.c.b16 %v1524, %v1523
        %v1530 = vpack.c.b16 %v1526, %v1525
        %1535 = vst [vmem:[%s159] sm:$0xff] %v1527
        %1536 = vst [vmem:[%s159 + $0x8] sm:$0xff] %v1528
        %1537 = vst [vmem:[%s159 + $0x10] sm:$0xff] %v1529
        %1538 = vst [vmem:[%s159 + $0x18] sm:$0xff] %v1530
        %s1539 = sand.u32 %s90, 1
        %s1540 = sand.u32 %s90, 1
        %s1541 = smul.addr %s1540, 32
        %s1542 = scalar_lea.vmem [#allocation2], %s1541
        // Predicated region
        $region33: #{rsu4_apply_nchw.14} parent=31 // pred_check
          %p1543 = pneg %p100
        $region34: #{rsu4_apply_nchw.14} parent=31 // pred_check_branch
          %1545 = sbr.rel (%p1543) target = $region36
        $region35: #{rsu4_apply_nchw.14} parent=31 // pred_region
          %s1546 = smul.u32 4, %s14
          %s1547 = smul.addr %s1546, 4
          %s1548 = scalar_lea.vmem %s3, %s1547
          // Predicated region
          $region37: #{rsu4_apply_nchw.14} parent=35 // pred_check
            _
          $region38: #{rsu4_apply_nchw.14} parent=35 // pred_check_branch
            %1550 = sbr.rel (0) target = $region40
          $region39: #{rsu4_apply_nchw.14} parent=35 // pred_region
            // Predicated region
            $region41: #{rsu4_apply_nchw.14} parent=39 // pred_check
              _
            $region42: #{rsu4_apply_nchw.14} parent=39 // pred_check_branch
              %1552 = sbr.rel (0) target = $region44
            $region43: #{rsu4_apply_nchw.14} parent=39 // pred_region
              loop: start=0, step=1, limit=1
              $region45: #{rsu4_apply_nchw.14} parent=43 // loop_pre_header
                _
              $region46: #{rsu4_apply_nchw.14} parent=43 // loop_header
                %s1554 = sphi 0, %s1558
                %p1555 = scmp.ge.s32.totalorder %s1554, 1
                %s1559 = sphi %s1542, %s1542
                %s1560 = sphi %s1548, %s1548
              $region47: #{rsu4_apply_nchw.14} parent=43 // loop_header_branch
                %1557 = sbr.rel (%p1555) target = $region51
              $region48: #{rsu4_apply_nchw.14} parent=43 // loop_body
                %v1561 = vld [vmem:[%s1559] sm:$0xff]
                %1562 = vst [vmem:[%s1560] sm:$0xff] %v1561
                %v1563 = vld [vmem:[%s1559 + $0x8] sm:$0xff]
                %1564 = vst [vmem:[%s1560 + $0x8] sm:$0xff] %v1563
                %v1565 = vld [vmem:[%s1559 + $0x10] sm:$0xff]
                %1566 = vst [vmem:[%s1560 + $0x20] sm:$0xff] %v1565
                %v1567 = vld [vmem:[%s1559 + $0x18] sm:$0xff]
                %1568 = vst [vmem:[%s1560 + $0x28] sm:$0xff] %v1567
              $region49: #{rsu4_apply_nchw.14} parent=43 // loop_footer
                %s1558 = sadd.s32 1, %s1554
              $region50: #{rsu4_apply_nchw.14} parent=43 // loop_footer_branch
                %1553 = sbr.rel target = $region46
              $region51: #{rsu4_apply_nchw.14} parent=43 // loop_exit
                _
            $region44: #{rsu4_apply_nchw.14} parent=39 // pred_fallthru
              _
            // Predicated region
            $region52: #{rsu4_apply_nchw.14} parent=39 // pred_check
              _
            $region53: #{rsu4_apply_nchw.14} parent=39 // pred_check_branch
              %1570 = sbr.rel target = $region55
            $region54: #{rsu4_apply_nchw.14} parent=39 // pred_region
              _
            $region55: #{rsu4_apply_nchw.14} parent=39 // pred_fallthru
              _
          $region40: #{rsu4_apply_nchw.14} parent=35 // pred_fallthru
            _
          %1571 = vnop
        $region36: #{rsu4_apply_nchw.14} parent=31 // pred_fallthru
          _
      $region32: #{rsu4_apply_nchw.14} parent=5 // pred_fallthru
        _
      %p1572 = scmp.le.s32.totalorder 2, %s9
      // Predicated region
      $region56: #{rsu4_apply_nchw.14} parent=5 // pred_check
        %p1573 = pneg %p1572
      $region57: #{rsu4_apply_nchw.14} parent=5 // pred_check_branch
        %1575 = sbr.rel (%p1573) target = $region59
      $region58: #{rsu4_apply_nchw.14} parent=5 // pred_region
        %s1576 = ssub.s32 %s9, 2
        // Predicated region
        $region60: #{rsu4_apply_nchw.14} parent=58 // pred_check
          %p1577 = pneg %p106
        $region61: #{rsu4_apply_nchw.14} parent=58 // pred_check_branch
          %1579 = sbr.rel (%p1577) target = $region63
        $region62: #{rsu4_apply_nchw.14} parent=58 // pred_region
          %s1580 = sand.u32 %s91, 1
          %s1581 = sand.u32 %s91, 1
          %s1582 = smul.addr %s1581, 32
          %s1583 = scalar_lea.vmem [#allocation2], %s1582
        $region63: #{rsu4_apply_nchw.14} parent=58 // pred_fallthru
          _
      $region59: #{rsu4_apply_nchw.14} parent=5 // pred_fallthru
        _
    $region6: #{rsu4_apply_nchw.14} parent=1 // loop_footer
      %s13 = sadd.s32 1, %s9
    $region7: #{rsu4_apply_nchw.14} parent=1 // loop_footer_branch
      %8 = sbr.rel target = $region3
    $region8: #{rsu4_apply_nchw.14} parent=1 // loop_exit
      _

// kernel: rsu4_apply_nchw.15
$region0: #{rsu4_apply_nchw.15}
  #allocation0 [shape = 'u32[]', space=smem, size = 0x4, offset = 0x4, fixed_abs, tag = 'smem constant byte address 0x4 - core index']
  #allocation1 [shape = 'u32[144,128]{1,0:T(1,128)}', space=vmem, size = 0x12000, scoped, tag = 'internal scratch']
  %s0 = inlined_call_operand.vmem [shape: bf16[5,32,640], index: 0, kind: input, shape index: {}]
  %s1 = inlined_call_operand.vmem [shape: bf16[9,16,32], index: 1, kind: input, shape index: {}]
  %s2 = inlined_call_operand.vmem [shape: f32[16,1], index: 2, kind: input, shape index: {}]
  %s3 = inlined_call_operand.vmem [shape: bf16[16,2560], index: 3, kind: output, shape index: {}]
  %s4 = sld [smem:[#allocation0]]
  $region64: #{rsu4_apply_nchw.15} parent=0
    _
  %s6 = ssub.s32 1, %s4
  %s7 = scalar_select 0, %s6, %s4
  $region1: #{rsu4_apply_nchw.15} parent=0
    #allocation2 [shape = 'u8[32768]{0}', space=vmem, size = 0x8000, scoped, tag = 'output window, operand 0']
    loop: start=0, step=1, limit=7
    $region2: #{rsu4_apply_nchw.15} parent=1 // loop_pre_header
      _
    $region3: #{rsu4_apply_nchw.15} parent=1 // loop_header
      %s9 = sphi 0, %s13
      %p10 = scmp.ge.s32.totalorder %s9, 7
      %s19 = sphi 0, %s21
      %s22 = sphi 0, %s19
      %s23 = sphi 0, %s22
      %s39 = sphi 0, %s23
      %s43 = sphi 0, %s43
      %s45 = sphi 0, %s43
      %s46 = sphi 0, %s45
      %s60 = sphi 0, %s46
      %s64 = sphi 0, %s64
      %s66 = sphi 0, %s64
      %s67 = sphi 0, %s66
      %s81 = sphi 0, %s67
      %s87 = sphi 0, %s89
      %s90 = sphi 0, %s87
      %s91 = sphi 0, %s90
      %s107 = sphi 0, %s91
    $region4: #{rsu4_apply_nchw.15} parent=1 // loop_header_branch
      %12 = sbr.rel (%p10) target = $region8
    $region5: #{rsu4_apply_nchw.15} parent=1 // loop_body
      %s14 = ssub.s32 %s9, 1
      %s15 = ssub.s32 %s9, 2
      %s16 = sadd.s32 %s9, 1
      %s17 = ssub.s32 %s9, %s16
      %p18 = scmp.eq.s32.totalorder %s17, 0
      %s20 = sadd.s32 %s19, 1
      %s21 = scalar_select %p18, %s19, %s20
      %p24 = pneg %p18
      %p25 = scmp.eq.s32.totalorder %s9, 4
      %p26 = por %p24, %p25
      %p27 = scmp.ne.s32.totalorder %s19, %s22
      %p28 = scmp.eq.s32.totalorder %s9, 0
      %p29 = por %p27, %p28
      %p30 = scmp.ne.s32.totalorder %s19, %s22
      %p31 = scmp.eq.s32.totalorder %s14, 4
      %p32 = por %p30, %p31
      %p33 = scmp.ne.s32.totalorder %s22, %s23
      %p34 = scmp.eq.s32.totalorder %s14, 0
      %p35 = por %p33, %p34
      %p36 = scmp.ne.s32.totalorder %s22, %s23
      %p37 = scmp.eq.s32.totalorder %s15, 4
      %p38 = por %p36, %p37
      %p40 = scmp.ne.s32.totalorder %s23, %s39
      %p41 = scmp.eq.s32.totalorder %s15, 0
      %p42 = por %p40, %p41
      %s44 = sadd.s32 %s43, 1
      %p47 = scmp.eq.s32.totalorder %s9, 4
      %p48 = scmp.ne.s32.totalorder %s43, %s45
      %p49 = scmp.eq.s32.totalorder %s9, 0
      %p50 = por %p48, %p49
      %p51 = scmp.ne.s32.totalorder %s43, %s45
      %p52 = scmp.eq.s32.totalorder %s14, 4
      %p53 = por %p51, %p52
      %p54 = scmp.ne.s32.totalorder %s45, %s46
      %p55 = scmp.eq.s32.totalorder %s14, 0
      %p56 = por %p54, %p55
      %p57 = scmp.ne.s32.totalorder %s45, %s46
      %p58 = scmp.eq.s32.totalorder %s15, 4
      %p59 = por %p57, %p58
      %p61 = scmp.ne.s32.totalorder %s46, %s60
      %p62 = scmp.eq.s32.totalorder %s15, 0
      %p63 = por %p61, %p62
      %s65 = sadd.s32 %s64, 1
      %p68 = scmp.eq.s32.totalorder %s9, 4
      %p69 = scmp.ne.s32.totalorder %s64, %s66
      %p70 = scmp.eq.s32.totalorder %s9, 0
      %p71 = por %p69, %p70
      %p72 = scmp.ne.s32.totalorder %s64, %s66
      %p73 = scmp.eq.s32.totalorder %s14, 4
      %p74 = por %p72, %p73
      %p75 = scmp.ne.s32.totalorder %s66, %s67
      %p76 = scmp.eq.s32.totalorder %s14, 0
      %p77 = por %p75, %p76
      %p78 = scmp.ne.s32.totalorder %s66, %s67
      %p79 = scmp.eq.s32.totalorder %s15, 4
      %p80 = por %p78, %p79
      %p82 = scmp.ne.s32.totalorder %s67, %s81
      %p83 = scmp.eq.s32.totalorder %s15, 0
      %p84 = por %p82, %p83
      %s85 = ssub.s32 %s9, %s16
      %p86 = scmp.eq.s32.totalorder %s85, 0
      %s88 = sadd.s32 %s87, 1
      %s89 = scalar_select %p86, %s87, %s88
      %p92 = pneg %p86
      %p93 = scmp.eq.s32.totalorder %s9, 4
      %p94 = por %p92, %p93
      %p95 = scmp.ne.s32.totalorder %s87, %s90
      %p96 = scmp.eq.s32.totalorder %s9, 0
      %p97 = por %p95, %p96
      %p98 = scmp.ne.s32.totalorder %s87, %s90
      %p99 = scmp.eq.s32.totalorder %s14, 4
      %p100 = por %p98, %p99
      %p101 = scmp.ne.s32.totalorder %s90, %s91
      %p102 = scmp.eq.s32.totalorder %s14, 0
      %p103 = por %p101, %p102
      %p104 = scmp.ne.s32.totalorder %s90, %s91
      %p105 = scmp.eq.s32.totalorder %s15, 4
      %p106 = por %p104, %p105
      %p108 = scmp.ne.s32.totalorder %s91, %s107
      %p109 = scmp.eq.s32.totalorder %s15, 0
      %p110 = por %p108, %p109
      %p111 = scmp.le.s32.totalorder 1, %s9
      %p112 = scmp.lt.s32.totalorder %s9, 6
      %p113 = pnand %p111, %p112
      %p114 = pneg %p113
      // Predicated region
      $region9: #{rsu4_apply_nchw.15} parent=5 // pred_check
        _
      $region10: #{rsu4_apply_nchw.15} parent=5 // pred_check_branch
        %116 = sbr.rel (%p113) target = $region12
      $region11: #{rsu4_apply_nchw.15} parent=5 // pred_region
        %s117 = ssub.s32 %s9, 1
        // Predicated region
        $region13: #{rsu4_apply_nchw.15} parent=11 // pred_check
          %p118 = pneg %p56
        $region14: #{rsu4_apply_nchw.15} parent=11 // pred_check_branch
          %120 = sbr.rel (%p118) target = $region16
        $region15: #{rsu4_apply_nchw.15} parent=11 // pred_region
          _
        $region16: #{rsu4_apply_nchw.15} parent=11 // pred_fallthru
          _
        // Predicated region
        $region17: #{rsu4_apply_nchw.15} parent=11 // pred_check
          %p121 = pneg %p77
        $region18: #{rsu4_apply_nchw.15} parent=11 // pred_check_branch
          %123 = sbr.rel (%p121) target = $region20
        $region19: #{rsu4_apply_nchw.15} parent=11 // pred_region
          _
        $region20: #{rsu4_apply_nchw.15} parent=11 // pred_fallthru
          _
      $region12: #{rsu4_apply_nchw.15} parent=5 // pred_fallthru
        _
      %p124 = scmp.lt.s32.totalorder %s9, 5
      // Predicated region
      $region21: #{rsu4_apply_nchw.15} parent=5 // pred_check
        %p125 = pneg %p124
      $region22: #{rsu4_apply_nchw.15} parent=5 // pred_check_branch
        %127 = sbr.rel (%p125) target = $region24
      $region23: #{rsu4_apply_nchw.15} parent=5 // pred_region
        // Predicated region
        $region25: #{rsu4_apply_nchw.15} parent=23 // pred_check
          %p128 = pneg %p29
        $region26: #{rsu4_apply_nchw.15} parent=23 // pred_check_branch
          %130 = sbr.rel (%p128) target = $region28
        $region27: #{rsu4_apply_nchw.15} parent=23 // pred_region
          %p131 = scmp.lt.s32.totalorder %s9, 4
          %s132 = scalar_select %p131, %s9, 4
          %s133 = smul.addr %s132, 20
          %s134 = smul.addr %s133, 4
          %s135 = scalar_lea.vmem %s0, %s134
        $region28: #{rsu4_apply_nchw.15} parent=23 // pred_fallthru
          _
      $region24: #{rsu4_apply_nchw.15} parent=5 // pred_fallthru
        _
      %p136 = scmp.le.s32.totalorder 1, %s9
      %p137 = scmp.lt.s32.totalorder %s9, 6
      %p138 = pnand %p136, %p137
      %p139 = pneg %p138
      // Predicated region
      $region29: #{rsu4_apply_nchw.15} parent=5 // pred_check
        _
      $region30: #{rsu4_apply_nchw.15} parent=5 // pred_check_branch
        %141 = sbr.rel (%p138) target = $region32
      $region31: #{rsu4_apply_nchw.15} parent=5 // pred_region
        %s142 = ssub.s32 %s9, 1
        %p143 = scmp.lt.s32.totalorder %s14, 4
        %s144 = scalar_select %p143, %s14, 4
        %s145 = smul.addr %s144, 20
        %s146 = smul.addr %s145, 4
        %s147 = scalar_lea.vmem %s0, %s146
        %p148 = pneg %p35
        %p149 = pneg %p32
        %p150 = pneg %p56
        %p151 = pneg %p53
        %p152 = pneg %p77
        %p153 = pneg %p74
        %p154 = pneg %p103
        %p155 = pneg %p100
        %s156 = sand.u32 %s90, 1
        %s157 = sand.u32 %s90, 1
        %s158 = smul.addr %s157, 32
        %s159 = scalar_lea.vmem [#allocation2], %s158
        %p160 = scmp.lt.s32.totalorder %s14, 4
        %s161 = scalar_select %p160, %s14, 4
        %s162 = smul.addr %s161, 20
        %s163 = smul.addr %s162, 4
        %s164 = scalar_lea.vmem %s0, %s163
        %s165 = smul.u32 4, %s14
        %v167 = vld [vmem:[%s1] sm:$0xf]
        %v168 = vld [vmem:[%s1 + $0x4] sm:$0xf]
        %v169 = vld [vmem:[%s164] sm:$0xff]
        %v170 = vld [vmem:[%s164 + $0x8] sm:$0xff]
        %v171 = vld [vmem:[%s164 + $0x10] sm:$0xf]
        %v172 = vld [vmem:[%s164 + $0x14] sm:$0xff]
        %v173 = vld [vmem:[%s164 + $0x1c] sm:$0xff]
        %v174 = vld [vmem:[%s164 + $0x24] sm:$0xf]
        %v175 = vld [vmem:[%s164 + $0x28] sm:$0xff]
        %v176 = vld [vmem:[%s164 + $0x30] sm:$0xff]
        %v177 = vld [vmem:[%s164 + $0x38] sm:$0xf]
        %v178 = vld [vmem:[%s164 + $0x3c] sm:$0xff]
        %v179 = vld [vmem:[%s164 + $0x44] sm:$0xff]
        %v180 = vld [vmem:[%s164 + $0x4c] sm:$0xf]
        %s181 = scalar_lea.vmem %s1, 8
        %v182 = vld [vmem:[%s181] sm:$0xf]
        %v183 = vld [vmem:[%s181 + $0x4] sm:$0xf]
        %v186 = vunpack.c.l.b16 %v182
        %v187 = vunpack.c.l.b16 %v183
        %v188 = vpack.c.b16 %v187, %v186
        %v201 = vunpack.c.l.b16 %v169
        %v202 = vunpack.c.h.b16 %v169
        %v203 = vunpack.c.l.b16 %v170
        %v204 = vunpack.c.h.b16 %v170
        %v205 = vunpack.c.l.b16 %v171
        %v206 = vunpack.c.l.b16 %v172
        %v207 = vunpack.c.h.b16 %v172
        %v208 = vunpack.c.l.b16 %v173
        %v209 = vunpack.c.h.b16 %v173
        %v210 = vunpack.c.l.b16 %v174
        %v211 = vunpack.c.l.b16 %v175
        %v212 = vunpack.c.h.b16 %v175
        %v213 = vunpack.c.l.b16 %v176
        %v214 = vunpack.c.h.b16 %v176
        %v215 = vunpack.c.l.b16 %v177
        %v216 = vunpack.c.l.b16 %v178
        %v217 = vunpack.c.h.b16 %v178
        %v218 = vunpack.c.l.b16 %v179
        %v219 = vunpack.c.h.b16 %v179
        %v220 = vunpack.c.l.b16 %v180
        %v221 = vpack.c.b16 %v206, %v201
        %v222 = vpack.c.b16 %v207, %v202
        %v223 = vpack.c.b16 %v208, %v203
        %v224 = vpack.c.b16 %v209, %v204
        %v225 = vpack.c.b16 %v210, %v205
        %v226 = vpack.c.b16 %v216, %v211
        %v227 = vpack.c.b16 %v217, %v212
        %v228 = vpack.c.b16 %v218, %v213
        %v229 = vpack.c.b16 %v219, %v214
        %v230 = vpack.c.b16 %v220, %v215
        %231 = vrot.lane.b32.xlu0 %v221, 98
        %v232 = vpop.permute.xlu0 %231
        %233 = vrot.lane.b32.xlu0 %v222, 98
        %v234 = vpop.permute.xlu0 %233
        %235 = vrot.lane.b32.xlu0 %v223, 98
        %v236 = vpop.permute.xlu0 %235
        %237 = vrot.lane.b32.xlu0 %v224, 98
        %v238 = vpop.permute.xlu0 %237
        %239 = vrot.lane.b32.xlu0 %v225, 98
        %v240 = vpop.permute.xlu0 %239
        %241 = vrot.lane.b32.xlu0 %v226, 98
        %v242 = vpop.permute.xlu0 %241
        %243 = vrot.lane.b32.xlu0 %v227, 98
        %v244 = vpop.permute.xlu0 %243
        %245 = vrot.lane.b32.xlu0 %v228, 98
        %v246 = vpop.permute.xlu0 %245
        %247 = vrot.lane.b32.xlu0 %v229, 98
        %v248 = vpop.permute.xlu0 %247
        %249 = vrot.lane.b32.xlu0 %v230, 98
        %v250 = vpop.permute.xlu0 %249
        %vm251 = vcmask 801792
        %v252 = vsel %vm251, %v232, %v234
        %v253 = vsel %vm251, %v234, %v236
        %v254 = vsel %vm251, %v236, %v238
        %v255 = vsel %vm251, %v238, %v240
        %v256 = vsel %vm251, %v242, %v244
        %v257 = vsel %vm251, %v244, %v246
        %v258 = vsel %vm251, %v246, %v248
        %v259 = vsel %vm251, %v248, %v250
        %vm268 = vcmask 261120
        %v270 = vsel %vm268, %v188, 0
        %272 = vmatprep.subr.bf16.mxu0 %v253
        %273 = vmatpush1.bf16.msra.mxu0 %v252
        %274 = vmatprep.subr.bf16.mxu0 %v257
        %275 = vmatpush1.bf16.msra.mxu0 %v256
        %276 = vmatprep.subr.bf16.mxu0 0
        %277 = vmatpush1.bf16.msra.mxu0 0
        %278 = vmatprep.subr.bf16.mxu0 0
        %279 = vmatpush1.bf16.msra.mxu0 0
        %280 = vmatprep.subr.bf16.mxu0 0
        %281 = vmatpush1.bf16.msra.mxu0 0
        %282 = vmatprep.subr.bf16.mxu0 0
        %283 = vmatpush1.bf16.msra.mxu0 0
        %284 = vmatprep.subr.bf16.mxu0 0
        %285 = vmatpush1.bf16.msra.mxu0 0
        %286 = vmatprep.subr.bf16.mxu0 0
        %287 = vmatpush1.bf16.msra.mxu0 0
        %288 = vmatprep.subr.bf16.mxu0 0
        %289 = vmatpush1.bf16.msra.mxu0 0
        %290 = vmatprep.subr.bf16.mxu0 0
        %291 = vmatpush1.bf16.msra.mxu0 0
        %292 = vmatprep.subr.bf16.mxu0 0
        %293 = vmatpush1.bf16.msra.mxu0 0
        %294 = vmatprep.subr.bf16.mxu0 0
        %295 = vmatpush1.bf16.msra.mxu0 0
        %296 = vmatprep.subr.bf16.mxu0 0
        %297 = vmatpush1.bf16.msra.mxu0 0
        %298 = vmatprep.subr.bf16.mxu0 0
        %299 = vmatpush1.bf16.msra.mxu0 0
        %300 = vmatprep.subr.bf16.mxu0 0
        %301 = vmatpush1.bf16.msra.mxu0 0
        %302 = vmatprep.subr.bf16.mxu0 0
        %303 = vmatpush1.bf16.msra.mxu0 0
        %304 = vmatprep.mubr.bf16.mxu0 0
        %305 = vmatmul.mubr.bf16.gmra.mrb[0].mxu0 %v270
        %v306 = vpop.f32.mrb[0].mxu0
        %v307 = vadd.f32 0.0, %v306
        %v308 = vpop.f32.mrb[0].mxu0
        %v309 = vadd.f32 0.0, %v308
        %v310 = vpop.f32.mrb[0].mxu0
        %v311 = vadd.f32 0.0, %v310
        %v312 = vpop.f32.mrb[0].mxu0
        %v313 = vadd.f32 0.0, %v312
        %314 = vdwg.mxu0
        %315 = vmatprep.subr.bf16.mxu0 %v255
        %316 = vmatpush1.bf16.msra.mxu0 %v254
        %317 = vmatprep.subr.bf16.mxu0 %v259
        %318 = vmatpush1.bf16.msra.mxu0 %v258
        %319 = vmatprep.subr.bf16.mxu0 0
        %320 = vmatpush1.bf16.msra.mxu0 0
        %321 = vmatprep.subr.bf16.mxu0 0
        %322 = vmatpush1.bf16.msra.mxu0 0
        %323 = vmatprep.subr.bf16.mxu0 0
        %324 = vmatpush1.bf16.msra.mxu0 0
        %325 = vmatprep.subr.bf16.mxu0 0
        %326 = vmatpush1.bf16.msra.mxu0 0
        %327 = vmatprep.subr.bf16.mxu0 0
        %328 = vmatpush1.bf16.msra.mxu0 0
        %329 = vmatprep.subr.bf16.mxu0 0
        %330 = vmatpush1.bf16.msra.mxu0 0
        %331 = vmatprep.subr.bf16.mxu0 0
        %332 = vmatpush1.bf16.msra.mxu0 0
        %333 = vmatprep.subr.bf16.mxu0 0
        %334 = vmatpush1.bf16.msra.mxu0 0
        %335 = vmatprep.subr.bf16.mxu0 0
        %336 = vmatpush1.bf16.msra.mxu0 0
        %337 = vmatprep.subr.bf16.mxu0 0
        %338 = vmatpush1.bf16.msra.mxu0 0
        %339 = vmatprep.subr.bf16.mxu0 0
        %340 = vmatpush1.bf16.msra.mxu0 0
        %341 = vmatprep.subr.bf16.mxu0 0
        %342 = vmatpush1.bf16.msra.mxu0 0
        %343 = vmatprep.subr.bf16.mxu0 0
        %344 = vmatpush1.bf16.msra.mxu0 0
        %345 = vmatprep.subr.bf16.mxu0 0
        %346 = vmatpush1.bf16.msra.mxu0 0
        %347 = vmatprep.mubr.bf16.mxu0 0
        %348 = vmatmul.mubr.bf16.gmra.mrb[0].mxu0 %v270
        %v349 = vpop.f32.mrb[0].mxu0
        %v350 = vadd.f32 0.0, %v349
        %v351 = vpop.f32.mrb[0].mxu0
        %v352 = vadd.f32 0.0, %v351
        %v353 = vpop.f32.mrb[0].mxu0
        %v354 = vadd.f32 0.0, %v353
        %v355 = vpop.f32.mrb[0].mxu0
        %v356 = vadd.f32 0.0, %v355
        %357 = vdwg.mxu0
        %v360 = vunpack.c.l.b16 %v167
        %v361 = vunpack.c.l.b16 %v168
        %v362 = vpack.c.b16 %v361, %v360
        %363 = vrot.lane.b32.xlu0 %v221, 99
        %v364 = vpop.permute.xlu0 %363
        %365 = vrot.lane.b32.xlu0 %v222, 99
        %v366 = vpop.permute.xlu0 %365
        %367 = vrot.lane.b32.xlu0 %v223, 99
        %v368 = vpop.permute.xlu0 %367
        %369 = vrot.lane.b32.xlu0 %v224, 99
        %v370 = vpop.permute.xlu0 %369
        %371 = vrot.lane.b32.xlu0 %v225, 99
        %v372 = vpop.permute.xlu0 %371
        %373 = vrot.lane.b32.xlu0 %v226, 99
        %v374 = vpop.permute.xlu0 %373
        %375 = vrot.lane.b32.xlu0 %v227, 99
        %v376 = vpop.permute.xlu0 %375
        %377 = vrot.lane.b32.xlu0 %v228, 99
        %v378 = vpop.permute.xlu0 %377
        %379 = vrot.lane.b32.xlu0 %v229, 99
        %v380 = vpop.permute.xlu0 %379
        %381 = vrot.lane.b32.xlu0 %v230, 99
        %v382 = vpop.permute.xlu0 %381
        %vm383 = vcmask 809984
        %v384 = vsel %vm383, %v364, %v366
        %v385 = vsel %vm383, %v366, %v368
        %v386 = vsel %vm383, %v368, %v370
        %v387 = vsel %vm383, %v370, %v372
        %v388 = vsel %vm383, %v374, %v376
        %v389 = vsel %vm383, %v376, %v378
        %v390 = vsel %vm383, %v378, %v380
        %v391 = vsel %vm383, %v380, %v382
        %v401 = vsel %vm268, %v362, 0
        %403 = vmatprep.subr.bf16.mxu0 %v385
        %404 = vmatpush1.bf16.msra.mxu0 %v384
        %405 = vmatprep.subr.bf16.mxu0 %v389
        %406 = vmatpush1.bf16.msra.mxu0 %v388
        %407 = vmatprep.subr.bf16.mxu0 0
        %408 = vmatpush1.bf16.msra.mxu0 0
        %409 = vmatprep.subr.bf16.mxu0 0
        %410 = vmatpush1.bf16.msra.mxu0 0
        %411 = vmatprep.subr.bf16.mxu0 0
        %412 = vmatpush1.bf16.msra.mxu0 0
        %413 = vmatprep.subr.bf16.mxu0 0
        %414 = vmatpush1.bf16.msra.mxu0 0
        %415 = vmatprep.subr.bf16.mxu0 0
        %416 = vmatpush1.bf16.msra.mxu0 0
        %417 = vmatprep.subr.bf16.mxu0 0
        %418 = vmatpush1.bf16.msra.mxu0 0
        %419 = vmatprep.subr.bf16.mxu0 0
        %420 = vmatpush1.bf16.msra.mxu0 0
        %421 = vmatprep.subr.bf16.mxu0 0
        %422 = vmatpush1.bf16.msra.mxu0 0
        %423 = vmatprep.subr.bf16.mxu0 0
        %424 = vmatpush1.bf16.msra.mxu0 0
        %425 = vmatprep.subr.bf16.mxu0 0
        %426 = vmatpush1.bf16.msra.mxu0 0
        %427 = vmatprep.subr.bf16.mxu0 0
        %428 = vmatpush1.bf16.msra.mxu0 0
        %429 = vmatprep.subr.bf16.mxu0 0
        %430 = vmatpush1.bf16.msra.mxu0 0
        %431 = vmatprep.subr.bf16.mxu0 0
        %432 = vmatpush1.bf16.msra.mxu0 0
        %433 = vmatprep.subr.bf16.mxu0 0
        %434 = vmatpush1.bf16.msra.mxu0 0
        %435 = vmatprep.mubr.bf16.mxu0 0
        %436 = vmatmul.mubr.bf16.gmra.mrb[0].mxu0 %v401
        %v437 = vpop.f32.mrb[0].mxu0
        %v438 = vadd.f32 %v307, %v437
        %v439 = vpop.f32.mrb[0].mxu0
        %v440 = vadd.f32 %v309, %v439
        %v441 = vpop.f32.mrb[0].mxu0
        %v442 = vadd.f32 %v311, %v441
        %v443 = vpop.f32.mrb[0].mxu0
        %v444 = vadd.f32 %v313, %v443
        %445 = vdwg.mxu0
        %446 = vmatprep.subr.bf16.mxu0 %v387
        %447 = vmatpush1.bf16.msra.mxu0 %v386
        %448 = vmatprep.subr.bf16.mxu0 %v391
        %449 = vmatpush1.bf16.msra.mxu0 %v390
        %450 = vmatprep.subr.bf16.mxu0 0
        %451 = vmatpush1.bf16.msra.mxu0 0
        %452 = vmatprep.subr.bf16.mxu0 0
        %453 = vmatpush1.bf16.msra.mxu0 0
        %454 = vmatprep.subr.bf16.mxu0 0
        %455 = vmatpush1.bf16.msra.mxu0 0
        %456 = vmatprep.subr.bf16.mxu0 0
        %457 = vmatpush1.bf16.msra.mxu0 0
        %458 = vmatprep.subr.bf16.mxu0 0
        %459 = vmatpush1.bf16.msra.mxu0 0
        %460 = vmatprep.subr.bf16.mxu0 0
        %461 = vmatpush1.bf16.msra.mxu0 0
        %462 = vmatprep.subr.bf16.mxu0 0
        %463 = vmatpush1.bf16.msra.mxu0 0
        %464 = vmatprep.subr.bf16.mxu0 0
        %465 = vmatpush1.bf16.msra.mxu0 0
        %466 = vmatprep.subr.bf16.mxu0 0
        %467 = vmatpush1.bf16.msra.mxu0 0
        %468 = vmatprep.subr.bf16.mxu0 0
        %469 = vmatpush1.bf16.msra.mxu0 0
        %470 = vmatprep.subr.bf16.mxu0 0
        %471 = vmatpush1.bf16.msra.mxu0 0
        %472 = vmatprep.subr.bf16.mxu0 0
        %473 = vmatpush1.bf16.msra.mxu0 0
        %474 = vmatprep.subr.bf16.mxu0 0
        %475 = vmatpush1.bf16.msra.mxu0 0
        %476 = vmatprep.subr.bf16.mxu0 0
        %477 = vmatpush1.bf16.msra.mxu0 0
        %478 = vmatprep.mubr.bf16.mxu0 0
        %479 = vmatmul.mubr.bf16.gmra.mrb[0].mxu0 %v401
        %v480 = vpop.f32.mrb[0].mxu0
        %v481 = vadd.f32 %v350, %v480
        %v482 = vpop.f32.mrb[0].mxu0
        %v483 = vadd.f32 %v352, %v482
        %v484 = vpop.f32.mrb[0].mxu0
        %v485 = vadd.f32 %v354, %v484
        %v486 = vpop.f32.mrb[0].mxu0
        %v487 = vadd.f32 %v356, %v486
        %488 = vdwg.mxu0
        %s489 = scalar_lea.vmem %s1, 16
        %v490 = vld [vmem:[%s489] sm:$0xf]
        %v491 = vld [vmem:[%s489 + $0x4] sm:$0xf]
        %v494 = vunpack.c.l.b16 %v490
        %v495 = vunpack.c.l.b16 %v491
        %v496 = vpack.c.b16 %v495, %v494
        %497 = vrot.lane.b32.xlu0 %v221, 97
        %v498 = vpop.permute.xlu0 %497
        %499 = vrot.lane.b32.xlu0 %v222, 97
        %v500 = vpop.permute.xlu0 %499
        %501 = vrot.lane.b32.xlu0 %v223, 97
        %v502 = vpop.permute.xlu0 %501
        %503 = vrot.lane.b32.xlu0 %v224, 97
        %v504 = vpop.permute.xlu0 %503
        %505 = vrot.lane.b32.xlu0 %v225, 97
        %v506 = vpop.permute.xlu0 %505
        %507 = vrot.lane.b32.xlu0 %v226, 97
        %v508 = vpop.permute.xlu0 %507
        %509 = vrot.lane.b32.xlu0 %v227, 97
        %v510 = vpop.permute.xlu0 %509
        %511 = vrot.lane.b32.xlu0 %v228, 97
        %v512 = vpop.permute.xlu0 %511
        %513 = vrot.lane.b32.xlu0 %v229, 97
        %v514 = vpop.permute.xlu0 %513
        %515 = vrot.lane.b32.xlu0 %v230, 97
        %v516 = vpop.permute.xlu0 %515
        %vm517 = vcmask 793600
        %v518 = vsel %vm517, %v498, %v500
        %v519 = vsel %vm517, %v500, %v502
        %v520 = vsel %vm517, %v502, %v504
        %v521 = vsel %vm517, %v504, %v506
        %v522 = vsel %vm517, %v508, %v510
        %v523 = vsel %vm517, %v510, %v512
        %v524 = vsel %vm517, %v512, %v514
        %v525 = vsel %vm517, %v514, %v516
        %v535 = vsel %vm268, %v496, 0
        %537 = vmatprep.subr.bf16.mxu0 %v519
        %538 = vmatpush1.bf16.msra.mxu0 %v518
        %539 = vmatprep.subr.bf16.mxu0 %v523
        %540 = vmatpush1.bf16.msra.mxu0 %v522
        %541 = vmatprep.subr.bf16.mxu0 0
        %542 = vmatpush1.bf16.msra.mxu0 0
        %543 = vmatprep.subr.bf16.mxu0 0
        %544 = vmatpush1.bf16.msra.mxu0 0
        %545 = vmatprep.subr.bf16.mxu0 0
        %546 = vmatpush1.bf16.msra.mxu0 0
        %547 = vmatprep.subr.bf16.mxu0 0
        %548 = vmatpush1.bf16.msra.mxu0 0
        %549 = vmatprep.subr.bf16.mxu0 0
        %550 = vmatpush1.bf16.msra.mxu0 0
        %551 = vmatprep.subr.bf16.mxu0 0
        %552 = vmatpush1.bf16.msra.mxu0 0
        %553 = vmatprep.subr.bf16.mxu0 0
        %554 = vmatpush1.bf16.msra.mxu0 0
        %555 = vmatprep.subr.bf16.mxu0 0
        %556 = vmatpush1.bf16.msra.mxu0 0
        %557 = vmatprep.subr.bf16.mxu0 0
        %558 = vmatpush1.bf16.msra.mxu0 0
        %559 = vmatprep.subr.bf16.mxu0 0
        %560 = vmatpush1.bf16.msra.mxu0 0
        %561 = vmatprep.subr.bf16.mxu0 0
        %562 = vmatpush1.bf16.msra.mxu0 0
        %563 = vmatprep.subr.bf16.mxu0 0
        %564 = vmatpush1.bf16.msra.mxu0 0
        %565 = vmatprep.subr.bf16.mxu0 0
        %566 = vmatpush1.bf16.msra.mxu0 0
        %567 = vmatprep.subr.bf16.mxu0 0
        %568 = vmatpush1.bf16.msra.mxu0 0
        %569 = vmatprep.mubr.bf16.mxu0 0
        %570 = vmatmul.mubr.bf16.gmra.mrb[0].mxu0 %v535
        %v571 = vpop.f32.mrb[0].mxu0
        %v572 = vadd.f32 0.0, %v571
        %v573 = vpop.f32.mrb[0].mxu0
        %v574 = vadd.f32 0.0, %v573
        %v575 = vpop.f32.mrb[0].mxu0
        %v576 = vadd.f32 0.0, %v575
        %v577 = vpop.f32.mrb[0].mxu0
        %v578 = vadd.f32 0.0, %v577
        %579 = vdwg.mxu0
        %580 = vmatprep.subr.bf16.mxu0 %v521
        %581 = vmatpush1.bf16.msra.mxu0 %v520
        %582 = vmatprep.subr.bf16.mxu0 %v525
        %583 = vmatpush1.bf16.msra.mxu0 %v524
        %584 = vmatprep.subr.bf16.mxu0 0
        %585 = vmatpush1.bf16.msra.mxu0 0
        %586 = vmatprep.subr.bf16.mxu0 0
        %587 = vmatpush1.bf16.msra.mxu0 0
        %588 = vmatprep.subr.bf16.mxu0 0
        %589 = vmatpush1.bf16.msra.mxu0 0
        %590 = vmatprep.subr.bf16.mxu0 0
        %591 = vmatpush1.bf16.msra.mxu0 0
        %592 = vmatprep.subr.bf16.mxu0 0
        %593 = vmatpush1.bf16.msra.mxu0 0
        %594 = vmatprep.subr.bf16.mxu0 0
        %595 = vmatpush1.bf16.msra.mxu0 0
        %596 = vmatprep.subr.bf16.mxu0 0
        %597 = vmatpush1.bf16.msra.mxu0 0
        %598 = vmatprep.subr.bf16.mxu0 0
        %599 = vmatpush1.bf16.msra.mxu0 0
        %600 = vmatprep.subr.bf16.mxu0 0
        %601 = vmatpush1.bf16.msra.mxu0 0
        %602 = vmatprep.subr.bf16.mxu0 0
        %603 = vmatpush1.bf16.msra.mxu0 0
        %604 = vmatprep.subr.bf16.mxu0 0
        %605 = vmatpush1.bf16.msra.mxu0 0
        %606 = vmatprep.subr.bf16.mxu0 0
        %607 = vmatpush1.bf16.msra.mxu0 0
        %608 = vmatprep.subr.bf16.mxu0 0
        %609 = vmatpush1.bf16.msra.mxu0 0
        %610 = vmatprep.subr.bf16.mxu0 0
        %611 = vmatpush1.bf16.msra.mxu0 0
        %612 = vmatprep.mubr.bf16.mxu0 0
        %613 = vmatmul.mubr.bf16.gmra.mrb[0].mxu0 %v535
        %v614 = vpop.f32.mrb[0].mxu0
        %v615 = vadd.f32 0.0, %v614
        %v616 = vpop.f32.mrb[0].mxu0
        %v617 = vadd.f32 0.0, %v616
        %v618 = vpop.f32.mrb[0].mxu0
        %v619 = vadd.f32 0.0, %v618
        %v620 = vpop.f32.mrb[0].mxu0
        %v621 = vadd.f32 0.0, %v620
        %622 = vdwg.mxu0
        %v623 = vadd.f32 %v438, %v572
        %v624 = vadd.f32 %v440, %v574
        %v625 = vadd.f32 %v481, %v615
        %v626 = vadd.f32 %v483, %v617
        %v627 = vadd.f32 %v442, %v576
        %v628 = vadd.f32 %v444, %v578
        %v629 = vadd.f32 %v485, %v619
        %v630 = vadd.f32 %v487, %v621
        %s631 = scalar_lea.vmem %s1, 24
        %v632 = vld [vmem:[%s631] sm:$0xf]
        %v633 = vld [vmem:[%s631 + $0x4] sm:$0xf]
        %v636 = vunpack.c.l.b16 %v632
        %v637 = vunpack.c.l.b16 %v633
        %v638 = vpack.c.b16 %v637, %v636
        %639 = vrot.lane.b32.xlu0 %v221, 65
        %v640 = vpop.permute.xlu0 %639
        %641 = vrot.lane.b32.xlu0 %v222, 65
        %v642 = vpop.permute.xlu0 %641
        %643 = vrot.lane.b32.xlu0 %v223, 65
        %v644 = vpop.permute.xlu0 %643
        %645 = vrot.lane.b32.xlu0 %v224, 65
        %v646 = vpop.permute.xlu0 %645
        %647 = vrot.lane.b32.xlu0 %v225, 65
        %v648 = vpop.permute.xlu0 %647
        %649 = vrot.lane.b32.xlu0 %v226, 65
        %v650 = vpop.permute.xlu0 %649
        %651 = vrot.lane.b32.xlu0 %v227, 65
        %v652 = vpop.permute.xlu0 %651
        %653 = vrot.lane.b32.xlu0 %v228, 65
        %v654 = vpop.permute.xlu0 %653
        %655 = vrot.lane.b32.xlu0 %v229, 65
        %v656 = vpop.permute.xlu0 %655
        %657 = vrot.lane.b32.xlu0 %v230, 65
        %v658 = vpop.permute.xlu0 %657
        %vm659 = vcmask 531456
        %v660 = vsel %vm659, %v640, %v642
        %v661 = vsel %vm659, %v642, %v644
        %v662 = vsel %vm659, %v644, %v646
        %v663 = vsel %vm659, %v646, %v648
        %v664 = vsel %vm659, %v650, %v652
        %v665 = vsel %vm659, %v652, %v654
        %v666 = vsel %vm659, %v654, %v656
        %v667 = vsel %vm659, %v656, %v658
        %v677 = vsel %vm268, %v638, 0
        %679 = vmatprep.subr.bf16.mxu0 %v661
        %680 = vmatpush1.bf16.msra.mxu0 %v660
        %681 = vmatprep.subr.bf16.mxu0 %v665
        %682 = vmatpush1.bf16.msra.mxu0 %v664
        %683 = vmatprep.subr.bf16.mxu0 0
        %684 = vmatpush1.bf16.msra.mxu0 0
        %685 = vmatprep.subr.bf16.mxu0 0
        %686 = vmatpush1.bf16.msra.mxu0 0
        %687 = vmatprep.subr.bf16.mxu0 0
        %688 = vmatpush1.bf16.msra.mxu0 0
        %689 = vmatprep.subr.bf16.mxu0 0
        %690 = vmatpush1.bf16.msra.mxu0 0
        %691 = vmatprep.subr.bf16.mxu0 0
        %692 = vmatpush1.bf16.msra.mxu0 0
        %693 = vmatprep.subr.bf16.mxu0 0
        %694 = vmatpush1.bf16.msra.mxu0 0
        %695 = vmatprep.subr.bf16.mxu0 0
        %696 = vmatpush1.bf16.msra.mxu0 0
        %697 = vmatprep.subr.bf16.mxu0 0
        %698 = vmatpush1.bf16.msra.mxu0 0
        %699 = vmatprep.subr.bf16.mxu0 0
        %700 = vmatpush1.bf16.msra.mxu0 0
        %701 = vmatprep.subr.bf16.mxu0 0
        %702 = vmatpush1.bf16.msra.mxu0 0
        %703 = vmatprep.subr.bf16.mxu0 0
        %704 = vmatpush1.bf16.msra.mxu0 0
        %705 = vmatprep.subr.bf16.mxu0 0
        %706 = vmatpush1.bf16.msra.mxu0 0
        %707 = vmatprep.subr.bf16.mxu0 0
        %708 = vmatpush1.bf16.msra.mxu0 0
        %709 = vmatprep.subr.bf16.mxu0 0
        %710 = vmatpush1.bf16.msra.mxu0 0
        %711 = vmatprep.mubr.bf16.mxu0 0
        %712 = vmatmul.mubr.bf16.gmra.mrb[0].mxu0 %v677
        %v713 = vpop.f32.mrb[0].mxu0
        %v714 = vadd.f32 0.0, %v713
        %v715 = vpop.f32.mrb[0].mxu0
        %v716 = vadd.f32 0.0, %v715
        %v717 = vpop.f32.mrb[0].mxu0
        %v718 = vadd.f32 0.0, %v717
        %v719 = vpop.f32.mrb[0].mxu0
        %v720 = vadd.f32 0.0, %v719
        %721 = vdwg.mxu0
        %722 = vmatprep.subr.bf16.mxu0 %v663
        %723 = vmatpush1.bf16.msra.mxu0 %v662
        %724 = vmatprep.subr.bf16.mxu0 %v667
        %725 = vmatpush1.bf16.msra.mxu0 %v666
        %726 = vmatprep.subr.bf16.mxu0 0
        %727 = vmatpush1.bf16.msra.mxu0 0
        %728 = vmatprep.subr.bf16.mxu0 0
        %729 = vmatpush1.bf16.msra.mxu0 0
        %730 = vmatprep.subr.bf16.mxu0 0
        %731 = vmatpush1.bf16.msra.mxu0 0
        %732 = vmatprep.subr.bf16.mxu0 0
        %733 = vmatpush1.bf16.msra.mxu0 0
        %734 = vmatprep.subr.bf16.mxu0 0
        %735 = vmatpush1.bf16.msra.mxu0 0
        %736 = vmatprep.subr.bf16.mxu0 0
        %737 = vmatpush1.bf16.msra.mxu0 0
        %738 = vmatprep.subr.bf16.mxu0 0
        %739 = vmatpush1.bf16.msra.mxu0 0
        %740 = vmatprep.subr.bf16.mxu0 0
        %741 = vmatpush1.bf16.msra.mxu0 0
        %742 = vmatprep.subr.bf16.mxu0 0
        %743 = vmatpush1.bf16.msra.mxu0 0
        %744 = vmatprep.subr.bf16.mxu0 0
        %745 = vmatpush1.bf16.msra.mxu0 0
        %746 = vmatprep.subr.bf16.mxu0 0
        %747 = vmatpush1.bf16.msra.mxu0 0
        %748 = vmatprep.subr.bf16.mxu0 0
        %749 = vmatpush1.bf16.msra.mxu0 0
        %750 = vmatprep.subr.bf16.mxu0 0
        %751 = vmatpush1.bf16.msra.mxu0 0
        %752 = vmatprep.subr.bf16.mxu0 0
        %753 = vmatpush1.bf16.msra.mxu0 0
        %754 = vmatprep.mubr.bf16.mxu0 0
        %755 = vmatmul.mubr.bf16.gmra.mrb[0].mxu0 %v677
        %v756 = vpop.f32.mrb[0].mxu0
        %v757 = vadd.f32 0.0, %v756
        %v758 = vpop.f32.mrb[0].mxu0
        %v759 = vadd.f32 0.0, %v758
        %v760 = vpop.f32.mrb[0].mxu0
        %v761 = vadd.f32 0.0, %v760
        %v762 = vpop.f32.mrb[0].mxu0
        %v763 = vadd.f32 0.0, %v762
        %764 = vdwg.mxu0
        %v765 = vadd.f32 %v623, %v714
        %v766 = vadd.f32 %v624, %v716
        %v767 = vadd.f32 %v625, %v757
        %v768 = vadd.f32 %v626, %v759
        %v769 = vadd.f32 %v627, %v718
        %v770 = vadd.f32 %v628, %v720
        %v771 = vadd.f32 %v629, %v761
        %v772 = vadd.f32 %v630, %v763
        %s773 = scalar_lea.vmem %s1, 32
        %v774 = vld [vmem:[%s773] sm:$0xf]
        %v775 = vld [vmem:[%s773 + $0x4] sm:$0xf]
        %v778 = vunpack.c.l.b16 %v774
        %v779 = vunpack.c.l.b16 %v775
        %v780 = vpack.c.b16 %v779, %v778
        %781 = vrot.lane.b32.xlu0 %v221, 64
        %v782 = vpop.permute.xlu0 %781
        %783 = vrot.lane.b32.xlu0 %v222, 64
        %v784 = vpop.permute.xlu0 %783
        %785 = vrot.lane.b32.xlu0 %v223, 64
        %v786 = vpop.permute.xlu0 %785
        %787 = vrot.lane.b32.xlu0 %v224, 64
        %v788 = vpop.permute.xlu0 %787
        %789 = vrot.lane.b32.xlu0 %v225, 64
        %v790 = vpop.permute.xlu0 %789
        %791 = vrot.lane.b32.xlu0 %v226, 64
        %v792 = vpop.permute.xlu0 %791
        %793 = vrot.lane.b32.xlu0 %v227, 64
        %v794 = vpop.permute.xlu0 %793
        %795 = vrot.lane.b32.xlu0 %v228, 64
        %v796 = vpop.permute.xlu0 %795
        %797 = vrot.lane.b32.xlu0 %v229, 64
        %v798 = vpop.permute.xlu0 %797
        %799 = vrot.lane.b32.xlu0 %v230, 64
        %v800 = vpop.permute.xlu0 %799
        %vm801 = vcmask 523264
        %v802 = vsel %vm801, %v782, %v784
        %v803 = vsel %vm801, %v784, %v786
        %v804 = vsel %vm801, %v786, %v788
        %v805 = vsel %vm801, %v788, %v790
        %v806 = vsel %vm801, %v792, %v794
        %v807 = vsel %vm801, %v794, %v796
        %v808 = vsel %vm801, %v796, %v798
        %v809 = vsel %vm801, %v798, %v800
        %v819 = vsel %vm268, %v780, 0
        %821 = vmatprep.subr.bf16.mxu0 %v803
        %822 = vmatpush1.bf16.msra.mxu0 %v802
        %823 = vmatprep.subr.bf16.mxu0 %v807
        %824 = vmatpush1.bf16.msra.mxu0 %v806
        %825 = vmatprep.subr.bf16.mxu0 0
        %826 = vmatpush1.bf16.msra.mxu0 0
        %827 = vmatprep.subr.bf16.mxu0 0
        %828 = vmatpush1.bf16.msra.mxu0 0
        %829 = vmatprep.subr.bf16.mxu0 0
        %830 = vmatpush1.bf16.msra.mxu0 0
        %831 = vmatprep.subr.bf16.mxu0 0
        %832 = vmatpush1.bf16.msra.mxu0 0
        %833 = vmatprep.subr.bf16.mxu0 0
        %834 = vmatpush1.bf16.msra.mxu0 0
        %835 = vmatprep.subr.bf16.mxu0 0
        %836 = vmatpush1.bf16.msra.mxu0 0
        %837 = vmatprep.subr.bf16.mxu0 0
        %838 = vmatpush1.bf16.msra.mxu0 0
        %839 = vmatprep.subr.bf16.mxu0 0
        %840 = vmatpush1.bf16.msra.mxu0 0
        %841 = vmatprep.subr.bf16.mxu0 0
        %842 = vmatpush1.bf16.msra.mxu0 0
        %843 = vmatprep.subr.bf16.mxu0 0
        %844 = vmatpush1.bf16.msra.mxu0 0
        %845 = vmatprep.subr.bf16.mxu0 0
        %846 = vmatpush1.bf16.msra.mxu0 0
        %847 = vmatprep.subr.bf16.mxu0 0
        %848 = vmatpush1.bf16.msra.mxu0 0
        %849 = vmatprep.subr.bf16.mxu0 0
        %850 = vmatpush1.bf16.msra.mxu0 0
        %851 = vmatprep.subr.bf16.mxu0 0
        %852 = vmatpush1.bf16.msra.mxu0 0
        %853 = vmatprep.mubr.bf16.mxu0 0
        %854 = vmatmul.mubr.bf16.gmra.mrb[0].mxu0 %v819
        %v855 = vpop.f32.mrb[0].mxu0
        %v856 = vadd.f32 0.0, %v855
        %v857 = vpop.f32.mrb[0].mxu0
        %v858 = vadd.f32 0.0, %v857
        %v859 = vpop.f32.mrb[0].mxu0
        %v860 = vadd.f32 0.0, %v859
        %v861 = vpop.f32.mrb[0].mxu0
        %v862 = vadd.f32 0.0, %v861
        %863 = vdwg.mxu0
        %864 = vmatprep.subr.bf16.mxu0 %v805
        %865 = vmatpush1.bf16.msra.mxu0 %v804
        %866 = vmatprep.subr.bf16.mxu0 %v809
        %867 = vmatpush1.bf16.msra.mxu0 %v808
        %868 = vmatprep.subr.bf16.mxu0 0
        %869 = vmatpush1.bf16.msra.mxu0 0
        %870 = vmatprep.subr.bf16.mxu0 0
        %871 = vmatpush1.bf16.msra.mxu0 0
        %872 = vmatprep.subr.bf16.mxu0 0
        %873 = vmatpush1.bf16.msra.mxu0 0
        %874 = vmatprep.subr.bf16.mxu0 0
        %875 = vmatpush1.bf16.msra.mxu0 0
        %876 = vmatprep.subr.bf16.mxu0 0
        %877 = vmatpush1.bf16.msra.mxu0 0
        %878 = vmatprep.subr.bf16.mxu0 0
        %879 = vmatpush1.bf16.msra.mxu0 0
        %880 = vmatprep.subr.bf16.mxu0 0
        %881 = vmatpush1.bf16.msra.mxu0 0
        %882 = vmatprep.subr.bf16.mxu0 0
        %883 = vmatpush1.bf16.msra.mxu0 0
        %884 = vmatprep.subr.bf16.mxu0 0
        %885 = vmatpush1.bf16.msra.mxu0 0
        %886 = vmatprep.subr.bf16.mxu0 0
        %887 = vmatpush1.bf16.msra.mxu0 0
        %888 = vmatprep.subr.bf16.mxu0 0
        %889 = vmatpush1.bf16.msra.mxu0 0
        %890 = vmatprep.subr.bf16.mxu0 0
        %891 = vmatpush1.bf16.msra.mxu0 0
        %892 = vmatprep.subr.bf16.mxu0 0
        %893 = vmatpush1.bf16.msra.mxu0 0
        %894 = vmatprep.subr.bf16.mxu0 0
        %895 = vmatpush1.bf16.msra.mxu0 0
        %896 = vmatprep.mubr.bf16.mxu0 0
        %897 = vmatmul.mubr.bf16.gmra.mrb[0].mxu0 %v819
        %v898 = vpop.f32.mrb[0].mxu0
        %v899 = vadd.f32 0.0, %v898
        %v900 = vpop.f32.mrb[0].mxu0
        %v901 = vadd.f32 0.0, %v900
        %v902 = vpop.f32.mrb[0].mxu0
        %v903 = vadd.f32 0.0, %v902
        %v904 = vpop.f32.mrb[0].mxu0
        %v905 = vadd.f32 0.0, %v904
        %906 = vdwg.mxu0
        %v907 = vadd.f32 %v765, %v856
        %v908 = vadd.f32 %v766, %v858
        %v909 = vadd.f32 %v767, %v899
        %v910 = vadd.f32 %v768, %v901
        %v911 = vadd.f32 %v769, %v860
        %v912 = vadd.f32 %v770, %v862
        %v913 = vadd.f32 %v771, %v903
        %v914 = vadd.f32 %v772, %v905
        %s915 = scalar_lea.vmem %s1, 40
        %v916 = vld [vmem:[%s915] sm:$0xf]
        %v917 = vld [vmem:[%s915 + $0x4] sm:$0xf]
        %v920 = vunpack.c.l.b16 %v916
        %v921 = vunpack.c.l.b16 %v917
        %v922 = vpack.c.b16 %v921, %v920
        %923 = vrot.lane.b32.xlu0 %v221, 63
        %v924 = vpop.permute.xlu0 %923
        %925 = vrot.lane.b32.xlu0 %v222, 63
        %v926 = vpop.permute.xlu0 %925
        %927 = vrot.lane.b32.xlu0 %v223, 63
        %v928 = vpop.permute.xlu0 %927
        %929 = vrot.lane.b32.xlu0 %v224, 63
        %v930 = vpop.permute.xlu0 %929
        %931 = vrot.lane.b32.xlu0 %v225, 63
        %v932 = vpop.permute.xlu0 %931
        %933 = vrot.lane.b32.xlu0 %v226, 63
        %v934 = vpop.permute.xlu0 %933
        %935 = vrot.lane.b32.xlu0 %v227, 63
        %v936 = vpop.permute.xlu0 %935
        %937 = vrot.lane.b32.xlu0 %v228, 63
        %v938 = vpop.permute.xlu0 %937
        %939 = vrot.lane.b32.xlu0 %v229, 63
        %v940 = vpop.permute.xlu0 %939
        %941 = vrot.lane.b32.xlu0 %v230, 63
        %v942 = vpop.permute.xlu0 %941
        %vm943 = vcmask 515072
        %v944 = vsel %vm943, %v924, %v926
        %v945 = vsel %vm943, %v926, %v928
        %v946 = vsel %vm943, %v928, %v930
        %v947 = vsel %vm943, %v930, %v932
        %v948 = vsel %vm943, %v934, %v936
        %v949 = vsel %vm943, %v936, %v938
        %v950 = vsel %vm943, %v938, %v940
        %v951 = vsel %vm943, %v940, %v942
        %v961 = vsel %vm268, %v922, 0
        %963 = vmatprep.subr.bf16.mxu0 %v945
        %964 = vmatpush1.bf16.msra.mxu0 %v944
        %965 = vmatprep.subr.bf16.mxu0 %v949
        %966 = vmatpush1.bf16.msra.mxu0 %v948
        %967 = vmatprep.subr.bf16.mxu0 0
        %968 = vmatpush1.bf16.msra.mxu0 0
        %969 = vmatprep.subr.bf16.mxu0 0
        %970 = vmatpush1.bf16.msra.mxu0 0
        %971 = vmatprep.subr.bf16.mxu0 0
        %972 = vmatpush1.bf16.msra.mxu0 0
        %973 = vmatprep.subr.bf16.mxu0 0
        %974 = vmatpush1.bf16.msra.mxu0 0
        %975 = vmatprep.subr.bf16.mxu0 0
        %976 = vmatpush1.bf16.msra.mxu0 0
        %977 = vmatprep.subr.bf16.mxu0 0
        %978 = vmatpush1.bf16.msra.mxu0 0
        %979 = vmatprep.subr.bf16.mxu0 0
        %980 = vmatpush1.bf16.msra.mxu0 0
        %981 = vmatprep.subr.bf16.mxu0 0
        %982 = vmatpush1.bf16.msra.mxu0 0
        %983 = vmatprep.subr.bf16.mxu0 0
        %984 = vmatpush1.bf16.msra.mxu0 0
        %985 = vmatprep.subr.bf16.mxu0 0
        %986 = vmatpush1.bf16.msra.mxu0 0
        %987 = vmatprep.subr.bf16.mxu0 0
        %988 = vmatpush1.bf16.msra.mxu0 0
        %989 = vmatprep.subr.bf16.mxu0 0
        %990 = vmatpush1.bf16.msra.mxu0 0
        %991 = vmatprep.subr.bf16.mxu0 0
        %992 = vmatpush1.bf16.msra.mxu0 0
        %993 = vmatprep.subr.bf16.mxu0 0
        %994 = vmatpush1.bf16.msra.mxu0 0
        %995 = vmatprep.mubr.bf16.mxu0 0
        %996 = vmatmul.mubr.bf16.gmra.mrb[0].mxu0 %v961
        %v997 = vpop.f32.mrb[0].mxu0
        %v998 = vadd.f32 0.0, %v997
        %v999 = vpop.f32.mrb[0].mxu0
        %v1000 = vadd.f32 0.0, %v999
        %v1001 = vpop.f32.mrb[0].mxu0
        %v1002 = vadd.f32 0.0, %v1001
        %v1003 = vpop.f32.mrb[0].mxu0
        %v1004 = vadd.f32 0.0, %v1003
        %1005 = vdwg.mxu0
        %1006 = vmatprep.subr.bf16.mxu0 %v947
        %1007 = vmatpush1.bf16.msra.mxu0 %v946
        %1008 = vmatprep.subr.bf16.mxu0 %v951
        %1009 = vmatpush1.bf16.msra.mxu0 %v950
        %1010 = vmatprep.subr.bf16.mxu0 0
        %1011 = vmatpush1.bf16.msra.mxu0 0
        %1012 = vmatprep.subr.bf16.mxu0 0
        %1013 = vmatpush1.bf16.msra.mxu0 0
        %1014 = vmatprep.subr.bf16.mxu0 0
        %1015 = vmatpush1.bf16.msra.mxu0 0
        %1016 = vmatprep.subr.bf16.mxu0 0
        %1017 = vmatpush1.bf16.msra.mxu0 0
        %1018 = vmatprep.subr.bf16.mxu0 0
        %1019 = vmatpush1.bf16.msra.mxu0 0
        %1020 = vmatprep.subr.bf16.mxu0 0
        %1021 = vmatpush1.bf16.msra.mxu0 0
        %1022 = vmatprep.subr.bf16.mxu0 0
        %1023 = vmatpush1.bf16.msra.mxu0 0
        %1024 = vmatprep.subr.bf16.mxu0 0
        %1025 = vmatpush1.bf16.msra.mxu0 0
        %1026 = vmatprep.subr.bf16.mxu0 0
        %1027 = vmatpush1.bf16.msra.mxu0 0
        %1028 = vmatprep.subr.bf16.mxu0 0
        %1029 = vmatpush1.bf16.msra.mxu0 0
        %1030 = vmatprep.subr.bf16.mxu0 0
        %1031 = vmatpush1.bf16.msra.mxu0 0
        %1032 = vmatprep.subr.bf16.mxu0 0
        %1033 = vmatpush1.bf16.msra.mxu0 0
        %1034 = vmatprep.subr.bf16.mxu0 0
        %1035 = vmatpush1.bf16.msra.mxu0 0
        %1036 = vmatprep.subr.bf16.mxu0 0
        %1037 = vmatpush1.bf16.msra.mxu0 0
        %1038 = vmatprep.mubr.bf16.mxu0 0
        %1039 = vmatmul.mubr.bf16.gmra.mrb[0].mxu0 %v961
        %v1040 = vpop.f32.mrb[0].mxu0
        %v1041 = vadd.f32 0.0, %v1040
        %v1042 = vpop.f32.mrb[0].mxu0
        %v1043 = vadd.f32 0.0, %v1042
        %v1044 = vpop.f32.mrb[0].mxu0
        %v1045 = vadd.f32 0.0, %v1044
        %v1046 = vpop.f32.mrb[0].mxu0
        %v1047 = vadd.f32 0.0, %v1046
        %1048 = vdwg.mxu0
        %v1049 = vadd.f32 %v907, %v998
        %v1050 = vadd.f32 %v908, %v1000
        %v1051 = vadd.f32 %v909, %v1041
        %v1052 = vadd.f32 %v910, %v1043
        %v1053 = vadd.f32 %v911, %v1002
        %v1054 = vadd.f32 %v912, %v1004
        %v1055 = vadd.f32 %v913, %v1045
        %v1056 = vadd.f32 %v914, %v1047
        %s1057 = scalar_lea.vmem %s1, 48
        %v1058 = vld [vmem:[%s1057] sm:$0xf]
        %v1059 = vld [vmem:[%s1057 + $0x4] sm:$0xf]
        %v1062 = vunpack.c.l.b16 %v1058
        %v1063 = vunpack.c.l.b16 %v1059
        %v1064 = vpack.c.b16 %v1063, %v1062
        %1065 = vrot.lane.b32.xlu0 %v221, 31
        %v1066 = vpop.permute.xlu0 %1065
        %1067 = vrot.lane.b32.xlu0 %v222, 31
        %v1068 = vpop.permute.xlu0 %1067
        %1069 = vrot.lane.b32.xlu0 %v223, 31
        %v1070 = vpop.permute.xlu0 %1069
        %1071 = vrot.lane.b32.xlu0 %v224, 31
        %v1072 = vpop.permute.xlu0 %1071
        %1073 = vrot.lane.b32.xlu0 %v225, 31
        %v1074 = vpop.permute.xlu0 %1073
        %1075 = vrot.lane.b32.xlu0 %v226, 31
        %v1076 = vpop.permute.xlu0 %1075
        %1077 = vrot.lane.b32.xlu0 %v227, 31
        %v1078 = vpop.permute.xlu0 %1077
        %1079 = vrot.lane.b32.xlu0 %v228, 31
        %v1080 = vpop.permute.xlu0 %1079
        %1081 = vrot.lane.b32.xlu0 %v229, 31
        %v1082 = vpop.permute.xlu0 %1081
        %1083 = vrot.lane.b32.xlu0 %v230, 31
        %v1084 = vpop.permute.xlu0 %1083
        %vm1085 = vcmask 252928
        %v1086 = vsel %vm1085, %v1066, %v1068
        %v1087 = vsel %vm1085, %v1068, %v1070
        %v1088 = vsel %vm1085, %v1070, %v1072
        %v1089 = vsel %vm1085, %v1072, %v1074
        %v1090 = vsel %vm1085, %v1076, %v1078
        %v1091 = vsel %vm1085, %v1078, %v1080
        %v1092 = vsel %vm1085, %v1080, %v1082
        %v1093 = vsel %vm1085, %v1082, %v1084
        %v1103 = vsel %vm268, %v1064, 0
        %1105 = vmatprep.subr.bf16.mxu0 %v1087
        %1106 = vmatpush1.bf16.msra.mxu0 %v1086
        %1107 = vmatprep.subr.bf16.mxu0 %v1091
        %1108 = vmatpush1.bf16.msra.mxu0 %v1090
        %1109 = vmatprep.subr.bf16.mxu0 0
        %1110 = vmatpush1.bf16.msra.mxu0 0
        %1111 = vmatprep.subr.bf16.mxu0 0
        %1112 = vmatpush1.bf16.msra.mxu0 0
        %1113 = vmatprep.subr.bf16.mxu0 0
        %1114 = vmatpush1.bf16.msra.mxu0 0
        %1115 = vmatprep.subr.bf16.mxu0 0
        %1116 = vmatpush1.bf16.msra.mxu0 0
        %1117 = vmatprep.subr.bf16.mxu0 0
        %1118 = vmatpush1.bf16.msra.mxu0 0
        %1119 = vmatprep.subr.bf16.mxu0 0
        %1120 = vmatpush1.bf16.msra.mxu0 0
        %1121 = vmatprep.subr.bf16.mxu0 0
        %1122 = vmatpush1.bf16.msra.mxu0 0
        %1123 = vmatprep.subr.bf16.mxu0 0
        %1124 = vmatpush1.bf16.msra.mxu0 0
        %1125 = vmatprep.subr.bf16.mxu0 0
        %1126 = vmatpush1.bf16.msra.mxu0 0
        %1127 = vmatprep.subr.bf16.mxu0 0
        %1128 = vmatpush1.bf16.msra.mxu0 0
        %1129 = vmatprep.subr.bf16.mxu0 0
        %1130 = vmatpush1.bf16.msra.mxu0 0
        %1131 = vmatprep.subr.bf16.mxu0 0
        %1132 = vmatpush1.bf16.msra.mxu0 0
        %1133 = vmatprep.subr.bf16.mxu0 0
        %1134 = vmatpush1.bf16.msra.mxu0 0
        %1135 = vmatprep.subr.bf16.mxu0 0
        %1136 = vmatpush1.bf16.msra.mxu0 0
        %1137 = vmatprep.mubr.bf16.mxu0 0
        %1138 = vmatmul.mubr.bf16.gmra.mrb[0].mxu0 %v1103
        %v1139 = vpop.f32.mrb[0].mxu0
        %v1140 = vadd.f32 0.0, %v1139
        %v1141 = vpop.f32.mrb[0].mxu0
        %v1142 = vadd.f32 0.0, %v1141
        %v1143 = vpop.f32.mrb[0].mxu0
        %v1144 = vadd.f32 0.0, %v1143
        %v1145 = vpop.f32.mrb[0].mxu0
        %v1146 = vadd.f32 0.0, %v1145
        %1147 = vdwg.mxu0
        %1148 = vmatprep.subr.bf16.mxu0 %v1089
        %1149 = vmatpush1.bf16.msra.mxu0 %v1088
        %1150 = vmatprep.subr.bf16.mxu0 %v1093
        %1151 = vmatpush1.bf16.msra.mxu0 %v1092
        %1152 = vmatprep.subr.bf16.mxu0 0
        %1153 = vmatpush1.bf16.msra.mxu0 0
        %1154 = vmatprep.subr.bf16.mxu0 0
        %1155 = vmatpush1.bf16.msra.mxu0 0
        %1156 = vmatprep.subr.bf16.mxu0 0
        %1157 = vmatpush1.bf16.msra.mxu0 0
        %1158 = vmatprep.subr.bf16.mxu0 0
        %1159 = vmatpush1.bf16.msra.mxu0 0
        %1160 = vmatprep.subr.bf16.mxu0 0
        %1161 = vmatpush1.bf16.msra.mxu0 0
        %1162 = vmatprep.subr.bf16.mxu0 0
        %1163 = vmatpush1.bf16.msra.mxu0 0
        %1164 = vmatprep.subr.bf16.mxu0 0
        %1165 = vmatpush1.bf16.msra.mxu0 0
        %1166 = vmatprep.subr.bf16.mxu0 0
        %1167 = vmatpush1.bf16.msra.mxu0 0
        %1168 = vmatprep.subr.bf16.mxu0 0
        %1169 = vmatpush1.bf16.msra.mxu0 0
        %1170 = vmatprep.subr.bf16.mxu0 0
        %1171 = vmatpush1.bf16.msra.mxu0 0
        %1172 = vmatprep.subr.bf16.mxu0 0
        %1173 = vmatpush1.bf16.msra.mxu0 0
        %1174 = vmatprep.subr.bf16.mxu0 0
        %1175 = vmatpush1.bf16.msra.mxu0 0
        %1176 = vmatprep.subr.bf16.mxu0 0
        %1177 = vmatpush1.bf16.msra.mxu0 0
        %1178 = vmatprep.subr.bf16.mxu0 0
        %1179 = vmatpush1.bf16.msra.mxu0 0
        %1180 = vmatprep.mubr.bf16.mxu0 0
        %1181 = vmatmul.mubr.bf16.gmra.mrb[0].mxu0 %v1103
        %v1182 = vpop.f32.mrb[0].mxu0
        %v1183 = vadd.f32 0.0, %v1182
        %v1184 = vpop.f32.mrb[0].mxu0
        %v1185 = vadd.f32 0.0, %v1184
        %v1186 = vpop.f32.mrb[0].mxu0
        %v1187 = vadd.f32 0.0, %v1186
        %v1188 = vpop.f32.mrb[0].mxu0
        %v1189 = vadd.f32 0.0, %v1188
        %1190 = vdwg.mxu0
        %v1191 = vadd.f32 %v1049, %v1140
        %v1192 = vadd.f32 %v1050, %v1142
        %v1193 = vadd.f32 %v1051, %v1183
        %v1194 = vadd.f32 %v1052, %v1185
        %v1195 = vadd.f32 %v1053, %v1144
        %v1196 = vadd.f32 %v1054, %v1146
        %v1197 = vadd.f32 %v1055, %v1187
        %v1198 = vadd.f32 %v1056, %v1189
        %s1199 = scalar_lea.vmem %s1, 56
        %v1200 = vld [vmem:[%s1199] sm:$0xf]
        %v1201 = vld [vmem:[%s1199 + $0x4] sm:$0xf]
        %v1204 = vunpack.c.l.b16 %v1200
        %v1205 = vunpack.c.l.b16 %v1201
        %v1206 = vpack.c.b16 %v1205, %v1204
        %1207 = vrot.lane.b32.xlu0 %v221, 30
        %v1208 = vpop.permute.xlu0 %1207
        %1209 = vrot.lane.b32.xlu0 %v222, 30
        %v1210 = vpop.permute.xlu0 %1209
        %1211 = vrot.lane.b32.xlu0 %v223, 30
        %v1212 = vpop.permute.xlu0 %1211
        %1213 = vrot.lane.b32.xlu0 %v224, 30
        %v1214 = vpop.permute.xlu0 %1213
        %1215 = vrot.lane.b32.xlu0 %v225, 30
        %v1216 = vpop.permute.xlu0 %1215
        %1217 = vrot.lane.b32.xlu0 %v226, 30
        %v1218 = vpop.permute.xlu0 %1217
        %1219 = vrot.lane.b32.xlu0 %v227, 30
        %v1220 = vpop.permute.xlu0 %1219
        %1221 = vrot.lane.b32.xlu0 %v228, 30
        %v1222 = vpop.permute.xlu0 %1221
        %1223 = vrot.lane.b32.xlu0 %v229, 30
        %v1224 = vpop.permute.xlu0 %1223
        %1225 = vrot.lane.b32.xlu0 %v230, 30
        %v1226 = vpop.permute.xlu0 %1225
        %vm1227 = vcmask 244736
        %v1228 = vsel %vm1227, %v1208, %v1210
        %v1229 = vsel %vm1227, %v1210, %v1212
        %v1230 = vsel %vm1227, %v1212, %v1214
        %v1231 = vsel %vm1227, %v1214, %v1216
        %v1232 = vsel %vm1227, %v1218, %v1220
        %v1233 = vsel %vm1227, %v1220, %v1222
        %v1234 = vsel %vm1227, %v1222, %v1224
        %v1235 = vsel %vm1227, %v1224, %v1226
        %v1245 = vsel %vm268, %v1206, 0
        %1247 = vmatprep.subr.bf16.mxu0 %v1229
        %1248 = vmatpush1.bf16.msra.mxu0 %v1228
        %1249 = vmatprep.subr.bf16.mxu0 %v1233
        %1250 = vmatpush1.bf16.msra.mxu0 %v1232
        %1251 = vmatprep.subr.bf16.mxu0 0
        %1252 = vmatpush1.bf16.msra.mxu0 0
        %1253 = vmatprep.subr.bf16.mxu0 0
        %1254 = vmatpush1.bf16.msra.mxu0 0
        %1255 = vmatprep.subr.bf16.mxu0 0
        %1256 = vmatpush1.bf16.msra.mxu0 0
        %1257 = vmatprep.subr.bf16.mxu0 0
        %1258 = vmatpush1.bf16.msra.mxu0 0
        %1259 = vmatprep.subr.bf16.mxu0 0
        %1260 = vmatpush1.bf16.msra.mxu0 0
        %1261 = vmatprep.subr.bf16.mxu0 0
        %1262 = vmatpush1.bf16.msra.mxu0 0
        %1263 = vmatprep.subr.bf16.mxu0 0
        %1264 = vmatpush1.bf16.msra.mxu0 0
        %1265 = vmatprep.subr.bf16.mxu0 0
        %1266 = vmatpush1.bf16.msra.mxu0 0
        %1267 = vmatprep.subr.bf16.mxu0 0
        %1268 = vmatpush1.bf16.msra.mxu0 0
        %1269 = vmatprep.subr.bf16.mxu0 0
        %1270 = vmatpush1.bf16.msra.mxu0 0
        %1271 = vmatprep.subr.bf16.mxu0 0
        %1272 = vmatpush1.bf16.msra.mxu0 0
        %1273 = vmatprep.subr.bf16.mxu0 0
        %1274 = vmatpush1.bf16.msra.mxu0 0
        %1275 = vmatprep.subr.bf16.mxu0 0
        %1276 = vmatpush1.bf16.msra.mxu0 0
        %1277 = vmatprep.subr.bf16.mxu0 0
        %1278 = vmatpush1.bf16.msra.mxu0 0
        %1279 = vmatprep.mubr.bf16.mxu0 0
        %1280 = vmatmul.mubr.bf16.gmra.mrb[0].mxu0 %v1245
        %v1281 = vpop.f32.mrb[0].mxu0
        %v1282 = vadd.f32 0.0, %v1281
        %v1283 = vpop.f32.mrb[0].mxu0
        %v1284 = vadd.f32 0.0, %v1283
        %v1285 = vpop.f32.mrb[0].mxu0
        %v1286 = vadd.f32 0.0, %v1285
        %v1287 = vpop.f32.mrb[0].mxu0
        %v1288 = vadd.f32 0.0, %v1287
        %1289 = vdwg.mxu0
        %1290 = vmatprep.subr.bf16.mxu0 %v1231
        %1291 = vmatpush1.bf16.msra.mxu0 %v1230
        %1292 = vmatprep.subr.bf16.mxu0 %v1235
        %1293 = vmatpush1.bf16.msra.mxu0 %v1234
        %1294 = vmatprep.subr.bf16.mxu0 0
        %1295 = vmatpush1.bf16.msra.mxu0 0
        %1296 = vmatprep.subr.bf16.mxu0 0
        %1297 = vmatpush1.bf16.msra.mxu0 0
        %1298 = vmatprep.subr.bf16.mxu0 0
        %1299 = vmatpush1.bf16.msra.mxu0 0
        %1300 = vmatprep.subr.bf16.mxu0 0
        %1301 = vmatpush1.bf16.msra.mxu0 0
        %1302 = vmatprep.subr.bf16.mxu0 0
        %1303 = vmatpush1.bf16.msra.mxu0 0
        %1304 = vmatprep.subr.bf16.mxu0 0
        %1305 = vmatpush1.bf16.msra.mxu0 0
        %1306 = vmatprep.subr.bf16.mxu0 0
        %1307 = vmatpush1.bf16.msra.mxu0 0
        %1308 = vmatprep.subr.bf16.mxu0 0
        %1309 = vmatpush1.bf16.msra.mxu0 0
        %1310 = vmatprep.subr.bf16.mxu0 0
        %1311 = vmatpush1.bf16.msra.mxu0 0
        %1312 = vmatprep.subr.bf16.mxu0 0
        %1313 = vmatpush1.bf16.msra.mxu0 0
        %1314 = vmatprep.subr.bf16.mxu0 0
        %1315 = vmatpush1.bf16.msra.mxu0 0
        %1316 = vmatprep.subr.bf16.mxu0 0
        %1317 = vmatpush1.bf16.msra.mxu0 0
        %1318 = vmatprep.subr.bf16.mxu0 0
        %1319 = vmatpush1.bf16.msra.mxu0 0
        %1320 = vmatprep.subr.bf16.mxu0 0
        %1321 = vmatpush1.bf16.msra.mxu0 0
        %1322 = vmatprep.mubr.bf16.mxu0 0
        %1323 = vmatmul.mubr.bf16.gmra.mrb[0].mxu0 %v1245
        %v1324 = vpop.f32.mrb[0].mxu0
        %v1325 = vadd.f32 0.0, %v1324
        %v1326 = vpop.f32.mrb[0].mxu0
        %v1327 = vadd.f32 0.0, %v1326
        %v1328 = vpop.f32.mrb[0].mxu0
        %v1329 = vadd.f32 0.0, %v1328
        %v1330 = vpop.f32.mrb[0].mxu0
        %v1331 = vadd.f32 0.0, %v1330
        %1332 = vdwg.mxu0
        %v1333 = vadd.f32 %v1191, %v1282
        %v1334 = vadd.f32 %v1192, %v1284
        %v1335 = vadd.f32 %v1193, %v1325
        %v1336 = vadd.f32 %v1194, %v1327
        %v1337 = vadd.f32 %v1195, %v1286
        %v1338 = vadd.f32 %v1196, %v1288
        %v1339 = vadd.f32 %v1197, %v1329
        %v1340 = vadd.f32 %v1198, %v1331
        %s1341 = scalar_lea.vmem %s1, 64
        %v1342 = vld [vmem:[%s1341] sm:$0xf]
        %v1343 = vld [vmem:[%s1341 + $0x4] sm:$0xf]
        %v1346 = vunpack.c.l.b16 %v1342
        %v1347 = vunpack.c.l.b16 %v1343
        %v1348 = vpack.c.b16 %v1347, %v1346
        %1349 = vrot.lane.b32.xlu0 %v221, 29
        %v1350 = vpop.permute.xlu0 %1349
        %1351 = vrot.lane.b32.xlu0 %v222, 29
        %v1352 = vpop.permute.xlu0 %1351
        %1353 = vrot.lane.b32.xlu0 %v223, 29
        %v1354 = vpop.permute.xlu0 %1353
        %1355 = vrot.lane.b32.xlu0 %v224, 29
        %v1356 = vpop.permute.xlu0 %1355
        %1357 = vrot.lane.b32.xlu0 %v225, 29
        %v1358 = vpop.permute.xlu0 %1357
        %1359 = vrot.lane.b32.xlu0 %v226, 29
        %v1360 = vpop.permute.xlu0 %1359
        %1361 = vrot.lane.b32.xlu0 %v227, 29
        %v1362 = vpop.permute.xlu0 %1361
        %1363 = vrot.lane.b32.xlu0 %v228, 29
        %v1364 = vpop.permute.xlu0 %1363
        %1365 = vrot.lane.b32.xlu0 %v229, 29
        %v1366 = vpop.permute.xlu0 %1365
        %1367 = vrot.lane.b32.xlu0 %v230, 29
        %v1368 = vpop.permute.xlu0 %1367
        %vm1369 = vcmask 236544
        %v1370 = vsel %vm1369, %v1350, %v1352
        %v1371 = vsel %vm1369, %v1352, %v1354
        %v1372 = vsel %vm1369, %v1354, %v1356
        %v1373 = vsel %vm1369, %v1356, %v1358
        %v1374 = vsel %vm1369, %v1360, %v1362
        %v1375 = vsel %vm1369, %v1362, %v1364
        %v1376 = vsel %vm1369, %v1364, %v1366
        %v1377 = vsel %vm1369, %v1366, %v1368
        %v1387 = vsel %vm268, %v1348, 0
        %1389 = vmatprep.subr.bf16.mxu0 %v1371
        %1390 = vmatpush1.bf16.msra.mxu0 %v1370
        %1391 = vmatprep.subr.bf16.mxu0 %v1375
        %1392 = vmatpush1.bf16.msra.mxu0 %v1374
        %1393 = vmatprep.subr.bf16.mxu0 0
        %1394 = vmatpush1.bf16.msra.mxu0 0
        %1395 = vmatprep.subr.bf16.mxu0 0
        %1396 = vmatpush1.bf16.msra.mxu0 0
        %1397 = vmatprep.subr.bf16.mxu0 0
        %1398 = vmatpush1.bf16.msra.mxu0 0
        %1399 = vmatprep.subr.bf16.mxu0 0
        %1400 = vmatpush1.bf16.msra.mxu0 0
        %1401 = vmatprep.subr.bf16.mxu0 0
        %1402 = vmatpush1.bf16.msra.mxu0 0
        %1403 = vmatprep.subr.bf16.mxu0 0
        %1404 = vmatpush1.bf16.msra.mxu0 0
        %1405 = vmatprep.subr.bf16.mxu0 0
        %1406 = vmatpush1.bf16.msra.mxu0 0
        %1407 = vmatprep.subr.bf16.mxu0 0
        %1408 = vmatpush1.bf16.msra.mxu0 0
        %1409 = vmatprep.subr.bf16.mxu0 0
        %1410 = vmatpush1.bf16.msra.mxu0 0
        %1411 = vmatprep.subr.bf16.mxu0 0
        %1412 = vmatpush1.bf16.msra.mxu0 0
        %1413 = vmatprep.subr.bf16.mxu0 0
        %1414 = vmatpush1.bf16.msra.mxu0 0
        %1415 = vmatprep.subr.bf16.mxu0 0
        %1416 = vmatpush1.bf16.msra.mxu0 0
        %1417 = vmatprep.subr.bf16.mxu0 0
        %1418 = vmatpush1.bf16.msra.mxu0 0
        %1419 = vmatprep.subr.bf16.mxu0 0
        %1420 = vmatpush1.bf16.msra.mxu0 0
        %1421 = vmatprep.mubr.bf16.mxu0 0
        %1422 = vmatmul.mubr.bf16.gmra.mrb[0].mxu0 %v1387
        %v1423 = vpop.f32.mrb[0].mxu0
        %v1424 = vadd.f32 0.0, %v1423
        %v1425 = vpop.f32.mrb[0].mxu0
        %v1426 = vadd.f32 0.0, %v1425
        %v1427 = vpop.f32.mrb[0].mxu0
        %v1428 = vadd.f32 0.0, %v1427
        %v1429 = vpop.f32.mrb[0].mxu0
        %v1430 = vadd.f32 0.0, %v1429
        %1431 = vdwg.mxu0
        %1432 = vmatprep.subr.bf16.mxu0 %v1373
        %1433 = vmatpush1.bf16.msra.mxu0 %v1372
        %1434 = vmatprep.subr.bf16.mxu0 %v1377
        %1435 = vmatpush1.bf16.msra.mxu0 %v1376
        %1436 = vmatprep.subr.bf16.mxu0 0
        %1437 = vmatpush1.bf16.msra.mxu0 0
        %1438 = vmatprep.subr.bf16.mxu0 0
        %1439 = vmatpush1.bf16.msra.mxu0 0
        %1440 = vmatprep.subr.bf16.mxu0 0
        %1441 = vmatpush1.bf16.msra.mxu0 0
        %1442 = vmatprep.subr.bf16.mxu0 0
        %1443 = vmatpush1.bf16.msra.mxu0 0
        %1444 = vmatprep.subr.bf16.mxu0 0
        %1445 = vmatpush1.bf16.msra.mxu0 0
        %1446 = vmatprep.subr.bf16.mxu0 0
        %1447 = vmatpush1.bf16.msra.mxu0 0
        %1448 = vmatprep.subr.bf16.mxu0 0
        %1449 = vmatpush1.bf16.msra.mxu0 0
        %1450 = vmatprep.subr.bf16.mxu0 0
        %1451 = vmatpush1.bf16.msra.mxu0 0
        %1452 = vmatprep.subr.bf16.mxu0 0
        %1453 = vmatpush1.bf16.msra.mxu0 0
        %1454 = vmatprep.subr.bf16.mxu0 0
        %1455 = vmatpush1.bf16.msra.mxu0 0
        %1456 = vmatprep.subr.bf16.mxu0 0
        %1457 = vmatpush1.bf16.msra.mxu0 0
        %1458 = vmatprep.subr.bf16.mxu0 0
        %1459 = vmatpush1.bf16.msra.mxu0 0
        %1460 = vmatprep.subr.bf16.mxu0 0
        %1461 = vmatpush1.bf16.msra.mxu0 0
        %1462 = vmatprep.subr.bf16.mxu0 0
        %1463 = vmatpush1.bf16.msra.mxu0 0
        %1464 = vmatprep.mubr.bf16.mxu0 0
        %1465 = vmatmul.mubr.bf16.gmra.mrb[0].mxu0 %v1387
        %v1466 = vpop.f32.mrb[0].mxu0
        %v1467 = vadd.f32 0.0, %v1466
        %v1468 = vpop.f32.mrb[0].mxu0
        %v1469 = vadd.f32 0.0, %v1468
        %v1470 = vpop.f32.mrb[0].mxu0
        %v1471 = vadd.f32 0.0, %v1470
        %v1472 = vpop.f32.mrb[0].mxu0
        %v1473 = vadd.f32 0.0, %v1472
        %1474 = vdwg.mxu0
        %v1475 = vadd.f32 %v1333, %v1424
        %v1476 = vadd.f32 %v1334, %v1426
        %v1477 = vadd.f32 %v1335, %v1467
        %v1478 = vadd.f32 %v1336, %v1469
        %v1479 = vadd.f32 %v1337, %v1428
        %v1480 = vadd.f32 %v1338, %v1430
        %v1481 = vadd.f32 %v1339, %v1471
        %v1482 = vadd.f32 %v1340, %v1473
        %v1483 = vld [vmem:[%s2] sm:$0xff]
        %v1484 = vld [vmem:[%s2 + $0x8] sm:$0xff]
        %1486 = vset.pattern.permute.xlu0 0
        %1487 = vperm.xlu0 %1486, %v1483
        %v1488 = vpop.permute.xlu0 %1487
        %1491 = vset.pattern.permute.xlu0 0
        %1492 = vperm.xlu0 %1491, %v1484
        %v1493 = vpop.permute.xlu0 %1492
        %v1495 = vadd.f32 %v1475, %v1488
        %v1496 = vadd.f32 %v1476, %v1488
        %v1497 = vadd.f32 %v1477, %v1488
        %v1498 = vadd.f32 %v1478, %v1488
        %v1499 = vadd.f32 %v1479, %v1493
        %v1500 = vadd.f32 %v1480, %v1493
        %v1501 = vadd.f32 %v1481, %v1493
        %v1502 = vadd.f32 %v1482, %v1493
        %v1503 = vmax.f32 %v1495, 0.0
        %v1504 = vmax.f32 %v1496, 0.0
        %v1505 = vmax.f32 %v1497, 0.0
        %v1506 = vmax.f32 %v1498, 0.0
        %v1507 = vmax.f32 %v1499, 0.0
        %v1508 = vmax.f32 %v1500, 0.0
        %v1509 = vmax.f32 %v1501, 0.0
        %v1510 = vmax.f32 %v1502, 0.0
        %v1511 = vpack.c.bf16 %v1507, %v1503
        %v1512 = vpack.c.bf16 %v1508, %v1504
        %v1513 = vpack.c.bf16 %v1509, %v1505
        %v1514 = vpack.c.bf16 %v1510, %v1506
        %v1519 = vunpack.c.l.b16 %v1511
        %v1520 = vunpack.c.l.b16 %v1512
        %v1521 = vunpack.c.l.b16 %v1513
        %v1522 = vunpack.c.l.b16 %v1514
        %v1523 = vunpack.c.h.b16 %v1511
        %v1524 = vunpack.c.h.b16 %v1512
        %v1525 = vunpack.c.h.b16 %v1513
        %v1526 = vunpack.c.h.b16 %v1514
        %v1527 = vpack.c.b16 %v1520, %v1519
        %v1528 = vpack.c.b16 %v1522, %v1521
        %v1529 = vpack.c.b16 %v1524, %v1523
        %v1530 = vpack.c.b16 %v1526, %v1525
        %1535 = vst [vmem:[%s159] sm:$0xff] %v1527
        %1536 = vst [vmem:[%s159 + $0x8] sm:$0xff] %v1528
        %1537 = vst [vmem:[%s159 + $0x10] sm:$0xff] %v1529
        %1538 = vst [vmem:[%s159 + $0x18] sm:$0xff] %v1530
        %s1539 = sand.u32 %s90, 1
        %s1540 = sand.u32 %s90, 1
        %s1541 = smul.addr %s1540, 32
        %s1542 = scalar_lea.vmem [#allocation2], %s1541
        // Predicated region
        $region33: #{rsu4_apply_nchw.15} parent=31 // pred_check
          %p1543 = pneg %p100
        $region34: #{rsu4_apply_nchw.15} parent=31 // pred_check_branch
          %1545 = sbr.rel (%p1543) target = $region36
        $region35: #{rsu4_apply_nchw.15} parent=31 // pred_region
          %s1546 = smul.u32 4, %s14
          %s1547 = smul.addr %s1546, 4
          %s1548 = scalar_lea.vmem %s3, %s1547
          // Predicated region
          $region37: #{rsu4_apply_nchw.15} parent=35 // pred_check
            _
          $region38: #{rsu4_apply_nchw.15} parent=35 // pred_check_branch
            %1550 = sbr.rel (0) target = $region40
          $region39: #{rsu4_apply_nchw.15} parent=35 // pred_region
            // Predicated region
            $region41: #{rsu4_apply_nchw.15} parent=39 // pred_check
              _
            $region42: #{rsu4_apply_nchw.15} parent=39 // pred_check_branch
              %1552 = sbr.rel (0) target = $region44
            $region43: #{rsu4_apply_nchw.15} parent=39 // pred_region
              loop: start=0, step=1, limit=1
              $region45: #{rsu4_apply_nchw.15} parent=43 // loop_pre_header
                _
              $region46: #{rsu4_apply_nchw.15} parent=43 // loop_header
                %s1554 = sphi 0, %s1558
                %p1555 = scmp.ge.s32.totalorder %s1554, 1
                %s1559 = sphi %s1542, %s1542
                %s1560 = sphi %s1548, %s1548
              $region47: #{rsu4_apply_nchw.15} parent=43 // loop_header_branch
                %1557 = sbr.rel (%p1555) target = $region51
              $region48: #{rsu4_apply_nchw.15} parent=43 // loop_body
                %v1561 = vld [vmem:[%s1559] sm:$0xff]
                %1562 = vst [vmem:[%s1560] sm:$0xff] %v1561
                %v1563 = vld [vmem:[%s1559 + $0x8] sm:$0xff]
                %1564 = vst [vmem:[%s1560 + $0x8] sm:$0xff] %v1563
                %v1565 = vld [vmem:[%s1559 + $0x10] sm:$0xff]
                %1566 = vst [vmem:[%s1560 + $0x50] sm:$0xff] %v1565
                %v1567 = vld [vmem:[%s1559 + $0x18] sm:$0xff]
                %1568 = vst [vmem:[%s1560 + $0x58] sm:$0xff] %v1567
              $region49: #{rsu4_apply_nchw.15} parent=43 // loop_footer
                %s1558 = sadd.s32 1, %s1554
              $region50: #{rsu4_apply_nchw.15} parent=43 // loop_footer_branch
                %1553 = sbr.rel target = $region46
              $region51: #{rsu4_apply_nchw.15} parent=43 // loop_exit
                _
            $region44: #{rsu4_apply_nchw.15} parent=39 // pred_fallthru
              _
            // Predicated region
            $region52: #{rsu4_apply_nchw.15} parent=39 // pred_check
              _
            $region53: #{rsu4_apply_nchw.15} parent=39 // pred_check_branch
              %1570 = sbr.rel target = $region55
            $region54: #{rsu4_apply_nchw.15} parent=39 // pred_region
              _
            $region55: #{rsu4_apply_nchw.15} parent=39 // pred_fallthru
              _
          $region40: #{rsu4_apply_nchw.15} parent=35 // pred_fallthru
            _
          %1571 = vnop
        $region36: #{rsu4_apply_nchw.15} parent=31 // pred_fallthru
          _
      $region32: #{rsu4_apply_nchw.15} parent=5 // pred_fallthru
        _
      %p1572 = scmp.le.s32.totalorder 2, %s9
      // Predicated region
      $region56: #{rsu4_apply_nchw.15} parent=5 // pred_check
        %p1573 = pneg %p1572
      $region57: #{rsu4_apply_nchw.15} parent=5 // pred_check_branch
        %1575 = sbr.rel (%p1573) target = $region59
      $region58: #{rsu4_apply_nchw.15} parent=5 // pred_region
        %s1576 = ssub.s32 %s9, 2
        // Predicated region
        $region60: #{rsu4_apply_nchw.15} parent=58 // pred_check
          %p1577 = pneg %p106
        $region61: #{rsu4_apply_nchw.15} parent=58 // pred_check_branch
          %1579 = sbr.rel (%p1577) target = $region63
        $region62: #{rsu4_apply_nchw.15} parent=58 // pred_region
          %s1580 = sand.u32 %s91, 1
          %s1581 = sand.u32 %s91, 1
          %s1582 = smul.addr %s1581, 32
          %s1583 = scalar_lea.vmem [#allocation2], %s1582
        $region63: #{rsu4_apply_nchw.15} parent=58 // pred_fallthru
          _
      $region59: #{rsu4_apply_nchw.15} parent=5 // pred_fallthru
        _
    $region6: #{rsu4_apply_nchw.15} parent=1 // loop_footer
      %s13 = sadd.s32 1, %s9
    $region7: #{rsu4_apply_nchw.15} parent=1 // loop_footer_branch
      %8 = sbr.rel target = $region3
    $region8: #{rsu4_apply_nchw.15} parent=1 // loop_exit
      _

</llo_original>
